<compile_context>
chip_gen: v7x
topology: tpu7x:2x2x1
jax: 0.10.0
libtpu: 0.0.40
codegen_flags: <defaults>
</compile_context>

<pallas_src>
import functools

import jax
import jax.numpy as jnp
from jax.experimental import pallas as pl
from jax.experimental.pallas import tpu as pltpu


# ----------------------------- model config -----------------------------

class Config:
    image_size = 32          # scaled-down analog of CLIP's 224 resize target
    patch_size = 8           # scaled-down analog of ViT-B/32 patch size
    width = 64               # transformer width
    layers = 2               # transformer depth
    heads = 4                # attention heads (head_dim = 16)
    visual_output_dim = 32   # clip_model.visual.output_dim
    out_dim = 16             # CLIPEncoder.out_dim (!= visual_output_dim -> fc is Linear)


CLIP_MEAN = jnp.array([0.48145466, 0.4578275, 0.40821073], jnp.float32)
CLIP_STD = jnp.array([0.26862954, 0.26130258, 0.27577711], jnp.float32)


# ----------------------------- Pallas kernel -----------------------------

def _layernorm(x, g, b):
    mu = jnp.mean(x, axis=-1, keepdims=True)
    var = jnp.mean(jnp.square(x - mu), axis=-1, keepdims=True)
    return (x - mu) * jax.lax.rsqrt(var + 1e-5) * g + b


def _encoder_kernel(
        # batch-step inputs / global constants
        patches_ref, embed_ref, mask_ref, sel_ref, lnpre_g_ref, lnpre_b_ref, convw_ref,
        # per-layer (streamed via the "arbitrary" grid axis)
        l1g_ref, l1b_ref, wq_ref, bq_ref, wk_ref, bk_ref, wv_ref, bv_ref, wo_ref, bo_ref,
        l2g_ref, l2b_ref, wfc_ref, bfc_ref, wpr_ref, bpr_ref,
        # tail constants
        lnpost_g_ref, lnpost_b_ref, proj_ref, fcb_ref,
        # output + persistent token-slab scratch
        out_ref, x_ref,
        *, nh, L):
    """One transformer layer for one batch-step's [M, W] token slab."""
    l = pl.program_id(1)

    # ---- layer 0 only: patch embed (Normalize folded) + cls/pos + ln_pre ----
    @pl.when(l == 0)
    def _init():
        x0 = (jnp.dot(patches_ref[...], convw_ref[...],
                      preferred_element_type=jnp.float32) + embed_ref[...])
        x_ref[...] = _layernorm(x0, lnpre_g_ref[...], lnpre_b_ref[...])

    x = x_ref[...]                                   # [M, W] f32 residual stream
    mask = mask_ref[...]                             # [M, M] block-diagonal 0/-1e30

    # ---- x = x + out_proj(MHA(ln_1(x))) ----
    h = _layernorm(x, l1g_ref[...], l1b_ref[...])
    hb = h.astype(jnp.bfloat16)
    attn = None
    for hd in range(nh):                             # per-head weights are ref loads
        q = jnp.dot(hb, wq_ref[hd], preferred_element_type=jnp.float32) + bq_ref[hd]
        k = jnp.dot(hb, wk_ref[hd], preferred_element_type=jnp.float32) + bk_ref[hd]
        v = jnp.dot(hb, wv_ref[hd], preferred_element_type=jnp.float32) + bv_ref[hd]
        # contract on the last axis of both -> no explicit k.T / XLU transpose;
        # 1/sqrt(dh) already folded into wq/bq at prepare time.
        s = jax.lax.dot_general(q.astype(jnp.bfloat16), k.astype(jnp.bfloat16),
                                (((1,), (1,)), ((), ())),
                                preferred_element_type=jnp.float32) + mask
        s = s - jnp.max(s, axis=-1, keepdims=True)
        p = jnp.exp(s)
        p = p / jnp.sum(p, axis=-1, keepdims=True)   # exact divide (parity w/ torch)
        o = jnp.dot(p.astype(jnp.bfloat16), v.astype(jnp.bfloat16),
                    preferred_element_type=jnp.float32)
        ho = jnp.dot(o.astype(jnp.bfloat16), wo_ref[hd],
                     preferred_element_type=jnp.float32)
        attn = ho if attn is None else attn + ho     # init with head 0, no zero-fill
    x = x + attn + bo_ref[...]

    # ---- x = x + MLP(ln_2(x)) ----
    h2 = _layernorm(x, l2g_ref[...], l2b_ref[...])
    h2 = (jnp.dot(h2.astype(jnp.bfloat16), wfc_ref[...],
                  preferred_element_type=jnp.float32) + bfc_ref[...])
    h2 = h2 * jax.nn.sigmoid(1.702 * h2)             # QuickGELU (f32)
    x = x + (jnp.dot(h2.astype(jnp.bfloat16), wpr_ref[...],
                     preferred_element_type=jnp.float32) + bpr_ref[...])
    x_ref[...] = x

    # ---- last layer only: gather CLS rows, ln_post, fused (proj @ fc) ----
    @pl.when(l == L - 1)
    def _tail():
        pooled = jnp.dot(sel_ref[...], x.astype(jnp.bfloat16),
                         preferred_element_type=jnp.float32)          # [Bt, W]
        pooled = _layernorm(pooled, lnpost_g_ref[...], lnpost_b_ref[...])
        out_ref[...] = (jnp.dot(pooled.astype(jnp.bfloat16), proj_ref[...],
                                preferred_element_type=jnp.float32)
                        + fcb_ref[...])                               # [Bt, out_dim]


# ----------------------------- parameters -----------------------------

def init_params(key, cfg):
    keys = iter(jax.random.split(key, 8 + 8 * cfg.layers))
    w = cfg.width
    scale = w ** -0.5
    grid = cfg.image_size // cfg.patch_size
    p = {
        "conv1_w": 0.02 * jax.random.normal(next(keys), (w, 3, cfg.patch_size, cfg.patch_size)),
        "class_embedding": scale * jax.random.normal(next(keys), (w,)),
        "positional_embedding": scale * jax.random.normal(next(keys), (grid * grid + 1, w)),
        "ln_pre": (jnp.ones((w,)), jnp.zeros((w,))),
        "ln_post": (jnp.ones((w,)), jnp.zeros((w,))),
        "visual_proj": scale * jax.random.normal(next(keys), (w, cfg.visual_output_dim)),
        # fc = nn.Linear(visual_output_dim, out_dim); torch convention weight [out, in]
        "fc_w": 0.02 * jax.random.normal(next(keys), (cfg.out_dim, cfg.visual_output_dim)),
        "fc_b": jnp.zeros((cfg.out_dim,)),
        "blocks": [],
    }
    for _ in range(cfg.layers):
        blk = {
            "ln_1": (jnp.ones((w,)), jnp.zeros((w,))),
            "attn_in_w": 0.02 * jax.random.normal(next(keys), (3 * w, w)),   # in_proj_weight [3W, W]
            "attn_in_b": jnp.zeros((3 * w,)),
            "attn_out_w": 0.02 * jax.random.normal(next(keys), (w, w)),      # out_proj.weight [W, W]
            "attn_out_b": jnp.zeros((w,)),
            "ln_2": (jnp.ones((w,)), jnp.zeros((w,))),
            "mlp_fc_w": 0.02 * jax.random.normal(next(keys), (4 * w, w)),
            "mlp_fc_b": jnp.zeros((4 * w,)),
            "mlp_proj_w": 0.02 * jax.random.normal(next(keys), (w, 4 * w)),
            "mlp_proj_b": jnp.zeros((w,)),
        }
        p["blocks"].append(blk)
    return p


def prepare_params(params, cfg, batch_size):
    """One-time prep: fold Normalize into conv1, fold cls+conv-bias into the pos
    table, split attention weights per head (scale folded into wq/bq), fuse
    visual_proj @ fc, stack per-layer weights to [L, ...] for streaming, build
    the block-diagonal attention mask / CLS selection matrix, cast matmul
    weights to bf16."""
    ps, W = cfg.patch_size, cfg.width
    nh = cfg.heads
    dh = W // nh
    C = 3
    K = C * ps * ps
    grid_n = cfg.image_size // ps
    S = grid_n * grid_n + 1
    S_pad = ((S + 7) // 8) * 8                       # 17 -> 24 (sublane aligned)

    # Batching geometry: fill the MXU row dim with Bt samples per grid step,
    # but keep >= 2 "parallel" grid steps when B > 1 so v7x's 2 TCs get work.
    B = batch_size
    Bt = min(max(1, 128 // S_pad), -(-B // 2)) if B > 1 else 1
    nb = -(-B // Bt)
    M = Bt * S_pad

    f32, bf16 = jnp.float32, jnp.bfloat16

    # ---- fold preprocess Normalize into conv1 (conv1 itself has no bias) ----
    mean_row = jnp.repeat(CLIP_MEAN, ps * ps)                    # [K], channel-major
    invstd_row = jnp.repeat(1.0 / CLIP_STD, ps * ps)
    conv_w2d = params["conv1_w"].reshape(W, K).T                 # [K, W]
    conv_w_fold = (invstd_row[:, None] * conv_w2d).astype(bf16)
    conv_b_fold = -(mean_row * invstd_row)[None, :] @ conv_w2d   # [1, W]

    # ---- cls + pos + folded conv bias as one additive table, tiled Bt times ----
    pos = params["positional_embedding"]
    embed_row = jnp.zeros((S_pad, W), f32)
    embed_row = embed_row.at[1:S].set(pos[1:] + conv_b_fold)
    embed_row = embed_row.at[0].set(pos[0] + params["class_embedding"])
    embed_add = jnp.tile(embed_row, (Bt, 1))                     # [M, W]

    # ---- block-diagonal attention mask: same sample AND real (non-pad) key ----
    samp = jnp.arange(M) // S_pad
    real = (jnp.arange(M) % S_pad) < S
    ok = (samp[:, None] == samp[None, :]) & real[None, :]
    blockmask = jnp.where(ok, 0.0, -1e30).astype(f32)            # [M, M]

    # ---- CLS-row gather expressed as a tiny selection matmul ----
    sel = (jnp.zeros((Bt, M), f32)
           .at[jnp.arange(Bt), jnp.arange(Bt) * S_pad].set(1.0).astype(bf16))

    scale = 1.0 / (dh ** 0.5)

    def per_head_in(w_slice, b_slice, sc):
        wh = (w_slice.T * sc).reshape(W, nh, dh).transpose(1, 0, 2)   # [nh, W, dh]
        bh = (b_slice * sc).reshape(nh, 1, dh)                        # [nh, 1, dh]
        return wh, bh

    l1g, l1b, wq, bq, wk, bk, wv, bv, wo, bo = ([] for _ in range(10))
    l2g, l2b, wfc, bfc, wpr, bpr = ([] for _ in range(6))
    for blk in params["blocks"]:
        win, binp = blk["attn_in_w"], blk["attn_in_b"]
        qw, qb = per_head_in(win[:W], binp[:W], scale)       # scale folded into q
        kw, kb = per_head_in(win[W:2 * W], binp[W:2 * W], 1.0)
        vw, vb = per_head_in(win[2 * W:], binp[2 * W:], 1.0)
        l1g.append(blk["ln_1"][0].reshape(1, W)); l1b.append(blk["ln_1"][1].reshape(1, W))
        wq.append(qw); bq.append(qb); wk.append(kw); bk.append(kb); wv.append(vw); bv.append(vb)
        wo.append(blk["attn_out_w"].T.reshape(nh, dh, W))    # per-head out-proj slices
        bo.append(blk["attn_out_b"].reshape(1, W))
        l2g.append(blk["ln_2"][0].reshape(1, W)); l2b.append(blk["ln_2"][1].reshape(1, W))
        wfc.append(blk["mlp_fc_w"].T); bfc.append(blk["mlp_fc_b"].reshape(1, 4 * W))
        wpr.append(blk["mlp_proj_w"].T); bpr.append(blk["mlp_proj_b"].reshape(1, W))

    def stk(xs, dt=f32):
        return jnp.stack(xs, 0).astype(dt)

    layer = (stk(l1g), stk(l1b),
             stk(wq, bf16), stk(bq), stk(wk, bf16), stk(bk), stk(wv, bf16), stk(bv),
             stk(wo, bf16), stk(bo),
             stk(l2g), stk(l2b),
             stk(wfc, bf16), stk(bfc), stk(wpr, bf16), stk(bpr))

    # ---- visual_proj and fc are two chained linears with no nonlinearity: fuse ----
    proj_fused = (params["visual_proj"] @ params["fc_w"].T).astype(bf16)   # [W, out_dim]

    pre = (embed_add, blockmask, sel,
           params["ln_pre"][0].reshape(1, W).astype(f32),
           params["ln_pre"][1].reshape(1, W).astype(f32),
           conv_w_fold)
    post = (params["ln_post"][0].reshape(1, W).astype(f32),
            params["ln_post"][1].reshape(1, W).astype(f32),
            proj_fused,
            params["fc_b"].reshape(1, cfg.out_dim).astype(f32))

    prep = {"pre": pre, "layer": layer, "post": post}
    geom = dict(S=S, S_pad=S_pad, Bt=Bt, nb=nb, M=M, K=K)    # plain Python ints
    return prep, geom


# ----------------------------- forward -----------------------------

def clip_encoder_forward(prep, image, cfg, geom):
    B0, C, _, _ = image.shape
    res, ps, W = cfg.image_size, cfg.patch_size, cfg.width
    grid_n = res // ps
    S, S_pad, Bt, nb, M, K = (geom["S"], geom["S_pad"], geom["Bt"],
                              geom["nb"], geom["M"], geom["K"])
    L, nh = cfg.layers, cfg.heads

    # ---- preprocess: Resize((res, res)) ----
    # TODO(synk): torchvision Resize antialias semantics not reproduced exactly
    # (only differs when downsampling; 16->32 here is an upsample).
    x = jax.image.resize(image, (B0, C, res, res), method="bilinear")

    # ---- conv1-as-matmul patchify (stride == kernel); Normalize folded into weights ----
    patches = (x.reshape(B0, C, grid_n, ps, grid_n, ps)
                .transpose(0, 2, 4, 1, 3, 5)
                .reshape(B0, grid_n * grid_n, K))
    # row 0 = CLS slot (zeros), rows S..S_pad-1 = seq pad, batch padded to nb*Bt
    patches = jnp.pad(patches, ((0, nb * Bt - B0), (1, S_pad - S), (0, 0)))
    patches = patches.reshape(nb, M, K).astype(jnp.bfloat16)

    def _const_spec(a):
        nd = a.ndim
        return pl.BlockSpec(a.shape, lambda b, l, nd=nd: (0,) * nd)

    def _layer_spec(a):
        nd = a.ndim
        return pl.BlockSpec((None,) + a.shape[1:],
                            lambda b, l, nd=nd: (l,) + (0,) * (nd - 1))

    in_specs = ([pl.BlockSpec((None, M, K), lambda b, l: (b, 0, 0))]
                + [_const_spec(a) for a in prep["pre"]]
                + [_layer_spec(a) for a in prep["layer"]]
                + [_const_spec(a) for a in prep["post"]])

    out = pl.pallas_call(
        functools.partial(_encoder_kernel, nh=nh, L=L),
        out_shape=jax.ShapeDtypeStruct((nb, Bt, cfg.out_dim), jnp.float32),
        grid=(nb, L),                                   # layers streamed innermost
        in_specs=in_specs,
        out_specs=pl.BlockSpec((None, Bt, cfg.out_dim), lambda b, l: (b, 0, 0)),
        scratch_shapes=[pltpu.VMEM((M, W), jnp.float32)],   # persistent token slab
        compiler_params=pltpu.CompilerParams(
            dimension_semantics=("parallel", "arbitrary"),
            vmem_limit_bytes=32 * 1024 * 1024),
    )(patches, *prep["pre"], *prep["layer"], *prep["post"])
    return out.reshape(nb * Bt, cfg.out_dim)[:B0]


# ----------------------------- main -----------------------------

if __name__ == "__main__":
    cfg = Config()
    key = jax.random.PRNGKey(0)
    pkey, xkey = jax.random.split(key)
    params = init_params(pkey, cfg)
    # batch 8 so the kernel demonstrates sample-batched rows (Bt=4) AND keeps
    # two parallel grid steps for v7x's dual TensorCores.
    image = jax.random.uniform(xkey, (8, 3, 16, 16), dtype=jnp.float32)   # NCHW, like PyTorch

    prep, geom = prepare_params(params, cfg, batch_size=image.shape[0])   # one-time fold/split/stack
    fwd = jax.jit(lambda p, im: clip_encoder_forward(p, im, cfg, geom))
    out = jax.block_until_ready(fwd(prep, image))
    assert out.shape == (image.shape[0], cfg.out_dim) and out.dtype == jnp.float32
    assert bool(jnp.all(jnp.isfinite(out)))
    print("KERNEL_OK")
</pallas_src>

<mosaic_0001>
module attributes {stable_mosaic.version = 11 : i64} {
  func.func @_encoder_kernel(%arg0: i32, %arg1: i32, %arg2: memref<1x96x192xbf16, #tpu.memory_space<vmem>>, %arg3: memref<96x64xf32, #tpu.memory_space<vmem>>, %arg4: memref<96x96xf32, #tpu.memory_space<vmem>>, %arg5: memref<4x96xbf16, #tpu.memory_space<vmem>>, %arg6: memref<1x64xf32, #tpu.memory_space<vmem>>, %arg7: memref<1x64xf32, #tpu.memory_space<vmem>>, %arg8: memref<192x64xbf16, #tpu.memory_space<vmem>>, %arg9: memref<1x1x64xf32, #tpu.memory_space<vmem>>, %arg10: memref<1x1x64xf32, #tpu.memory_space<vmem>>, %arg11: memref<1x4x64x16xbf16, #tpu.memory_space<vmem>>, %arg12: memref<1x4x1x16xf32, #tpu.memory_space<vmem>>, %arg13: memref<1x4x64x16xbf16, #tpu.memory_space<vmem>>, %arg14: memref<1x4x1x16xf32, #tpu.memory_space<vmem>>, %arg15: memref<1x4x64x16xbf16, #tpu.memory_space<vmem>>, %arg16: memref<1x4x1x16xf32, #tpu.memory_space<vmem>>, %arg17: memref<1x4x16x64xbf16, #tpu.memory_space<vmem>>, %arg18: memref<1x1x64xf32, #tpu.memory_space<vmem>>, %arg19: memref<1x1x64xf32, #tpu.memory_space<vmem>>, %arg20: memref<1x1x64xf32, #tpu.memory_space<vmem>>, %arg21: memref<1x64x256xbf16, #tpu.memory_space<vmem>>, %arg22: memref<1x1x256xf32, #tpu.memory_space<vmem>>, %arg23: memref<1x256x64xbf16, #tpu.memory_space<vmem>>, %arg24: memref<1x1x64xf32, #tpu.memory_space<vmem>>, %arg25: memref<1x64xf32, #tpu.memory_space<vmem>>, %arg26: memref<1x64xf32, #tpu.memory_space<vmem>>, %arg27: memref<64x16xbf16, #tpu.memory_space<vmem>>, %arg28: memref<1x16xf32, #tpu.memory_space<vmem>>, %arg29: memref<1x4x16xf32, #tpu.memory_space<vmem>>, %arg30: memref<96x64xf32, #tpu.memory_space<vmem>>) attributes {dimension_semantics = [#tpu.dimension_semantics<parallel>, #tpu.dimension_semantics<arbitrary>], iteration_bounds = array<i64: 2, 2>, scalar_prefetch = 0 : i64, scratch_operands = 1 : i64, tpu.core_type = #tpu.core_type<tc>, window_params = [{transform_indices = @transform_0, window_bounds = array<i64: 1, 96, 192>}, {pipeline_mode = #tpu.pipeline_mode<synchronous>, transform_indices = @transform_1, window_bounds = array<i64: 96, 64>}, {pipeline_mode = #tpu.pipeline_mode<synchronous>, transform_indices = @transform_2, window_bounds = array<i64: 96, 96>}, {pipeline_mode = #tpu.pipeline_mode<synchronous>, transform_indices = @transform_3, window_bounds = array<i64: 4, 96>}, {pipeline_mode = #tpu.pipeline_mode<synchronous>, transform_indices = @transform_4, window_bounds = array<i64: 1, 64>}, {pipeline_mode = #tpu.pipeline_mode<synchronous>, transform_indices = @transform_5, window_bounds = array<i64: 1, 64>}, {pipeline_mode = #tpu.pipeline_mode<synchronous>, transform_indices = @transform_6, window_bounds = array<i64: 192, 64>}, {transform_indices = @transform_7, window_bounds = array<i64: 1, 1, 64>}, {transform_indices = @transform_8, window_bounds = array<i64: 1, 1, 64>}, {transform_indices = @transform_9, window_bounds = array<i64: 1, 4, 64, 16>}, {transform_indices = @transform_10, window_bounds = array<i64: 1, 4, 1, 16>}, {transform_indices = @transform_11, window_bounds = array<i64: 1, 4, 64, 16>}, {transform_indices = @transform_12, window_bounds = array<i64: 1, 4, 1, 16>}, {transform_indices = @transform_13, window_bounds = array<i64: 1, 4, 64, 16>}, {transform_indices = @transform_14, window_bounds = array<i64: 1, 4, 1, 16>}, {transform_indices = @transform_15, window_bounds = array<i64: 1, 4, 16, 64>}, {transform_indices = @transform_16, window_bounds = array<i64: 1, 1, 64>}, {transform_indices = @transform_17, window_bounds = array<i64: 1, 1, 64>}, {transform_indices = @transform_18, window_bounds = array<i64: 1, 1, 64>}, {transform_indices = @transform_19, window_bounds = array<i64: 1, 64, 256>}, {transform_indices = @transform_20, window_bounds = array<i64: 1, 1, 256>}, {transform_indices = @transform_21, window_bounds = array<i64: 1, 256, 64>}, {transform_indices = @transform_22, window_bounds = array<i64: 1, 1, 64>}, {pipeline_mode = #tpu.pipeline_mode<synchronous>, transform_indices = @transform_23, window_bounds = array<i64: 1, 64>}, {pipeline_mode = #tpu.pipeline_mode<synchronous>, transform_indices = @transform_24, window_bounds = array<i64: 1, 64>}, {pipeline_mode = #tpu.pipeline_mode<synchronous>, transform_indices = @transform_25, window_bounds = array<i64: 64, 16>}, {pipeline_mode = #tpu.pipeline_mode<synchronous>, transform_indices = @transform_26, window_bounds = array<i64: 1, 16>}, {transform_indices = @transform_27, window_bounds = array<i64: 1, 4, 16>}]} {
    %c0_i32 = arith.constant 0 : i32
    %0 = arith.cmpi eq, %arg1, %c0_i32 : i32
    %1 = arith.extui %0 : i1 to i32
    %c0_i32_0 = arith.constant 0 : i32
    %2 = arith.cmpi ne, %1, %c0_i32_0 : i32
    scf.if %2 {
      %c0_188 = arith.constant 0 : index
      %c0_189 = arith.constant 0 : index
      %c0_190 = arith.constant 0 : index
      %259 = vector.load %arg2[%c0_188, %c0_189, %c0_190] : memref<1x96x192xbf16, #tpu.memory_space<vmem>>, vector<1x96x192xbf16>
      %260 = vector.shape_cast %259 : vector<1x96x192xbf16> to vector<96x192xbf16>
      %c0_191 = arith.constant 0 : index
      %c0_192 = arith.constant 0 : index
      %261 = vector.load %arg8[%c0_191, %c0_192] : memref<192x64xbf16, #tpu.memory_space<vmem>>, vector<192x64xbf16>
      %cst_193 = arith.constant dense<0.000000e+00> : vector<96x64xf32>
      %262 = tpu.matmul %260, %261, %cst_193 {dimension_numbers = #tpu.dot_dimension_numbers<[1], [0], [0], [1], [0, 0, 1, 1], [], []>} : vector<96x192xbf16>, vector<192x64xbf16>, vector<96x64xf32> -> vector<96x64xf32>
      %c0_194 = arith.constant 0 : index
      %c0_195 = arith.constant 0 : index
      %263 = vector.load %arg3[%c0_194, %c0_195] : memref<96x64xf32, #tpu.memory_space<vmem>>, vector<96x64xf32>
      %264 = arith.addf %262, %263 : vector<96x64xf32>
      %c0_196 = arith.constant 0 : index
      %c0_197 = arith.constant 0 : index
      %265 = vector.load %arg6[%c0_196, %c0_197] : memref<1x64xf32, #tpu.memory_space<vmem>>, vector<1x64xf32>
      %c0_198 = arith.constant 0 : index
      %c0_199 = arith.constant 0 : index
      %266 = vector.load %arg7[%c0_198, %c0_199] : memref<1x64xf32, #tpu.memory_space<vmem>>, vector<1x64xf32>
      %cst_200 = arith.constant dense<0.000000e+00> : vector<96xf32>
      %267 = vector.multi_reduction <add>, %264, %cst_200 [1] : vector<96x64xf32> to vector<96xf32>
      %268 = vector.shape_cast %267 : vector<96xf32> to vector<96x1xf32>
      %cst_201 = arith.constant 6.400000e+01 : f32
      %269 = vector.broadcast %cst_201 : f32 to vector<96x1xf32>
      %270 = arith.divf %268, %269 : vector<96x1xf32>
      %271 = vector.broadcast %270 : vector<96x1xf32> to vector<96x64xf32>
      %272 = arith.subf %264, %271 : vector<96x64xf32>
      %273 = arith.mulf %272, %272 : vector<96x64xf32>
      %cst_202 = arith.constant dense<0.000000e+00> : vector<96xf32>
      %274 = vector.multi_reduction <add>, %273, %cst_202 [1] : vector<96x64xf32> to vector<96xf32>
      %275 = vector.shape_cast %274 : vector<96xf32> to vector<96x1xf32>
      %cst_203 = arith.constant 6.400000e+01 : f32
      %276 = vector.broadcast %cst_203 : f32 to vector<96x1xf32>
      %277 = arith.divf %275, %276 : vector<96x1xf32>
      %278 = vector.broadcast %270 : vector<96x1xf32> to vector<96x64xf32>
      %279 = arith.subf %264, %278 : vector<96x64xf32>
      %cst_204 = arith.constant 9.99999974E-6 : f32
      %280 = vector.broadcast %cst_204 : f32 to vector<96x1xf32>
      %281 = arith.addf %277, %280 : vector<96x1xf32>
      %282 = math.rsqrt %281 : vector<96x1xf32>
      %283 = vector.broadcast %282 : vector<96x1xf32> to vector<96x64xf32>
      %284 = arith.mulf %279, %283 : vector<96x64xf32>
      %285 = vector.broadcast %265 : vector<1x64xf32> to vector<96x64xf32>
      %286 = arith.mulf %284, %285 : vector<96x64xf32>
      %287 = vector.broadcast %266 : vector<1x64xf32> to vector<96x64xf32>
      %288 = arith.addf %286, %287 : vector<96x64xf32>
      %c0_205 = arith.constant 0 : index
      %c0_206 = arith.constant 0 : index
      %289 = vector.load %arg30[%c0_205, %c0_206] : memref<96x64xf32, #tpu.memory_space<vmem>>, vector<96x64xf32>
      tpu.vector_store %arg30[%c0_205, %c0_206], %288 {strides = array<i32>} : memref<96x64xf32, #tpu.memory_space<vmem>>, vector<96x64xf32>,
    } else {
    }
    %c0 = arith.constant 0 : index
    %c0_1 = arith.constant 0 : index
    %3 = vector.load %arg30[%c0, %c0_1] : memref<96x64xf32, #tpu.memory_space<vmem>>, vector<96x64xf32>
    %c0_2 = arith.constant 0 : index
    %c0_3 = arith.constant 0 : index
    %4 = vector.load %arg4[%c0_2, %c0_3] : memref<96x96xf32, #tpu.memory_space<vmem>>, vector<96x96xf32>
    %c0_4 = arith.constant 0 : index
    %c0_5 = arith.constant 0 : index
    %c0_6 = arith.constant 0 : index
    %5 = vector.load %arg9[%c0_4, %c0_5, %c0_6] : memref<1x1x64xf32, #tpu.memory_space<vmem>>, vector<1x1x64xf32>
    %6 = vector.shape_cast %5 : vector<1x1x64xf32> to vector<1x64xf32>
    %c0_7 = arith.constant 0 : index
    %c0_8 = arith.constant 0 : index
    %c0_9 = arith.constant 0 : index
    %7 = vector.load %arg10[%c0_7, %c0_8, %c0_9] : memref<1x1x64xf32, #tpu.memory_space<vmem>>, vector<1x1x64xf32>
    %8 = vector.shape_cast %7 : vector<1x1x64xf32> to vector<1x64xf32>
    %cst = arith.constant dense<0.000000e+00> : vector<96xf32>
    %9 = vector.multi_reduction <add>, %3, %cst [1] : vector<96x64xf32> to vector<96xf32>
    %10 = vector.shape_cast %9 : vector<96xf32> to vector<96x1xf32>
    %cst_10 = arith.constant 6.400000e+01 : f32
    %11 = vector.broadcast %cst_10 : f32 to vector<96x1xf32>
    %12 = arith.divf %10, %11 : vector<96x1xf32>
    %13 = vector.broadcast %12 : vector<96x1xf32> to vector<96x64xf32>
    %14 = arith.subf %3, %13 : vector<96x64xf32>
    %15 = arith.mulf %14, %14 : vector<96x64xf32>
    %cst_11 = arith.constant dense<0.000000e+00> : vector<96xf32>
    %16 = vector.multi_reduction <add>, %15, %cst_11 [1] : vector<96x64xf32> to vector<96xf32>
    %17 = vector.shape_cast %16 : vector<96xf32> to vector<96x1xf32>
    %cst_12 = arith.constant 6.400000e+01 : f32
    %18 = vector.broadcast %cst_12 : f32 to vector<96x1xf32>
    %19 = arith.divf %17, %18 : vector<96x1xf32>
    %20 = vector.broadcast %12 : vector<96x1xf32> to vector<96x64xf32>
    %21 = arith.subf %3, %20 : vector<96x64xf32>
    %cst_13 = arith.constant 9.99999974E-6 : f32
    %22 = vector.broadcast %cst_13 : f32 to vector<96x1xf32>
    %23 = arith.addf %19, %22 : vector<96x1xf32>
    %24 = math.rsqrt %23 : vector<96x1xf32>
    %25 = vector.broadcast %24 : vector<96x1xf32> to vector<96x64xf32>
    %26 = arith.mulf %21, %25 : vector<96x64xf32>
    %27 = vector.broadcast %6 : vector<1x64xf32> to vector<96x64xf32>
    %28 = arith.mulf %26, %27 : vector<96x64xf32>
    %29 = vector.broadcast %8 : vector<1x64xf32> to vector<96x64xf32>
    %30 = arith.addf %28, %29 : vector<96x64xf32>
    %31 = arith.truncf %30 : vector<96x64xf32> to vector<96x64xbf16>
    %c0_14 = arith.constant 0 : index
    %c0_15 = arith.constant 0 : index
    %c0_16 = arith.constant 0 : index
    %c0_17 = arith.constant 0 : index
    %32 = vector.load %arg11[%c0_14, %c0_15, %c0_16, %c0_17] : memref<1x4x64x16xbf16, #tpu.memory_space<vmem>>, vector<1x1x64x16xbf16>
    %33 = vector.shape_cast %32 : vector<1x1x64x16xbf16> to vector<64x16xbf16>
    %cst_18 = arith.constant dense<0.000000e+00> : vector<96x16xf32>
    %34 = tpu.matmul %31, %33, %cst_18 {dimension_numbers = #tpu.dot_dimension_numbers<[1], [0], [0], [1], [0, 0, 1, 1], [], []>} : vector<96x64xbf16>, vector<64x16xbf16>, vector<96x16xf32> -> vector<96x16xf32>
    %c0_19 = arith.constant 0 : index
    %c0_20 = arith.constant 0 : index
    %c0_21 = arith.constant 0 : index
    %c0_22 = arith.constant 0 : index
    %35 = vector.load %arg12[%c0_19, %c0_20, %c0_21, %c0_22] : memref<1x4x1x16xf32, #tpu.memory_space<vmem>>, vector<1x1x1x16xf32>
    %36 = vector.shape_cast %35 : vector<1x1x1x16xf32> to vector<1x16xf32>
    %37 = vector.broadcast %36 : vector<1x16xf32> to vector<96x16xf32>
    %38 = arith.addf %34, %37 : vector<96x16xf32>
    %c0_23 = arith.constant 0 : index
    %c0_24 = arith.constant 0 : index
    %c0_25 = arith.constant 0 : index
    %c0_26 = arith.constant 0 : index
    %39 = vector.load %arg13[%c0_23, %c0_24, %c0_25, %c0_26] : memref<1x4x64x16xbf16, #tpu.memory_space<vmem>>, vector<1x1x64x16xbf16>
    %40 = vector.shape_cast %39 : vector<1x1x64x16xbf16> to vector<64x16xbf16>
    %cst_27 = arith.constant dense<0.000000e+00> : vector<96x16xf32>
    %41 = tpu.matmul %31, %40, %cst_27 {dimension_numbers = #tpu.dot_dimension_numbers<[1], [0], [0], [1], [0, 0, 1, 1], [], []>} : vector<96x64xbf16>, vector<64x16xbf16>, vector<96x16xf32> -> vector<96x16xf32>
    %c0_28 = arith.constant 0 : index
    %c0_29 = arith.constant 0 : index
    %c0_30 = arith.constant 0 : index
    %c0_31 = arith.constant 0 : index
    %42 = vector.load %arg14[%c0_28, %c0_29, %c0_30, %c0_31] : memref<1x4x1x16xf32, #tpu.memory_space<vmem>>, vector<1x1x1x16xf32>
    %43 = vector.shape_cast %42 : vector<1x1x1x16xf32> to vector<1x16xf32>
    %44 = vector.broadcast %43 : vector<1x16xf32> to vector<96x16xf32>
    %45 = arith.addf %41, %44 : vector<96x16xf32>
    %c0_32 = arith.constant 0 : index
    %c0_33 = arith.constant 0 : index
    %c0_34 = arith.constant 0 : index
    %c0_35 = arith.constant 0 : index
    %46 = vector.load %arg15[%c0_32, %c0_33, %c0_34, %c0_35] : memref<1x4x64x16xbf16, #tpu.memory_space<vmem>>, vector<1x1x64x16xbf16>
    %47 = vector.shape_cast %46 : vector<1x1x64x16xbf16> to vector<64x16xbf16>
    %cst_36 = arith.constant dense<0.000000e+00> : vector<96x16xf32>
    %48 = tpu.matmul %31, %47, %cst_36 {dimension_numbers = #tpu.dot_dimension_numbers<[1], [0], [0], [1], [0, 0, 1, 1], [], []>} : vector<96x64xbf16>, vector<64x16xbf16>, vector<96x16xf32> -> vector<96x16xf32>
    %c0_37 = arith.constant 0 : index
    %c0_38 = arith.constant 0 : index
    %c0_39 = arith.constant 0 : index
    %c0_40 = arith.constant 0 : index
    %49 = vector.load %arg16[%c0_37, %c0_38, %c0_39, %c0_40] : memref<1x4x1x16xf32, #tpu.memory_space<vmem>>, vector<1x1x1x16xf32>
    %50 = vector.shape_cast %49 : vector<1x1x1x16xf32> to vector<1x16xf32>
    %51 = vector.broadcast %50 : vector<1x16xf32> to vector<96x16xf32>
    %52 = arith.addf %48, %51 : vector<96x16xf32>
    %53 = arith.truncf %38 : vector<96x16xf32> to vector<96x16xbf16>
    %54 = arith.truncf %45 : vector<96x16xf32> to vector<96x16xbf16>
    %cst_41 = arith.constant dense<0.000000e+00> : vector<96x96xf32>
    %55 = tpu.matmul %53, %54, %cst_41 {dimension_numbers = #tpu.dot_dimension_numbers<[1], [1], [0], [0], [0, 0, 1, 0], [], []>} : vector<96x16xbf16>, vector<96x16xbf16>, vector<96x96xf32> -> vector<96x96xf32>
    %56 = arith.addf %55, %4 : vector<96x96xf32>
    %cst_42 = arith.constant dense<0xFF800000> : vector<96xf32>
    %57 = vector.multi_reduction <maximumf>, %56, %cst_42 [1] : vector<96x96xf32> to vector<96xf32>
    %58 = vector.shape_cast %57 : vector<96xf32> to vector<96x1xf32>
    %59 = vector.broadcast %58 : vector<96x1xf32> to vector<96x96xf32>
    %60 = arith.subf %56, %59 : vector<96x96xf32>
    %61 = math.exp %60 : vector<96x96xf32>
    %cst_43 = arith.constant dense<0.000000e+00> : vector<96xf32>
    %62 = vector.multi_reduction <add>, %61, %cst_43 [1] : vector<96x96xf32> to vector<96xf32>
    %63 = vector.shape_cast %62 : vector<96xf32> to vector<96x1xf32>
    %64 = vector.broadcast %63 : vector<96x1xf32> to vector<96x96xf32>
    %65 = arith.divf %61, %64 : vector<96x96xf32>
    %66 = arith.truncf %65 : vector<96x96xf32> to vector<96x96xbf16>
    %67 = arith.truncf %52 : vector<96x16xf32> to vector<96x16xbf16>
    %cst_44 = arith.constant dense<0.000000e+00> : vector<96x16xf32>
    %68 = tpu.matmul %66, %67, %cst_44 {dimension_numbers = #tpu.dot_dimension_numbers<[1], [0], [0], [1], [0, 0, 1, 1], [], []>} : vector<96x96xbf16>, vector<96x16xbf16>, vector<96x16xf32> -> vector<96x16xf32>
    %69 = arith.truncf %68 : vector<96x16xf32> to vector<96x16xbf16>
    %c0_45 = arith.constant 0 : index
    %c0_46 = arith.constant 0 : index
    %c0_47 = arith.constant 0 : index
    %c0_48 = arith.constant 0 : index
    %70 = vector.load %arg17[%c0_45, %c0_46, %c0_47, %c0_48] : memref<1x4x16x64xbf16, #tpu.memory_space<vmem>>, vector<1x1x16x64xbf16>
    %71 = vector.shape_cast %70 : vector<1x1x16x64xbf16> to vector<16x64xbf16>
    %cst_49 = arith.constant dense<0.000000e+00> : vector<96x64xf32>
    %72 = tpu.matmul %69, %71, %cst_49 {dimension_numbers = #tpu.dot_dimension_numbers<[1], [0], [0], [1], [0, 0, 1, 1], [], []>} : vector<96x16xbf16>, vector<16x64xbf16>, vector<96x64xf32> -> vector<96x64xf32>
    %c0_50 = arith.constant 0 : index
    %c1 = arith.constant 1 : index
    %c0_51 = arith.constant 0 : index
    %c0_52 = arith.constant 0 : index
    %73 = vector.load %arg11[%c0_50, %c1, %c0_51, %c0_52] : memref<1x4x64x16xbf16, #tpu.memory_space<vmem>>, vector<1x1x64x16xbf16>
    %74 = vector.shape_cast %73 : vector<1x1x64x16xbf16> to vector<64x16xbf16>
    %cst_53 = arith.constant dense<0.000000e+00> : vector<96x16xf32>
    %75 = tpu.matmul %31, %74, %cst_53 {dimension_numbers = #tpu.dot_dimension_numbers<[1], [0], [0], [1], [0, 0, 1, 1], [], []>} : vector<96x64xbf16>, vector<64x16xbf16>, vector<96x16xf32> -> vector<96x16xf32>
    %c0_54 = arith.constant 0 : index
    %c1_55 = arith.constant 1 : index
    %c0_56 = arith.constant 0 : index
    %c0_57 = arith.constant 0 : index
    %76 = vector.load %arg12[%c0_54, %c1_55, %c0_56, %c0_57] : memref<1x4x1x16xf32, #tpu.memory_space<vmem>>, vector<1x1x1x16xf32>
    %77 = vector.shape_cast %76 : vector<1x1x1x16xf32> to vector<1x16xf32>
    %78 = vector.broadcast %77 : vector<1x16xf32> to vector<96x16xf32>
    %79 = arith.addf %75, %78 : vector<96x16xf32>
    %c0_58 = arith.constant 0 : index
    %c1_59 = arith.constant 1 : index
    %c0_60 = arith.constant 0 : index
    %c0_61 = arith.constant 0 : index
    %80 = vector.load %arg13[%c0_58, %c1_59, %c0_60, %c0_61] : memref<1x4x64x16xbf16, #tpu.memory_space<vmem>>, vector<1x1x64x16xbf16>
    %81 = vector.shape_cast %80 : vector<1x1x64x16xbf16> to vector<64x16xbf16>
    %cst_62 = arith.constant dense<0.000000e+00> : vector<96x16xf32>
    %82 = tpu.matmul %31, %81, %cst_62 {dimension_numbers = #tpu.dot_dimension_numbers<[1], [0], [0], [1], [0, 0, 1, 1], [], []>} : vector<96x64xbf16>, vector<64x16xbf16>, vector<96x16xf32> -> vector<96x16xf32>
    %c0_63 = arith.constant 0 : index
    %c1_64 = arith.constant 1 : index
    %c0_65 = arith.constant 0 : index
    %c0_66 = arith.constant 0 : index
    %83 = vector.load %arg14[%c0_63, %c1_64, %c0_65, %c0_66] : memref<1x4x1x16xf32, #tpu.memory_space<vmem>>, vector<1x1x1x16xf32>
    %84 = vector.shape_cast %83 : vector<1x1x1x16xf32> to vector<1x16xf32>
    %85 = vector.broadcast %84 : vector<1x16xf32> to vector<96x16xf32>
    %86 = arith.addf %82, %85 : vector<96x16xf32>
    %c0_67 = arith.constant 0 : index
    %c1_68 = arith.constant 1 : index
    %c0_69 = arith.constant 0 : index
    %c0_70 = arith.constant 0 : index
    %87 = vector.load %arg15[%c0_67, %c1_68, %c0_69, %c0_70] : memref<1x4x64x16xbf16, #tpu.memory_space<vmem>>, vector<1x1x64x16xbf16>
    %88 = vector.shape_cast %87 : vector<1x1x64x16xbf16> to vector<64x16xbf16>
    %cst_71 = arith.constant dense<0.000000e+00> : vector<96x16xf32>
    %89 = tpu.matmul %31, %88, %cst_71 {dimension_numbers = #tpu.dot_dimension_numbers<[1], [0], [0], [1], [0, 0, 1, 1], [], []>} : vector<96x64xbf16>, vector<64x16xbf16>, vector<96x16xf32> -> vector<96x16xf32>
    %c0_72 = arith.constant 0 : index
    %c1_73 = arith.constant 1 : index
    %c0_74 = arith.constant 0 : index
    %c0_75 = arith.constant 0 : index
    %90 = vector.load %arg16[%c0_72, %c1_73, %c0_74, %c0_75] : memref<1x4x1x16xf32, #tpu.memory_space<vmem>>, vector<1x1x1x16xf32>
    %91 = vector.shape_cast %90 : vector<1x1x1x16xf32> to vector<1x16xf32>
    %92 = vector.broadcast %91 : vector<1x16xf32> to vector<96x16xf32>
    %93 = arith.addf %89, %92 : vector<96x16xf32>
    %94 = arith.truncf %79 : vector<96x16xf32> to vector<96x16xbf16>
    %95 = arith.truncf %86 : vector<96x16xf32> to vector<96x16xbf16>
    %cst_76 = arith.constant dense<0.000000e+00> : vector<96x96xf32>
    %96 = tpu.matmul %94, %95, %cst_76 {dimension_numbers = #tpu.dot_dimension_numbers<[1], [1], [0], [0], [0, 0, 1, 0], [], []>} : vector<96x16xbf16>, vector<96x16xbf16>, vector<96x96xf32> -> vector<96x96xf32>
    %97 = arith.addf %96, %4 : vector<96x96xf32>
    %cst_77 = arith.constant dense<0xFF800000> : vector<96xf32>
    %98 = vector.multi_reduction <maximumf>, %97, %cst_77 [1] : vector<96x96xf32> to vector<96xf32>
    %99 = vector.shape_cast %98 : vector<96xf32> to vector<96x1xf32>
    %100 = vector.broadcast %99 : vector<96x1xf32> to vector<96x96xf32>
    %101 = arith.subf %97, %100 : vector<96x96xf32>
    %102 = math.exp %101 : vector<96x96xf32>
    %cst_78 = arith.constant dense<0.000000e+00> : vector<96xf32>
    %103 = vector.multi_reduction <add>, %102, %cst_78 [1] : vector<96x96xf32> to vector<96xf32>
    %104 = vector.shape_cast %103 : vector<96xf32> to vector<96x1xf32>
    %105 = vector.broadcast %104 : vector<96x1xf32> to vector<96x96xf32>
    %106 = arith.divf %102, %105 : vector<96x96xf32>
    %107 = arith.truncf %106 : vector<96x96xf32> to vector<96x96xbf16>
    %108 = arith.truncf %93 : vector<96x16xf32> to vector<96x16xbf16>
    %cst_79 = arith.constant dense<0.000000e+00> : vector<96x16xf32>
    %109 = tpu.matmul %107, %108, %cst_79 {dimension_numbers = #tpu.dot_dimension_numbers<[1], [0], [0], [1], [0, 0, 1, 1], [], []>} : vector<96x96xbf16>, vector<96x16xbf16>, vector<96x16xf32> -> vector<96x16xf32>
    %110 = arith.truncf %109 : vector<96x16xf32> to vector<96x16xbf16>
    %c0_80 = arith.constant 0 : index
    %c1_81 = arith.constant 1 : index
    %c0_82 = arith.constant 0 : index
    %c0_83 = arith.constant 0 : index
    %111 = vector.load %arg17[%c0_80, %c1_81, %c0_82, %c0_83] : memref<1x4x16x64xbf16, #tpu.memory_space<vmem>>, vector<1x1x16x64xbf16>
    %112 = vector.shape_cast %111 : vector<1x1x16x64xbf16> to vector<16x64xbf16>
    %cst_84 = arith.constant dense<0.000000e+00> : vector<96x64xf32>
    %113 = tpu.matmul %110, %112, %cst_84 {dimension_numbers = #tpu.dot_dimension_numbers<[1], [0], [0], [1], [0, 0, 1, 1], [], []>} : vector<96x16xbf16>, vector<16x64xbf16>, vector<96x64xf32> -> vector<96x64xf32>
    %114 = arith.addf %72, %113 : vector<96x64xf32>
    %c0_85 = arith.constant 0 : index
    %c2 = arith.constant 2 : index
    %c0_86 = arith.constant 0 : index
    %c0_87 = arith.constant 0 : index
    %115 = vector.load %arg11[%c0_85, %c2, %c0_86, %c0_87] : memref<1x4x64x16xbf16, #tpu.memory_space<vmem>>, vector<1x1x64x16xbf16>
    %116 = vector.shape_cast %115 : vector<1x1x64x16xbf16> to vector<64x16xbf16>
    %cst_88 = arith.constant dense<0.000000e+00> : vector<96x16xf32>
    %117 = tpu.matmul %31, %116, %cst_88 {dimension_numbers = #tpu.dot_dimension_numbers<[1], [0], [0], [1], [0, 0, 1, 1], [], []>} : vector<96x64xbf16>, vector<64x16xbf16>, vector<96x16xf32> -> vector<96x16xf32>
    %c0_89 = arith.constant 0 : index
    %c2_90 = arith.constant 2 : index
    %c0_91 = arith.constant 0 : index
    %c0_92 = arith.constant 0 : index
    %118 = vector.load %arg12[%c0_89, %c2_90, %c0_91, %c0_92] : memref<1x4x1x16xf32, #tpu.memory_space<vmem>>, vector<1x1x1x16xf32>
    %119 = vector.shape_cast %118 : vector<1x1x1x16xf32> to vector<1x16xf32>
    %120 = vector.broadcast %119 : vector<1x16xf32> to vector<96x16xf32>
    %121 = arith.addf %117, %120 : vector<96x16xf32>
    %c0_93 = arith.constant 0 : index
    %c2_94 = arith.constant 2 : index
    %c0_95 = arith.constant 0 : index
    %c0_96 = arith.constant 0 : index
    %122 = vector.load %arg13[%c0_93, %c2_94, %c0_95, %c0_96] : memref<1x4x64x16xbf16, #tpu.memory_space<vmem>>, vector<1x1x64x16xbf16>
    %123 = vector.shape_cast %122 : vector<1x1x64x16xbf16> to vector<64x16xbf16>
    %cst_97 = arith.constant dense<0.000000e+00> : vector<96x16xf32>
    %124 = tpu.matmul %31, %123, %cst_97 {dimension_numbers = #tpu.dot_dimension_numbers<[1], [0], [0], [1], [0, 0, 1, 1], [], []>} : vector<96x64xbf16>, vector<64x16xbf16>, vector<96x16xf32> -> vector<96x16xf32>
    %c0_98 = arith.constant 0 : index
    %c2_99 = arith.constant 2 : index
    %c0_100 = arith.constant 0 : index
    %c0_101 = arith.constant 0 : index
    %125 = vector.load %arg14[%c0_98, %c2_99, %c0_100, %c0_101] : memref<1x4x1x16xf32, #tpu.memory_space<vmem>>, vector<1x1x1x16xf32>
    %126 = vector.shape_cast %125 : vector<1x1x1x16xf32> to vector<1x16xf32>
    %127 = vector.broadcast %126 : vector<1x16xf32> to vector<96x16xf32>
    %128 = arith.addf %124, %127 : vector<96x16xf32>
    %c0_102 = arith.constant 0 : index
    %c2_103 = arith.constant 2 : index
    %c0_104 = arith.constant 0 : index
    %c0_105 = arith.constant 0 : index
    %129 = vector.load %arg15[%c0_102, %c2_103, %c0_104, %c0_105] : memref<1x4x64x16xbf16, #tpu.memory_space<vmem>>, vector<1x1x64x16xbf16>
    %130 = vector.shape_cast %129 : vector<1x1x64x16xbf16> to vector<64x16xbf16>
    %cst_106 = arith.constant dense<0.000000e+00> : vector<96x16xf32>
    %131 = tpu.matmul %31, %130, %cst_106 {dimension_numbers = #tpu.dot_dimension_numbers<[1], [0], [0], [1], [0, 0, 1, 1], [], []>} : vector<96x64xbf16>, vector<64x16xbf16>, vector<96x16xf32> -> vector<96x16xf32>
    %c0_107 = arith.constant 0 : index
    %c2_108 = arith.constant 2 : index
    %c0_109 = arith.constant 0 : index
    %c0_110 = arith.constant 0 : index
    %132 = vector.load %arg16[%c0_107, %c2_108, %c0_109, %c0_110] : memref<1x4x1x16xf32, #tpu.memory_space<vmem>>, vector<1x1x1x16xf32>
    %133 = vector.shape_cast %132 : vector<1x1x1x16xf32> to vector<1x16xf32>
    %134 = vector.broadcast %133 : vector<1x16xf32> to vector<96x16xf32>
    %135 = arith.addf %131, %134 : vector<96x16xf32>
    %136 = arith.truncf %121 : vector<96x16xf32> to vector<96x16xbf16>
    %137 = arith.truncf %128 : vector<96x16xf32> to vector<96x16xbf16>
    %cst_111 = arith.constant dense<0.000000e+00> : vector<96x96xf32>
    %138 = tpu.matmul %136, %137, %cst_111 {dimension_numbers = #tpu.dot_dimension_numbers<[1], [1], [0], [0], [0, 0, 1, 0], [], []>} : vector<96x16xbf16>, vector<96x16xbf16>, vector<96x96xf32> -> vector<96x96xf32>
    %139 = arith.addf %138, %4 : vector<96x96xf32>
    %cst_112 = arith.constant dense<0xFF800000> : vector<96xf32>
    %140 = vector.multi_reduction <maximumf>, %139, %cst_112 [1] : vector<96x96xf32> to vector<96xf32>
    %141 = vector.shape_cast %140 : vector<96xf32> to vector<96x1xf32>
    %142 = vector.broadcast %141 : vector<96x1xf32> to vector<96x96xf32>
    %143 = arith.subf %139, %142 : vector<96x96xf32>
    %144 = math.exp %143 : vector<96x96xf32>
    %cst_113 = arith.constant dense<0.000000e+00> : vector<96xf32>
    %145 = vector.multi_reduction <add>, %144, %cst_113 [1] : vector<96x96xf32> to vector<96xf32>
    %146 = vector.shape_cast %145 : vector<96xf32> to vector<96x1xf32>
    %147 = vector.broadcast %146 : vector<96x1xf32> to vector<96x96xf32>
    %148 = arith.divf %144, %147 : vector<96x96xf32>
    %149 = arith.truncf %148 : vector<96x96xf32> to vector<96x96xbf16>
    %150 = arith.truncf %135 : vector<96x16xf32> to vector<96x16xbf16>
    %cst_114 = arith.constant dense<0.000000e+00> : vector<96x16xf32>
    %151 = tpu.matmul %149, %150, %cst_114 {dimension_numbers = #tpu.dot_dimension_numbers<[1], [0], [0], [1], [0, 0, 1, 1], [], []>} : vector<96x96xbf16>, vector<96x16xbf16>, vector<96x16xf32> -> vector<96x16xf32>
    %152 = arith.truncf %151 : vector<96x16xf32> to vector<96x16xbf16>
    %c0_115 = arith.constant 0 : index
    %c2_116 = arith.constant 2 : index
    %c0_117 = arith.constant 0 : index
    %c0_118 = arith.constant 0 : index
    %153 = vector.load %arg17[%c0_115, %c2_116, %c0_117, %c0_118] : memref<1x4x16x64xbf16, #tpu.memory_space<vmem>>, vector<1x1x16x64xbf16>
    %154 = vector.shape_cast %153 : vector<1x1x16x64xbf16> to vector<16x64xbf16>
    %cst_119 = arith.constant dense<0.000000e+00> : vector<96x64xf32>
    %155 = tpu.matmul %152, %154, %cst_119 {dimension_numbers = #tpu.dot_dimension_numbers<[1], [0], [0], [1], [0, 0, 1, 1], [], []>} : vector<96x16xbf16>, vector<16x64xbf16>, vector<96x64xf32> -> vector<96x64xf32>
    %156 = arith.addf %114, %155 : vector<96x64xf32>
    %c0_120 = arith.constant 0 : index
    %c3 = arith.constant 3 : index
    %c0_121 = arith.constant 0 : index
    %c0_122 = arith.constant 0 : index
    %157 = vector.load %arg11[%c0_120, %c3, %c0_121, %c0_122] : memref<1x4x64x16xbf16, #tpu.memory_space<vmem>>, vector<1x1x64x16xbf16>
    %158 = vector.shape_cast %157 : vector<1x1x64x16xbf16> to vector<64x16xbf16>
    %cst_123 = arith.constant dense<0.000000e+00> : vector<96x16xf32>
    %159 = tpu.matmul %31, %158, %cst_123 {dimension_numbers = #tpu.dot_dimension_numbers<[1], [0], [0], [1], [0, 0, 1, 1], [], []>} : vector<96x64xbf16>, vector<64x16xbf16>, vector<96x16xf32> -> vector<96x16xf32>
    %c0_124 = arith.constant 0 : index
    %c3_125 = arith.constant 3 : index
    %c0_126 = arith.constant 0 : index
    %c0_127 = arith.constant 0 : index
    %160 = vector.load %arg12[%c0_124, %c3_125, %c0_126, %c0_127] : memref<1x4x1x16xf32, #tpu.memory_space<vmem>>, vector<1x1x1x16xf32>
    %161 = vector.shape_cast %160 : vector<1x1x1x16xf32> to vector<1x16xf32>
    %162 = vector.broadcast %161 : vector<1x16xf32> to vector<96x16xf32>
    %163 = arith.addf %159, %162 : vector<96x16xf32>
    %c0_128 = arith.constant 0 : index
    %c3_129 = arith.constant 3 : index
    %c0_130 = arith.constant 0 : index
    %c0_131 = arith.constant 0 : index
    %164 = vector.load %arg13[%c0_128, %c3_129, %c0_130, %c0_131] : memref<1x4x64x16xbf16, #tpu.memory_space<vmem>>, vector<1x1x64x16xbf16>
    %165 = vector.shape_cast %164 : vector<1x1x64x16xbf16> to vector<64x16xbf16>
    %cst_132 = arith.constant dense<0.000000e+00> : vector<96x16xf32>
    %166 = tpu.matmul %31, %165, %cst_132 {dimension_numbers = #tpu.dot_dimension_numbers<[1], [0], [0], [1], [0, 0, 1, 1], [], []>} : vector<96x64xbf16>, vector<64x16xbf16>, vector<96x16xf32> -> vector<96x16xf32>
    %c0_133 = arith.constant 0 : index
    %c3_134 = arith.constant 3 : index
    %c0_135 = arith.constant 0 : index
    %c0_136 = arith.constant 0 : index
    %167 = vector.load %arg14[%c0_133, %c3_134, %c0_135, %c0_136] : memref<1x4x1x16xf32, #tpu.memory_space<vmem>>, vector<1x1x1x16xf32>
    %168 = vector.shape_cast %167 : vector<1x1x1x16xf32> to vector<1x16xf32>
    %169 = vector.broadcast %168 : vector<1x16xf32> to vector<96x16xf32>
    %170 = arith.addf %166, %169 : vector<96x16xf32>
    %c0_137 = arith.constant 0 : index
    %c3_138 = arith.constant 3 : index
    %c0_139 = arith.constant 0 : index
    %c0_140 = arith.constant 0 : index
    %171 = vector.load %arg15[%c0_137, %c3_138, %c0_139, %c0_140] : memref<1x4x64x16xbf16, #tpu.memory_space<vmem>>, vector<1x1x64x16xbf16>
    %172 = vector.shape_cast %171 : vector<1x1x64x16xbf16> to vector<64x16xbf16>
    %cst_141 = arith.constant dense<0.000000e+00> : vector<96x16xf32>
    %173 = tpu.matmul %31, %172, %cst_141 {dimension_numbers = #tpu.dot_dimension_numbers<[1], [0], [0], [1], [0, 0, 1, 1], [], []>} : vector<96x64xbf16>, vector<64x16xbf16>, vector<96x16xf32> -> vector<96x16xf32>
    %c0_142 = arith.constant 0 : index
    %c3_143 = arith.constant 3 : index
    %c0_144 = arith.constant 0 : index
    %c0_145 = arith.constant 0 : index
    %174 = vector.load %arg16[%c0_142, %c3_143, %c0_144, %c0_145] : memref<1x4x1x16xf32, #tpu.memory_space<vmem>>, vector<1x1x1x16xf32>
    %175 = vector.shape_cast %174 : vector<1x1x1x16xf32> to vector<1x16xf32>
    %176 = vector.broadcast %175 : vector<1x16xf32> to vector<96x16xf32>
    %177 = arith.addf %173, %176 : vector<96x16xf32>
    %178 = arith.truncf %163 : vector<96x16xf32> to vector<96x16xbf16>
    %179 = arith.truncf %170 : vector<96x16xf32> to vector<96x16xbf16>
    %cst_146 = arith.constant dense<0.000000e+00> : vector<96x96xf32>
    %180 = tpu.matmul %178, %179, %cst_146 {dimension_numbers = #tpu.dot_dimension_numbers<[1], [1], [0], [0], [0, 0, 1, 0], [], []>} : vector<96x16xbf16>, vector<96x16xbf16>, vector<96x96xf32> -> vector<96x96xf32>
    %181 = arith.addf %180, %4 : vector<96x96xf32>
    %cst_147 = arith.constant dense<0xFF800000> : vector<96xf32>
    %182 = vector.multi_reduction <maximumf>, %181, %cst_147 [1] : vector<96x96xf32> to vector<96xf32>
    %183 = vector.shape_cast %182 : vector<96xf32> to vector<96x1xf32>
    %184 = vector.broadcast %183 : vector<96x1xf32> to vector<96x96xf32>
    %185 = arith.subf %181, %184 : vector<96x96xf32>
    %186 = math.exp %185 : vector<96x96xf32>
    %cst_148 = arith.constant dense<0.000000e+00> : vector<96xf32>
    %187 = vector.multi_reduction <add>, %186, %cst_148 [1] : vector<96x96xf32> to vector<96xf32>
    %188 = vector.shape_cast %187 : vector<96xf32> to vector<96x1xf32>
    %189 = vector.broadcast %188 : vector<96x1xf32> to vector<96x96xf32>
    %190 = arith.divf %186, %189 : vector<96x96xf32>
    %191 = arith.truncf %190 : vector<96x96xf32> to vector<96x96xbf16>
    %192 = arith.truncf %177 : vector<96x16xf32> to vector<96x16xbf16>
    %cst_149 = arith.constant dense<0.000000e+00> : vector<96x16xf32>
    %193 = tpu.matmul %191, %192, %cst_149 {dimension_numbers = #tpu.dot_dimension_numbers<[1], [0], [0], [1], [0, 0, 1, 1], [], []>} : vector<96x96xbf16>, vector<96x16xbf16>, vector<96x16xf32> -> vector<96x16xf32>
    %194 = arith.truncf %193 : vector<96x16xf32> to vector<96x16xbf16>
    %c0_150 = arith.constant 0 : index
    %c3_151 = arith.constant 3 : index
    %c0_152 = arith.constant 0 : index
    %c0_153 = arith.constant 0 : index
    %195 = vector.load %arg17[%c0_150, %c3_151, %c0_152, %c0_153] : memref<1x4x16x64xbf16, #tpu.memory_space<vmem>>, vector<1x1x16x64xbf16>
    %196 = vector.shape_cast %195 : vector<1x1x16x64xbf16> to vector<16x64xbf16>
    %cst_154 = arith.constant dense<0.000000e+00> : vector<96x64xf32>
    %197 = tpu.matmul %194, %196, %cst_154 {dimension_numbers = #tpu.dot_dimension_numbers<[1], [0], [0], [1], [0, 0, 1, 1], [], []>} : vector<96x16xbf16>, vector<16x64xbf16>, vector<96x64xf32> -> vector<96x64xf32>
    %198 = arith.addf %156, %197 : vector<96x64xf32>
    %199 = arith.addf %3, %198 : vector<96x64xf32>
    %c0_155 = arith.constant 0 : index
    %c0_156 = arith.constant 0 : index
    %c0_157 = arith.constant 0 : index
    %200 = vector.load %arg18[%c0_155, %c0_156, %c0_157] : memref<1x1x64xf32, #tpu.memory_space<vmem>>, vector<1x1x64xf32>
    %201 = vector.shape_cast %200 : vector<1x1x64xf32> to vector<1x64xf32>
    %202 = vector.broadcast %201 : vector<1x64xf32> to vector<96x64xf32>
    %203 = arith.addf %199, %202 : vector<96x64xf32>
    %c0_158 = arith.constant 0 : index
    %c0_159 = arith.constant 0 : index
    %c0_160 = arith.constant 0 : index
    %204 = vector.load %arg19[%c0_158, %c0_159, %c0_160] : memref<1x1x64xf32, #tpu.memory_space<vmem>>, vector<1x1x64xf32>
    %205 = vector.shape_cast %204 : vector<1x1x64xf32> to vector<1x64xf32>
    %c0_161 = arith.constant 0 : index
    %c0_162 = arith.constant 0 : index
    %c0_163 = arith.constant 0 : index
    %206 = vector.load %arg20[%c0_161, %c0_162, %c0_163] : memref<1x1x64xf32, #tpu.memory_space<vmem>>, vector<1x1x64xf32>
    %207 = vector.shape_cast %206 : vector<1x1x64xf32> to vector<1x64xf32>
    %cst_164 = arith.constant dense<0.000000e+00> : vector<96xf32>
    %208 = vector.multi_reduction <add>, %203, %cst_164 [1] : vector<96x64xf32> to vector<96xf32>
    %209 = vector.shape_cast %208 : vector<96xf32> to vector<96x1xf32>
    %cst_165 = arith.constant 6.400000e+01 : f32
    %210 = vector.broadcast %cst_165 : f32 to vector<96x1xf32>
    %211 = arith.divf %209, %210 : vector<96x1xf32>
    %212 = vector.broadcast %211 : vector<96x1xf32> to vector<96x64xf32>
    %213 = arith.subf %203, %212 : vector<96x64xf32>
    %214 = arith.mulf %213, %213 : vector<96x64xf32>
    %cst_166 = arith.constant dense<0.000000e+00> : vector<96xf32>
    %215 = vector.multi_reduction <add>, %214, %cst_166 [1] : vector<96x64xf32> to vector<96xf32>
    %216 = vector.shape_cast %215 : vector<96xf32> to vector<96x1xf32>
    %cst_167 = arith.constant 6.400000e+01 : f32
    %217 = vector.broadcast %cst_167 : f32 to vector<96x1xf32>
    %218 = arith.divf %216, %217 : vector<96x1xf32>
    %219 = vector.broadcast %211 : vector<96x1xf32> to vector<96x64xf32>
    %220 = arith.subf %203, %219 : vector<96x64xf32>
    %cst_168 = arith.constant 9.99999974E-6 : f32
    %221 = vector.broadcast %cst_168 : f32 to vector<96x1xf32>
    %222 = arith.addf %218, %221 : vector<96x1xf32>
    %223 = math.rsqrt %222 : vector<96x1xf32>
    %224 = vector.broadcast %223 : vector<96x1xf32> to vector<96x64xf32>
    %225 = arith.mulf %220, %224 : vector<96x64xf32>
    %226 = vector.broadcast %205 : vector<1x64xf32> to vector<96x64xf32>
    %227 = arith.mulf %225, %226 : vector<96x64xf32>
    %228 = vector.broadcast %207 : vector<1x64xf32> to vector<96x64xf32>
    %229 = arith.addf %227, %228 : vector<96x64xf32>
    %230 = arith.truncf %229 : vector<96x64xf32> to vector<96x64xbf16>
    %c0_169 = arith.constant 0 : index
    %c0_170 = arith.constant 0 : index
    %c0_171 = arith.constant 0 : index
    %231 = vector.load %arg21[%c0_169, %c0_170, %c0_171] : memref<1x64x256xbf16, #tpu.memory_space<vmem>>, vector<1x64x256xbf16>
    %232 = vector.shape_cast %231 : vector<1x64x256xbf16> to vector<64x256xbf16>
    %cst_172 = arith.constant dense<0.000000e+00> : vector<96x256xf32>
    %233 = tpu.matmul %230, %232, %cst_172 {dimension_numbers = #tpu.dot_dimension_numbers<[1], [0], [0], [1], [0, 0, 1, 1], [], []>} : vector<96x64xbf16>, vector<64x256xbf16>, vector<96x256xf32> -> vector<96x256xf32>
    %c0_173 = arith.constant 0 : index
    %c0_174 = arith.constant 0 : index
    %c0_175 = arith.constant 0 : index
    %234 = vector.load %arg22[%c0_173, %c0_174, %c0_175] : memref<1x1x256xf32, #tpu.memory_space<vmem>>, vector<1x1x256xf32>
    %235 = vector.shape_cast %234 : vector<1x1x256xf32> to vector<1x256xf32>
    %236 = vector.broadcast %235 : vector<1x256xf32> to vector<96x256xf32>
    %237 = arith.addf %233, %236 : vector<96x256xf32>
    %cst_176 = arith.constant 1.702000e+00 : f32
    %238 = vector.broadcast %cst_176 : f32 to vector<96x256xf32>
    %239 = arith.mulf %238, %237 : vector<96x256xf32>
    %240 = arith.negf %239 : vector<96x256xf32>
    %241 = math.exp %240 : vector<96x256xf32>
    %cst_177 = arith.constant 1.000000e+00 : f32
    %242 = vector.broadcast %cst_177 : f32 to vector<96x256xf32>
    %243 = arith.addf %242, %241 : vector<96x256xf32>
    %244 = arith.divf %242, %243 : vector<96x256xf32>
    %245 = arith.mulf %237, %244 : vector<96x256xf32>
    %246 = arith.truncf %245 : vector<96x256xf32> to vector<96x256xbf16>
    %c0_178 = arith.constant 0 : index
    %c0_179 = arith.constant 0 : index
    %c0_180 = arith.constant 0 : index
    %247 = vector.load %arg23[%c0_178, %c0_179, %c0_180] : memref<1x256x64xbf16, #tpu.memory_space<vmem>>, vector<1x256x64xbf16>
    %248 = vector.shape_cast %247 : vector<1x256x64xbf16> to vector<256x64xbf16>
    %cst_181 = arith.constant dense<0.000000e+00> : vector<96x64xf32>
    %249 = tpu.matmul %246, %248, %cst_181 {dimension_numbers = #tpu.dot_dimension_numbers<[1], [0], [0], [1], [0, 0, 1, 1], [], []>} : vector<96x256xbf16>, vector<256x64xbf16>, vector<96x64xf32> -> vector<96x64xf32>
    %c0_182 = arith.constant 0 : index
    %c0_183 = arith.constant 0 : index
    %c0_184 = arith.constant 0 : index
    %250 = vector.load %arg24[%c0_182, %c0_183, %c0_184] : memref<1x1x64xf32, #tpu.memory_space<vmem>>, vector<1x1x64xf32>
    %251 = vector.shape_cast %250 : vector<1x1x64xf32> to vector<1x64xf32>
    %252 = vector.broadcast %251 : vector<1x64xf32> to vector<96x64xf32>
    %253 = arith.addf %249, %252 : vector<96x64xf32>
    %254 = arith.addf %203, %253 : vector<96x64xf32>
    %c0_185 = arith.constant 0 : index
    %c0_186 = arith.constant 0 : index
    %255 = vector.load %arg30[%c0_185, %c0_186] : memref<96x64xf32, #tpu.memory_space<vmem>>, vector<96x64xf32>
    tpu.vector_store %arg30[%c0_185, %c0_186], %254 {strides = array<i32>} : memref<96x64xf32, #tpu.memory_space<vmem>>, vector<96x64xf32>,
    %c1_i32 = arith.constant 1 : i32
    %256 = arith.cmpi eq, %arg1, %c1_i32 : i32
    %257 = arith.extui %256 : i1 to i32
    %c0_i32_187 = arith.constant 0 : i32
    %258 = arith.cmpi ne, %257, %c0_i32_187 : i32
    scf.if %258 {
      %c0_188 = arith.constant 0 : index
      %c0_189 = arith.constant 0 : index
      %259 = vector.load %arg5[%c0_188, %c0_189] : memref<4x96xbf16, #tpu.memory_space<vmem>>, vector<4x96xbf16>
      %260 = arith.truncf %254 : vector<96x64xf32> to vector<96x64xbf16>
      %cst_190 = arith.constant dense<0.000000e+00> : vector<4x64xf32>
      %261 = tpu.matmul %259, %260, %cst_190 {dimension_numbers = #tpu.dot_dimension_numbers<[1], [0], [0], [1], [0, 0, 1, 1], [], []>} : vector<4x96xbf16>, vector<96x64xbf16>, vector<4x64xf32> -> vector<4x64xf32>
      %c0_191 = arith.constant 0 : index
      %c0_192 = arith.constant 0 : index
      %262 = vector.load %arg25[%c0_191, %c0_192] : memref<1x64xf32, #tpu.memory_space<vmem>>, vector<1x64xf32>
      %c0_193 = arith.constant 0 : index
      %c0_194 = arith.constant 0 : index
      %263 = vector.load %arg26[%c0_193, %c0_194] : memref<1x64xf32, #tpu.memory_space<vmem>>, vector<1x64xf32>
      %cst_195 = arith.constant dense<0.000000e+00> : vector<4xf32>
      %264 = vector.multi_reduction <add>, %261, %cst_195 [1] : vector<4x64xf32> to vector<4xf32>
      %265 = vector.shape_cast %264 : vector<4xf32> to vector<4x1xf32>
      %cst_196 = arith.constant 6.400000e+01 : f32
      %266 = vector.broadcast %cst_196 : f32 to vector<4x1xf32>
      %267 = arith.divf %265, %266 : vector<4x1xf32>
      %268 = vector.broadcast %267 : vector<4x1xf32> to vector<4x64xf32>
      %269 = arith.subf %261, %268 : vector<4x64xf32>
      %270 = arith.mulf %269, %269 : vector<4x64xf32>
      %cst_197 = arith.constant dense<0.000000e+00> : vector<4xf32>
      %271 = vector.multi_reduction <add>, %270, %cst_197 [1] : vector<4x64xf32> to vector<4xf32>
      %272 = vector.shape_cast %271 : vector<4xf32> to vector<4x1xf32>
      %cst_198 = arith.constant 6.400000e+01 : f32
      %273 = vector.broadcast %cst_198 : f32 to vector<4x1xf32>
      %274 = arith.divf %272, %273 : vector<4x1xf32>
      %275 = vector.broadcast %267 : vector<4x1xf32> to vector<4x64xf32>
      %276 = arith.subf %261, %275 : vector<4x64xf32>
      %cst_199 = arith.constant 9.99999974E-6 : f32
      %277 = vector.broadcast %cst_199 : f32 to vector<4x1xf32>
      %278 = arith.addf %274, %277 : vector<4x1xf32>
      %279 = math.rsqrt %278 : vector<4x1xf32>
      %280 = vector.broadcast %279 : vector<4x1xf32> to vector<4x64xf32>
      %281 = arith.mulf %276, %280 : vector<4x64xf32>
      %282 = vector.broadcast %262 : vector<1x64xf32> to vector<4x64xf32>
      %283 = arith.mulf %281, %282 : vector<4x64xf32>
      %284 = vector.broadcast %263 : vector<1x64xf32> to vector<4x64xf32>
      %285 = arith.addf %283, %284 : vector<4x64xf32>
      %286 = arith.truncf %285 : vector<4x64xf32> to vector<4x64xbf16>
      %c0_200 = arith.constant 0 : index
      %c0_201 = arith.constant 0 : index
      %287 = vector.load %arg27[%c0_200, %c0_201] : memref<64x16xbf16, #tpu.memory_space<vmem>>, vector<64x16xbf16>
      %cst_202 = arith.constant dense<0.000000e+00> : vector<4x16xf32>
      %288 = tpu.matmul %286, %287, %cst_202 {dimension_numbers = #tpu.dot_dimension_numbers<[1], [0], [0], [1], [0, 0, 1, 1], [], []>} : vector<4x64xbf16>, vector<64x16xbf16>, vector<4x16xf32> -> vector<4x16xf32>
      %c0_203 = arith.constant 0 : index
      %c0_204 = arith.constant 0 : index
      %289 = vector.load %arg28[%c0_203, %c0_204] : memref<1x16xf32, #tpu.memory_space<vmem>>, vector<1x16xf32>
      %290 = vector.broadcast %289 : vector<1x16xf32> to vector<4x16xf32>
      %291 = arith.addf %288, %290 : vector<4x16xf32>
      %c0_205 = arith.constant 0 : index
      %c0_206 = arith.constant 0 : index
      %c0_207 = arith.constant 0 : index
      %292 = vector.load %arg29[%c0_205, %c0_206, %c0_207] : memref<1x4x16xf32, #tpu.memory_space<vmem>>, vector<1x4x16xf32>
      %293 = vector.shape_cast %292 : vector<1x4x16xf32> to vector<4x16xf32>
      %294 = vector.shape_cast %291 : vector<4x16xf32> to vector<1x4x16xf32>
      tpu.vector_store %arg29[%c0_205, %c0_206, %c0_207], %294 {strides = array<i32>} : memref<1x4x16xf32, #tpu.memory_space<vmem>>, vector<1x4x16xf32>,
    } else {
    }
    return
  }
  func.func @transform_0(%arg0: i32, %arg1: i32) -> (i32, i32, i32) {
    %c0_i32 = arith.constant 0 : i32
    %c0_i32_0 = arith.constant 0 : i32
    %c0_i32_1 = arith.constant 0 : i32
    return %arg0, %c0_i32, %c0_i32_0 : i32, i32, i32
  }
  func.func @transform_1(%arg0: i32, %arg1: i32) -> (i32, i32) {
    %c0_i32 = arith.constant 0 : i32
    %c0_i32_0 = arith.constant 0 : i32
    %c0_i32_1 = arith.constant 0 : i32
    return %c0_i32, %c0_i32_0 : i32, i32
  }
  func.func @transform_2(%arg0: i32, %arg1: i32) -> (i32, i32) {
    %c0_i32 = arith.constant 0 : i32
    %c0_i32_0 = arith.constant 0 : i32
    %c0_i32_1 = arith.constant 0 : i32
    return %c0_i32, %c0_i32_0 : i32, i32
  }
  func.func @transform_3(%arg0: i32, %arg1: i32) -> (i32, i32) {
    %c0_i32 = arith.constant 0 : i32
    %c0_i32_0 = arith.constant 0 : i32
    %c0_i32_1 = arith.constant 0 : i32
    return %c0_i32, %c0_i32_0 : i32, i32
  }
  func.func @transform_4(%arg0: i32, %arg1: i32) -> (i32, i32) {
    %c0_i32 = arith.constant 0 : i32
    %c0_i32_0 = arith.constant 0 : i32
    %c0_i32_1 = arith.constant 0 : i32
    return %c0_i32, %c0_i32_0 : i32, i32
  }
  func.func @transform_5(%arg0: i32, %arg1: i32) -> (i32, i32) {
    %c0_i32 = arith.constant 0 : i32
    %c0_i32_0 = arith.constant 0 : i32
    %c0_i32_1 = arith.constant 0 : i32
    return %c0_i32, %c0_i32_0 : i32, i32
  }
  func.func @transform_6(%arg0: i32, %arg1: i32) -> (i32, i32) {
    %c0_i32 = arith.constant 0 : i32
    %c0_i32_0 = arith.constant 0 : i32
    %c0_i32_1 = arith.constant 0 : i32
    return %c0_i32, %c0_i32_0 : i32, i32
  }
  func.func @transform_7(%arg0: i32, %arg1: i32) -> (i32, i32, i32) {
    %c0_i32 = arith.constant 0 : i32
    %c0_i32_0 = arith.constant 0 : i32
    %c0_i32_1 = arith.constant 0 : i32
    return %arg1, %c0_i32, %c0_i32_0 : i32, i32, i32
  }
  func.func @transform_8(%arg0: i32, %arg1: i32) -> (i32, i32, i32) {
    %c0_i32 = arith.constant 0 : i32
    %c0_i32_0 = arith.constant 0 : i32
    %c0_i32_1 = arith.constant 0 : i32
    return %arg1, %c0_i32, %c0_i32_0 : i32, i32, i32
  }
  func.func @transform_9(%arg0: i32, %arg1: i32) -> (i32, i32, i32, i32) {
    %c0_i32 = arith.constant 0 : i32
    %c0_i32_0 = arith.constant 0 : i32
    %c0_i32_1 = arith.constant 0 : i32
    %c0_i32_2 = arith.constant 0 : i32
    return %arg1, %c0_i32, %c0_i32_0, %c0_i32_1 : i32, i32, i32, i32
  }
  func.func @transform_10(%arg0: i32, %arg1: i32) -> (i32, i32, i32, i32) {
    %c0_i32 = arith.constant 0 : i32
    %c0_i32_0 = arith.constant 0 : i32
    %c0_i32_1 = arith.constant 0 : i32
    %c0_i32_2 = arith.constant 0 : i32
    return %arg1, %c0_i32, %c0_i32_0, %c0_i32_1 : i32, i32, i32, i32
  }
  func.func @transform_11(%arg0: i32, %arg1: i32) -> (i32, i32, i32, i32) {
    %c0_i32 = arith.constant 0 : i32
    %c0_i32_0 = arith.constant 0 : i32
    %c0_i32_1 = arith.constant 0 : i32
    %c0_i32_2 = arith.constant 0 : i32
    return %arg1, %c0_i32, %c0_i32_0, %c0_i32_1 : i32, i32, i32, i32
  }
  func.func @transform_12(%arg0: i32, %arg1: i32) -> (i32, i32, i32, i32) {
    %c0_i32 = arith.constant 0 : i32
    %c0_i32_0 = arith.constant 0 : i32
    %c0_i32_1 = arith.constant 0 : i32
    %c0_i32_2 = arith.constant 0 : i32
    return %arg1, %c0_i32, %c0_i32_0, %c0_i32_1 : i32, i32, i32, i32
  }
  func.func @transform_13(%arg0: i32, %arg1: i32) -> (i32, i32, i32, i32) {
    %c0_i32 = arith.constant 0 : i32
    %c0_i32_0 = arith.constant 0 : i32
    %c0_i32_1 = arith.constant 0 : i32
    %c0_i32_2 = arith.constant 0 : i32
    return %arg1, %c0_i32, %c0_i32_0, %c0_i32_1 : i32, i32, i32, i32
  }
  func.func @transform_14(%arg0: i32, %arg1: i32) -> (i32, i32, i32, i32) {
    %c0_i32 = arith.constant 0 : i32
    %c0_i32_0 = arith.constant 0 : i32
    %c0_i32_1 = arith.constant 0 : i32
    %c0_i32_2 = arith.constant 0 : i32
    return %arg1, %c0_i32, %c0_i32_0, %c0_i32_1 : i32, i32, i32, i32
  }
  func.func @transform_15(%arg0: i32, %arg1: i32) -> (i32, i32, i32, i32) {
    %c0_i32 = arith.constant 0 : i32
    %c0_i32_0 = arith.constant 0 : i32
    %c0_i32_1 = arith.constant 0 : i32
    %c0_i32_2 = arith.constant 0 : i32
    return %arg1, %c0_i32, %c0_i32_0, %c0_i32_1 : i32, i32, i32, i32
  }
  func.func @transform_16(%arg0: i32, %arg1: i32) -> (i32, i32, i32) {
    %c0_i32 = arith.constant 0 : i32
    %c0_i32_0 = arith.constant 0 : i32
    %c0_i32_1 = arith.constant 0 : i32
    return %arg1, %c0_i32, %c0_i32_0 : i32, i32, i32
  }
  func.func @transform_17(%arg0: i32, %arg1: i32) -> (i32, i32, i32) {
    %c0_i32 = arith.constant 0 : i32
    %c0_i32_0 = arith.constant 0 : i32
    %c0_i32_1 = arith.constant 0 : i32
    return %arg1, %c0_i32, %c0_i32_0 : i32, i32, i32
  }
  func.func @transform_18(%arg0: i32, %arg1: i32) -> (i32, i32, i32) {
    %c0_i32 = arith.constant 0 : i32
    %c0_i32_0 = arith.constant 0 : i32
    %c0_i32_1 = arith.constant 0 : i32
    return %arg1, %c0_i32, %c0_i32_0 : i32, i32, i32
  }
  func.func @transform_19(%arg0: i32, %arg1: i32) -> (i32, i32, i32) {
    %c0_i32 = arith.constant 0 : i32
    %c0_i32_0 = arith.constant 0 : i32
    %c0_i32_1 = arith.constant 0 : i32
    return %arg1, %c0_i32, %c0_i32_0 : i32, i32, i32
  }
  func.func @transform_20(%arg0: i32, %arg1: i32) -> (i32, i32, i32) {
    %c0_i32 = arith.constant 0 : i32
    %c0_i32_0 = arith.constant 0 : i32
    %c0_i32_1 = arith.constant 0 : i32
    return %arg1, %c0_i32, %c0_i32_0 : i32, i32, i32
  }
  func.func @transform_21(%arg0: i32, %arg1: i32) -> (i32, i32, i32) {
    %c0_i32 = arith.constant 0 : i32
    %c0_i32_0 = arith.constant 0 : i32
    %c0_i32_1 = arith.constant 0 : i32
    return %arg1, %c0_i32, %c0_i32_0 : i32, i32, i32
  }
  func.func @transform_22(%arg0: i32, %arg1: i32) -> (i32, i32, i32) {
    %c0_i32 = arith.constant 0 : i32
    %c0_i32_0 = arith.constant 0 : i32
    %c0_i32_1 = arith.constant 0 : i32
    return %arg1, %c0_i32, %c0_i32_0 : i32, i32, i32
  }
  func.func @transform_23(%arg0: i32, %arg1: i32) -> (i32, i32) {
    %c0_i32 = arith.constant 0 : i32
    %c0_i32_0 = arith.constant 0 : i32
    %c0_i32_1 = arith.constant 0 : i32
    return %c0_i32, %c0_i32_0 : i32, i32
  }
  func.func @transform_24(%arg0: i32, %arg1: i32) -> (i32, i32) {
    %c0_i32 = arith.constant 0 : i32
    %c0_i32_0 = arith.constant 0 : i32
    %c0_i32_1 = arith.constant 0 : i32
    return %c0_i32, %c0_i32_0 : i32, i32
  }
  func.func @transform_25(%arg0: i32, %arg1: i32) -> (i32, i32) {
    %c0_i32 = arith.constant 0 : i32
    %c0_i32_0 = arith.constant 0 : i32
    %c0_i32_1 = arith.constant 0 : i32
    return %c0_i32, %c0_i32_0 : i32, i32
  }
  func.func @transform_26(%arg0: i32, %arg1: i32) -> (i32, i32) {
    %c0_i32 = arith.constant 0 : i32
    %c0_i32_0 = arith.constant 0 : i32
    %c0_i32_1 = arith.constant 0 : i32
    return %c0_i32, %c0_i32_0 : i32, i32
  }
  func.func @transform_27(%arg0: i32, %arg1: i32) -> (i32, i32, i32) {
    %c0_i32 = arith.constant 0 : i32
    %c0_i32_0 = arith.constant 0 : i32
    %c0_i32_1 = arith.constant 0 : i32
    return %arg0, %c0_i32, %c0_i32_0 : i32, i32, i32
  }
}

</mosaic_0001>

<llo_original>
// kernel: _lambda_.1
$region0: #{_lambda_.1}
  #allocation0 [shape = 'u32[]', space=smem, size = 0x4, offset = 0x4, fixed_abs, tag = 'smem constant byte address 0x4 - core index']
  #allocation1 [shape = 'u32[144,128]{1,0:T(1,128)}', space=vmem, size = 0x12000, scoped, tag = 'internal scratch']
  #allocation2 [shape = 'f32[96,64]{1,0:T(8,128)}', space=vmem, size = 0xc000, scoped, tag = 'scratch operand']
  %s0 = inlined_call_operand.vmem [shape: bf16[2,96,192], index: 0, kind: input, shape index: {}]
  %s1 = inlined_call_operand.vmem [shape: f32[96,64], index: 1, kind: input, shape index: {}]
  %s2 = inlined_call_operand.vmem [shape: f32[96,96], index: 2, kind: input, shape index: {}]
  %s3 = inlined_call_operand.vmem [shape: bf16[4,96], index: 3, kind: input, shape index: {}]
  %s4 = inlined_call_operand.vmem [shape: f32[1,64], index: 4, kind: input, shape index: {}]
  %s5 = inlined_call_operand.vmem [shape: f32[1,64], index: 5, kind: input, shape index: {}]
  %s6 = inlined_call_operand.vmem [shape: bf16[192,64], index: 6, kind: input, shape index: {}]
  %s7 = inlined_call_operand.vmem [shape: f32[2,1,64], index: 7, kind: input, shape index: {}]
  %s8 = inlined_call_operand.vmem [shape: f32[2,1,64], index: 8, kind: input, shape index: {}]
  %s9 = inlined_call_operand.vmem [shape: bf16[2,4,64,16], index: 9, kind: input, shape index: {}]
  %s10 = inlined_call_operand.vmem [shape: f32[2,4,1,16], index: 10, kind: input, shape index: {}]
  %s11 = inlined_call_operand.vmem [shape: bf16[2,4,64,16], index: 11, kind: input, shape index: {}]
  %s12 = inlined_call_operand.vmem [shape: f32[2,4,1,16], index: 12, kind: input, shape index: {}]
  %s13 = inlined_call_operand.vmem [shape: bf16[2,4,64,16], index: 13, kind: input, shape index: {}]
  %s14 = inlined_call_operand.vmem [shape: f32[2,4,1,16], index: 14, kind: input, shape index: {}]
  %s15 = inlined_call_operand.vmem [shape: bf16[2,4,16,64], index: 15, kind: input, shape index: {}]
  %s16 = inlined_call_operand.vmem [shape: f32[2,1,64], index: 16, kind: input, shape index: {}]
  %s17 = inlined_call_operand.vmem [shape: f32[2,1,64], index: 17, kind: input, shape index: {}]
  %s18 = inlined_call_operand.vmem [shape: f32[2,1,64], index: 18, kind: input, shape index: {}]
  %s19 = inlined_call_operand.vmem [shape: bf16[2,64,256], index: 19, kind: input, shape index: {}]
  %s20 = inlined_call_operand.vmem [shape: f32[2,1,256], index: 20, kind: input, shape index: {}]
  %s21 = inlined_call_operand.vmem [shape: bf16[2,256,64], index: 21, kind: input, shape index: {}]
  %s22 = inlined_call_operand.vmem [shape: f32[2,1,64], index: 22, kind: input, shape index: {}]
  %s23 = inlined_call_operand.vmem [shape: f32[1,64], index: 23, kind: input, shape index: {}]
  %s24 = inlined_call_operand.vmem [shape: f32[1,64], index: 24, kind: input, shape index: {}]
  %s25 = inlined_call_operand.vmem [shape: bf16[64,16], index: 25, kind: input, shape index: {}]
  %s26 = inlined_call_operand.vmem [shape: f32[1,16], index: 26, kind: input, shape index: {}]
  %s27 = inlined_call_operand.hbm [shape: f32[2,4,16], index: 27, kind: output, shape index: {}]
  %s28 = sld [smem:[#allocation0]]
  $region149: #{_lambda_.1} parent=0
    _
  %s30 = ssub.s32 1, %s28
  %s31 = scalar_select 0, %s30, %s28
  $region1: #{_lambda_.1} parent=0
    #allocation3 [shape = 'u8[4096]{0}', space=vmem, size = 0x1000, scoped, tag = 'output window, operand 0']
    #allocation4 [shape = 's32[2]{0}', space=sflag, size = 0x8, scoped, tag = 'scoped memory for _lambda_.1']
    %32 = vsyncpa [#allocation4], 0
    %s33 = scalar_lea.sflag [#allocation4], 1
    %34 = vsyncpa %s33, 0
    loop: start=0, step=1, limit=6
    $region2: #{_lambda_.1} parent=1 // loop_pre_header
      _
    $region3: #{_lambda_.1} parent=1 // loop_header
      %s36 = sphi 0, %s40
      %p37 = scmp.ge.s32.totalorder %s36, 6
      %s43 = sphi 0, %s55
      %s44 = sphi 0, %s51
      %s45 = sphi 0, %s43
      %s46 = sphi 0, %s44
      %s47 = sphi 0, %s45
      %s48 = sphi 0, %s46
      %s58 = sphi 0, %s60
      %s61 = sphi 0, %s58
      %s62 = sphi 0, %s61
      %s78 = sphi 0, %s62
      %s82 = sphi 0, %s82
      %s84 = sphi 0, %s82
      %s85 = sphi 0, %s84
      %s99 = sphi 0, %s85
      %s103 = sphi 0, %s103
      %s105 = sphi 0, %s103
      %s106 = sphi 0, %s105
      %s120 = sphi 0, %s106
      %s124 = sphi 0, %s124
      %s126 = sphi 0, %s124
      %s127 = sphi 0, %s126
      %s141 = sphi 0, %s127
      %s145 = sphi 0, %s145
      %s147 = sphi 0, %s145
      %s148 = sphi 0, %s147
      %s162 = sphi 0, %s148
      %s166 = sphi 0, %s166
      %s168 = sphi 0, %s166
      %s169 = sphi 0, %s168
      %s183 = sphi 0, %s169
      %s187 = sphi 0, %s187
      %s189 = sphi 0, %s187
      %s190 = sphi 0, %s189
      %s204 = sphi 0, %s190
      %s210 = sphi 0, %s212
      %s213 = sphi 0, %s210
      %s214 = sphi 0, %s213
      %s230 = sphi 0, %s214
      %s236 = sphi 0, %s238
      %s239 = sphi 0, %s236
      %s240 = sphi 0, %s239
      %s256 = sphi 0, %s240
      %s262 = sphi 0, %s264
      %s265 = sphi 0, %s262
      %s266 = sphi 0, %s265
      %s282 = sphi 0, %s266
      %s288 = sphi 0, %s290
      %s291 = sphi 0, %s288
      %s292 = sphi 0, %s291
      %s308 = sphi 0, %s292
      %s314 = sphi 0, %s316
      %s317 = sphi 0, %s314
      %s318 = sphi 0, %s317
      %s334 = sphi 0, %s318
      %s340 = sphi 0, %s342
      %s343 = sphi 0, %s340
      %s344 = sphi 0, %s343
      %s360 = sphi 0, %s344
      %s366 = sphi 0, %s368
      %s369 = sphi 0, %s366
      %s370 = sphi 0, %s369
      %s386 = sphi 0, %s370
      %s392 = sphi 0, %s394
      %s395 = sphi 0, %s392
      %s396 = sphi 0, %s395
      %s412 = sphi 0, %s396
      %s418 = sphi 0, %s420
      %s421 = sphi 0, %s418
      %s422 = sphi 0, %s421
      %s438 = sphi 0, %s422
      %s444 = sphi 0, %s446
      %s447 = sphi 0, %s444
      %s448 = sphi 0, %s447
      %s464 = sphi 0, %s448
      %s470 = sphi 0, %s472
      %s473 = sphi 0, %s470
      %s474 = sphi 0, %s473
      %s490 = sphi 0, %s474
      %s496 = sphi 0, %s498
      %s499 = sphi 0, %s496
      %s500 = sphi 0, %s499
      %s516 = sphi 0, %s500
      %s522 = sphi 0, %s524
      %s525 = sphi 0, %s522
      %s526 = sphi 0, %s525
      %s542 = sphi 0, %s526
      %s548 = sphi 0, %s550
      %s551 = sphi 0, %s548
      %s552 = sphi 0, %s551
      %s568 = sphi 0, %s552
      %s574 = sphi 0, %s576
      %s577 = sphi 0, %s574
      %s578 = sphi 0, %s577
      %s594 = sphi 0, %s578
      %s600 = sphi 0, %s602
      %s603 = sphi 0, %s600
      %s604 = sphi 0, %s603
      %s620 = sphi 0, %s604
      %s624 = sphi 0, %s624
      %s626 = sphi 0, %s624
      %s627 = sphi 0, %s626
      %s641 = sphi 0, %s627
      %s645 = sphi 0, %s645
      %s647 = sphi 0, %s645
      %s648 = sphi 0, %s647
      %s662 = sphi 0, %s648
      %s666 = sphi 0, %s666
      %s668 = sphi 0, %s666
      %s669 = sphi 0, %s668
      %s683 = sphi 0, %s669
      %s687 = sphi 0, %s687
      %s689 = sphi 0, %s687
      %s690 = sphi 0, %s689
      %s704 = sphi 0, %s690
      %s710 = sphi 0, %s712
      %s713 = sphi 0, %s710
      %s714 = sphi 0, %s713
      %s730 = sphi 0, %s714
    $region4: #{_lambda_.1} parent=1 // loop_header_branch
      %39 = sbr.rel (%p37) target = $region8
    $region5: #{_lambda_.1} parent=1 // loop_body
      %s41 = ssub.s32 %s36, 1
      %s42 = ssub.s32 %s36, 2
      %s49 = sadd.s32 1, %s44
      %p50 = scmp.ge.s32.totalorder %s49, 2
      %s51 = scalar_select %p50, 0, %s49
      %s52 = sadd.s32 1, %s43
      %s53 = scalar_select %p50, %s52, %s43
      %p54 = scmp.ge.s32.totalorder %s53, 2
      %s55 = scalar_select %p54, 0, %s53
      %s56 = ssub.s32 %s43, %s55
      %p57 = scmp.eq.s32.totalorder %s56, 0
      %s59 = sadd.s32 %s58, 1
      %s60 = scalar_select %p57, %s58, %s59
      %p63 = pneg %p57
      %p64 = scmp.eq.s32.totalorder %s36, 3
      %p65 = por %p63, %p64
      %p66 = scmp.ne.s32.totalorder %s58, %s61
      %p67 = scmp.eq.s32.totalorder %s36, 0
      %p68 = por %p66, %p67
      %p69 = scmp.ne.s32.totalorder %s58, %s61
      %p70 = scmp.eq.s32.totalorder %s41, 3
      %p71 = por %p69, %p70
      %p72 = scmp.ne.s32.totalorder %s61, %s62
      %p73 = scmp.eq.s32.totalorder %s41, 0
      %p74 = por %p72, %p73
      %p75 = scmp.ne.s32.totalorder %s61, %s62
      %p76 = scmp.eq.s32.totalorder %s42, 3
      %p77 = por %p75, %p76
      %p79 = scmp.ne.s32.totalorder %s62, %s78
      %p80 = scmp.eq.s32.totalorder %s42, 0
      %p81 = por %p79, %p80
      %s83 = sadd.s32 %s82, 1
      %p86 = scmp.eq.s32.totalorder %s36, 3
      %p87 = scmp.ne.s32.totalorder %s82, %s84
      %p88 = scmp.eq.s32.totalorder %s36, 0
      %p89 = por %p87, %p88
      %p90 = scmp.ne.s32.totalorder %s82, %s84
      %p91 = scmp.eq.s32.totalorder %s41, 3
      %p92 = por %p90, %p91
      %p93 = scmp.ne.s32.totalorder %s84, %s85
      %p94 = scmp.eq.s32.totalorder %s41, 0
      %p95 = por %p93, %p94
      %p96 = scmp.ne.s32.totalorder %s84, %s85
      %p97 = scmp.eq.s32.totalorder %s42, 3
      %p98 = por %p96, %p97
      %p100 = scmp.ne.s32.totalorder %s85, %s99
      %p101 = scmp.eq.s32.totalorder %s42, 0
      %p102 = por %p100, %p101
      %s104 = sadd.s32 %s103, 1
      %p107 = scmp.eq.s32.totalorder %s36, 3
      %p108 = scmp.ne.s32.totalorder %s103, %s105
      %p109 = scmp.eq.s32.totalorder %s36, 0
      %p110 = por %p108, %p109
      %p111 = scmp.ne.s32.totalorder %s103, %s105
      %p112 = scmp.eq.s32.totalorder %s41, 3
      %p113 = por %p111, %p112
      %p114 = scmp.ne.s32.totalorder %s105, %s106
      %p115 = scmp.eq.s32.totalorder %s41, 0
      %p116 = por %p114, %p115
      %p117 = scmp.ne.s32.totalorder %s105, %s106
      %p118 = scmp.eq.s32.totalorder %s42, 3
      %p119 = por %p117, %p118
      %p121 = scmp.ne.s32.totalorder %s106, %s120
      %p122 = scmp.eq.s32.totalorder %s42, 0
      %p123 = por %p121, %p122
      %s125 = sadd.s32 %s124, 1
      %p128 = scmp.eq.s32.totalorder %s36, 3
      %p129 = scmp.ne.s32.totalorder %s124, %s126
      %p130 = scmp.eq.s32.totalorder %s36, 0
      %p131 = por %p129, %p130
      %p132 = scmp.ne.s32.totalorder %s124, %s126
      %p133 = scmp.eq.s32.totalorder %s41, 3
      %p134 = por %p132, %p133
      %p135 = scmp.ne.s32.totalorder %s126, %s127
      %p136 = scmp.eq.s32.totalorder %s41, 0
      %p137 = por %p135, %p136
      %p138 = scmp.ne.s32.totalorder %s126, %s127
      %p139 = scmp.eq.s32.totalorder %s42, 3
      %p140 = por %p138, %p139
      %p142 = scmp.ne.s32.totalorder %s127, %s141
      %p143 = scmp.eq.s32.totalorder %s42, 0
      %p144 = por %p142, %p143
      %s146 = sadd.s32 %s145, 1
      %p149 = scmp.eq.s32.totalorder %s36, 3
      %p150 = scmp.ne.s32.totalorder %s145, %s147
      %p151 = scmp.eq.s32.totalorder %s36, 0
      %p152 = por %p150, %p151
      %p153 = scmp.ne.s32.totalorder %s145, %s147
      %p154 = scmp.eq.s32.totalorder %s41, 3
      %p155 = por %p153, %p154
      %p156 = scmp.ne.s32.totalorder %s147, %s148
      %p157 = scmp.eq.s32.totalorder %s41, 0
      %p158 = por %p156, %p157
      %p159 = scmp.ne.s32.totalorder %s147, %s148
      %p160 = scmp.eq.s32.totalorder %s42, 3
      %p161 = por %p159, %p160
      %p163 = scmp.ne.s32.totalorder %s148, %s162
      %p164 = scmp.eq.s32.totalorder %s42, 0
      %p165 = por %p163, %p164
      %s167 = sadd.s32 %s166, 1
      %p170 = scmp.eq.s32.totalorder %s36, 3
      %p171 = scmp.ne.s32.totalorder %s166, %s168
      %p172 = scmp.eq.s32.totalorder %s36, 0
      %p173 = por %p171, %p172
      %p174 = scmp.ne.s32.totalorder %s166, %s168
      %p175 = scmp.eq.s32.totalorder %s41, 3
      %p176 = por %p174, %p175
      %p177 = scmp.ne.s32.totalorder %s168, %s169
      %p178 = scmp.eq.s32.totalorder %s41, 0
      %p179 = por %p177, %p178
      %p180 = scmp.ne.s32.totalorder %s168, %s169
      %p181 = scmp.eq.s32.totalorder %s42, 3
      %p182 = por %p180, %p181
      %p184 = scmp.ne.s32.totalorder %s169, %s183
      %p185 = scmp.eq.s32.totalorder %s42, 0
      %p186 = por %p184, %p185
      %s188 = sadd.s32 %s187, 1
      %p191 = scmp.eq.s32.totalorder %s36, 3
      %p192 = scmp.ne.s32.totalorder %s187, %s189
      %p193 = scmp.eq.s32.totalorder %s36, 0
      %p194 = por %p192, %p193
      %p195 = scmp.ne.s32.totalorder %s187, %s189
      %p196 = scmp.eq.s32.totalorder %s41, 3
      %p197 = por %p195, %p196
      %p198 = scmp.ne.s32.totalorder %s189, %s190
      %p199 = scmp.eq.s32.totalorder %s41, 0
      %p200 = por %p198, %p199
      %p201 = scmp.ne.s32.totalorder %s189, %s190
      %p202 = scmp.eq.s32.totalorder %s42, 3
      %p203 = por %p201, %p202
      %p205 = scmp.ne.s32.totalorder %s190, %s204
      %p206 = scmp.eq.s32.totalorder %s42, 0
      %p207 = por %p205, %p206
      %s208 = ssub.s32 %s44, %s51
      %p209 = scmp.eq.s32.totalorder %s208, 0
      %s211 = sadd.s32 %s210, 1
      %s212 = scalar_select %p209, %s210, %s211
      %p215 = pneg %p209
      %p216 = scmp.eq.s32.totalorder %s36, 3
      %p217 = por %p215, %p216
      %p218 = scmp.ne.s32.totalorder %s210, %s213
      %p219 = scmp.eq.s32.totalorder %s36, 0
      %p220 = por %p218, %p219
      %p221 = scmp.ne.s32.totalorder %s210, %s213
      %p222 = scmp.eq.s32.totalorder %s41, 3
      %p223 = por %p221, %p222
      %p224 = scmp.ne.s32.totalorder %s213, %s214
      %p225 = scmp.eq.s32.totalorder %s41, 0
      %p226 = por %p224, %p225
      %p227 = scmp.ne.s32.totalorder %s213, %s214
      %p228 = scmp.eq.s32.totalorder %s42, 3
      %p229 = por %p227, %p228
      %p231 = scmp.ne.s32.totalorder %s214, %s230
      %p232 = scmp.eq.s32.totalorder %s42, 0
      %p233 = por %p231, %p232
      %s234 = ssub.s32 %s44, %s51
      %p235 = scmp.eq.s32.totalorder %s234, 0
      %s237 = sadd.s32 %s236, 1
      %s238 = scalar_select %p235, %s236, %s237
      %p241 = pneg %p235
      %p242 = scmp.eq.s32.totalorder %s36, 3
      %p243 = por %p241, %p242
      %p244 = scmp.ne.s32.totalorder %s236, %s239
      %p245 = scmp.eq.s32.totalorder %s36, 0
      %p246 = por %p244, %p245
      %p247 = scmp.ne.s32.totalorder %s236, %s239
      %p248 = scmp.eq.s32.totalorder %s41, 3
      %p249 = por %p247, %p248
      %p250 = scmp.ne.s32.totalorder %s239, %s240
      %p251 = scmp.eq.s32.totalorder %s41, 0
      %p252 = por %p250, %p251
      %p253 = scmp.ne.s32.totalorder %s239, %s240
      %p254 = scmp.eq.s32.totalorder %s42, 3
      %p255 = por %p253, %p254
      %p257 = scmp.ne.s32.totalorder %s240, %s256
      %p258 = scmp.eq.s32.totalorder %s42, 0
      %p259 = por %p257, %p258
      %s260 = ssub.s32 %s44, %s51
      %p261 = scmp.eq.s32.totalorder %s260, 0
      %s263 = sadd.s32 %s262, 1
      %s264 = scalar_select %p261, %s262, %s263
      %p267 = pneg %p261
      %p268 = scmp.eq.s32.totalorder %s36, 3
      %p269 = por %p267, %p268
      %p270 = scmp.ne.s32.totalorder %s262, %s265
      %p271 = scmp.eq.s32.totalorder %s36, 0
      %p272 = por %p270, %p271
      %p273 = scmp.ne.s32.totalorder %s262, %s265
      %p274 = scmp.eq.s32.totalorder %s41, 3
      %p275 = por %p273, %p274
      %p276 = scmp.ne.s32.totalorder %s265, %s266
      %p277 = scmp.eq.s32.totalorder %s41, 0
      %p278 = por %p276, %p277
      %p279 = scmp.ne.s32.totalorder %s265, %s266
      %p280 = scmp.eq.s32.totalorder %s42, 3
      %p281 = por %p279, %p280
      %p283 = scmp.ne.s32.totalorder %s266, %s282
      %p284 = scmp.eq.s32.totalorder %s42, 0
      %p285 = por %p283, %p284
      %s286 = ssub.s32 %s44, %s51
      %p287 = scmp.eq.s32.totalorder %s286, 0
      %s289 = sadd.s32 %s288, 1
      %s290 = scalar_select %p287, %s288, %s289
      %p293 = pneg %p287
      %p294 = scmp.eq.s32.totalorder %s36, 3
      %p295 = por %p293, %p294
      %p296 = scmp.ne.s32.totalorder %s288, %s291
      %p297 = scmp.eq.s32.totalorder %s36, 0
      %p298 = por %p296, %p297
      %p299 = scmp.ne.s32.totalorder %s288, %s291
      %p300 = scmp.eq.s32.totalorder %s41, 3
      %p301 = por %p299, %p300
      %p302 = scmp.ne.s32.totalorder %s291, %s292
      %p303 = scmp.eq.s32.totalorder %s41, 0
      %p304 = por %p302, %p303
      %p305 = scmp.ne.s32.totalorder %s291, %s292
      %p306 = scmp.eq.s32.totalorder %s42, 3
      %p307 = por %p305, %p306
      %p309 = scmp.ne.s32.totalorder %s292, %s308
      %p310 = scmp.eq.s32.totalorder %s42, 0
      %p311 = por %p309, %p310
      %s312 = ssub.s32 %s44, %s51
      %p313 = scmp.eq.s32.totalorder %s312, 0
      %s315 = sadd.s32 %s314, 1
      %s316 = scalar_select %p313, %s314, %s315
      %p319 = pneg %p313
      %p320 = scmp.eq.s32.totalorder %s36, 3
      %p321 = por %p319, %p320
      %p322 = scmp.ne.s32.totalorder %s314, %s317
      %p323 = scmp.eq.s32.totalorder %s36, 0
      %p324 = por %p322, %p323
      %p325 = scmp.ne.s32.totalorder %s314, %s317
      %p326 = scmp.eq.s32.totalorder %s41, 3
      %p327 = por %p325, %p326
      %p328 = scmp.ne.s32.totalorder %s317, %s318
      %p329 = scmp.eq.s32.totalorder %s41, 0
      %p330 = por %p328, %p329
      %p331 = scmp.ne.s32.totalorder %s317, %s318
      %p332 = scmp.eq.s32.totalorder %s42, 3
      %p333 = por %p331, %p332
      %p335 = scmp.ne.s32.totalorder %s318, %s334
      %p336 = scmp.eq.s32.totalorder %s42, 0
      %p337 = por %p335, %p336
      %s338 = ssub.s32 %s44, %s51
      %p339 = scmp.eq.s32.totalorder %s338, 0
      %s341 = sadd.s32 %s340, 1
      %s342 = scalar_select %p339, %s340, %s341
      %p345 = pneg %p339
      %p346 = scmp.eq.s32.totalorder %s36, 3
      %p347 = por %p345, %p346
      %p348 = scmp.ne.s32.totalorder %s340, %s343
      %p349 = scmp.eq.s32.totalorder %s36, 0
      %p350 = por %p348, %p349
      %p351 = scmp.ne.s32.totalorder %s340, %s343
      %p352 = scmp.eq.s32.totalorder %s41, 3
      %p353 = por %p351, %p352
      %p354 = scmp.ne.s32.totalorder %s343, %s344
      %p355 = scmp.eq.s32.totalorder %s41, 0
      %p356 = por %p354, %p355
      %p357 = scmp.ne.s32.totalorder %s343, %s344
      %p358 = scmp.eq.s32.totalorder %s42, 3
      %p359 = por %p357, %p358
      %p361 = scmp.ne.s32.totalorder %s344, %s360
      %p362 = scmp.eq.s32.totalorder %s42, 0
      %p363 = por %p361, %p362
      %s364 = ssub.s32 %s44, %s51
      %p365 = scmp.eq.s32.totalorder %s364, 0
      %s367 = sadd.s32 %s366, 1
      %s368 = scalar_select %p365, %s366, %s367
      %p371 = pneg %p365
      %p372 = scmp.eq.s32.totalorder %s36, 3
      %p373 = por %p371, %p372
      %p374 = scmp.ne.s32.totalorder %s366, %s369
      %p375 = scmp.eq.s32.totalorder %s36, 0
      %p376 = por %p374, %p375
      %p377 = scmp.ne.s32.totalorder %s366, %s369
      %p378 = scmp.eq.s32.totalorder %s41, 3
      %p379 = por %p377, %p378
      %p380 = scmp.ne.s32.totalorder %s369, %s370
      %p381 = scmp.eq.s32.totalorder %s41, 0
      %p382 = por %p380, %p381
      %p383 = scmp.ne.s32.totalorder %s369, %s370
      %p384 = scmp.eq.s32.totalorder %s42, 3
      %p385 = por %p383, %p384
      %p387 = scmp.ne.s32.totalorder %s370, %s386
      %p388 = scmp.eq.s32.totalorder %s42, 0
      %p389 = por %p387, %p388
      %s390 = ssub.s32 %s44, %s51
      %p391 = scmp.eq.s32.totalorder %s390, 0
      %s393 = sadd.s32 %s392, 1
      %s394 = scalar_select %p391, %s392, %s393
      %p397 = pneg %p391
      %p398 = scmp.eq.s32.totalorder %s36, 3
      %p399 = por %p397, %p398
      %p400 = scmp.ne.s32.totalorder %s392, %s395
      %p401 = scmp.eq.s32.totalorder %s36, 0
      %p402 = por %p400, %p401
      %p403 = scmp.ne.s32.totalorder %s392, %s395
      %p404 = scmp.eq.s32.totalorder %s41, 3
      %p405 = por %p403, %p404
      %p406 = scmp.ne.s32.totalorder %s395, %s396
      %p407 = scmp.eq.s32.totalorder %s41, 0
      %p408 = por %p406, %p407
      %p409 = scmp.ne.s32.totalorder %s395, %s396
      %p410 = scmp.eq.s32.totalorder %s42, 3
      %p411 = por %p409, %p410
      %p413 = scmp.ne.s32.totalorder %s396, %s412
      %p414 = scmp.eq.s32.totalorder %s42, 0
      %p415 = por %p413, %p414
      %s416 = ssub.s32 %s44, %s51
      %p417 = scmp.eq.s32.totalorder %s416, 0
      %s419 = sadd.s32 %s418, 1
      %s420 = scalar_select %p417, %s418, %s419
      %p423 = pneg %p417
      %p424 = scmp.eq.s32.totalorder %s36, 3
      %p425 = por %p423, %p424
      %p426 = scmp.ne.s32.totalorder %s418, %s421
      %p427 = scmp.eq.s32.totalorder %s36, 0
      %p428 = por %p426, %p427
      %p429 = scmp.ne.s32.totalorder %s418, %s421
      %p430 = scmp.eq.s32.totalorder %s41, 3
      %p431 = por %p429, %p430
      %p432 = scmp.ne.s32.totalorder %s421, %s422
      %p433 = scmp.eq.s32.totalorder %s41, 0
      %p434 = por %p432, %p433
      %p435 = scmp.ne.s32.totalorder %s421, %s422
      %p436 = scmp.eq.s32.totalorder %s42, 3
      %p437 = por %p435, %p436
      %p439 = scmp.ne.s32.totalorder %s422, %s438
      %p440 = scmp.eq.s32.totalorder %s42, 0
      %p441 = por %p439, %p440
      %s442 = ssub.s32 %s44, %s51
      %p443 = scmp.eq.s32.totalorder %s442, 0
      %s445 = sadd.s32 %s444, 1
      %s446 = scalar_select %p443, %s444, %s445
      %p449 = pneg %p443
      %p450 = scmp.eq.s32.totalorder %s36, 3
      %p451 = por %p449, %p450
      %p452 = scmp.ne.s32.totalorder %s444, %s447
      %p453 = scmp.eq.s32.totalorder %s36, 0
      %p454 = por %p452, %p453
      %p455 = scmp.ne.s32.totalorder %s444, %s447
      %p456 = scmp.eq.s32.totalorder %s41, 3
      %p457 = por %p455, %p456
      %p458 = scmp.ne.s32.totalorder %s447, %s448
      %p459 = scmp.eq.s32.totalorder %s41, 0
      %p460 = por %p458, %p459
      %p461 = scmp.ne.s32.totalorder %s447, %s448
      %p462 = scmp.eq.s32.totalorder %s42, 3
      %p463 = por %p461, %p462
      %p465 = scmp.ne.s32.totalorder %s448, %s464
      %p466 = scmp.eq.s32.totalorder %s42, 0
      %p467 = por %p465, %p466
      %s468 = ssub.s32 %s44, %s51
      %p469 = scmp.eq.s32.totalorder %s468, 0
      %s471 = sadd.s32 %s470, 1
      %s472 = scalar_select %p469, %s470, %s471
      %p475 = pneg %p469
      %p476 = scmp.eq.s32.totalorder %s36, 3
      %p477 = por %p475, %p476
      %p478 = scmp.ne.s32.totalorder %s470, %s473
      %p479 = scmp.eq.s32.totalorder %s36, 0
      %p480 = por %p478, %p479
      %p481 = scmp.ne.s32.totalorder %s470, %s473
      %p482 = scmp.eq.s32.totalorder %s41, 3
      %p483 = por %p481, %p482
      %p484 = scmp.ne.s32.totalorder %s473, %s474
      %p485 = scmp.eq.s32.totalorder %s41, 0
      %p486 = por %p484, %p485
      %p487 = scmp.ne.s32.totalorder %s473, %s474
      %p488 = scmp.eq.s32.totalorder %s42, 3
      %p489 = por %p487, %p488
      %p491 = scmp.ne.s32.totalorder %s474, %s490
      %p492 = scmp.eq.s32.totalorder %s42, 0
      %p493 = por %p491, %p492
      %s494 = ssub.s32 %s44, %s51
      %p495 = scmp.eq.s32.totalorder %s494, 0
      %s497 = sadd.s32 %s496, 1
      %s498 = scalar_select %p495, %s496, %s497
      %p501 = pneg %p495
      %p502 = scmp.eq.s32.totalorder %s36, 3
      %p503 = por %p501, %p502
      %p504 = scmp.ne.s32.totalorder %s496, %s499
      %p505 = scmp.eq.s32.totalorder %s36, 0
      %p506 = por %p504, %p505
      %p507 = scmp.ne.s32.totalorder %s496, %s499
      %p508 = scmp.eq.s32.totalorder %s41, 3
      %p509 = por %p507, %p508
      %p510 = scmp.ne.s32.totalorder %s499, %s500
      %p511 = scmp.eq.s32.totalorder %s41, 0
      %p512 = por %p510, %p511
      %p513 = scmp.ne.s32.totalorder %s499, %s500
      %p514 = scmp.eq.s32.totalorder %s42, 3
      %p515 = por %p513, %p514
      %p517 = scmp.ne.s32.totalorder %s500, %s516
      %p518 = scmp.eq.s32.totalorder %s42, 0
      %p519 = por %p517, %p518
      %s520 = ssub.s32 %s44, %s51
      %p521 = scmp.eq.s32.totalorder %s520, 0
      %s523 = sadd.s32 %s522, 1
      %s524 = scalar_select %p521, %s522, %s523
      %p527 = pneg %p521
      %p528 = scmp.eq.s32.totalorder %s36, 3
      %p529 = por %p527, %p528
      %p530 = scmp.ne.s32.totalorder %s522, %s525
      %p531 = scmp.eq.s32.totalorder %s36, 0
      %p532 = por %p530, %p531
      %p533 = scmp.ne.s32.totalorder %s522, %s525
      %p534 = scmp.eq.s32.totalorder %s41, 3
      %p535 = por %p533, %p534
      %p536 = scmp.ne.s32.totalorder %s525, %s526
      %p537 = scmp.eq.s32.totalorder %s41, 0
      %p538 = por %p536, %p537
      %p539 = scmp.ne.s32.totalorder %s525, %s526
      %p540 = scmp.eq.s32.totalorder %s42, 3
      %p541 = por %p539, %p540
      %p543 = scmp.ne.s32.totalorder %s526, %s542
      %p544 = scmp.eq.s32.totalorder %s42, 0
      %p545 = por %p543, %p544
      %s546 = ssub.s32 %s44, %s51
      %p547 = scmp.eq.s32.totalorder %s546, 0
      %s549 = sadd.s32 %s548, 1
      %s550 = scalar_select %p547, %s548, %s549
      %p553 = pneg %p547
      %p554 = scmp.eq.s32.totalorder %s36, 3
      %p555 = por %p553, %p554
      %p556 = scmp.ne.s32.totalorder %s548, %s551
      %p557 = scmp.eq.s32.totalorder %s36, 0
      %p558 = por %p556, %p557
      %p559 = scmp.ne.s32.totalorder %s548, %s551
      %p560 = scmp.eq.s32.totalorder %s41, 3
      %p561 = por %p559, %p560
      %p562 = scmp.ne.s32.totalorder %s551, %s552
      %p563 = scmp.eq.s32.totalorder %s41, 0
      %p564 = por %p562, %p563
      %p565 = scmp.ne.s32.totalorder %s551, %s552
      %p566 = scmp.eq.s32.totalorder %s42, 3
      %p567 = por %p565, %p566
      %p569 = scmp.ne.s32.totalorder %s552, %s568
      %p570 = scmp.eq.s32.totalorder %s42, 0
      %p571 = por %p569, %p570
      %s572 = ssub.s32 %s44, %s51
      %p573 = scmp.eq.s32.totalorder %s572, 0
      %s575 = sadd.s32 %s574, 1
      %s576 = scalar_select %p573, %s574, %s575
      %p579 = pneg %p573
      %p580 = scmp.eq.s32.totalorder %s36, 3
      %p581 = por %p579, %p580
      %p582 = scmp.ne.s32.totalorder %s574, %s577
      %p583 = scmp.eq.s32.totalorder %s36, 0
      %p584 = por %p582, %p583
      %p585 = scmp.ne.s32.totalorder %s574, %s577
      %p586 = scmp.eq.s32.totalorder %s41, 3
      %p587 = por %p585, %p586
      %p588 = scmp.ne.s32.totalorder %s577, %s578
      %p589 = scmp.eq.s32.totalorder %s41, 0
      %p590 = por %p588, %p589
      %p591 = scmp.ne.s32.totalorder %s577, %s578
      %p592 = scmp.eq.s32.totalorder %s42, 3
      %p593 = por %p591, %p592
      %p595 = scmp.ne.s32.totalorder %s578, %s594
      %p596 = scmp.eq.s32.totalorder %s42, 0
      %p597 = por %p595, %p596
      %s598 = ssub.s32 %s44, %s51
      %p599 = scmp.eq.s32.totalorder %s598, 0
      %s601 = sadd.s32 %s600, 1
      %s602 = scalar_select %p599, %s600, %s601
      %p605 = pneg %p599
      %p606 = scmp.eq.s32.totalorder %s36, 3
      %p607 = por %p605, %p606
      %p608 = scmp.ne.s32.totalorder %s600, %s603
      %p609 = scmp.eq.s32.totalorder %s36, 0
      %p610 = por %p608, %p609
      %p611 = scmp.ne.s32.totalorder %s600, %s603
      %p612 = scmp.eq.s32.totalorder %s41, 3
      %p613 = por %p611, %p612
      %p614 = scmp.ne.s32.totalorder %s603, %s604
      %p615 = scmp.eq.s32.totalorder %s41, 0
      %p616 = por %p614, %p615
      %p617 = scmp.ne.s32.totalorder %s603, %s604
      %p618 = scmp.eq.s32.totalorder %s42, 3
      %p619 = por %p617, %p618
      %p621 = scmp.ne.s32.totalorder %s604, %s620
      %p622 = scmp.eq.s32.totalorder %s42, 0
      %p623 = por %p621, %p622
      %s625 = sadd.s32 %s624, 1
      %p628 = scmp.eq.s32.totalorder %s36, 3
      %p629 = scmp.ne.s32.totalorder %s624, %s626
      %p630 = scmp.eq.s32.totalorder %s36, 0
      %p631 = por %p629, %p630
      %p632 = scmp.ne.s32.totalorder %s624, %s626
      %p633 = scmp.eq.s32.totalorder %s41, 3
      %p634 = por %p632, %p633
      %p635 = scmp.ne.s32.totalorder %s626, %s627
      %p636 = scmp.eq.s32.totalorder %s41, 0
      %p637 = por %p635, %p636
      %p638 = scmp.ne.s32.totalorder %s626, %s627
      %p639 = scmp.eq.s32.totalorder %s42, 3
      %p640 = por %p638, %p639
      %p642 = scmp.ne.s32.totalorder %s627, %s641
      %p643 = scmp.eq.s32.totalorder %s42, 0
      %p644 = por %p642, %p643
      %s646 = sadd.s32 %s645, 1
      %p649 = scmp.eq.s32.totalorder %s36, 3
      %p650 = scmp.ne.s32.totalorder %s645, %s647
      %p651 = scmp.eq.s32.totalorder %s36, 0
      %p652 = por %p650, %p651
      %p653 = scmp.ne.s32.totalorder %s645, %s647
      %p654 = scmp.eq.s32.totalorder %s41, 3
      %p655 = por %p653, %p654
      %p656 = scmp.ne.s32.totalorder %s647, %s648
      %p657 = scmp.eq.s32.totalorder %s41, 0
      %p658 = por %p656, %p657
      %p659 = scmp.ne.s32.totalorder %s647, %s648
      %p660 = scmp.eq.s32.totalorder %s42, 3
      %p661 = por %p659, %p660
      %p663 = scmp.ne.s32.totalorder %s648, %s662
      %p664 = scmp.eq.s32.totalorder %s42, 0
      %p665 = por %p663, %p664
      %s667 = sadd.s32 %s666, 1
      %p670 = scmp.eq.s32.totalorder %s36, 3
      %p671 = scmp.ne.s32.totalorder %s666, %s668
      %p672 = scmp.eq.s32.totalorder %s36, 0
      %p673 = por %p671, %p672
      %p674 = scmp.ne.s32.totalorder %s666, %s668
      %p675 = scmp.eq.s32.totalorder %s41, 3
      %p676 = por %p674, %p675
      %p677 = scmp.ne.s32.totalorder %s668, %s669
      %p678 = scmp.eq.s32.totalorder %s41, 0
      %p679 = por %p677, %p678
      %p680 = scmp.ne.s32.totalorder %s668, %s669
      %p681 = scmp.eq.s32.totalorder %s42, 3
      %p682 = por %p680, %p681
      %p684 = scmp.ne.s32.totalorder %s669, %s683
      %p685 = scmp.eq.s32.totalorder %s42, 0
      %p686 = por %p684, %p685
      %s688 = sadd.s32 %s687, 1
      %p691 = scmp.eq.s32.totalorder %s36, 3
      %p692 = scmp.ne.s32.totalorder %s687, %s689
      %p693 = scmp.eq.s32.totalorder %s36, 0
      %p694 = por %p692, %p693
      %p695 = scmp.ne.s32.totalorder %s687, %s689
      %p696 = scmp.eq.s32.totalorder %s41, 3
      %p697 = por %p695, %p696
      %p698 = scmp.ne.s32.totalorder %s689, %s690
      %p699 = scmp.eq.s32.totalorder %s41, 0
      %p700 = por %p698, %p699
      %p701 = scmp.ne.s32.totalorder %s689, %s690
      %p702 = scmp.eq.s32.totalorder %s42, 3
      %p703 = por %p701, %p702
      %p705 = scmp.ne.s32.totalorder %s690, %s704
      %p706 = scmp.eq.s32.totalorder %s42, 0
      %p707 = por %p705, %p706
      %s708 = ssub.s32 %s43, %s55
      %p709 = scmp.eq.s32.totalorder %s708, 0
      %s711 = sadd.s32 %s710, 1
      %s712 = scalar_select %p709, %s710, %s711
      %p715 = pneg %p709
      %p716 = scmp.eq.s32.totalorder %s36, 3
      %p717 = por %p715, %p716
      %p718 = scmp.ne.s32.totalorder %s710, %s713
      %p719 = scmp.eq.s32.totalorder %s36, 0
      %p720 = por %p718, %p719
      %p721 = scmp.ne.s32.totalorder %s710, %s713
      %p722 = scmp.eq.s32.totalorder %s41, 3
      %p723 = por %p721, %p722
      %p724 = scmp.ne.s32.totalorder %s713, %s714
      %p725 = scmp.eq.s32.totalorder %s41, 0
      %p726 = por %p724, %p725
      %p727 = scmp.ne.s32.totalorder %s713, %s714
      %p728 = scmp.eq.s32.totalorder %s42, 3
      %p729 = por %p727, %p728
      %p731 = scmp.ne.s32.totalorder %s714, %s730
      %p732 = scmp.eq.s32.totalorder %s42, 0
      %p733 = por %p731, %p732
      %p734 = scmp.le.s32.totalorder 1, %s36
      %p735 = scmp.lt.s32.totalorder %s36, 5
      %p736 = pnand %p734, %p735
      %p737 = pneg %p736
      // Predicated region
      $region9: #{_lambda_.1} parent=5 // pred_check
        _
      $region10: #{_lambda_.1} parent=5 // pred_check_branch
        %739 = sbr.rel (%p736) target = $region12
      $region11: #{_lambda_.1} parent=5 // pred_region
        %s740 = ssub.s32 %s36, 1
        // Predicated region
        $region13: #{_lambda_.1} parent=11 // pred_check
          %p741 = pneg %p95
        $region14: #{_lambda_.1} parent=11 // pred_check_branch
          %743 = sbr.rel (%p741) target = $region16
        $region15: #{_lambda_.1} parent=11 // pred_region
          _
        $region16: #{_lambda_.1} parent=11 // pred_fallthru
          _
        // Predicated region
        $region17: #{_lambda_.1} parent=11 // pred_check
          %p744 = pneg %p116
        $region18: #{_lambda_.1} parent=11 // pred_check_branch
          %746 = sbr.rel (%p744) target = $region20
        $region19: #{_lambda_.1} parent=11 // pred_region
          _
        $region20: #{_lambda_.1} parent=11 // pred_fallthru
          _
        // Predicated region
        $region21: #{_lambda_.1} parent=11 // pred_check
          %p747 = pneg %p137
        $region22: #{_lambda_.1} parent=11 // pred_check_branch
          %749 = sbr.rel (%p747) target = $region24
        $region23: #{_lambda_.1} parent=11 // pred_region
          _
        $region24: #{_lambda_.1} parent=11 // pred_fallthru
          _
        // Predicated region
        $region25: #{_lambda_.1} parent=11 // pred_check
          %p750 = pneg %p158
        $region26: #{_lambda_.1} parent=11 // pred_check_branch
          %752 = sbr.rel (%p750) target = $region28
        $region27: #{_lambda_.1} parent=11 // pred_region
          _
        $region28: #{_lambda_.1} parent=11 // pred_fallthru
          _
        // Predicated region
        $region29: #{_lambda_.1} parent=11 // pred_check
          %p753 = pneg %p179
        $region30: #{_lambda_.1} parent=11 // pred_check_branch
          %755 = sbr.rel (%p753) target = $region32
        $region31: #{_lambda_.1} parent=11 // pred_region
          _
        $region32: #{_lambda_.1} parent=11 // pred_fallthru
          _
        // Predicated region
        $region33: #{_lambda_.1} parent=11 // pred_check
          %p756 = pneg %p200
        $region34: #{_lambda_.1} parent=11 // pred_check_branch
          %758 = sbr.rel (%p756) target = $region36
        $region35: #{_lambda_.1} parent=11 // pred_region
          _
        $region36: #{_lambda_.1} parent=11 // pred_fallthru
          _
        // Predicated region
        $region37: #{_lambda_.1} parent=11 // pred_check
          %p759 = pneg %p637
        $region38: #{_lambda_.1} parent=11 // pred_check_branch
          %761 = sbr.rel (%p759) target = $region40
        $region39: #{_lambda_.1} parent=11 // pred_region
          _
        $region40: #{_lambda_.1} parent=11 // pred_fallthru
          _
        // Predicated region
        $region41: #{_lambda_.1} parent=11 // pred_check
          %p762 = pneg %p658
        $region42: #{_lambda_.1} parent=11 // pred_check_branch
          %764 = sbr.rel (%p762) target = $region44
        $region43: #{_lambda_.1} parent=11 // pred_region
          _
        $region44: #{_lambda_.1} parent=11 // pred_fallthru
          _
        // Predicated region
        $region45: #{_lambda_.1} parent=11 // pred_check
          %p765 = pneg %p679
        $region46: #{_lambda_.1} parent=11 // pred_check_branch
          %767 = sbr.rel (%p765) target = $region48
        $region47: #{_lambda_.1} parent=11 // pred_region
          _
        $region48: #{_lambda_.1} parent=11 // pred_fallthru
          _
        // Predicated region
        $region49: #{_lambda_.1} parent=11 // pred_check
          %p768 = pneg %p700
        $region50: #{_lambda_.1} parent=11 // pred_check_branch
          %770 = sbr.rel (%p768) target = $region52
        $region51: #{_lambda_.1} parent=11 // pred_region
          _
        $region52: #{_lambda_.1} parent=11 // pred_fallthru
          _
      $region12: #{_lambda_.1} parent=5 // pred_fallthru
        _
      %p771 = scmp.lt.s32.totalorder %s36, 4
      // Predicated region
      $region53: #{_lambda_.1} parent=5 // pred_check
        %p772 = pneg %p771
      $region54: #{_lambda_.1} parent=5 // pred_check_branch
        %774 = sbr.rel (%p772) target = $region56
      $region55: #{_lambda_.1} parent=5 // pred_region
        // Predicated region
        $region57: #{_lambda_.1} parent=55 // pred_check
          %p775 = pneg %p68
        $region58: #{_lambda_.1} parent=55 // pred_check_branch
          %777 = sbr.rel (%p775) target = $region60
        $region59: #{_lambda_.1} parent=55 // pred_region
          %p778 = scmp.lt.s32.totalorder %s43, 1
          %s779 = scalar_select %p778, %s43, 1
          %s780 = smul.addr %s779, 24
          %s781 = smul.addr %s780, 4
          %s782 = scalar_lea.vmem %s0, %s781
        $region60: #{_lambda_.1} parent=55 // pred_fallthru
          _
        // Predicated region
        $region61: #{_lambda_.1} parent=55 // pred_check
          %p783 = pneg %p220
        $region62: #{_lambda_.1} parent=55 // pred_check_branch
          %785 = sbr.rel (%p783) target = $region64
        $region63: #{_lambda_.1} parent=55 // pred_region
          %p786 = scmp.lt.s32.totalorder %s44, 1
          %s787 = scalar_select %p786, %s44, 1
          %s788 = scalar_lea.vmem %s7, %s787
        $region64: #{_lambda_.1} parent=55 // pred_fallthru
          _
        // Predicated region
        $region65: #{_lambda_.1} parent=55 // pred_check
          %p789 = pneg %p246
        $region66: #{_lambda_.1} parent=55 // pred_check_branch
          %791 = sbr.rel (%p789) target = $region68
        $region67: #{_lambda_.1} parent=55 // pred_region
          %p792 = scmp.lt.s32.totalorder %s44, 1
          %s793 = scalar_select %p792, %s44, 1
          %s794 = scalar_lea.vmem %s8, %s793
        $region68: #{_lambda_.1} parent=55 // pred_fallthru
          _
        // Predicated region
        $region69: #{_lambda_.1} parent=55 // pred_check
          %p795 = pneg %p272
        $region70: #{_lambda_.1} parent=55 // pred_check_branch
          %797 = sbr.rel (%p795) target = $region72
        $region71: #{_lambda_.1} parent=55 // pred_region
          %p798 = scmp.lt.s32.totalorder %s44, 1
          %s799 = scalar_select %p798, %s44, 1
          %s800 = smul.addr %s799, 32
          %s801 = smul.addr %s800, 4
          %s802 = scalar_lea.vmem %s9, %s801
        $region72: #{_lambda_.1} parent=55 // pred_fallthru
          _
        // Predicated region
        $region73: #{_lambda_.1} parent=55 // pred_check
          %p803 = pneg %p298
        $region74: #{_lambda_.1} parent=55 // pred_check_branch
          %805 = sbr.rel (%p803) target = $region76
        $region75: #{_lambda_.1} parent=55 // pred_region
          %p806 = scmp.lt.s32.totalorder %s44, 1
          %s807 = scalar_select %p806, %s44, 1
          %s808 = smul.addr %s807, 4
          %s809 = scalar_lea.vmem %s10, %s808
        $region76: #{_lambda_.1} parent=55 // pred_fallthru
          _
        // Predicated region
        $region77: #{_lambda_.1} parent=55 // pred_check
          %p810 = pneg %p324
        $region78: #{_lambda_.1} parent=55 // pred_check_branch
          %812 = sbr.rel (%p810) target = $region80
        $region79: #{_lambda_.1} parent=55 // pred_region
          %p813 = scmp.lt.s32.totalorder %s44, 1
          %s814 = scalar_select %p813, %s44, 1
          %s815 = smul.addr %s814, 32
          %s816 = smul.addr %s815, 4
          %s817 = scalar_lea.vmem %s11, %s816
        $region80: #{_lambda_.1} parent=55 // pred_fallthru
          _
        // Predicated region
        $region81: #{_lambda_.1} parent=55 // pred_check
          %p818 = pneg %p350
        $region82: #{_lambda_.1} parent=55 // pred_check_branch
          %820 = sbr.rel (%p818) target = $region84
        $region83: #{_lambda_.1} parent=55 // pred_region
          %p821 = scmp.lt.s32.totalorder %s44, 1
          %s822 = scalar_select %p821, %s44, 1
          %s823 = smul.addr %s822, 4
          %s824 = scalar_lea.vmem %s12, %s823
        $region84: #{_lambda_.1} parent=55 // pred_fallthru
          _
        // Predicated region
        $region85: #{_lambda_.1} parent=55 // pred_check
          %p825 = pneg %p376
        $region86: #{_lambda_.1} parent=55 // pred_check_branch
          %827 = sbr.rel (%p825) target = $region88
        $region87: #{_lambda_.1} parent=55 // pred_region
          %p828 = scmp.lt.s32.totalorder %s44, 1
          %s829 = scalar_select %p828, %s44, 1
          %s830 = smul.addr %s829, 32
          %s831 = smul.addr %s830, 4
          %s832 = scalar_lea.vmem %s13, %s831
        $region88: #{_lambda_.1} parent=55 // pred_fallthru
          _
        // Predicated region
        $region89: #{_lambda_.1} parent=55 // pred_check
          %p833 = pneg %p402
        $region90: #{_lambda_.1} parent=55 // pred_check_branch
          %835 = sbr.rel (%p833) target = $region92
        $region91: #{_lambda_.1} parent=55 // pred_region
          %p836 = scmp.lt.s32.totalorder %s44, 1
          %s837 = scalar_select %p836, %s44, 1
          %s838 = smul.addr %s837, 4
          %s839 = scalar_lea.vmem %s14, %s838
        $region92: #{_lambda_.1} parent=55 // pred_fallthru
          _
        // Predicated region
        $region93: #{_lambda_.1} parent=55 // pred_check
          %p840 = pneg %p428
        $region94: #{_lambda_.1} parent=55 // pred_check_branch
          %842 = sbr.rel (%p840) target = $region96
        $region95: #{_lambda_.1} parent=55 // pred_region
          %p843 = scmp.lt.s32.totalorder %s44, 1
          %s844 = scalar_select %p843, %s44, 1
          %s845 = smul.addr %s844, 8
          %s846 = smul.addr %s845, 4
          %s847 = scalar_lea.vmem %s15, %s846
        $region96: #{_lambda_.1} parent=55 // pred_fallthru
          _
        // Predicated region
        $region97: #{_lambda_.1} parent=55 // pred_check
          %p848 = pneg %p454
        $region98: #{_lambda_.1} parent=55 // pred_check_branch
          %850 = sbr.rel (%p848) target = $region100
        $region99: #{_lambda_.1} parent=55 // pred_region
          %p851 = scmp.lt.s32.totalorder %s44, 1
          %s852 = scalar_select %p851, %s44, 1
          %s853 = scalar_lea.vmem %s16, %s852
        $region100: #{_lambda_.1} parent=55 // pred_fallthru
          _
        // Predicated region
        $region101: #{_lambda_.1} parent=55 // pred_check
          %p854 = pneg %p480
        $region102: #{_lambda_.1} parent=55 // pred_check_branch
          %856 = sbr.rel (%p854) target = $region104
        $region103: #{_lambda_.1} parent=55 // pred_region
          %p857 = scmp.lt.s32.totalorder %s44, 1
          %s858 = scalar_select %p857, %s44, 1
          %s859 = scalar_lea.vmem %s17, %s858
        $region104: #{_lambda_.1} parent=55 // pred_fallthru
          _
        // Predicated region
        $region105: #{_lambda_.1} parent=55 // pred_check
          %p860 = pneg %p506
        $region106: #{_lambda_.1} parent=55 // pred_check_branch
          %862 = sbr.rel (%p860) target = $region108
        $region107: #{_lambda_.1} parent=55 // pred_region
          %p863 = scmp.lt.s32.totalorder %s44, 1
          %s864 = scalar_select %p863, %s44, 1
          %s865 = scalar_lea.vmem %s18, %s864
        $region108: #{_lambda_.1} parent=55 // pred_fallthru
          _
        // Predicated region
        $region109: #{_lambda_.1} parent=55 // pred_check
          %p866 = pneg %p532
        $region110: #{_lambda_.1} parent=55 // pred_check_branch
          %868 = sbr.rel (%p866) target = $region112
        $region111: #{_lambda_.1} parent=55 // pred_region
          %p869 = scmp.lt.s32.totalorder %s44, 1
          %s870 = scalar_select %p869, %s44, 1
          %s871 = smul.addr %s870, 16
          %s872 = smul.addr %s871, 4
          %s873 = scalar_lea.vmem %s19, %s872
        $region112: #{_lambda_.1} parent=55 // pred_fallthru
          _
        // Predicated region
        $region113: #{_lambda_.1} parent=55 // pred_check
          %p874 = pneg %p558
        $region114: #{_lambda_.1} parent=55 // pred_check_branch
          %876 = sbr.rel (%p874) target = $region116
        $region115: #{_lambda_.1} parent=55 // pred_region
          %p877 = scmp.lt.s32.totalorder %s44, 1
          %s878 = scalar_select %p877, %s44, 1
          %s879 = smul.addr %s878, 2
          %s880 = scalar_lea.vmem %s20, %s879
        $region116: #{_lambda_.1} parent=55 // pred_fallthru
          _
        // Predicated region
        $region117: #{_lambda_.1} parent=55 // pred_check
          %p881 = pneg %p584
        $region118: #{_lambda_.1} parent=55 // pred_check_branch
          %883 = sbr.rel (%p881) target = $region120
        $region119: #{_lambda_.1} parent=55 // pred_region
          %p884 = scmp.lt.s32.totalorder %s44, 1
          %s885 = scalar_select %p884, %s44, 1
          %s886 = smul.addr %s885, 32
          %s887 = smul.addr %s886, 4
          %s888 = scalar_lea.vmem %s21, %s887
        $region120: #{_lambda_.1} parent=55 // pred_fallthru
          _
        // Predicated region
        $region121: #{_lambda_.1} parent=55 // pred_check
          %p889 = pneg %p610
        $region122: #{_lambda_.1} parent=55 // pred_check_branch
          %891 = sbr.rel (%p889) target = $region124
        $region123: #{_lambda_.1} parent=55 // pred_region
          %p892 = scmp.lt.s32.totalorder %s44, 1
          %s893 = scalar_select %p892, %s44, 1
          %s894 = scalar_lea.vmem %s22, %s893
        $region124: #{_lambda_.1} parent=55 // pred_fallthru
          _
      $region56: #{_lambda_.1} parent=5 // pred_fallthru
        _
      %p895 = scmp.le.s32.totalorder 1, %s36
      %p896 = scmp.lt.s32.totalorder %s36, 5
      %p897 = pnand %p895, %p896
      %p898 = pneg %p897
      // Predicated region
      $region125: #{_lambda_.1} parent=5 // pred_check
        _
      $region126: #{_lambda_.1} parent=5 // pred_check_branch
        %900 = sbr.rel (%p897) target = $region128
      $region127: #{_lambda_.1} parent=5 // pred_region
        %s901 = ssub.s32 %s36, 1
        %p902 = scmp.lt.s32.totalorder %s45, 1
        %s903 = scalar_select %p902, %s45, 1
        %s904 = smul.addr %s903, 24
        %s905 = smul.addr %s904, 4
        %s906 = scalar_lea.vmem %s0, %s905
        %p907 = pneg %p74
        %p908 = pneg %p71
        %p909 = pneg %p95
        %p910 = pneg %p92
        %p911 = pneg %p116
        %p912 = pneg %p113
        %p913 = pneg %p137
        %p914 = pneg %p134
        %p915 = pneg %p158
        %p916 = pneg %p155
        %p917 = pneg %p179
        %p918 = pneg %p176
        %p919 = pneg %p200
        %p920 = pneg %p197
        %p921 = scmp.lt.s32.totalorder %s46, 1
        %s922 = scalar_select %p921, %s46, 1
        %s923 = scalar_lea.vmem %s7, %s922
        %p924 = pneg %p226
        %p925 = pneg %p223
        %p926 = scmp.lt.s32.totalorder %s46, 1
        %s927 = scalar_select %p926, %s46, 1
        %s928 = scalar_lea.vmem %s8, %s927
        %p929 = pneg %p252
        %p930 = pneg %p249
        %p931 = scmp.lt.s32.totalorder %s46, 1
        %s932 = scalar_select %p931, %s46, 1
        %s933 = smul.addr %s932, 32
        %s934 = smul.addr %s933, 4
        %s935 = scalar_lea.vmem %s9, %s934
        %p936 = pneg %p278
        %p937 = pneg %p275
        %p938 = scmp.lt.s32.totalorder %s46, 1
        %s939 = scalar_select %p938, %s46, 1
        %s940 = smul.addr %s939, 4
        %s941 = scalar_lea.vmem %s10, %s940
        %p942 = pneg %p304
        %p943 = pneg %p301
        %p944 = scmp.lt.s32.totalorder %s46, 1
        %s945 = scalar_select %p944, %s46, 1
        %s946 = smul.addr %s945, 32
        %s947 = smul.addr %s946, 4
        %s948 = scalar_lea.vmem %s11, %s947
        %p949 = pneg %p330
        %p950 = pneg %p327
        %p951 = scmp.lt.s32.totalorder %s46, 1
        %s952 = scalar_select %p951, %s46, 1
        %s953 = smul.addr %s952, 4
        %s954 = scalar_lea.vmem %s12, %s953
        %p955 = pneg %p356
        %p956 = pneg %p353
        %p957 = scmp.lt.s32.totalorder %s46, 1
        %s958 = scalar_select %p957, %s46, 1
        %s959 = smul.addr %s958, 32
        %s960 = smul.addr %s959, 4
        %s961 = scalar_lea.vmem %s13, %s960
        %p962 = pneg %p382
        %p963 = pneg %p379
        %p964 = scmp.lt.s32.totalorder %s46, 1
        %s965 = scalar_select %p964, %s46, 1
        %s966 = smul.addr %s965, 4
        %s967 = scalar_lea.vmem %s14, %s966
        %p968 = pneg %p408
        %p969 = pneg %p405
        %p970 = scmp.lt.s32.totalorder %s46, 1
        %s971 = scalar_select %p970, %s46, 1
        %s972 = smul.addr %s971, 8
        %s973 = smul.addr %s972, 4
        %s974 = scalar_lea.vmem %s15, %s973
        %p975 = pneg %p434
        %p976 = pneg %p431
        %p977 = scmp.lt.s32.totalorder %s46, 1
        %s978 = scalar_select %p977, %s46, 1
        %s979 = scalar_lea.vmem %s16, %s978
        %p980 = pneg %p460
        %p981 = pneg %p457
        %p982 = scmp.lt.s32.totalorder %s46, 1
        %s983 = scalar_select %p982, %s46, 1
        %s984 = scalar_lea.vmem %s17, %s983
        %p985 = pneg %p486
        %p986 = pneg %p483
        %p987 = scmp.lt.s32.totalorder %s46, 1
        %s988 = scalar_select %p987, %s46, 1
        %s989 = scalar_lea.vmem %s18, %s988
        %p990 = pneg %p512
        %p991 = pneg %p509
        %p992 = scmp.lt.s32.totalorder %s46, 1
        %s993 = scalar_select %p992, %s46, 1
        %s994 = smul.addr %s993, 16
        %s995 = smul.addr %s994, 4
        %s996 = scalar_lea.vmem %s19, %s995
        %p997 = pneg %p538
        %p998 = pneg %p535
        %p999 = scmp.lt.s32.totalorder %s46, 1
        %s1000 = scalar_select %p999, %s46, 1
        %s1001 = smul.addr %s1000, 2
        %s1002 = scalar_lea.vmem %s20, %s1001
        %p1003 = pneg %p564
        %p1004 = pneg %p561
        %p1005 = scmp.lt.s32.totalorder %s46, 1
        %s1006 = scalar_select %p1005, %s46, 1
        %s1007 = smul.addr %s1006, 32
        %s1008 = smul.addr %s1007, 4
        %s1009 = scalar_lea.vmem %s21, %s1008
        %p1010 = pneg %p590
        %p1011 = pneg %p587
        %p1012 = scmp.lt.s32.totalorder %s46, 1
        %s1013 = scalar_select %p1012, %s46, 1
        %s1014 = scalar_lea.vmem %s22, %s1013
        %p1015 = pneg %p616
        %p1016 = pneg %p613
        %p1017 = pneg %p637
        %p1018 = pneg %p634
        %p1019 = pneg %p658
        %p1020 = pneg %p655
        %p1021 = pneg %p679
        %p1022 = pneg %p676
        %p1023 = pneg %p700
        %p1024 = pneg %p697
        %p1025 = pneg %p726
        %p1026 = pneg %p723
        %s1027 = sand.u32 %s713, 1
        %s1028 = scalar_lea.sflag [#allocation4], %s1027
        %s1029 = sand.u32 %s713, 1
        %s1030 = smul.addr %s1029, 4
        %s1031 = scalar_lea.vmem [#allocation3], %s1030
        %p1032 = scmp.lt.s32.totalorder %s45, 1
        %s1033 = scalar_select %p1032, %s45, 1
        %s1034 = smul.addr %s1033, 24
        %s1035 = smul.addr %s1034, 4
        %s1036 = scalar_lea.vmem %s0, %s1035
        %p1037 = scmp.lt.s32.totalorder %s46, 1
        %s1038 = scalar_select %p1037, %s46, 1
        %s1039 = scalar_lea.vmem %s7, %s1038
        %p1040 = scmp.lt.s32.totalorder %s46, 1
        %s1041 = scalar_select %p1040, %s46, 1
        %s1042 = scalar_lea.vmem %s8, %s1041
        %p1043 = scmp.lt.s32.totalorder %s46, 1
        %s1044 = scalar_select %p1043, %s46, 1
        %s1045 = smul.addr %s1044, 32
        %s1046 = smul.addr %s1045, 4
        %s1047 = scalar_lea.vmem %s9, %s1046
        %p1048 = scmp.lt.s32.totalorder %s46, 1
        %s1049 = scalar_select %p1048, %s46, 1
        %s1050 = smul.addr %s1049, 4
        %s1051 = scalar_lea.vmem %s10, %s1050
        %p1052 = scmp.lt.s32.totalorder %s46, 1
        %s1053 = scalar_select %p1052, %s46, 1
        %s1054 = smul.addr %s1053, 32
        %s1055 = smul.addr %s1054, 4
        %s1056 = scalar_lea.vmem %s11, %s1055
        %p1057 = scmp.lt.s32.totalorder %s46, 1
        %s1058 = scalar_select %p1057, %s46, 1
        %s1059 = smul.addr %s1058, 4
        %s1060 = scalar_lea.vmem %s12, %s1059
        %p1061 = scmp.lt.s32.totalorder %s46, 1
        %s1062 = scalar_select %p1061, %s46, 1
        %s1063 = smul.addr %s1062, 32
        %s1064 = smul.addr %s1063, 4
        %s1065 = scalar_lea.vmem %s13, %s1064
        %p1066 = scmp.lt.s32.totalorder %s46, 1
        %s1067 = scalar_select %p1066, %s46, 1
        %s1068 = smul.addr %s1067, 4
        %s1069 = scalar_lea.vmem %s14, %s1068
        %p1070 = scmp.lt.s32.totalorder %s46, 1
        %s1071 = scalar_select %p1070, %s46, 1
        %s1072 = smul.addr %s1071, 8
        %s1073 = smul.addr %s1072, 4
        %s1074 = scalar_lea.vmem %s15, %s1073
        %p1075 = scmp.lt.s32.totalorder %s46, 1
        %s1076 = scalar_select %p1075, %s46, 1
        %s1077 = scalar_lea.vmem %s16, %s1076
        %p1078 = scmp.lt.s32.totalorder %s46, 1
        %s1079 = scalar_select %p1078, %s46, 1
        %s1080 = scalar_lea.vmem %s17, %s1079
        %p1081 = scmp.lt.s32.totalorder %s46, 1
        %s1082 = scalar_select %p1081, %s46, 1
        %s1083 = scalar_lea.vmem %s18, %s1082
        %p1084 = scmp.lt.s32.totalorder %s46, 1
        %s1085 = scalar_select %p1084, %s46, 1
        %s1086 = smul.addr %s1085, 16
        %s1087 = smul.addr %s1086, 4
        %s1088 = scalar_lea.vmem %s19, %s1087
        %p1089 = scmp.lt.s32.totalorder %s46, 1
        %s1090 = scalar_select %p1089, %s46, 1
        %s1091 = smul.addr %s1090, 2
        %s1092 = scalar_lea.vmem %s20, %s1091
        %p1093 = scmp.lt.s32.totalorder %s46, 1
        %s1094 = scalar_select %p1093, %s46, 1
        %s1095 = smul.addr %s1094, 32
        %s1096 = smul.addr %s1095, 4
        %s1097 = scalar_lea.vmem %s21, %s1096
        %p1098 = scmp.lt.s32.totalorder %s46, 1
        %s1099 = scalar_select %p1098, %s46, 1
        %s1100 = scalar_lea.vmem %s22, %s1099
        %p1102 = scmp.eq.s32.totalorder %s46, 0
        // Predicated region
        $region129: #{_lambda_.1} parent=127 // pred_check
          %p1103 = pneg %p1102
        $region130: #{_lambda_.1} parent=127 // pred_check_branch
          %1105 = sbr.rel (%p1103) target = $region132
        $region131: #{_lambda_.1} parent=127 // pred_region
          %v1106 = vld [vmem:[%s1036] sm:$0xff]
          %v1107 = vld [vmem:[%s1036 + $0x8] sm:$0xff]
          %v1108 = vld [vmem:[%s1036 + $0x10] sm:$0xff]
          %v1109 = vld [vmem:[%s1036 + $0x18] sm:$0xff]
          %v1110 = vld [vmem:[%s1036 + $0x20] sm:$0xff]
          %v1111 = vld [vmem:[%s1036 + $0x28] sm:$0xff]
          %v1112 = vld [vmem:[%s1036 + $0x30] sm:$0xff]
          %v1113 = vld [vmem:[%s1036 + $0x38] sm:$0xff]
          %v1114 = vld [vmem:[%s1036 + $0x40] sm:$0xff]
          %v1115 = vld [vmem:[%s1036 + $0x48] sm:$0xff]
          %v1116 = vld [vmem:[%s1036 + $0x50] sm:$0xff]
          %v1117 = vld [vmem:[%s1036 + $0x58] sm:$0xff]
          %v1118 = vld [vmem:[%s6] sm:$0xf]
          %v1119 = vld [vmem:[%s6 + $0x4] sm:$0xf]
          %v1120 = vld [vmem:[%s6 + $0x8] sm:$0xf]
          %v1121 = vld [vmem:[%s6 + $0xc] sm:$0xf]
          %v1122 = vld [vmem:[%s6 + $0x10] sm:$0xf]
          %v1123 = vld [vmem:[%s6 + $0x14] sm:$0xf]
          %v1124 = vld [vmem:[%s6 + $0x18] sm:$0xf]
          %v1125 = vld [vmem:[%s6 + $0x1c] sm:$0xf]
          %v1126 = vld [vmem:[%s6 + $0x20] sm:$0xf]
          %v1127 = vld [vmem:[%s6 + $0x24] sm:$0xf]
          %v1128 = vld [vmem:[%s6 + $0x28] sm:$0xf]
          %v1129 = vld [vmem:[%s6 + $0x2c] sm:$0xf]
          %v1130 = vld [vmem:[%s6 + $0x30] sm:$0xf]
          %v1131 = vld [vmem:[%s6 + $0x34] sm:$0xf]
          %v1132 = vld [vmem:[%s6 + $0x38] sm:$0xf]
          %v1133 = vld [vmem:[%s6 + $0x3c] sm:$0xf]
          %v1134 = vld [vmem:[%s6 + $0x40] sm:$0xf]
          %v1135 = vld [vmem:[%s6 + $0x44] sm:$0xf]
          %v1136 = vld [vmem:[%s6 + $0x48] sm:$0xf]
          %v1137 = vld [vmem:[%s6 + $0x4c] sm:$0xf]
          %v1138 = vld [vmem:[%s6 + $0x50] sm:$0xf]
          %v1139 = vld [vmem:[%s6 + $0x54] sm:$0xf]
          %v1140 = vld [vmem:[%s6 + $0x58] sm:$0xf]
          %v1141 = vld [vmem:[%s6 + $0x5c] sm:$0xf]
          %v1142 = vld [vmem:[%s1] sm:$0xff]
          %v1143 = vld [vmem:[%s1 + $0x8] sm:$0xff]
          %v1144 = vld [vmem:[%s1 + $0x10] sm:$0xff]
          %v1145 = vld [vmem:[%s1 + $0x18] sm:$0xff]
          %v1146 = vld [vmem:[%s1 + $0x20] sm:$0xff]
          %v1147 = vld [vmem:[%s1 + $0x28] sm:$0xff]
          %v1148 = vld [vmem:[%s1 + $0x30] sm:$0xff]
          %v1149 = vld [vmem:[%s1 + $0x38] sm:$0xff]
          %v1150 = vld [vmem:[%s1 + $0x40] sm:$0xff]
          %v1151 = vld [vmem:[%s1 + $0x48] sm:$0xff]
          %v1152 = vld [vmem:[%s1 + $0x50] sm:$0xff]
          %v1153 = vld [vmem:[%s1 + $0x58] sm:$0xff]
          %v1166 = vunpack.c.l.b16 %v1106
          %v1167 = vunpack.c.h.b16 %v1106
          %v1168 = vunpack.c.l.b16 %v1107
          %v1169 = vunpack.c.h.b16 %v1107
          %v1170 = vunpack.c.l.b16 %v1108
          %v1171 = vunpack.c.h.b16 %v1108
          %v1172 = vunpack.c.l.b16 %v1109
          %v1173 = vunpack.c.h.b16 %v1109
          %v1174 = vunpack.c.l.b16 %v1110
          %v1175 = vunpack.c.h.b16 %v1110
          %v1176 = vunpack.c.l.b16 %v1111
          %v1177 = vunpack.c.h.b16 %v1111
          %v1178 = vunpack.c.l.b16 %v1112
          %v1179 = vunpack.c.h.b16 %v1112
          %v1180 = vunpack.c.l.b16 %v1113
          %v1181 = vunpack.c.h.b16 %v1113
          %v1182 = vunpack.c.l.b16 %v1114
          %v1183 = vunpack.c.h.b16 %v1114
          %v1184 = vunpack.c.l.b16 %v1115
          %v1185 = vunpack.c.h.b16 %v1115
          %v1186 = vunpack.c.l.b16 %v1116
          %v1187 = vunpack.c.h.b16 %v1116
          %v1188 = vunpack.c.l.b16 %v1117
          %v1189 = vunpack.c.h.b16 %v1117
          %v1190 = vpack.c.b16 %v1168, %v1166
          %v1191 = vpack.c.b16 %v1169, %v1167
          %v1192 = vpack.c.b16 %v1172, %v1170
          %v1193 = vpack.c.b16 %v1173, %v1171
          %v1194 = vpack.c.b16 %v1176, %v1174
          %v1195 = vpack.c.b16 %v1177, %v1175
          %v1196 = vpack.c.b16 %v1180, %v1178
          %v1197 = vpack.c.b16 %v1181, %v1179
          %v1198 = vpack.c.b16 %v1184, %v1182
          %v1199 = vpack.c.b16 %v1185, %v1183
          %v1200 = vpack.c.b16 %v1188, %v1186
          %v1201 = vpack.c.b16 %v1189, %v1187
          %v1232 = vunpack.c.l.b16 %v1118
          %v1233 = vunpack.c.l.b16 %v1119
          %v1234 = vunpack.c.l.b16 %v1120
          %v1235 = vunpack.c.l.b16 %v1121
          %v1236 = vunpack.c.l.b16 %v1122
          %v1237 = vunpack.c.l.b16 %v1123
          %v1238 = vunpack.c.l.b16 %v1124
          %v1239 = vunpack.c.l.b16 %v1125
          %v1240 = vunpack.c.l.b16 %v1126
          %v1241 = vunpack.c.l.b16 %v1127
          %v1242 = vunpack.c.l.b16 %v1128
          %v1243 = vunpack.c.l.b16 %v1129
          %v1244 = vunpack.c.l.b16 %v1130
          %v1245 = vunpack.c.l.b16 %v1131
          %v1246 = vunpack.c.l.b16 %v1132
          %v1247 = vunpack.c.l.b16 %v1133
          %v1248 = vunpack.c.l.b16 %v1134
          %v1249 = vunpack.c.l.b16 %v1135
          %v1250 = vunpack.c.l.b16 %v1136
          %v1251 = vunpack.c.l.b16 %v1137
          %v1252 = vunpack.c.l.b16 %v1138
          %v1253 = vunpack.c.l.b16 %v1139
          %v1254 = vunpack.c.l.b16 %v1140
          %v1255 = vunpack.c.l.b16 %v1141
          %v1256 = vpack.c.b16 %v1233, %v1232
          %v1257 = vpack.c.b16 %v1235, %v1234
          %v1258 = vpack.c.b16 %v1237, %v1236
          %v1259 = vpack.c.b16 %v1239, %v1238
          %v1260 = vpack.c.b16 %v1241, %v1240
          %v1261 = vpack.c.b16 %v1243, %v1242
          %v1262 = vpack.c.b16 %v1245, %v1244
          %v1263 = vpack.c.b16 %v1247, %v1246
          %v1264 = vpack.c.b16 %v1249, %v1248
          %v1265 = vpack.c.b16 %v1251, %v1250
          %v1266 = vpack.c.b16 %v1253, %v1252
          %v1267 = vpack.c.b16 %v1255, %v1254
          %vm1280 = vcmask 523264
          %v1282 = vsel %vm1280, %v1191, 0
          %v1285 = vsel %vm1280, %v1193, 0
          %v1288 = vsel %vm1280, %v1195, 0
          %v1291 = vsel %vm1280, %v1197, 0
          %v1294 = vsel %vm1280, %v1199, 0
          %v1297 = vsel %vm1280, %v1201, 0
          %1299 = vmatprep.subr.bf16.mxu0 0
          %1300 = vmatpush1.bf16.msra.mxu0 %v1256
          %1301 = vmatprep.subr.bf16.mxu0 0
          %1302 = vmatpush1.bf16.msra.mxu0 %v1257
          %1303 = vmatprep.subr.bf16.mxu0 0
          %1304 = vmatpush1.bf16.msra.mxu0 %v1258
          %1305 = vmatprep.subr.bf16.mxu0 0
          %1306 = vmatpush1.bf16.msra.mxu0 %v1259
          %1307 = vmatprep.subr.bf16.mxu0 0
          %1308 = vmatpush1.bf16.msra.mxu0 %v1260
          %1309 = vmatprep.subr.bf16.mxu0 0
          %1310 = vmatpush1.bf16.msra.mxu0 %v1261
          %1311 = vmatprep.subr.bf16.mxu0 0
          %1312 = vmatpush1.bf16.msra.mxu0 %v1262
          %1313 = vmatprep.subr.bf16.mxu0 0
          %1314 = vmatpush1.bf16.msra.mxu0 %v1263
          %1315 = vmatprep.subr.bf16.mxu0 0
          %1316 = vmatpush1.bf16.msra.mxu0 %v1264
          %1317 = vmatprep.subr.bf16.mxu0 0
          %1318 = vmatpush1.bf16.msra.mxu0 %v1265
          %1319 = vmatprep.subr.bf16.mxu0 0
          %1320 = vmatpush1.bf16.msra.mxu0 %v1266
          %1321 = vmatprep.subr.bf16.mxu0 0
          %1322 = vmatpush1.bf16.msra.mxu0 %v1267
          %1323 = vmatprep.subr.bf16.mxu0 0
          %1324 = vmatpush1.bf16.msra.mxu0 0
          %1325 = vmatprep.subr.bf16.mxu0 0
          %1326 = vmatpush1.bf16.msra.mxu0 0
          %1327 = vmatprep.subr.bf16.mxu0 0
          %1328 = vmatpush1.bf16.msra.mxu0 0
          %1329 = vmatprep.subr.bf16.mxu0 0
          %1330 = vmatpush1.bf16.msra.mxu0 0
          %1331 = vmatprep.mubr.bf16.mxu0 %v1282
          %1332 = vmatmul.mubr.bf16.gmra.mrb[0].mxu0 %v1190
          %v1333 = vpop.f32.mrb[0].mxu0
          %v1334 = vadd.f32 %v1142, %v1333
          %v1335 = vpop.f32.mrb[0].mxu0
          %v1336 = vpop.f32.mrb[0].mxu0
          %v1337 = vadd.f32 %v1143, %v1336
          %v1338 = vpop.f32.mrb[0].mxu0
          %1339 = vmatprep.mubr.bf16.mxu0 %v1285
          %1340 = vmatmul.mubr.bf16.gmra.mrb[0].mxu0 %v1192
          %v1341 = vpop.f32.mrb[0].mxu0
          %v1342 = vadd.f32 %v1144, %v1341
          %v1343 = vpop.f32.mrb[0].mxu0
          %v1344 = vpop.f32.mrb[0].mxu0
          %v1345 = vadd.f32 %v1145, %v1344
          %v1346 = vpop.f32.mrb[0].mxu0
          %1347 = vmatprep.mubr.bf16.mxu0 %v1288
          %1348 = vmatmul.mubr.bf16.gmra.mrb[0].mxu0 %v1194
          %v1349 = vpop.f32.mrb[0].mxu0
          %v1350 = vadd.f32 %v1146, %v1349
          %v1351 = vpop.f32.mrb[0].mxu0
          %v1352 = vpop.f32.mrb[0].mxu0
          %v1353 = vadd.f32 %v1147, %v1352
          %v1354 = vpop.f32.mrb[0].mxu0
          %1355 = vmatprep.mubr.bf16.mxu0 %v1291
          %1356 = vmatmul.mubr.bf16.gmra.mrb[0].mxu0 %v1196
          %v1357 = vpop.f32.mrb[0].mxu0
          %v1358 = vadd.f32 %v1148, %v1357
          %v1359 = vpop.f32.mrb[0].mxu0
          %v1360 = vpop.f32.mrb[0].mxu0
          %v1361 = vadd.f32 %v1149, %v1360
          %v1362 = vpop.f32.mrb[0].mxu0
          %1363 = vmatprep.mubr.bf16.mxu0 %v1294
          %1364 = vmatmul.mubr.bf16.gmra.mrb[0].mxu0 %v1198
          %v1365 = vpop.f32.mrb[0].mxu0
          %v1366 = vadd.f32 %v1150, %v1365
          %v1367 = vpop.f32.mrb[0].mxu0
          %v1368 = vpop.f32.mrb[0].mxu0
          %v1369 = vadd.f32 %v1151, %v1368
          %v1370 = vpop.f32.mrb[0].mxu0
          %1371 = vmatprep.mubr.bf16.mxu0 %v1297
          %1372 = vmatmul.mubr.bf16.gmra.mrb[0].mxu0 %v1200
          %v1373 = vpop.f32.mrb[0].mxu0
          %v1374 = vadd.f32 %v1152, %v1373
          %v1375 = vpop.f32.mrb[0].mxu0
          %v1376 = vpop.f32.mrb[0].mxu0
          %v1377 = vadd.f32 %v1153, %v1376
          %v1378 = vpop.f32.mrb[0].mxu0
          %1379 = vdwg.mxu0
          %v1380 = vld [vmem:[%s4] sm:$0x1]
          %v1381 = vld [vmem:[%s5] sm:$0x1]
          %v1382 = vsel %vm1280, %v1334, 0.0
          %1383 = vadd.xlane.f32.xlu0 %v1382
          %v1384 = vpop.xlane.xlu0 %1383
          %v1385 = vsel %vm1280, %v1337, 0.0
          %1386 = vadd.xlane.f32.xlu0 %v1385
          %v1387 = vpop.xlane.xlu0 %1386
          %v1388 = vsel %vm1280, %v1342, 0.0
          %1389 = vadd.xlane.f32.xlu0 %v1388
          %v1390 = vpop.xlane.xlu0 %1389
          %v1391 = vsel %vm1280, %v1345, 0.0
          %1392 = vadd.xlane.f32.xlu0 %v1391
          %v1393 = vpop.xlane.xlu0 %1392
          %v1394 = vsel %vm1280, %v1350, 0.0
          %1395 = vadd.xlane.f32.xlu0 %v1394
          %v1396 = vpop.xlane.xlu0 %1395
          %v1397 = vsel %vm1280, %v1353, 0.0
          %1398 = vadd.xlane.f32.xlu0 %v1397
          %v1399 = vpop.xlane.xlu0 %1398
          %v1400 = vsel %vm1280, %v1358, 0.0
          %1401 = vadd.xlane.f32.xlu0 %v1400
          %v1402 = vpop.xlane.xlu0 %1401
          %v1403 = vsel %vm1280, %v1361, 0.0
          %1404 = vadd.xlane.f32.xlu0 %v1403
          %v1405 = vpop.xlane.xlu0 %1404
          %v1406 = vsel %vm1280, %v1366, 0.0
          %1407 = vadd.xlane.f32.xlu0 %v1406
          %v1408 = vpop.xlane.xlu0 %1407
          %v1409 = vsel %vm1280, %v1369, 0.0
          %1410 = vadd.xlane.f32.xlu0 %v1409
          %v1411 = vpop.xlane.xlu0 %1410
          %v1412 = vsel %vm1280, %v1374, 0.0
          %1413 = vadd.xlane.f32.xlu0 %v1412
          %v1414 = vpop.xlane.xlu0 %1413
          %v1415 = vsel %vm1280, %v1377, 0.0
          %1416 = vadd.xlane.f32.xlu0 %v1415
          %v1417 = vpop.xlane.xlu0 %1416
          %v1418 = vrcp.pop 64.0
          %v1419 = vmul.f32 %v1384, %v1418
          %v1420 = vmul.f32 %v1387, %v1418
          %v1421 = vmul.f32 %v1390, %v1418
          %v1422 = vmul.f32 %v1393, %v1418
          %v1423 = vmul.f32 %v1396, %v1418
          %v1424 = vmul.f32 %v1399, %v1418
          %v1425 = vmul.f32 %v1402, %v1418
          %v1426 = vmul.f32 %v1405, %v1418
          %v1427 = vmul.f32 %v1408, %v1418
          %v1428 = vmul.f32 %v1411, %v1418
          %v1429 = vmul.f32 %v1414, %v1418
          %v1430 = vmul.f32 %v1417, %v1418
          %v1431 = vsub.f32 %v1334, %v1419
          %v1432 = vsub.f32 %v1337, %v1420
          %v1433 = vsub.f32 %v1342, %v1421
          %v1434 = vsub.f32 %v1345, %v1422
          %v1435 = vsub.f32 %v1350, %v1423
          %v1436 = vsub.f32 %v1353, %v1424
          %v1437 = vsub.f32 %v1358, %v1425
          %v1438 = vsub.f32 %v1361, %v1426
          %v1439 = vsub.f32 %v1366, %v1427
          %v1440 = vsub.f32 %v1369, %v1428
          %v1441 = vsub.f32 %v1374, %v1429
          %v1442 = vsub.f32 %v1377, %v1430
          %v1443 = vmul.f32 %v1431, %v1431
          %v1444 = vmul.f32 %v1432, %v1432
          %v1445 = vmul.f32 %v1433, %v1433
          %v1446 = vmul.f32 %v1434, %v1434
          %v1447 = vmul.f32 %v1435, %v1435
          %v1448 = vmul.f32 %v1436, %v1436
          %v1449 = vmul.f32 %v1437, %v1437
          %v1450 = vmul.f32 %v1438, %v1438
          %v1451 = vmul.f32 %v1439, %v1439
          %v1452 = vmul.f32 %v1440, %v1440
          %v1453 = vmul.f32 %v1441, %v1441
          %v1454 = vmul.f32 %v1442, %v1442
          %v1455 = vsel %vm1280, %v1443, 0.0
          %1456 = vadd.xlane.f32.xlu0 %v1455
          %v1457 = vpop.xlane.xlu0 %1456
          %v1458 = vsel %vm1280, %v1444, 0.0
          %1459 = vadd.xlane.f32.xlu0 %v1458
          %v1460 = vpop.xlane.xlu0 %1459
          %v1461 = vsel %vm1280, %v1445, 0.0
          %1462 = vadd.xlane.f32.xlu0 %v1461
          %v1463 = vpop.xlane.xlu0 %1462
          %v1464 = vsel %vm1280, %v1446, 0.0
          %1465 = vadd.xlane.f32.xlu0 %v1464
          %v1466 = vpop.xlane.xlu0 %1465
          %v1467 = vsel %vm1280, %v1447, 0.0
          %1468 = vadd.xlane.f32.xlu0 %v1467
          %v1469 = vpop.xlane.xlu0 %1468
          %v1470 = vsel %vm1280, %v1448, 0.0
          %1471 = vadd.xlane.f32.xlu0 %v1470
          %v1472 = vpop.xlane.xlu0 %1471
          %v1473 = vsel %vm1280, %v1449, 0.0
          %1474 = vadd.xlane.f32.xlu0 %v1473
          %v1475 = vpop.xlane.xlu0 %1474
          %v1476 = vsel %vm1280, %v1450, 0.0
          %1477 = vadd.xlane.f32.xlu0 %v1476
          %v1478 = vpop.xlane.xlu0 %1477
          %v1479 = vsel %vm1280, %v1451, 0.0
          %1480 = vadd.xlane.f32.xlu0 %v1479
          %v1481 = vpop.xlane.xlu0 %1480
          %v1482 = vsel %vm1280, %v1452, 0.0
          %1483 = vadd.xlane.f32.xlu0 %v1482
          %v1484 = vpop.xlane.xlu0 %1483
          %v1485 = vsel %vm1280, %v1453, 0.0
          %1486 = vadd.xlane.f32.xlu0 %v1485
          %v1487 = vpop.xlane.xlu0 %1486
          %v1488 = vsel %vm1280, %v1454, 0.0
          %1489 = vadd.xlane.f32.xlu0 %v1488
          %v1490 = vpop.xlane.xlu0 %1489
          %v1491 = vmul.f32 %v1457, %v1418
          %v1492 = vmul.f32 %v1460, %v1418
          %v1493 = vmul.f32 %v1463, %v1418
          %v1494 = vmul.f32 %v1466, %v1418
          %v1495 = vmul.f32 %v1469, %v1418
          %v1496 = vmul.f32 %v1472, %v1418
          %v1497 = vmul.f32 %v1475, %v1418
          %v1498 = vmul.f32 %v1478, %v1418
          %v1499 = vmul.f32 %v1481, %v1418
          %v1500 = vmul.f32 %v1484, %v1418
          %v1501 = vmul.f32 %v1487, %v1418
          %v1502 = vmul.f32 %v1490, %v1418
          %v1503 = vadd.f32 %v1491, 1e-05
          %v1504 = vadd.f32 %v1492, 1e-05
          %v1505 = vadd.f32 %v1493, 1e-05
          %v1506 = vadd.f32 %v1494, 1e-05
          %v1507 = vadd.f32 %v1495, 1e-05
          %v1508 = vadd.f32 %v1496, 1e-05
          %v1509 = vadd.f32 %v1497, 1e-05
          %v1510 = vadd.f32 %v1498, 1e-05
          %v1511 = vadd.f32 %v1499, 1e-05
          %v1512 = vadd.f32 %v1500, 1e-05
          %v1513 = vadd.f32 %v1501, 1e-05
          %v1514 = vadd.f32 %v1502, 1e-05
          %v1515 = vrsqrt.pop %v1503
          %v1516 = vrsqrt.pop %v1504
          %v1517 = vrsqrt.pop %v1505
          %v1518 = vrsqrt.pop %v1506
          %v1519 = vrsqrt.pop %v1507
          %v1520 = vrsqrt.pop %v1508
          %v1521 = vrsqrt.pop %v1509
          %v1522 = vrsqrt.pop %v1510
          %v1523 = vrsqrt.pop %v1511
          %v1524 = vrsqrt.pop %v1512
          %v1525 = vrsqrt.pop %v1513
          %v1526 = vrsqrt.pop %v1514
          %v1527 = vmul.f32 %v1431, %v1515
          %v1528 = vmul.f32 %v1432, %v1516
          %v1529 = vmul.f32 %v1433, %v1517
          %v1530 = vmul.f32 %v1434, %v1518
          %v1531 = vmul.f32 %v1435, %v1519
          %v1532 = vmul.f32 %v1436, %v1520
          %v1533 = vmul.f32 %v1437, %v1521
          %v1534 = vmul.f32 %v1438, %v1522
          %v1535 = vmul.f32 %v1439, %v1523
          %v1536 = vmul.f32 %v1440, %v1524
          %v1537 = vmul.f32 %v1441, %v1525
          %v1538 = vmul.f32 %v1442, %v1526
          %v1540 = vlaneseq
          %v1541 = vshrl.u32 %v1540, 7
          %v1542 = vsub.s32 0, %v1541
          %v1543 = vrot.slane %v1380, %v1542
          %v1545 = vmul.f32 %v1527, %v1543
          %v1546 = vmul.f32 %v1528, %v1543
          %v1547 = vmul.f32 %v1529, %v1543
          %v1548 = vmul.f32 %v1530, %v1543
          %v1549 = vmul.f32 %v1531, %v1543
          %v1550 = vmul.f32 %v1532, %v1543
          %v1551 = vmul.f32 %v1533, %v1543
          %v1552 = vmul.f32 %v1534, %v1543
          %v1553 = vmul.f32 %v1535, %v1543
          %v1554 = vmul.f32 %v1536, %v1543
          %v1555 = vmul.f32 %v1537, %v1543
          %v1556 = vmul.f32 %v1538, %v1543
          %v1558 = vlaneseq
          %v1559 = vshrl.u32 %v1558, 7
          %v1560 = vsub.s32 0, %v1559
          %v1561 = vrot.slane %v1381, %v1560
          %v1563 = vadd.f32 %v1545, %v1561
          %v1564 = vadd.f32 %v1546, %v1561
          %v1565 = vadd.f32 %v1547, %v1561
          %v1566 = vadd.f32 %v1548, %v1561
          %v1567 = vadd.f32 %v1549, %v1561
          %v1568 = vadd.f32 %v1550, %v1561
          %v1569 = vadd.f32 %v1551, %v1561
          %v1570 = vadd.f32 %v1552, %v1561
          %v1571 = vadd.f32 %v1553, %v1561
          %v1572 = vadd.f32 %v1554, %v1561
          %v1573 = vadd.f32 %v1555, %v1561
          %v1574 = vadd.f32 %v1556, %v1561
          %1575 = vst.msk [vmem:[#allocation2] sm:$0xff] %vm1280, %v1563
          %1576 = vst.msk [vmem:[#allocation2 + $0x8] sm:$0xff] %vm1280, %v1564
          %1577 = vst.msk [vmem:[#allocation2 + $0x10] sm:$0xff] %vm1280, %v1565
          %1578 = vst.msk [vmem:[#allocation2 + $0x18] sm:$0xff] %vm1280, %v1566
          %1579 = vst.msk [vmem:[#allocation2 + $0x20] sm:$0xff] %vm1280, %v1567
          %1580 = vst.msk [vmem:[#allocation2 + $0x28] sm:$0xff] %vm1280, %v1568
          %1581 = vst.msk [vmem:[#allocation2 + $0x30] sm:$0xff] %vm1280, %v1569
          %1582 = vst.msk [vmem:[#allocation2 + $0x38] sm:$0xff] %vm1280, %v1570
          %1583 = vst.msk [vmem:[#allocation2 + $0x40] sm:$0xff] %vm1280, %v1571
          %1584 = vst.msk [vmem:[#allocation2 + $0x48] sm:$0xff] %vm1280, %v1572
          %1585 = vst.msk [vmem:[#allocation2 + $0x50] sm:$0xff] %vm1280, %v1573
          %1586 = vst.msk [vmem:[#allocation2 + $0x58] sm:$0xff] %vm1280, %v1574
        $region132: #{_lambda_.1} parent=127 // pred_fallthru
          _
        %v1587 = vld [vmem:[#allocation2] sm:$0xff]
        %v1588 = vld [vmem:[#allocation2 + $0x8] sm:$0xff]
        %v1589 = vld [vmem:[#allocation2 + $0x10] sm:$0xff]
        %v1590 = vld [vmem:[#allocation2 + $0x18] sm:$0xff]
        %v1591 = vld [vmem:[#allocation2 + $0x20] sm:$0xff]
        %v1592 = vld [vmem:[#allocation2 + $0x28] sm:$0xff]
        %v1593 = vld [vmem:[#allocation2 + $0x30] sm:$0xff]
        %v1594 = vld [vmem:[#allocation2 + $0x38] sm:$0xff]
        %v1595 = vld [vmem:[#allocation2 + $0x40] sm:$0xff]
        %v1596 = vld [vmem:[#allocation2 + $0x48] sm:$0xff]
        %v1597 = vld [vmem:[#allocation2 + $0x50] sm:$0xff]
        %v1598 = vld [vmem:[#allocation2 + $0x58] sm:$0xff]
        %v1599 = vld [vmem:[%s2] sm:$0xff]
        %v1600 = vld [vmem:[%s2 + $0x8] sm:$0xff]
        %v1601 = vld [vmem:[%s2 + $0x10] sm:$0xff]
        %v1602 = vld [vmem:[%s2 + $0x18] sm:$0xff]
        %v1603 = vld [vmem:[%s2 + $0x20] sm:$0xff]
        %v1604 = vld [vmem:[%s2 + $0x28] sm:$0xff]
        %v1605 = vld [vmem:[%s2 + $0x30] sm:$0xff]
        %v1606 = vld [vmem:[%s2 + $0x38] sm:$0xff]
        %v1607 = vld [vmem:[%s2 + $0x40] sm:$0xff]
        %v1608 = vld [vmem:[%s2 + $0x48] sm:$0xff]
        %v1609 = vld [vmem:[%s2 + $0x50] sm:$0xff]
        %v1610 = vld [vmem:[%s2 + $0x58] sm:$0xff]
        %v1611 = vld [vmem:[%s1039] sm:$0x1]
        %v1612 = vld [vmem:[%s1042] sm:$0x1]
        %vm1613 = vcmask 523264
        %v1614 = vsel %vm1613, %v1587, 0.0
        %1615 = vadd.xlane.f32.xlu0 %v1614
        %v1616 = vpop.xlane.xlu0 %1615
        %v1617 = vsel %vm1613, %v1588, 0.0
        %1618 = vadd.xlane.f32.xlu0 %v1617
        %v1619 = vpop.xlane.xlu0 %1618
        %v1620 = vsel %vm1613, %v1589, 0.0
        %1621 = vadd.xlane.f32.xlu0 %v1620
        %v1622 = vpop.xlane.xlu0 %1621
        %v1623 = vsel %vm1613, %v1590, 0.0
        %1624 = vadd.xlane.f32.xlu0 %v1623
        %v1625 = vpop.xlane.xlu0 %1624
        %v1626 = vsel %vm1613, %v1591, 0.0
        %1627 = vadd.xlane.f32.xlu0 %v1626
        %v1628 = vpop.xlane.xlu0 %1627
        %v1629 = vsel %vm1613, %v1592, 0.0
        %1630 = vadd.xlane.f32.xlu0 %v1629
        %v1631 = vpop.xlane.xlu0 %1630
        %v1632 = vsel %vm1613, %v1593, 0.0
        %1633 = vadd.xlane.f32.xlu0 %v1632
        %v1634 = vpop.xlane.xlu0 %1633
        %v1635 = vsel %vm1613, %v1594, 0.0
        %1636 = vadd.xlane.f32.xlu0 %v1635
        %v1637 = vpop.xlane.xlu0 %1636
        %v1638 = vsel %vm1613, %v1595, 0.0
        %1639 = vadd.xlane.f32.xlu0 %v1638
        %v1640 = vpop.xlane.xlu0 %1639
        %v1641 = vsel %vm1613, %v1596, 0.0
        %1642 = vadd.xlane.f32.xlu0 %v1641
        %v1643 = vpop.xlane.xlu0 %1642
        %v1644 = vsel %vm1613, %v1597, 0.0
        %1645 = vadd.xlane.f32.xlu0 %v1644
        %v1646 = vpop.xlane.xlu0 %1645
        %v1647 = vsel %vm1613, %v1598, 0.0
        %1648 = vadd.xlane.f32.xlu0 %v1647
        %v1649 = vpop.xlane.xlu0 %1648
        %v1650 = vrcp.pop 64.0
        %v1651 = vmul.f32 %v1616, %v1650
        %v1652 = vmul.f32 %v1619, %v1650
        %v1653 = vmul.f32 %v1622, %v1650
        %v1654 = vmul.f32 %v1625, %v1650
        %v1655 = vmul.f32 %v1628, %v1650
        %v1656 = vmul.f32 %v1631, %v1650
        %v1657 = vmul.f32 %v1634, %v1650
        %v1658 = vmul.f32 %v1637, %v1650
        %v1659 = vmul.f32 %v1640, %v1650
        %v1660 = vmul.f32 %v1643, %v1650
        %v1661 = vmul.f32 %v1646, %v1650
        %v1662 = vmul.f32 %v1649, %v1650
        %v1663 = vsub.f32 %v1587, %v1651
        %v1664 = vsub.f32 %v1588, %v1652
        %v1665 = vsub.f32 %v1589, %v1653
        %v1666 = vsub.f32 %v1590, %v1654
        %v1667 = vsub.f32 %v1591, %v1655
        %v1668 = vsub.f32 %v1592, %v1656
        %v1669 = vsub.f32 %v1593, %v1657
        %v1670 = vsub.f32 %v1594, %v1658
        %v1671 = vsub.f32 %v1595, %v1659
        %v1672 = vsub.f32 %v1596, %v1660
        %v1673 = vsub.f32 %v1597, %v1661
        %v1674 = vsub.f32 %v1598, %v1662
        %v1675 = vmul.f32 %v1663, %v1663
        %v1676 = vmul.f32 %v1664, %v1664
        %v1677 = vmul.f32 %v1665, %v1665
        %v1678 = vmul.f32 %v1666, %v1666
        %v1679 = vmul.f32 %v1667, %v1667
        %v1680 = vmul.f32 %v1668, %v1668
        %v1681 = vmul.f32 %v1669, %v1669
        %v1682 = vmul.f32 %v1670, %v1670
        %v1683 = vmul.f32 %v1671, %v1671
        %v1684 = vmul.f32 %v1672, %v1672
        %v1685 = vmul.f32 %v1673, %v1673
        %v1686 = vmul.f32 %v1674, %v1674
        %v1687 = vsel %vm1613, %v1675, 0.0
        %1688 = vadd.xlane.f32.xlu0 %v1687
        %v1689 = vpop.xlane.xlu0 %1688
        %v1690 = vsel %vm1613, %v1676, 0.0
        %1691 = vadd.xlane.f32.xlu0 %v1690
        %v1692 = vpop.xlane.xlu0 %1691
        %v1693 = vsel %vm1613, %v1677, 0.0
        %1694 = vadd.xlane.f32.xlu0 %v1693
        %v1695 = vpop.xlane.xlu0 %1694
        %v1696 = vsel %vm1613, %v1678, 0.0
        %1697 = vadd.xlane.f32.xlu0 %v1696
        %v1698 = vpop.xlane.xlu0 %1697
        %v1699 = vsel %vm1613, %v1679, 0.0
        %1700 = vadd.xlane.f32.xlu0 %v1699
        %v1701 = vpop.xlane.xlu0 %1700
        %v1702 = vsel %vm1613, %v1680, 0.0
        %1703 = vadd.xlane.f32.xlu0 %v1702
        %v1704 = vpop.xlane.xlu0 %1703
        %v1705 = vsel %vm1613, %v1681, 0.0
        %1706 = vadd.xlane.f32.xlu0 %v1705
        %v1707 = vpop.xlane.xlu0 %1706
        %v1708 = vsel %vm1613, %v1682, 0.0
        %1709 = vadd.xlane.f32.xlu0 %v1708
        %v1710 = vpop.xlane.xlu0 %1709
        %v1711 = vsel %vm1613, %v1683, 0.0
        %1712 = vadd.xlane.f32.xlu0 %v1711
        %v1713 = vpop.xlane.xlu0 %1712
        %v1714 = vsel %vm1613, %v1684, 0.0
        %1715 = vadd.xlane.f32.xlu0 %v1714
        %v1716 = vpop.xlane.xlu0 %1715
        %v1717 = vsel %vm1613, %v1685, 0.0
        %1718 = vadd.xlane.f32.xlu0 %v1717
        %v1719 = vpop.xlane.xlu0 %1718
        %v1720 = vsel %vm1613, %v1686, 0.0
        %1721 = vadd.xlane.f32.xlu0 %v1720
        %v1722 = vpop.xlane.xlu0 %1721
        %v1723 = vmul.f32 %v1689, %v1650
        %v1724 = vmul.f32 %v1692, %v1650
        %v1725 = vmul.f32 %v1695, %v1650
        %v1726 = vmul.f32 %v1698, %v1650
        %v1727 = vmul.f32 %v1701, %v1650
        %v1728 = vmul.f32 %v1704, %v1650
        %v1729 = vmul.f32 %v1707, %v1650
        %v1730 = vmul.f32 %v1710, %v1650
        %v1731 = vmul.f32 %v1713, %v1650
        %v1732 = vmul.f32 %v1716, %v1650
        %v1733 = vmul.f32 %v1719, %v1650
        %v1734 = vmul.f32 %v1722, %v1650
        %v1735 = vadd.f32 %v1723, 1e-05
        %v1736 = vadd.f32 %v1724, 1e-05
        %v1737 = vadd.f32 %v1725, 1e-05
        %v1738 = vadd.f32 %v1726, 1e-05
        %v1739 = vadd.f32 %v1727, 1e-05
        %v1740 = vadd.f32 %v1728, 1e-05
        %v1741 = vadd.f32 %v1729, 1e-05
        %v1742 = vadd.f32 %v1730, 1e-05
        %v1743 = vadd.f32 %v1731, 1e-05
        %v1744 = vadd.f32 %v1732, 1e-05
        %v1745 = vadd.f32 %v1733, 1e-05
        %v1746 = vadd.f32 %v1734, 1e-05
        %v1747 = vrsqrt.pop %v1735
        %v1748 = vrsqrt.pop %v1736
        %v1749 = vrsqrt.pop %v1737
        %v1750 = vrsqrt.pop %v1738
        %v1751 = vrsqrt.pop %v1739
        %v1752 = vrsqrt.pop %v1740
        %v1753 = vrsqrt.pop %v1741
        %v1754 = vrsqrt.pop %v1742
        %v1755 = vrsqrt.pop %v1743
        %v1756 = vrsqrt.pop %v1744
        %v1757 = vrsqrt.pop %v1745
        %v1758 = vrsqrt.pop %v1746
        %v1759 = vmul.f32 %v1663, %v1747
        %v1760 = vmul.f32 %v1664, %v1748
        %v1761 = vmul.f32 %v1665, %v1749
        %v1762 = vmul.f32 %v1666, %v1750
        %v1763 = vmul.f32 %v1667, %v1751
        %v1764 = vmul.f32 %v1668, %v1752
        %v1765 = vmul.f32 %v1669, %v1753
        %v1766 = vmul.f32 %v1670, %v1754
        %v1767 = vmul.f32 %v1671, %v1755
        %v1768 = vmul.f32 %v1672, %v1756
        %v1769 = vmul.f32 %v1673, %v1757
        %v1770 = vmul.f32 %v1674, %v1758
        %v1772 = vlaneseq
        %v1773 = vshrl.u32 %v1772, 7
        %v1774 = vsub.s32 0, %v1773
        %v1775 = vrot.slane %v1611, %v1774
        %v1777 = vmul.f32 %v1759, %v1775
        %v1778 = vmul.f32 %v1760, %v1775
        %v1779 = vmul.f32 %v1761, %v1775
        %v1780 = vmul.f32 %v1762, %v1775
        %v1781 = vmul.f32 %v1763, %v1775
        %v1782 = vmul.f32 %v1764, %v1775
        %v1783 = vmul.f32 %v1765, %v1775
        %v1784 = vmul.f32 %v1766, %v1775
        %v1785 = vmul.f32 %v1767, %v1775
        %v1786 = vmul.f32 %v1768, %v1775
        %v1787 = vmul.f32 %v1769, %v1775
        %v1788 = vmul.f32 %v1770, %v1775
        %v1790 = vlaneseq
        %v1791 = vshrl.u32 %v1790, 7
        %v1792 = vsub.s32 0, %v1791
        %v1793 = vrot.slane %v1612, %v1792
        %v1795 = vadd.f32 %v1777, %v1793
        %v1796 = vadd.f32 %v1778, %v1793
        %v1797 = vadd.f32 %v1779, %v1793
        %v1798 = vadd.f32 %v1780, %v1793
        %v1799 = vadd.f32 %v1781, %v1793
        %v1800 = vadd.f32 %v1782, %v1793
        %v1801 = vadd.f32 %v1783, %v1793
        %v1802 = vadd.f32 %v1784, %v1793
        %v1803 = vadd.f32 %v1785, %v1793
        %v1804 = vadd.f32 %v1786, %v1793
        %v1805 = vadd.f32 %v1787, %v1793
        %v1806 = vadd.f32 %v1788, %v1793
        %v1807 = vpack.c.bf16 %v1796, %v1795
        %v1808 = vpack.c.bf16 %v1798, %v1797
        %v1809 = vpack.c.bf16 %v1800, %v1799
        %v1810 = vpack.c.bf16 %v1802, %v1801
        %v1811 = vpack.c.bf16 %v1804, %v1803
        %v1812 = vpack.c.bf16 %v1806, %v1805
        %v1813 = vld [vmem:[%s1047] sm:$0xf]
        %v1814 = vld [vmem:[%s1047 + $0x4] sm:$0xf]
        %v1815 = vld [vmem:[%s1047 + $0x8] sm:$0xf]
        %v1816 = vld [vmem:[%s1047 + $0xc] sm:$0xf]
        %v1817 = vld [vmem:[%s1047 + $0x10] sm:$0xf]
        %v1818 = vld [vmem:[%s1047 + $0x14] sm:$0xf]
        %v1819 = vld [vmem:[%s1047 + $0x18] sm:$0xf]
        %v1820 = vld [vmem:[%s1047 + $0x1c] sm:$0xf]
        %v1821 = vld [vmem:[%s1051] sm:$0x1]
        %v1823 = vlaneseq
        %v1824 = vshrl.u32 %v1823, 7
        %v1825 = vsub.s32 0, %v1824
        %v1826 = vrot.slane %v1821, %v1825
        %v1836 = vunpack.c.l.b16 %v1813
        %v1837 = vunpack.c.l.b16 %v1814
        %v1838 = vunpack.c.l.b16 %v1815
        %v1839 = vunpack.c.l.b16 %v1816
        %v1840 = vunpack.c.l.b16 %v1817
        %v1841 = vunpack.c.l.b16 %v1818
        %v1842 = vunpack.c.l.b16 %v1819
        %v1843 = vunpack.c.l.b16 %v1820
        %v1844 = vpack.c.b16 %v1837, %v1836
        %v1845 = vpack.c.b16 %v1839, %v1838
        %v1846 = vpack.c.b16 %v1841, %v1840
        %v1847 = vpack.c.b16 %v1843, %v1842
        %v1853 = vsel %vm1613, %v1807, 0
        %v1856 = vsel %vm1613, %v1808, 0
        %v1859 = vsel %vm1613, %v1809, 0
        %v1862 = vsel %vm1613, %v1810, 0
        %v1865 = vsel %vm1613, %v1811, 0
        %v1868 = vsel %vm1613, %v1812, 0
        %1870 = vmatprep.subr.bf16.mxu0 0
        %1871 = vmatpush1.bf16.msra.mxu0 %v1844
        %1872 = vmatprep.subr.bf16.mxu0 0
        %1873 = vmatpush1.bf16.msra.mxu0 %v1845
        %1874 = vmatprep.subr.bf16.mxu0 0
        %1875 = vmatpush1.bf16.msra.mxu0 %v1846
        %1876 = vmatprep.subr.bf16.mxu0 0
        %1877 = vmatpush1.bf16.msra.mxu0 %v1847
        %1878 = vmatprep.subr.bf16.mxu0 0
        %1879 = vmatpush1.bf16.msra.mxu0 0
        %1880 = vmatprep.subr.bf16.mxu0 0
        %1881 = vmatpush1.bf16.msra.mxu0 0
        %1882 = vmatprep.subr.bf16.mxu0 0
        %1883 = vmatpush1.bf16.msra.mxu0 0
        %1884 = vmatprep.subr.bf16.mxu0 0
        %1885 = vmatpush1.bf16.msra.mxu0 0
        %1886 = vmatprep.subr.bf16.mxu0 0
        %1887 = vmatpush1.bf16.msra.mxu0 0
        %1888 = vmatprep.subr.bf16.mxu0 0
        %1889 = vmatpush1.bf16.msra.mxu0 0
        %1890 = vmatprep.subr.bf16.mxu0 0
        %1891 = vmatpush1.bf16.msra.mxu0 0
        %1892 = vmatprep.subr.bf16.mxu0 0
        %1893 = vmatpush1.bf16.msra.mxu0 0
        %1894 = vmatprep.subr.bf16.mxu0 0
        %1895 = vmatpush1.bf16.msra.mxu0 0
        %1896 = vmatprep.subr.bf16.mxu0 0
        %1897 = vmatpush1.bf16.msra.mxu0 0
        %1898 = vmatprep.subr.bf16.mxu0 0
        %1899 = vmatpush1.bf16.msra.mxu0 0
        %1900 = vmatprep.subr.bf16.mxu0 0
        %1901 = vmatpush1.bf16.msra.mxu0 0
        %1902 = vmatprep.mubr.bf16.mxu0 0
        %1903 = vmatmul.mubr.bf16.gmra.mrb[0].mxu0 %v1853
        %v1904 = vpop.f32.mrb[0].mxu0
        %v1905 = vadd.f32 %v1826, %v1904
        %v1906 = vpop.f32.mrb[0].mxu0
        %v1907 = vpop.f32.mrb[0].mxu0
        %v1908 = vadd.f32 %v1826, %v1907
        %v1909 = vpop.f32.mrb[0].mxu0
        %1910 = vmatprep.mubr.bf16.mxu0 0
        %1911 = vmatmul.mubr.bf16.gmra.mrb[0].mxu0 %v1856
        %v1912 = vpop.f32.mrb[0].mxu0
        %v1913 = vadd.f32 %v1826, %v1912
        %v1914 = vpop.f32.mrb[0].mxu0
        %v1915 = vpop.f32.mrb[0].mxu0
        %v1916 = vadd.f32 %v1826, %v1915
        %v1917 = vpop.f32.mrb[0].mxu0
        %1918 = vmatprep.mubr.bf16.mxu0 0
        %1919 = vmatmul.mubr.bf16.gmra.mrb[0].mxu0 %v1859
        %v1920 = vpop.f32.mrb[0].mxu0
        %v1921 = vadd.f32 %v1826, %v1920
        %v1922 = vpop.f32.mrb[0].mxu0
        %v1923 = vpop.f32.mrb[0].mxu0
        %v1924 = vadd.f32 %v1826, %v1923
        %v1925 = vpop.f32.mrb[0].mxu0
        %1926 = vmatprep.mubr.bf16.mxu0 0
        %1927 = vmatmul.mubr.bf16.gmra.mrb[0].mxu0 %v1862
        %v1928 = vpop.f32.mrb[0].mxu0
        %v1929 = vadd.f32 %v1826, %v1928
        %v1930 = vpop.f32.mrb[0].mxu0
        %v1931 = vpop.f32.mrb[0].mxu0
        %v1932 = vadd.f32 %v1826, %v1931
        %v1933 = vpop.f32.mrb[0].mxu0
        %1934 = vmatprep.mubr.bf16.mxu0 0
        %1935 = vmatmul.mubr.bf16.gmra.mrb[0].mxu0 %v1865
        %v1936 = vpop.f32.mrb[0].mxu0
        %v1937 = vadd.f32 %v1826, %v1936
        %v1938 = vpop.f32.mrb[0].mxu0
        %v1939 = vpop.f32.mrb[0].mxu0
        %v1940 = vadd.f32 %v1826, %v1939
        %v1941 = vpop.f32.mrb[0].mxu0
        %1942 = vmatprep.mubr.bf16.mxu0 0
        %1943 = vmatmul.mubr.bf16.gmra.mrb[0].mxu0 %v1868
        %v1944 = vpop.f32.mrb[0].mxu0
        %v1945 = vadd.f32 %v1826, %v1944
        %v1946 = vpop.f32.mrb[0].mxu0
        %v1947 = vpop.f32.mrb[0].mxu0
        %v1948 = vadd.f32 %v1826, %v1947
        %v1949 = vpop.f32.mrb[0].mxu0
        %1950 = vdwg.mxu0
        %v1951 = vld [vmem:[%s1056] sm:$0xf]
        %v1952 = vld [vmem:[%s1056 + $0x4] sm:$0xf]
        %v1953 = vld [vmem:[%s1056 + $0x8] sm:$0xf]
        %v1954 = vld [vmem:[%s1056 + $0xc] sm:$0xf]
        %v1955 = vld [vmem:[%s1056 + $0x10] sm:$0xf]
        %v1956 = vld [vmem:[%s1056 + $0x14] sm:$0xf]
        %v1957 = vld [vmem:[%s1056 + $0x18] sm:$0xf]
        %v1958 = vld [vmem:[%s1056 + $0x1c] sm:$0xf]
        %v1959 = vld [vmem:[%s1060] sm:$0x1]
        %v1961 = vlaneseq
        %v1962 = vshrl.u32 %v1961, 7
        %v1963 = vsub.s32 0, %v1962
        %v1964 = vrot.slane %v1959, %v1963
        %v1974 = vunpack.c.l.b16 %v1951
        %v1975 = vunpack.c.l.b16 %v1952
        %v1976 = vunpack.c.l.b16 %v1953
        %v1977 = vunpack.c.l.b16 %v1954
        %v1978 = vunpack.c.l.b16 %v1955
        %v1979 = vunpack.c.l.b16 %v1956
        %v1980 = vunpack.c.l.b16 %v1957
        %v1981 = vunpack.c.l.b16 %v1958
        %v1982 = vpack.c.b16 %v1975, %v1974
        %v1983 = vpack.c.b16 %v1977, %v1976
        %v1984 = vpack.c.b16 %v1979, %v1978
        %v1985 = vpack.c.b16 %v1981, %v1980
        %1990 = vmatprep.subr.bf16.mxu0 0
        %1991 = vmatpush1.bf16.msra.mxu0 %v1982
        %1992 = vmatprep.subr.bf16.mxu0 0
        %1993 = vmatpush1.bf16.msra.mxu0 %v1983
        %1994 = vmatprep.subr.bf16.mxu0 0
        %1995 = vmatpush1.bf16.msra.mxu0 %v1984
        %1996 = vmatprep.subr.bf16.mxu0 0
        %1997 = vmatpush1.bf16.msra.mxu0 %v1985
        %1998 = vmatprep.subr.bf16.mxu0 0
        %1999 = vmatpush1.bf16.msra.mxu0 0
        %2000 = vmatprep.subr.bf16.mxu0 0
        %2001 = vmatpush1.bf16.msra.mxu0 0
        %2002 = vmatprep.subr.bf16.mxu0 0
        %2003 = vmatpush1.bf16.msra.mxu0 0
        %2004 = vmatprep.subr.bf16.mxu0 0
        %2005 = vmatpush1.bf16.msra.mxu0 0
        %2006 = vmatprep.subr.bf16.mxu0 0
        %2007 = vmatpush1.bf16.msra.mxu0 0
        %2008 = vmatprep.subr.bf16.mxu0 0
        %2009 = vmatpush1.bf16.msra.mxu0 0
        %2010 = vmatprep.subr.bf16.mxu0 0
        %2011 = vmatpush1.bf16.msra.mxu0 0
        %2012 = vmatprep.subr.bf16.mxu0 0
        %2013 = vmatpush1.bf16.msra.mxu0 0
        %2014 = vmatprep.subr.bf16.mxu0 0
        %2015 = vmatpush1.bf16.msra.mxu0 0
        %2016 = vmatprep.subr.bf16.mxu0 0
        %2017 = vmatpush1.bf16.msra.mxu0 0
        %2018 = vmatprep.subr.bf16.mxu0 0
        %2019 = vmatpush1.bf16.msra.mxu0 0
        %2020 = vmatprep.subr.bf16.mxu0 0
        %2021 = vmatpush1.bf16.msra.mxu0 0
        %2022 = vmatprep.mubr.bf16.mxu0 0
        %2023 = vmatmul.mubr.bf16.gmra.mrb[0].mxu0 %v1853
        %v2024 = vpop.f32.mrb[0].mxu0
        %v2025 = vadd.f32 %v1964, %v2024
        %v2026 = vpop.f32.mrb[0].mxu0
        %v2027 = vpop.f32.mrb[0].mxu0
        %v2028 = vadd.f32 %v1964, %v2027
        %v2029 = vpop.f32.mrb[0].mxu0
        %2030 = vmatprep.mubr.bf16.mxu0 0
        %2031 = vmatmul.mubr.bf16.gmra.mrb[0].mxu0 %v1856
        %v2032 = vpop.f32.mrb[0].mxu0
        %v2033 = vadd.f32 %v1964, %v2032
        %v2034 = vpop.f32.mrb[0].mxu0
        %v2035 = vpop.f32.mrb[0].mxu0
        %v2036 = vadd.f32 %v1964, %v2035
        %v2037 = vpop.f32.mrb[0].mxu0
        %2038 = vmatprep.mubr.bf16.mxu0 0
        %2039 = vmatmul.mubr.bf16.gmra.mrb[0].mxu0 %v1859
        %v2040 = vpop.f32.mrb[0].mxu0
        %v2041 = vadd.f32 %v1964, %v2040
        %v2042 = vpop.f32.mrb[0].mxu0
        %v2043 = vpop.f32.mrb[0].mxu0
        %v2044 = vadd.f32 %v1964, %v2043
        %v2045 = vpop.f32.mrb[0].mxu0
        %2046 = vmatprep.mubr.bf16.mxu0 0
        %2047 = vmatmul.mubr.bf16.gmra.mrb[0].mxu0 %v1862
        %v2048 = vpop.f32.mrb[0].mxu0
        %v2049 = vadd.f32 %v1964, %v2048
        %v2050 = vpop.f32.mrb[0].mxu0
        %v2051 = vpop.f32.mrb[0].mxu0
        %v2052 = vadd.f32 %v1964, %v2051
        %v2053 = vpop.f32.mrb[0].mxu0
        %2054 = vmatprep.mubr.bf16.mxu0 0
        %2055 = vmatmul.mubr.bf16.gmra.mrb[0].mxu0 %v1865
        %v2056 = vpop.f32.mrb[0].mxu0
        %v2057 = vadd.f32 %v1964, %v2056
        %v2058 = vpop.f32.mrb[0].mxu0
        %v2059 = vpop.f32.mrb[0].mxu0
        %v2060 = vadd.f32 %v1964, %v2059
        %v2061 = vpop.f32.mrb[0].mxu0
        %2062 = vmatprep.mubr.bf16.mxu0 0
        %2063 = vmatmul.mubr.bf16.gmra.mrb[0].mxu0 %v1868
        %v2064 = vpop.f32.mrb[0].mxu0
        %v2065 = vadd.f32 %v1964, %v2064
        %v2066 = vpop.f32.mrb[0].mxu0
        %v2067 = vpop.f32.mrb[0].mxu0
        %v2068 = vadd.f32 %v1964, %v2067
        %v2069 = vpop.f32.mrb[0].mxu0
        %2070 = vdwg.mxu0
        %v2071 = vld [vmem:[%s1065] sm:$0xf]
        %v2072 = vld [vmem:[%s1065 + $0x4] sm:$0xf]
        %v2073 = vld [vmem:[%s1065 + $0x8] sm:$0xf]
        %v2074 = vld [vmem:[%s1065 + $0xc] sm:$0xf]
        %v2075 = vld [vmem:[%s1065 + $0x10] sm:$0xf]
        %v2076 = vld [vmem:[%s1065 + $0x14] sm:$0xf]
        %v2077 = vld [vmem:[%s1065 + $0x18] sm:$0xf]
        %v2078 = vld [vmem:[%s1065 + $0x1c] sm:$0xf]
        %v2079 = vld [vmem:[%s1069] sm:$0x1]
        %v2081 = vlaneseq
        %v2082 = vshrl.u32 %v2081, 7
        %v2083 = vsub.s32 0, %v2082
        %v2084 = vrot.slane %v2079, %v2083
        %v2094 = vunpack.c.l.b16 %v2071
        %v2095 = vunpack.c.l.b16 %v2072
        %v2096 = vunpack.c.l.b16 %v2073
        %v2097 = vunpack.c.l.b16 %v2074
        %v2098 = vunpack.c.l.b16 %v2075
        %v2099 = vunpack.c.l.b16 %v2076
        %v2100 = vunpack.c.l.b16 %v2077
        %v2101 = vunpack.c.l.b16 %v2078
        %v2102 = vpack.c.b16 %v2095, %v2094
        %v2103 = vpack.c.b16 %v2097, %v2096
        %v2104 = vpack.c.b16 %v2099, %v2098
        %v2105 = vpack.c.b16 %v2101, %v2100
        %2110 = vmatprep.subr.bf16.mxu0 0
        %2111 = vmatpush1.bf16.msra.mxu0 %v2102
        %2112 = vmatprep.subr.bf16.mxu0 0
        %2113 = vmatpush1.bf16.msra.mxu0 %v2103
        %2114 = vmatprep.subr.bf16.mxu0 0
        %2115 = vmatpush1.bf16.msra.mxu0 %v2104
        %2116 = vmatprep.subr.bf16.mxu0 0
        %2117 = vmatpush1.bf16.msra.mxu0 %v2105
        %2118 = vmatprep.subr.bf16.mxu0 0
        %2119 = vmatpush1.bf16.msra.mxu0 0
        %2120 = vmatprep.subr.bf16.mxu0 0
        %2121 = vmatpush1.bf16.msra.mxu0 0
        %2122 = vmatprep.subr.bf16.mxu0 0
        %2123 = vmatpush1.bf16.msra.mxu0 0
        %2124 = vmatprep.subr.bf16.mxu0 0
        %2125 = vmatpush1.bf16.msra.mxu0 0
        %2126 = vmatprep.subr.bf16.mxu0 0
        %2127 = vmatpush1.bf16.msra.mxu0 0
        %2128 = vmatprep.subr.bf16.mxu0 0
        %2129 = vmatpush1.bf16.msra.mxu0 0
        %2130 = vmatprep.subr.bf16.mxu0 0
        %2131 = vmatpush1.bf16.msra.mxu0 0
        %2132 = vmatprep.subr.bf16.mxu0 0
        %2133 = vmatpush1.bf16.msra.mxu0 0
        %2134 = vmatprep.subr.bf16.mxu0 0
        %2135 = vmatpush1.bf16.msra.mxu0 0
        %2136 = vmatprep.subr.bf16.mxu0 0
        %2137 = vmatpush1.bf16.msra.mxu0 0
        %2138 = vmatprep.subr.bf16.mxu0 0
        %2139 = vmatpush1.bf16.msra.mxu0 0
        %2140 = vmatprep.subr.bf16.mxu0 0
        %2141 = vmatpush1.bf16.msra.mxu0 0
        %2142 = vmatprep.mubr.bf16.mxu0 0
        %2143 = vmatmul.mubr.bf16.gmra.mrb[0].mxu0 %v1853
        %v2144 = vpop.f32.mrb[0].mxu0
        %v2145 = vadd.f32 %v2084, %v2144
        %v2146 = vpop.f32.mrb[0].mxu0
        %v2147 = vpop.f32.mrb[0].mxu0
        %v2148 = vadd.f32 %v2084, %v2147
        %v2149 = vpop.f32.mrb[0].mxu0
        %2150 = vmatprep.mubr.bf16.mxu0 0
        %2151 = vmatmul.mubr.bf16.gmra.mrb[0].mxu0 %v1856
        %v2152 = vpop.f32.mrb[0].mxu0
        %v2153 = vadd.f32 %v2084, %v2152
        %v2154 = vpop.f32.mrb[0].mxu0
        %v2155 = vpop.f32.mrb[0].mxu0
        %v2156 = vadd.f32 %v2084, %v2155
        %v2157 = vpop.f32.mrb[0].mxu0
        %2158 = vmatprep.mubr.bf16.mxu0 0
        %2159 = vmatmul.mubr.bf16.gmra.mrb[0].mxu0 %v1859
        %v2160 = vpop.f32.mrb[0].mxu0
        %v2161 = vadd.f32 %v2084, %v2160
        %v2162 = vpop.f32.mrb[0].mxu0
        %v2163 = vpop.f32.mrb[0].mxu0
        %v2164 = vadd.f32 %v2084, %v2163
        %v2165 = vpop.f32.mrb[0].mxu0
        %2166 = vmatprep.mubr.bf16.mxu0 0
        %2167 = vmatmul.mubr.bf16.gmra.mrb[0].mxu0 %v1862
        %v2168 = vpop.f32.mrb[0].mxu0
        %v2169 = vadd.f32 %v2084, %v2168
        %v2170 = vpop.f32.mrb[0].mxu0
        %v2171 = vpop.f32.mrb[0].mxu0
        %v2172 = vadd.f32 %v2084, %v2171
        %v2173 = vpop.f32.mrb[0].mxu0
        %2174 = vmatprep.mubr.bf16.mxu0 0
        %2175 = vmatmul.mubr.bf16.gmra.mrb[0].mxu0 %v1865
        %v2176 = vpop.f32.mrb[0].mxu0
        %v2177 = vadd.f32 %v2084, %v2176
        %v2178 = vpop.f32.mrb[0].mxu0
        %v2179 = vpop.f32.mrb[0].mxu0
        %v2180 = vadd.f32 %v2084, %v2179
        %v2181 = vpop.f32.mrb[0].mxu0
        %2182 = vmatprep.mubr.bf16.mxu0 0
        %2183 = vmatmul.mubr.bf16.gmra.mrb[0].mxu0 %v1868
        %v2184 = vpop.f32.mrb[0].mxu0
        %v2185 = vadd.f32 %v2084, %v2184
        %v2186 = vpop.f32.mrb[0].mxu0
        %v2187 = vpop.f32.mrb[0].mxu0
        %v2188 = vadd.f32 %v2084, %v2187
        %v2189 = vpop.f32.mrb[0].mxu0
        %2190 = vdwg.mxu0
        %v2191 = vpack.c.bf16 %v1908, %v1905
        %v2192 = vpack.c.bf16 %v1916, %v1913
        %v2193 = vpack.c.bf16 %v1924, %v1921
        %v2194 = vpack.c.bf16 %v1932, %v1929
        %v2195 = vpack.c.bf16 %v1940, %v1937
        %v2196 = vpack.c.bf16 %v1948, %v1945
        %v2197 = vpack.c.bf16 %v2028, %v2025
        %v2198 = vpack.c.bf16 %v2036, %v2033
        %v2199 = vpack.c.bf16 %v2044, %v2041
        %v2200 = vpack.c.bf16 %v2052, %v2049
        %v2201 = vpack.c.bf16 %v2060, %v2057
        %v2202 = vpack.c.bf16 %v2068, %v2065
        %vm2203 = vcmask 130048
        %v2205 = vsel %vm2203, %v2191, 0
        %v2208 = vsel %vm2203, %v2192, 0
        %v2211 = vsel %vm2203, %v2193, 0
        %v2214 = vsel %vm2203, %v2194, 0
        %v2217 = vsel %vm2203, %v2195, 0
        %v2220 = vsel %vm2203, %v2196, 0
        %v2223 = vsel %vm2203, %v2197, 0
        %v2226 = vsel %vm2203, %v2198, 0
        %v2229 = vsel %vm2203, %v2199, 0
        %v2232 = vsel %vm2203, %v2200, 0
        %v2235 = vsel %vm2203, %v2201, 0
        %v2238 = vsel %vm2203, %v2202, 0
        %2240 = vmatprep.subr.bf16.mxu0 0
        %2241 = vmatpush1.bf16.xpose.msra.mxu0 %v2223
        %2242 = vmatprep.subr.bf16.mxu0 0
        %2243 = vmatpush1.bf16.xpose.msra.mxu0 %v2226
        %2244 = vmatprep.subr.bf16.mxu0 0
        %2245 = vmatpush1.bf16.xpose.msra.mxu0 %v2229
        %2246 = vmatprep.subr.bf16.mxu0 0
        %2247 = vmatpush1.bf16.xpose.msra.mxu0 %v2232
        %2248 = vmatprep.subr.bf16.mxu0 0
        %2249 = vmatpush1.bf16.xpose.msra.mxu0 %v2235
        %2250 = vmatprep.subr.bf16.mxu0 0
        %2251 = vmatpush1.bf16.xpose.msra.mxu0 %v2238
        %2252 = vmatprep.subr.bf16.mxu0 0
        %2253 = vmatpush1.bf16.xpose.msra.mxu0 0
        %2254 = vmatprep.subr.bf16.mxu0 0
        %2255 = vmatpush1.bf16.xpose.msra.mxu0 0
        %2256 = vmatprep.subr.bf16.mxu0 0
        %2257 = vmatpush1.bf16.xpose.msra.mxu0 0
        %2258 = vmatprep.subr.bf16.mxu0 0
        %2259 = vmatpush1.bf16.xpose.msra.mxu0 0
        %2260 = vmatprep.subr.bf16.mxu0 0
        %2261 = vmatpush1.bf16.xpose.msra.mxu0 0
        %2262 = vmatprep.subr.bf16.mxu0 0
        %2263 = vmatpush1.bf16.xpose.msra.mxu0 0
        %2264 = vmatprep.subr.bf16.mxu0 0
        %2265 = vmatpush1.bf16.xpose.msra.mxu0 0
        %2266 = vmatprep.subr.bf16.mxu0 0
        %2267 = vmatpush1.bf16.xpose.msra.mxu0 0
        %2268 = vmatprep.subr.bf16.mxu0 0
        %2269 = vmatpush1.bf16.xpose.msra.mxu0 0
        %2270 = vmatprep.subr.bf16.mxu0 0
        %2271 = vmatpush1.bf16.xpose.msra.mxu0 0
        %2272 = vmatprep.mubr.bf16.mxu0 0
        %2273 = vmatmul.mubr.bf16.gmra.mrb[0].mxu0 %v2205
        %v2274 = vpop.f32.mrb[0].mxu0
        %v2275 = vadd.f32 %v1599, %v2274
        %v2276 = vpop.f32.mrb[0].mxu0
        %v2277 = vpop.f32.mrb[0].mxu0
        %v2278 = vadd.f32 %v1600, %v2277
        %v2279 = vpop.f32.mrb[0].mxu0
        %2280 = vmatprep.mubr.bf16.mxu0 0
        %2281 = vmatmul.mubr.bf16.gmra.mrb[0].mxu0 %v2208
        %v2282 = vpop.f32.mrb[0].mxu0
        %v2283 = vadd.f32 %v1601, %v2282
        %v2284 = vpop.f32.mrb[0].mxu0
        %v2285 = vpop.f32.mrb[0].mxu0
        %v2286 = vadd.f32 %v1602, %v2285
        %v2287 = vpop.f32.mrb[0].mxu0
        %2288 = vmatprep.mubr.bf16.mxu0 0
        %2289 = vmatmul.mubr.bf16.gmra.mrb[0].mxu0 %v2211
        %v2290 = vpop.f32.mrb[0].mxu0
        %v2291 = vadd.f32 %v1603, %v2290
        %v2292 = vpop.f32.mrb[0].mxu0
        %v2293 = vpop.f32.mrb[0].mxu0
        %v2294 = vadd.f32 %v1604, %v2293
        %v2295 = vpop.f32.mrb[0].mxu0
        %2296 = vmatprep.mubr.bf16.mxu0 0
        %2297 = vmatmul.mubr.bf16.gmra.mrb[0].mxu0 %v2214
        %v2298 = vpop.f32.mrb[0].mxu0
        %v2299 = vadd.f32 %v1605, %v2298
        %v2300 = vpop.f32.mrb[0].mxu0
        %v2301 = vpop.f32.mrb[0].mxu0
        %v2302 = vadd.f32 %v1606, %v2301
        %v2303 = vpop.f32.mrb[0].mxu0
        %2304 = vmatprep.mubr.bf16.mxu0 0
        %2305 = vmatmul.mubr.bf16.gmra.mrb[0].mxu0 %v2217
        %v2306 = vpop.f32.mrb[0].mxu0
        %v2307 = vadd.f32 %v1607, %v2306
        %v2308 = vpop.f32.mrb[0].mxu0
        %v2309 = vpop.f32.mrb[0].mxu0
        %v2310 = vadd.f32 %v1608, %v2309
        %v2311 = vpop.f32.mrb[0].mxu0
        %2312 = vmatprep.mubr.bf16.mxu0 0
        %2313 = vmatmul.mubr.bf16.gmra.mrb[0].mxu0 %v2220
        %v2314 = vpop.f32.mrb[0].mxu0
        %v2315 = vadd.f32 %v1609, %v2314
        %v2316 = vpop.f32.mrb[0].mxu0
        %v2317 = vpop.f32.mrb[0].mxu0
        %v2318 = vadd.f32 %v1610, %v2317
        %v2319 = vpop.f32.mrb[0].mxu0
        %2320 = vdwg.mxu0
        %vm2321 = vcmask 785408
        %v2322 = vsel %vm2321, %v2275, -inf
        %2323 = vmax.xlane.f32.xlu0 %v2322
        %v2324 = vpop.xlane.xlu0 %2323
        %v2325 = vsel %vm2321, %v2278, -inf
        %2326 = vmax.xlane.f32.xlu0 %v2325
        %v2327 = vpop.xlane.xlu0 %2326
        %v2328 = vsel %vm2321, %v2283, -inf
        %2329 = vmax.xlane.f32.xlu0 %v2328
        %v2330 = vpop.xlane.xlu0 %2329
        %v2331 = vsel %vm2321, %v2286, -inf
        %2332 = vmax.xlane.f32.xlu0 %v2331
        %v2333 = vpop.xlane.xlu0 %2332
        %v2334 = vsel %vm2321, %v2291, -inf
        %2335 = vmax.xlane.f32.xlu0 %v2334
        %v2336 = vpop.xlane.xlu0 %2335
        %v2337 = vsel %vm2321, %v2294, -inf
        %2338 = vmax.xlane.f32.xlu0 %v2337
        %v2339 = vpop.xlane.xlu0 %2338
        %v2340 = vsel %vm2321, %v2299, -inf
        %2341 = vmax.xlane.f32.xlu0 %v2340
        %v2342 = vpop.xlane.xlu0 %2341
        %v2343 = vsel %vm2321, %v2302, -inf
        %2344 = vmax.xlane.f32.xlu0 %v2343
        %v2345 = vpop.xlane.xlu0 %2344
        %v2346 = vsel %vm2321, %v2307, -inf
        %2347 = vmax.xlane.f32.xlu0 %v2346
        %v2348 = vpop.xlane.xlu0 %2347
        %v2349 = vsel %vm2321, %v2310, -inf
        %2350 = vmax.xlane.f32.xlu0 %v2349
        %v2351 = vpop.xlane.xlu0 %2350
        %v2352 = vsel %vm2321, %v2315, -inf
        %2353 = vmax.xlane.f32.xlu0 %v2352
        %v2354 = vpop.xlane.xlu0 %2353
        %v2355 = vsel %vm2321, %v2318, -inf
        %2356 = vmax.xlane.f32.xlu0 %v2355
        %v2357 = vpop.xlane.xlu0 %2356
        %v2358 = vsub.f32 %v2275, %v2324
        %v2359 = vsub.f32 %v2278, %v2327
        %v2360 = vsub.f32 %v2283, %v2330
        %v2361 = vsub.f32 %v2286, %v2333
        %v2362 = vsub.f32 %v2291, %v2336
        %v2363 = vsub.f32 %v2294, %v2339
        %v2364 = vsub.f32 %v2299, %v2342
        %v2365 = vsub.f32 %v2302, %v2345
        %v2366 = vsub.f32 %v2307, %v2348
        %v2367 = vsub.f32 %v2310, %v2351
        %v2368 = vsub.f32 %v2315, %v2354
        %v2369 = vsub.f32 %v2318, %v2357
        %v2370 = vmul.f32 %v2358, 1.442695
        %v2371 = vpow.pop %v2370
        %v2372 = vmul.f32 %v2359, 1.442695
        %v2373 = vpow.pop %v2372
        %v2374 = vmul.f32 %v2360, 1.442695
        %v2375 = vpow.pop %v2374
        %v2376 = vmul.f32 %v2361, 1.442695
        %v2377 = vpow.pop %v2376
        %v2378 = vmul.f32 %v2362, 1.442695
        %v2379 = vpow.pop %v2378
        %v2380 = vmul.f32 %v2363, 1.442695
        %v2381 = vpow.pop %v2380
        %v2382 = vmul.f32 %v2364, 1.442695
        %v2383 = vpow.pop %v2382
        %v2384 = vmul.f32 %v2365, 1.442695
        %v2385 = vpow.pop %v2384
        %v2386 = vmul.f32 %v2366, 1.442695
        %v2387 = vpow.pop %v2386
        %v2388 = vmul.f32 %v2367, 1.442695
        %v2389 = vpow.pop %v2388
        %v2390 = vmul.f32 %v2368, 1.442695
        %v2391 = vpow.pop %v2390
        %v2392 = vmul.f32 %v2369, 1.442695
        %v2393 = vpow.pop %v2392
        %v2394 = vsel %vm2321, %v2371, 0.0
        %2395 = vadd.xlane.f32.xlu0 %v2394
        %v2396 = vpop.xlane.xlu0 %2395
        %v2397 = vsel %vm2321, %v2373, 0.0
        %2398 = vadd.xlane.f32.xlu0 %v2397
        %v2399 = vpop.xlane.xlu0 %2398
        %v2400 = vsel %vm2321, %v2375, 0.0
        %2401 = vadd.xlane.f32.xlu0 %v2400
        %v2402 = vpop.xlane.xlu0 %2401
        %v2403 = vsel %vm2321, %v2377, 0.0
        %2404 = vadd.xlane.f32.xlu0 %v2403
        %v2405 = vpop.xlane.xlu0 %2404
        %v2406 = vsel %vm2321, %v2379, 0.0
        %2407 = vadd.xlane.f32.xlu0 %v2406
        %v2408 = vpop.xlane.xlu0 %2407
        %v2409 = vsel %vm2321, %v2381, 0.0
        %2410 = vadd.xlane.f32.xlu0 %v2409
        %v2411 = vpop.xlane.xlu0 %2410
        %v2412 = vsel %vm2321, %v2383, 0.0
        %2413 = vadd.xlane.f32.xlu0 %v2412
        %v2414 = vpop.xlane.xlu0 %2413
        %v2415 = vsel %vm2321, %v2385, 0.0
        %2416 = vadd.xlane.f32.xlu0 %v2415
        %v2417 = vpop.xlane.xlu0 %2416
        %v2418 = vsel %vm2321, %v2387, 0.0
        %2419 = vadd.xlane.f32.xlu0 %v2418
        %v2420 = vpop.xlane.xlu0 %2419
        %v2421 = vsel %vm2321, %v2389, 0.0
        %2422 = vadd.xlane.f32.xlu0 %v2421
        %v2423 = vpop.xlane.xlu0 %2422
        %v2424 = vsel %vm2321, %v2391, 0.0
        %2425 = vadd.xlane.f32.xlu0 %v2424
        %v2426 = vpop.xlane.xlu0 %2425
        %v2427 = vsel %vm2321, %v2393, 0.0
        %2428 = vadd.xlane.f32.xlu0 %v2427
        %v2429 = vpop.xlane.xlu0 %2428
        %v2430 = vrcp.pop %v2396
        %v2431 = vmul.f32 %v2371, %v2430
        %v2432 = vrcp.pop %v2399
        %v2433 = vmul.f32 %v2373, %v2432
        %v2434 = vrcp.pop %v2402
        %v2435 = vmul.f32 %v2375, %v2434
        %v2436 = vrcp.pop %v2405
        %v2437 = vmul.f32 %v2377, %v2436
        %v2438 = vrcp.pop %v2408
        %v2439 = vmul.f32 %v2379, %v2438
        %v2440 = vrcp.pop %v2411
        %v2441 = vmul.f32 %v2381, %v2440
        %v2442 = vrcp.pop %v2414
        %v2443 = vmul.f32 %v2383, %v2442
        %v2444 = vrcp.pop %v2417
        %v2445 = vmul.f32 %v2385, %v2444
        %v2446 = vrcp.pop %v2420
        %v2447 = vmul.f32 %v2387, %v2446
        %v2448 = vrcp.pop %v2423
        %v2449 = vmul.f32 %v2389, %v2448
        %v2450 = vrcp.pop %v2426
        %v2451 = vmul.f32 %v2391, %v2450
        %v2452 = vrcp.pop %v2429
        %v2453 = vmul.f32 %v2393, %v2452
        %v2454 = vpack.c.bf16 %v2433, %v2431
        %v2455 = vpack.c.bf16 %v2437, %v2435
        %v2456 = vpack.c.bf16 %v2441, %v2439
        %v2457 = vpack.c.bf16 %v2445, %v2443
        %v2458 = vpack.c.bf16 %v2449, %v2447
        %v2459 = vpack.c.bf16 %v2453, %v2451
        %v2460 = vpack.c.bf16 %v2148, %v2145
        %v2461 = vpack.c.bf16 %v2156, %v2153
        %v2462 = vpack.c.bf16 %v2164, %v2161
        %v2463 = vpack.c.bf16 %v2172, %v2169
        %v2464 = vpack.c.bf16 %v2180, %v2177
        %v2465 = vpack.c.bf16 %v2188, %v2185
        %v2467 = vsel %vm2321, %v2454, 0
        %v2470 = vsel %vm2321, %v2455, 0
        %v2473 = vsel %vm2321, %v2456, 0
        %v2476 = vsel %vm2321, %v2457, 0
        %v2479 = vsel %vm2321, %v2458, 0
        %v2482 = vsel %vm2321, %v2459, 0
        %2484 = vmatprep.subr.bf16.mxu0 0
        %2485 = vmatpush1.bf16.msra.mxu0 %v2460
        %2486 = vmatprep.subr.bf16.mxu0 0
        %2487 = vmatpush1.bf16.msra.mxu0 %v2461
        %2488 = vmatprep.subr.bf16.mxu0 0
        %2489 = vmatpush1.bf16.msra.mxu0 %v2462
        %2490 = vmatprep.subr.bf16.mxu0 0
        %2491 = vmatpush1.bf16.msra.mxu0 %v2463
        %2492 = vmatprep.subr.bf16.mxu0 0
        %2493 = vmatpush1.bf16.msra.mxu0 %v2464
        %2494 = vmatprep.subr.bf16.mxu0 0
        %2495 = vmatpush1.bf16.msra.mxu0 %v2465
        %2496 = vmatprep.subr.bf16.mxu0 0
        %2497 = vmatpush1.bf16.msra.mxu0 0
        %2498 = vmatprep.subr.bf16.mxu0 0
        %2499 = vmatpush1.bf16.msra.mxu0 0
        %2500 = vmatprep.subr.bf16.mxu0 0
        %2501 = vmatpush1.bf16.msra.mxu0 0
        %2502 = vmatprep.subr.bf16.mxu0 0
        %2503 = vmatpush1.bf16.msra.mxu0 0
        %2504 = vmatprep.subr.bf16.mxu0 0
        %2505 = vmatpush1.bf16.msra.mxu0 0
        %2506 = vmatprep.subr.bf16.mxu0 0
        %2507 = vmatpush1.bf16.msra.mxu0 0
        %2508 = vmatprep.subr.bf16.mxu0 0
        %2509 = vmatpush1.bf16.msra.mxu0 0
        %2510 = vmatprep.subr.bf16.mxu0 0
        %2511 = vmatpush1.bf16.msra.mxu0 0
        %2512 = vmatprep.subr.bf16.mxu0 0
        %2513 = vmatpush1.bf16.msra.mxu0 0
        %2514 = vmatprep.subr.bf16.mxu0 0
        %2515 = vmatpush1.bf16.msra.mxu0 0
        %2516 = vmatprep.mubr.bf16.mxu0 0
        %2517 = vmatmul.mubr.bf16.gmra.mrb[0].mxu0 %v2467
        %v2518 = vpop.f32.mrb[0].mxu0
        %v2519 = vadd.f32 0.0, %v2518
        %v2520 = vpop.f32.mrb[0].mxu0
        %v2521 = vpop.f32.mrb[0].mxu0
        %v2522 = vadd.f32 0.0, %v2521
        %v2523 = vpop.f32.mrb[0].mxu0
        %2524 = vmatprep.mubr.bf16.mxu0 0
        %2525 = vmatmul.mubr.bf16.gmra.mrb[0].mxu0 %v2470
        %v2526 = vpop.f32.mrb[0].mxu0
        %v2527 = vadd.f32 0.0, %v2526
        %v2528 = vpop.f32.mrb[0].mxu0
        %v2529 = vpop.f32.mrb[0].mxu0
        %v2530 = vadd.f32 0.0, %v2529
        %v2531 = vpop.f32.mrb[0].mxu0
        %2532 = vmatprep.mubr.bf16.mxu0 0
        %2533 = vmatmul.mubr.bf16.gmra.mrb[0].mxu0 %v2473
        %v2534 = vpop.f32.mrb[0].mxu0
        %v2535 = vadd.f32 0.0, %v2534
        %v2536 = vpop.f32.mrb[0].mxu0
        %v2537 = vpop.f32.mrb[0].mxu0
        %v2538 = vadd.f32 0.0, %v2537
        %v2539 = vpop.f32.mrb[0].mxu0
        %2540 = vmatprep.mubr.bf16.mxu0 0
        %2541 = vmatmul.mubr.bf16.gmra.mrb[0].mxu0 %v2476
        %v2542 = vpop.f32.mrb[0].mxu0
        %v2543 = vadd.f32 0.0, %v2542
        %v2544 = vpop.f32.mrb[0].mxu0
        %v2545 = vpop.f32.mrb[0].mxu0
        %v2546 = vadd.f32 0.0, %v2545
        %v2547 = vpop.f32.mrb[0].mxu0
        %2548 = vmatprep.mubr.bf16.mxu0 0
        %2549 = vmatmul.mubr.bf16.gmra.mrb[0].mxu0 %v2479
        %v2550 = vpop.f32.mrb[0].mxu0
        %v2551 = vadd.f32 0.0, %v2550
        %v2552 = vpop.f32.mrb[0].mxu0
        %v2553 = vpop.f32.mrb[0].mxu0
        %v2554 = vadd.f32 0.0, %v2553
        %v2555 = vpop.f32.mrb[0].mxu0
        %2556 = vmatprep.mubr.bf16.mxu0 0
        %2557 = vmatmul.mubr.bf16.gmra.mrb[0].mxu0 %v2482
        %v2558 = vpop.f32.mrb[0].mxu0
        %v2559 = vadd.f32 0.0, %v2558
        %v2560 = vpop.f32.mrb[0].mxu0
        %v2561 = vpop.f32.mrb[0].mxu0
        %v2562 = vadd.f32 0.0, %v2561
        %v2563 = vpop.f32.mrb[0].mxu0
        %2564 = vdwg.mxu0
        %v2565 = vpack.c.bf16 %v2522, %v2519
        %v2566 = vpack.c.bf16 %v2530, %v2527
        %v2567 = vpack.c.bf16 %v2538, %v2535
        %v2568 = vpack.c.bf16 %v2546, %v2543
        %v2569 = vpack.c.bf16 %v2554, %v2551
        %v2570 = vpack.c.bf16 %v2562, %v2559
        %v2571 = vld [vmem:[%s1074] sm:$0xf]
        %v2572 = vld [vmem:[%s1074 + $0x4] sm:$0xf]
        %s2573 = scalar_lea.vmem %s1047, 32
        %v2574 = vld [vmem:[%s2573] sm:$0xf]
        %v2575 = vld [vmem:[%s2573 + $0x4] sm:$0xf]
        %v2576 = vld [vmem:[%s2573 + $0x8] sm:$0xf]
        %v2577 = vld [vmem:[%s2573 + $0xc] sm:$0xf]
        %v2578 = vld [vmem:[%s2573 + $0x10] sm:$0xf]
        %v2579 = vld [vmem:[%s2573 + $0x14] sm:$0xf]
        %v2580 = vld [vmem:[%s2573 + $0x18] sm:$0xf]
        %v2581 = vld [vmem:[%s2573 + $0x1c] sm:$0xf]
        %s2582 = scalar_lea.vmem %s1051, 1
        %v2583 = vld [vmem:[%s2582] sm:$0x1]
        %v2585 = vlaneseq
        %v2586 = vshrl.u32 %v2585, 7
        %v2587 = vsub.s32 0, %v2586
        %v2588 = vrot.slane %v2583, %v2587
        %v2598 = vunpack.c.l.b16 %v2574
        %v2599 = vunpack.c.l.b16 %v2575
        %v2600 = vunpack.c.l.b16 %v2576
        %v2601 = vunpack.c.l.b16 %v2577
        %v2602 = vunpack.c.l.b16 %v2578
        %v2603 = vunpack.c.l.b16 %v2579
        %v2604 = vunpack.c.l.b16 %v2580
        %v2605 = vunpack.c.l.b16 %v2581
        %v2606 = vpack.c.b16 %v2599, %v2598
        %v2607 = vpack.c.b16 %v2601, %v2600
        %v2608 = vpack.c.b16 %v2603, %v2602
        %v2609 = vpack.c.b16 %v2605, %v2604
        %2614 = vmatprep.subr.bf16.mxu0 0
        %2615 = vmatpush1.bf16.msra.mxu0 %v2606
        %2616 = vmatprep.subr.bf16.mxu0 0
        %2617 = vmatpush1.bf16.msra.mxu0 %v2607
        %2618 = vmatprep.subr.bf16.mxu0 0
        %2619 = vmatpush1.bf16.msra.mxu0 %v2608
        %2620 = vmatprep.subr.bf16.mxu0 0
        %2621 = vmatpush1.bf16.msra.mxu0 %v2609
        %2622 = vmatprep.subr.bf16.mxu0 0
        %2623 = vmatpush1.bf16.msra.mxu0 0
        %2624 = vmatprep.subr.bf16.mxu0 0
        %2625 = vmatpush1.bf16.msra.mxu0 0
        %2626 = vmatprep.subr.bf16.mxu0 0
        %2627 = vmatpush1.bf16.msra.mxu0 0
        %2628 = vmatprep.subr.bf16.mxu0 0
        %2629 = vmatpush1.bf16.msra.mxu0 0
        %2630 = vmatprep.subr.bf16.mxu0 0
        %2631 = vmatpush1.bf16.msra.mxu0 0
        %2632 = vmatprep.subr.bf16.mxu0 0
        %2633 = vmatpush1.bf16.msra.mxu0 0
        %2634 = vmatprep.subr.bf16.mxu0 0
        %2635 = vmatpush1.bf16.msra.mxu0 0
        %2636 = vmatprep.subr.bf16.mxu0 0
        %2637 = vmatpush1.bf16.msra.mxu0 0
        %2638 = vmatprep.subr.bf16.mxu0 0
        %2639 = vmatpush1.bf16.msra.mxu0 0
        %2640 = vmatprep.subr.bf16.mxu0 0
        %2641 = vmatpush1.bf16.msra.mxu0 0
        %2642 = vmatprep.subr.bf16.mxu0 0
        %2643 = vmatpush1.bf16.msra.mxu0 0
        %2644 = vmatprep.subr.bf16.mxu0 0
        %2645 = vmatpush1.bf16.msra.mxu0 0
        %2646 = vmatprep.mubr.bf16.mxu0 0
        %2647 = vmatmul.mubr.bf16.gmra.mrb[0].mxu0 %v1853
        %v2648 = vpop.f32.mrb[0].mxu0
        %v2649 = vadd.f32 %v2588, %v2648
        %v2650 = vpop.f32.mrb[0].mxu0
        %v2651 = vpop.f32.mrb[0].mxu0
        %v2652 = vadd.f32 %v2588, %v2651
        %v2653 = vpop.f32.mrb[0].mxu0
        %2654 = vmatprep.mubr.bf16.mxu0 0
        %2655 = vmatmul.mubr.bf16.gmra.mrb[0].mxu0 %v1856
        %v2656 = vpop.f32.mrb[0].mxu0
        %v2657 = vadd.f32 %v2588, %v2656
        %v2658 = vpop.f32.mrb[0].mxu0
        %v2659 = vpop.f32.mrb[0].mxu0
        %v2660 = vadd.f32 %v2588, %v2659
        %v2661 = vpop.f32.mrb[0].mxu0
        %2662 = vmatprep.mubr.bf16.mxu0 0
        %2663 = vmatmul.mubr.bf16.gmra.mrb[0].mxu0 %v1859
        %v2664 = vpop.f32.mrb[0].mxu0
        %v2665 = vadd.f32 %v2588, %v2664
        %v2666 = vpop.f32.mrb[0].mxu0
        %v2667 = vpop.f32.mrb[0].mxu0
        %v2668 = vadd.f32 %v2588, %v2667
        %v2669 = vpop.f32.mrb[0].mxu0
        %2670 = vmatprep.mubr.bf16.mxu0 0
        %2671 = vmatmul.mubr.bf16.gmra.mrb[0].mxu0 %v1862
        %v2672 = vpop.f32.mrb[0].mxu0
        %v2673 = vadd.f32 %v2588, %v2672
        %v2674 = vpop.f32.mrb[0].mxu0
        %v2675 = vpop.f32.mrb[0].mxu0
        %v2676 = vadd.f32 %v2588, %v2675
        %v2677 = vpop.f32.mrb[0].mxu0
        %2678 = vmatprep.mubr.bf16.mxu0 0
        %2679 = vmatmul.mubr.bf16.gmra.mrb[0].mxu0 %v1865
        %v2680 = vpop.f32.mrb[0].mxu0
        %v2681 = vadd.f32 %v2588, %v2680
        %v2682 = vpop.f32.mrb[0].mxu0
        %v2683 = vpop.f32.mrb[0].mxu0
        %v2684 = vadd.f32 %v2588, %v2683
        %v2685 = vpop.f32.mrb[0].mxu0
        %2686 = vmatprep.mubr.bf16.mxu0 0
        %2687 = vmatmul.mubr.bf16.gmra.mrb[0].mxu0 %v1868
        %v2688 = vpop.f32.mrb[0].mxu0
        %v2689 = vadd.f32 %v2588, %v2688
        %v2690 = vpop.f32.mrb[0].mxu0
        %v2691 = vpop.f32.mrb[0].mxu0
        %v2692 = vadd.f32 %v2588, %v2691
        %v2693 = vpop.f32.mrb[0].mxu0
        %2694 = vdwg.mxu0
        %s2695 = scalar_lea.vmem %s1056, 32
        %v2696 = vld [vmem:[%s2695] sm:$0xf]
        %v2697 = vld [vmem:[%s2695 + $0x4] sm:$0xf]
        %v2698 = vld [vmem:[%s2695 + $0x8] sm:$0xf]
        %v2699 = vld [vmem:[%s2695 + $0xc] sm:$0xf]
        %v2700 = vld [vmem:[%s2695 + $0x10] sm:$0xf]
        %v2701 = vld [vmem:[%s2695 + $0x14] sm:$0xf]
        %v2702 = vld [vmem:[%s2695 + $0x18] sm:$0xf]
        %v2703 = vld [vmem:[%s2695 + $0x1c] sm:$0xf]
        %s2704 = scalar_lea.vmem %s1060, 1
        %v2705 = vld [vmem:[%s2704] sm:$0x1]
        %v2707 = vlaneseq
        %v2708 = vshrl.u32 %v2707, 7
        %v2709 = vsub.s32 0, %v2708
        %v2710 = vrot.slane %v2705, %v2709
        %v2720 = vunpack.c.l.b16 %v2696
        %v2721 = vunpack.c.l.b16 %v2697
        %v2722 = vunpack.c.l.b16 %v2698
        %v2723 = vunpack.c.l.b16 %v2699
        %v2724 = vunpack.c.l.b16 %v2700
        %v2725 = vunpack.c.l.b16 %v2701
        %v2726 = vunpack.c.l.b16 %v2702
        %v2727 = vunpack.c.l.b16 %v2703
        %v2728 = vpack.c.b16 %v2721, %v2720
        %v2729 = vpack.c.b16 %v2723, %v2722
        %v2730 = vpack.c.b16 %v2725, %v2724
        %v2731 = vpack.c.b16 %v2727, %v2726
        %2736 = vmatprep.subr.bf16.mxu0 0
        %2737 = vmatpush1.bf16.msra.mxu0 %v2728
        %2738 = vmatprep.subr.bf16.mxu0 0
        %2739 = vmatpush1.bf16.msra.mxu0 %v2729
        %2740 = vmatprep.subr.bf16.mxu0 0
        %2741 = vmatpush1.bf16.msra.mxu0 %v2730
        %2742 = vmatprep.subr.bf16.mxu0 0
        %2743 = vmatpush1.bf16.msra.mxu0 %v2731
        %2744 = vmatprep.subr.bf16.mxu0 0
        %2745 = vmatpush1.bf16.msra.mxu0 0
        %2746 = vmatprep.subr.bf16.mxu0 0
        %2747 = vmatpush1.bf16.msra.mxu0 0
        %2748 = vmatprep.subr.bf16.mxu0 0
        %2749 = vmatpush1.bf16.msra.mxu0 0
        %2750 = vmatprep.subr.bf16.mxu0 0
        %2751 = vmatpush1.bf16.msra.mxu0 0
        %2752 = vmatprep.subr.bf16.mxu0 0
        %2753 = vmatpush1.bf16.msra.mxu0 0
        %2754 = vmatprep.subr.bf16.mxu0 0
        %2755 = vmatpush1.bf16.msra.mxu0 0
        %2756 = vmatprep.subr.bf16.mxu0 0
        %2757 = vmatpush1.bf16.msra.mxu0 0
        %2758 = vmatprep.subr.bf16.mxu0 0
        %2759 = vmatpush1.bf16.msra.mxu0 0
        %2760 = vmatprep.subr.bf16.mxu0 0
        %2761 = vmatpush1.bf16.msra.mxu0 0
        %2762 = vmatprep.subr.bf16.mxu0 0
        %2763 = vmatpush1.bf16.msra.mxu0 0
        %2764 = vmatprep.subr.bf16.mxu0 0
        %2765 = vmatpush1.bf16.msra.mxu0 0
        %2766 = vmatprep.subr.bf16.mxu0 0
        %2767 = vmatpush1.bf16.msra.mxu0 0
        %2768 = vmatprep.mubr.bf16.mxu0 0
        %2769 = vmatmul.mubr.bf16.gmra.mrb[0].mxu0 %v1853
        %v2770 = vpop.f32.mrb[0].mxu0
        %v2771 = vadd.f32 %v2710, %v2770
        %v2772 = vpop.f32.mrb[0].mxu0
        %v2773 = vpop.f32.mrb[0].mxu0
        %v2774 = vadd.f32 %v2710, %v2773
        %v2775 = vpop.f32.mrb[0].mxu0
        %2776 = vmatprep.mubr.bf16.mxu0 0
        %2777 = vmatmul.mubr.bf16.gmra.mrb[0].mxu0 %v1856
        %v2778 = vpop.f32.mrb[0].mxu0
        %v2779 = vadd.f32 %v2710, %v2778
        %v2780 = vpop.f32.mrb[0].mxu0
        %v2781 = vpop.f32.mrb[0].mxu0
        %v2782 = vadd.f32 %v2710, %v2781
        %v2783 = vpop.f32.mrb[0].mxu0
        %2784 = vmatprep.mubr.bf16.mxu0 0
        %2785 = vmatmul.mubr.bf16.gmra.mrb[0].mxu0 %v1859
        %v2786 = vpop.f32.mrb[0].mxu0
        %v2787 = vadd.f32 %v2710, %v2786
        %v2788 = vpop.f32.mrb[0].mxu0
        %v2789 = vpop.f32.mrb[0].mxu0
        %v2790 = vadd.f32 %v2710, %v2789
        %v2791 = vpop.f32.mrb[0].mxu0
        %2792 = vmatprep.mubr.bf16.mxu0 0
        %2793 = vmatmul.mubr.bf16.gmra.mrb[0].mxu0 %v1862
        %v2794 = vpop.f32.mrb[0].mxu0
        %v2795 = vadd.f32 %v2710, %v2794
        %v2796 = vpop.f32.mrb[0].mxu0
        %v2797 = vpop.f32.mrb[0].mxu0
        %v2798 = vadd.f32 %v2710, %v2797
        %v2799 = vpop.f32.mrb[0].mxu0
        %2800 = vmatprep.mubr.bf16.mxu0 0
        %2801 = vmatmul.mubr.bf16.gmra.mrb[0].mxu0 %v1865
        %v2802 = vpop.f32.mrb[0].mxu0
        %v2803 = vadd.f32 %v2710, %v2802
        %v2804 = vpop.f32.mrb[0].mxu0
        %v2805 = vpop.f32.mrb[0].mxu0
        %v2806 = vadd.f32 %v2710, %v2805
        %v2807 = vpop.f32.mrb[0].mxu0
        %2808 = vmatprep.mubr.bf16.mxu0 0
        %2809 = vmatmul.mubr.bf16.gmra.mrb[0].mxu0 %v1868
        %v2810 = vpop.f32.mrb[0].mxu0
        %v2811 = vadd.f32 %v2710, %v2810
        %v2812 = vpop.f32.mrb[0].mxu0
        %v2813 = vpop.f32.mrb[0].mxu0
        %v2814 = vadd.f32 %v2710, %v2813
        %v2815 = vpop.f32.mrb[0].mxu0
        %2816 = vdwg.mxu0
        %s2817 = scalar_lea.vmem %s1065, 32
        %v2818 = vld [vmem:[%s2817] sm:$0xf]
        %v2819 = vld [vmem:[%s2817 + $0x4] sm:$0xf]
        %v2820 = vld [vmem:[%s2817 + $0x8] sm:$0xf]
        %v2821 = vld [vmem:[%s2817 + $0xc] sm:$0xf]
        %v2822 = vld [vmem:[%s2817 + $0x10] sm:$0xf]
        %v2823 = vld [vmem:[%s2817 + $0x14] sm:$0xf]
        %v2824 = vld [vmem:[%s2817 + $0x18] sm:$0xf]
        %v2825 = vld [vmem:[%s2817 + $0x1c] sm:$0xf]
        %s2826 = scalar_lea.vmem %s1069, 1
        %v2827 = vld [vmem:[%s2826] sm:$0x1]
        %v2829 = vlaneseq
        %v2830 = vshrl.u32 %v2829, 7
        %v2831 = vsub.s32 0, %v2830
        %v2832 = vrot.slane %v2827, %v2831
        %v2842 = vunpack.c.l.b16 %v2818
        %v2843 = vunpack.c.l.b16 %v2819
        %v2844 = vunpack.c.l.b16 %v2820
        %v2845 = vunpack.c.l.b16 %v2821
        %v2846 = vunpack.c.l.b16 %v2822
        %v2847 = vunpack.c.l.b16 %v2823
        %v2848 = vunpack.c.l.b16 %v2824
        %v2849 = vunpack.c.l.b16 %v2825
        %v2850 = vpack.c.b16 %v2843, %v2842
        %v2851 = vpack.c.b16 %v2845, %v2844
        %v2852 = vpack.c.b16 %v2847, %v2846
        %v2853 = vpack.c.b16 %v2849, %v2848
        %2858 = vmatprep.subr.bf16.mxu0 0
        %2859 = vmatpush1.bf16.msra.mxu0 %v2850
        %2860 = vmatprep.subr.bf16.mxu0 0
        %2861 = vmatpush1.bf16.msra.mxu0 %v2851
        %2862 = vmatprep.subr.bf16.mxu0 0
        %2863 = vmatpush1.bf16.msra.mxu0 %v2852
        %2864 = vmatprep.subr.bf16.mxu0 0
        %2865 = vmatpush1.bf16.msra.mxu0 %v2853
        %2866 = vmatprep.subr.bf16.mxu0 0
        %2867 = vmatpush1.bf16.msra.mxu0 0
        %2868 = vmatprep.subr.bf16.mxu0 0
        %2869 = vmatpush1.bf16.msra.mxu0 0
        %2870 = vmatprep.subr.bf16.mxu0 0
        %2871 = vmatpush1.bf16.msra.mxu0 0
        %2872 = vmatprep.subr.bf16.mxu0 0
        %2873 = vmatpush1.bf16.msra.mxu0 0
        %2874 = vmatprep.subr.bf16.mxu0 0
        %2875 = vmatpush1.bf16.msra.mxu0 0
        %2876 = vmatprep.subr.bf16.mxu0 0
        %2877 = vmatpush1.bf16.msra.mxu0 0
        %2878 = vmatprep.subr.bf16.mxu0 0
        %2879 = vmatpush1.bf16.msra.mxu0 0
        %2880 = vmatprep.subr.bf16.mxu0 0
        %2881 = vmatpush1.bf16.msra.mxu0 0
        %2882 = vmatprep.subr.bf16.mxu0 0
        %2883 = vmatpush1.bf16.msra.mxu0 0
        %2884 = vmatprep.subr.bf16.mxu0 0
        %2885 = vmatpush1.bf16.msra.mxu0 0
        %2886 = vmatprep.subr.bf16.mxu0 0
        %2887 = vmatpush1.bf16.msra.mxu0 0
        %2888 = vmatprep.subr.bf16.mxu0 0
        %2889 = vmatpush1.bf16.msra.mxu0 0
        %2890 = vmatprep.mubr.bf16.mxu0 0
        %2891 = vmatmul.mubr.bf16.gmra.mrb[0].mxu0 %v1853
        %v2892 = vpop.f32.mrb[0].mxu0
        %v2893 = vadd.f32 %v2832, %v2892
        %v2894 = vpop.f32.mrb[0].mxu0
        %v2895 = vpop.f32.mrb[0].mxu0
        %v2896 = vadd.f32 %v2832, %v2895
        %v2897 = vpop.f32.mrb[0].mxu0
        %2898 = vmatprep.mubr.bf16.mxu0 0
        %2899 = vmatmul.mubr.bf16.gmra.mrb[0].mxu0 %v1856
        %v2900 = vpop.f32.mrb[0].mxu0
        %v2901 = vadd.f32 %v2832, %v2900
        %v2902 = vpop.f32.mrb[0].mxu0
        %v2903 = vpop.f32.mrb[0].mxu0
        %v2904 = vadd.f32 %v2832, %v2903
        %v2905 = vpop.f32.mrb[0].mxu0
        %2906 = vmatprep.mubr.bf16.mxu0 0
        %2907 = vmatmul.mubr.bf16.gmra.mrb[0].mxu0 %v1859
        %v2908 = vpop.f32.mrb[0].mxu0
        %v2909 = vadd.f32 %v2832, %v2908
        %v2910 = vpop.f32.mrb[0].mxu0
        %v2911 = vpop.f32.mrb[0].mxu0
        %v2912 = vadd.f32 %v2832, %v2911
        %v2913 = vpop.f32.mrb[0].mxu0
        %2914 = vmatprep.mubr.bf16.mxu0 0
        %2915 = vmatmul.mubr.bf16.gmra.mrb[0].mxu0 %v1862
        %v2916 = vpop.f32.mrb[0].mxu0
        %v2917 = vadd.f32 %v2832, %v2916
        %v2918 = vpop.f32.mrb[0].mxu0
        %v2919 = vpop.f32.mrb[0].mxu0
        %v2920 = vadd.f32 %v2832, %v2919
        %v2921 = vpop.f32.mrb[0].mxu0
        %2922 = vmatprep.mubr.bf16.mxu0 0
        %2923 = vmatmul.mubr.bf16.gmra.mrb[0].mxu0 %v1865
        %v2924 = vpop.f32.mrb[0].mxu0
        %v2925 = vadd.f32 %v2832, %v2924
        %v2926 = vpop.f32.mrb[0].mxu0
        %v2927 = vpop.f32.mrb[0].mxu0
        %v2928 = vadd.f32 %v2832, %v2927
        %v2929 = vpop.f32.mrb[0].mxu0
        %2930 = vmatprep.mubr.bf16.mxu0 0
        %2931 = vmatmul.mubr.bf16.gmra.mrb[0].mxu0 %v1868
        %v2932 = vpop.f32.mrb[0].mxu0
        %v2933 = vadd.f32 %v2832, %v2932
        %v2934 = vpop.f32.mrb[0].mxu0
        %v2935 = vpop.f32.mrb[0].mxu0
        %v2936 = vadd.f32 %v2832, %v2935
        %v2937 = vpop.f32.mrb[0].mxu0
        %2938 = vdwg.mxu0
        %v2939 = vpack.c.bf16 %v2652, %v2649
        %v2940 = vpack.c.bf16 %v2660, %v2657
        %v2941 = vpack.c.bf16 %v2668, %v2665
        %v2942 = vpack.c.bf16 %v2676, %v2673
        %v2943 = vpack.c.bf16 %v2684, %v2681
        %v2944 = vpack.c.bf16 %v2692, %v2689
        %v2945 = vpack.c.bf16 %v2774, %v2771
        %v2946 = vpack.c.bf16 %v2782, %v2779
        %v2947 = vpack.c.bf16 %v2790, %v2787
        %v2948 = vpack.c.bf16 %v2798, %v2795
        %v2949 = vpack.c.bf16 %v2806, %v2803
        %v2950 = vpack.c.bf16 %v2814, %v2811
        %v2952 = vsel %vm2203, %v2939, 0
        %v2955 = vsel %vm2203, %v2940, 0
        %v2958 = vsel %vm2203, %v2941, 0
        %v2961 = vsel %vm2203, %v2942, 0
        %v2964 = vsel %vm2203, %v2943, 0
        %v2967 = vsel %vm2203, %v2944, 0
        %v2970 = vsel %vm2203, %v2945, 0
        %v2973 = vsel %vm2203, %v2946, 0
        %v2976 = vsel %vm2203, %v2947, 0
        %v2979 = vsel %vm2203, %v2948, 0
        %v2982 = vsel %vm2203, %v2949, 0
        %v2985 = vsel %vm2203, %v2950, 0
        %2987 = vmatprep.subr.bf16.mxu0 0
        %2988 = vmatpush1.bf16.xpose.msra.mxu0 %v2970
        %2989 = vmatprep.subr.bf16.mxu0 0
        %2990 = vmatpush1.bf16.xpose.msra.mxu0 %v2973
        %2991 = vmatprep.subr.bf16.mxu0 0
        %2992 = vmatpush1.bf16.xpose.msra.mxu0 %v2976
        %2993 = vmatprep.subr.bf16.mxu0 0
        %2994 = vmatpush1.bf16.xpose.msra.mxu0 %v2979
        %2995 = vmatprep.subr.bf16.mxu0 0
        %2996 = vmatpush1.bf16.xpose.msra.mxu0 %v2982
        %2997 = vmatprep.subr.bf16.mxu0 0
        %2998 = vmatpush1.bf16.xpose.msra.mxu0 %v2985
        %2999 = vmatprep.subr.bf16.mxu0 0
        %3000 = vmatpush1.bf16.xpose.msra.mxu0 0
        %3001 = vmatprep.subr.bf16.mxu0 0
        %3002 = vmatpush1.bf16.xpose.msra.mxu0 0
        %3003 = vmatprep.subr.bf16.mxu0 0
        %3004 = vmatpush1.bf16.xpose.msra.mxu0 0
        %3005 = vmatprep.subr.bf16.mxu0 0
        %3006 = vmatpush1.bf16.xpose.msra.mxu0 0
        %3007 = vmatprep.subr.bf16.mxu0 0
        %3008 = vmatpush1.bf16.xpose.msra.mxu0 0
        %3009 = vmatprep.subr.bf16.mxu0 0
        %3010 = vmatpush1.bf16.xpose.msra.mxu0 0
        %3011 = vmatprep.subr.bf16.mxu0 0
        %3012 = vmatpush1.bf16.xpose.msra.mxu0 0
        %3013 = vmatprep.subr.bf16.mxu0 0
        %3014 = vmatpush1.bf16.xpose.msra.mxu0 0
        %3015 = vmatprep.subr.bf16.mxu0 0
        %3016 = vmatpush1.bf16.xpose.msra.mxu0 0
        %3017 = vmatprep.subr.bf16.mxu0 0
        %3018 = vmatpush1.bf16.xpose.msra.mxu0 0
        %3019 = vmatprep.mubr.bf16.mxu0 0
        %3020 = vmatmul.mubr.bf16.gmra.mrb[0].mxu0 %v2952
        %v3021 = vpop.f32.mrb[0].mxu0
        %v3022 = vadd.f32 %v1599, %v3021
        %v3023 = vpop.f32.mrb[0].mxu0
        %v3024 = vpop.f32.mrb[0].mxu0
        %v3025 = vadd.f32 %v1600, %v3024
        %v3026 = vpop.f32.mrb[0].mxu0
        %3027 = vmatprep.mubr.bf16.mxu0 0
        %3028 = vmatmul.mubr.bf16.gmra.mrb[0].mxu0 %v2955
        %v3029 = vpop.f32.mrb[0].mxu0
        %v3030 = vadd.f32 %v1601, %v3029
        %v3031 = vpop.f32.mrb[0].mxu0
        %v3032 = vpop.f32.mrb[0].mxu0
        %v3033 = vadd.f32 %v1602, %v3032
        %v3034 = vpop.f32.mrb[0].mxu0
        %3035 = vmatprep.mubr.bf16.mxu0 0
        %3036 = vmatmul.mubr.bf16.gmra.mrb[0].mxu0 %v2958
        %v3037 = vpop.f32.mrb[0].mxu0
        %v3038 = vadd.f32 %v1603, %v3037
        %v3039 = vpop.f32.mrb[0].mxu0
        %v3040 = vpop.f32.mrb[0].mxu0
        %v3041 = vadd.f32 %v1604, %v3040
        %v3042 = vpop.f32.mrb[0].mxu0
        %3043 = vmatprep.mubr.bf16.mxu0 0
        %3044 = vmatmul.mubr.bf16.gmra.mrb[0].mxu0 %v2961
        %v3045 = vpop.f32.mrb[0].mxu0
        %v3046 = vadd.f32 %v1605, %v3045
        %v3047 = vpop.f32.mrb[0].mxu0
        %v3048 = vpop.f32.mrb[0].mxu0
        %v3049 = vadd.f32 %v1606, %v3048
        %v3050 = vpop.f32.mrb[0].mxu0
        %3051 = vmatprep.mubr.bf16.mxu0 0
        %3052 = vmatmul.mubr.bf16.gmra.mrb[0].mxu0 %v2964
        %v3053 = vpop.f32.mrb[0].mxu0
        %v3054 = vadd.f32 %v1607, %v3053
        %v3055 = vpop.f32.mrb[0].mxu0
        %v3056 = vpop.f32.mrb[0].mxu0
        %v3057 = vadd.f32 %v1608, %v3056
        %v3058 = vpop.f32.mrb[0].mxu0
        %3059 = vmatprep.mubr.bf16.mxu0 0
        %3060 = vmatmul.mubr.bf16.gmra.mrb[0].mxu0 %v2967
        %v3061 = vpop.f32.mrb[0].mxu0
        %v3062 = vadd.f32 %v1609, %v3061
        %v3063 = vpop.f32.mrb[0].mxu0
        %v3064 = vpop.f32.mrb[0].mxu0
        %v3065 = vadd.f32 %v1610, %v3064
        %v3066 = vpop.f32.mrb[0].mxu0
        %3067 = vdwg.mxu0
        %v3068 = vsel %vm2321, %v3022, -inf
        %3069 = vmax.xlane.f32.xlu0 %v3068
        %v3070 = vpop.xlane.xlu0 %3069
        %v3071 = vsel %vm2321, %v3025, -inf
        %3072 = vmax.xlane.f32.xlu0 %v3071
        %v3073 = vpop.xlane.xlu0 %3072
        %v3074 = vsel %vm2321, %v3030, -inf
        %3075 = vmax.xlane.f32.xlu0 %v3074
        %v3076 = vpop.xlane.xlu0 %3075
        %v3077 = vsel %vm2321, %v3033, -inf
        %3078 = vmax.xlane.f32.xlu0 %v3077
        %v3079 = vpop.xlane.xlu0 %3078
        %v3080 = vsel %vm2321, %v3038, -inf
        %3081 = vmax.xlane.f32.xlu0 %v3080
        %v3082 = vpop.xlane.xlu0 %3081
        %v3083 = vsel %vm2321, %v3041, -inf
        %3084 = vmax.xlane.f32.xlu0 %v3083
        %v3085 = vpop.xlane.xlu0 %3084
        %v3086 = vsel %vm2321, %v3046, -inf
        %3087 = vmax.xlane.f32.xlu0 %v3086
        %v3088 = vpop.xlane.xlu0 %3087
        %v3089 = vsel %vm2321, %v3049, -inf
        %3090 = vmax.xlane.f32.xlu0 %v3089
        %v3091 = vpop.xlane.xlu0 %3090
        %v3092 = vsel %vm2321, %v3054, -inf
        %3093 = vmax.xlane.f32.xlu0 %v3092
        %v3094 = vpop.xlane.xlu0 %3093
        %v3095 = vsel %vm2321, %v3057, -inf
        %3096 = vmax.xlane.f32.xlu0 %v3095
        %v3097 = vpop.xlane.xlu0 %3096
        %v3098 = vsel %vm2321, %v3062, -inf
        %3099 = vmax.xlane.f32.xlu0 %v3098
        %v3100 = vpop.xlane.xlu0 %3099
        %v3101 = vsel %vm2321, %v3065, -inf
        %3102 = vmax.xlane.f32.xlu0 %v3101
        %v3103 = vpop.xlane.xlu0 %3102
        %v3104 = vsub.f32 %v3022, %v3070
        %v3105 = vsub.f32 %v3025, %v3073
        %v3106 = vsub.f32 %v3030, %v3076
        %v3107 = vsub.f32 %v3033, %v3079
        %v3108 = vsub.f32 %v3038, %v3082
        %v3109 = vsub.f32 %v3041, %v3085
        %v3110 = vsub.f32 %v3046, %v3088
        %v3111 = vsub.f32 %v3049, %v3091
        %v3112 = vsub.f32 %v3054, %v3094
        %v3113 = vsub.f32 %v3057, %v3097
        %v3114 = vsub.f32 %v3062, %v3100
        %v3115 = vsub.f32 %v3065, %v3103
        %v3116 = vmul.f32 %v3104, 1.442695
        %v3117 = vpow.pop %v3116
        %v3118 = vmul.f32 %v3105, 1.442695
        %v3119 = vpow.pop %v3118
        %v3120 = vmul.f32 %v3106, 1.442695
        %v3121 = vpow.pop %v3120
        %v3122 = vmul.f32 %v3107, 1.442695
        %v3123 = vpow.pop %v3122
        %v3124 = vmul.f32 %v3108, 1.442695
        %v3125 = vpow.pop %v3124
        %v3126 = vmul.f32 %v3109, 1.442695
        %v3127 = vpow.pop %v3126
        %v3128 = vmul.f32 %v3110, 1.442695
        %v3129 = vpow.pop %v3128
        %v3130 = vmul.f32 %v3111, 1.442695
        %v3131 = vpow.pop %v3130
        %v3132 = vmul.f32 %v3112, 1.442695
        %v3133 = vpow.pop %v3132
        %v3134 = vmul.f32 %v3113, 1.442695
        %v3135 = vpow.pop %v3134
        %v3136 = vmul.f32 %v3114, 1.442695
        %v3137 = vpow.pop %v3136
        %v3138 = vmul.f32 %v3115, 1.442695
        %v3139 = vpow.pop %v3138
        %v3140 = vsel %vm2321, %v3117, 0.0
        %3141 = vadd.xlane.f32.xlu0 %v3140
        %v3142 = vpop.xlane.xlu0 %3141
        %v3143 = vsel %vm2321, %v3119, 0.0
        %3144 = vadd.xlane.f32.xlu0 %v3143
        %v3145 = vpop.xlane.xlu0 %3144
        %v3146 = vsel %vm2321, %v3121, 0.0
        %3147 = vadd.xlane.f32.xlu0 %v3146
        %v3148 = vpop.xlane.xlu0 %3147
        %v3149 = vsel %vm2321, %v3123, 0.0
        %3150 = vadd.xlane.f32.xlu0 %v3149
        %v3151 = vpop.xlane.xlu0 %3150
        %v3152 = vsel %vm2321, %v3125, 0.0
        %3153 = vadd.xlane.f32.xlu0 %v3152
        %v3154 = vpop.xlane.xlu0 %3153
        %v3155 = vsel %vm2321, %v3127, 0.0
        %3156 = vadd.xlane.f32.xlu0 %v3155
        %v3157 = vpop.xlane.xlu0 %3156
        %v3158 = vsel %vm2321, %v3129, 0.0
        %3159 = vadd.xlane.f32.xlu0 %v3158
        %v3160 = vpop.xlane.xlu0 %3159
        %v3161 = vsel %vm2321, %v3131, 0.0
        %3162 = vadd.xlane.f32.xlu0 %v3161
        %v3163 = vpop.xlane.xlu0 %3162
        %v3164 = vsel %vm2321, %v3133, 0.0
        %3165 = vadd.xlane.f32.xlu0 %v3164
        %v3166 = vpop.xlane.xlu0 %3165
        %v3167 = vsel %vm2321, %v3135, 0.0
        %3168 = vadd.xlane.f32.xlu0 %v3167
        %v3169 = vpop.xlane.xlu0 %3168
        %v3170 = vsel %vm2321, %v3137, 0.0
        %3171 = vadd.xlane.f32.xlu0 %v3170
        %v3172 = vpop.xlane.xlu0 %3171
        %v3173 = vsel %vm2321, %v3139, 0.0
        %3174 = vadd.xlane.f32.xlu0 %v3173
        %v3175 = vpop.xlane.xlu0 %3174
        %v3176 = vrcp.pop %v3142
        %v3177 = vmul.f32 %v3117, %v3176
        %v3178 = vrcp.pop %v3145
        %v3179 = vmul.f32 %v3119, %v3178
        %v3180 = vrcp.pop %v3148
        %v3181 = vmul.f32 %v3121, %v3180
        %v3182 = vrcp.pop %v3151
        %v3183 = vmul.f32 %v3123, %v3182
        %v3184 = vrcp.pop %v3154
        %v3185 = vmul.f32 %v3125, %v3184
        %v3186 = vrcp.pop %v3157
        %v3187 = vmul.f32 %v3127, %v3186
        %v3188 = vrcp.pop %v3160
        %v3189 = vmul.f32 %v3129, %v3188
        %v3190 = vrcp.pop %v3163
        %v3191 = vmul.f32 %v3131, %v3190
        %v3192 = vrcp.pop %v3166
        %v3193 = vmul.f32 %v3133, %v3192
        %v3194 = vrcp.pop %v3169
        %v3195 = vmul.f32 %v3135, %v3194
        %v3196 = vrcp.pop %v3172
        %v3197 = vmul.f32 %v3137, %v3196
        %v3198 = vrcp.pop %v3175
        %v3199 = vmul.f32 %v3139, %v3198
        %v3200 = vpack.c.bf16 %v3179, %v3177
        %v3201 = vpack.c.bf16 %v3183, %v3181
        %v3202 = vpack.c.bf16 %v3187, %v3185
        %v3203 = vpack.c.bf16 %v3191, %v3189
        %v3204 = vpack.c.bf16 %v3195, %v3193
        %v3205 = vpack.c.bf16 %v3199, %v3197
        %v3206 = vpack.c.bf16 %v2896, %v2893
        %v3207 = vpack.c.bf16 %v2904, %v2901
        %v3208 = vpack.c.bf16 %v2912, %v2909
        %v3209 = vpack.c.bf16 %v2920, %v2917
        %v3210 = vpack.c.bf16 %v2928, %v2925
        %v3211 = vpack.c.bf16 %v2936, %v2933
        %v3213 = vsel %vm2321, %v3200, 0
        %v3216 = vsel %vm2321, %v3201, 0
        %v3219 = vsel %vm2321, %v3202, 0
        %v3222 = vsel %vm2321, %v3203, 0
        %v3225 = vsel %vm2321, %v3204, 0
        %v3228 = vsel %vm2321, %v3205, 0
        %3230 = vmatprep.subr.bf16.mxu0 0
        %3231 = vmatpush1.bf16.msra.mxu0 %v3206
        %3232 = vmatprep.subr.bf16.mxu0 0
        %3233 = vmatpush1.bf16.msra.mxu0 %v3207
        %3234 = vmatprep.subr.bf16.mxu0 0
        %3235 = vmatpush1.bf16.msra.mxu0 %v3208
        %3236 = vmatprep.subr.bf16.mxu0 0
        %3237 = vmatpush1.bf16.msra.mxu0 %v3209
        %3238 = vmatprep.subr.bf16.mxu0 0
        %3239 = vmatpush1.bf16.msra.mxu0 %v3210
        %3240 = vmatprep.subr.bf16.mxu0 0
        %3241 = vmatpush1.bf16.msra.mxu0 %v3211
        %3242 = vmatprep.subr.bf16.mxu0 0
        %3243 = vmatpush1.bf16.msra.mxu0 0
        %3244 = vmatprep.subr.bf16.mxu0 0
        %3245 = vmatpush1.bf16.msra.mxu0 0
        %3246 = vmatprep.subr.bf16.mxu0 0
        %3247 = vmatpush1.bf16.msra.mxu0 0
        %3248 = vmatprep.subr.bf16.mxu0 0
        %3249 = vmatpush1.bf16.msra.mxu0 0
        %3250 = vmatprep.subr.bf16.mxu0 0
        %3251 = vmatpush1.bf16.msra.mxu0 0
        %3252 = vmatprep.subr.bf16.mxu0 0
        %3253 = vmatpush1.bf16.msra.mxu0 0
        %3254 = vmatprep.subr.bf16.mxu0 0
        %3255 = vmatpush1.bf16.msra.mxu0 0
        %3256 = vmatprep.subr.bf16.mxu0 0
        %3257 = vmatpush1.bf16.msra.mxu0 0
        %3258 = vmatprep.subr.bf16.mxu0 0
        %3259 = vmatpush1.bf16.msra.mxu0 0
        %3260 = vmatprep.subr.bf16.mxu0 0
        %3261 = vmatpush1.bf16.msra.mxu0 0
        %3262 = vmatprep.mubr.bf16.mxu0 0
        %3263 = vmatmul.mubr.bf16.gmra.mrb[0].mxu0 %v3213
        %v3264 = vpop.f32.mrb[0].mxu0
        %v3265 = vadd.f32 0.0, %v3264
        %v3266 = vpop.f32.mrb[0].mxu0
        %v3267 = vpop.f32.mrb[0].mxu0
        %v3268 = vadd.f32 0.0, %v3267
        %v3269 = vpop.f32.mrb[0].mxu0
        %3270 = vmatprep.mubr.bf16.mxu0 0
        %3271 = vmatmul.mubr.bf16.gmra.mrb[0].mxu0 %v3216
        %v3272 = vpop.f32.mrb[0].mxu0
        %v3273 = vadd.f32 0.0, %v3272
        %v3274 = vpop.f32.mrb[0].mxu0
        %v3275 = vpop.f32.mrb[0].mxu0
        %v3276 = vadd.f32 0.0, %v3275
        %v3277 = vpop.f32.mrb[0].mxu0
        %3278 = vmatprep.mubr.bf16.mxu0 0
        %3279 = vmatmul.mubr.bf16.gmra.mrb[0].mxu0 %v3219
        %v3280 = vpop.f32.mrb[0].mxu0
        %v3281 = vadd.f32 0.0, %v3280
        %v3282 = vpop.f32.mrb[0].mxu0
        %v3283 = vpop.f32.mrb[0].mxu0
        %v3284 = vadd.f32 0.0, %v3283
        %v3285 = vpop.f32.mrb[0].mxu0
        %3286 = vmatprep.mubr.bf16.mxu0 0
        %3287 = vmatmul.mubr.bf16.gmra.mrb[0].mxu0 %v3222
        %v3288 = vpop.f32.mrb[0].mxu0
        %v3289 = vadd.f32 0.0, %v3288
        %v3290 = vpop.f32.mrb[0].mxu0
        %v3291 = vpop.f32.mrb[0].mxu0
        %v3292 = vadd.f32 0.0, %v3291
        %v3293 = vpop.f32.mrb[0].mxu0
        %3294 = vmatprep.mubr.bf16.mxu0 0
        %3295 = vmatmul.mubr.bf16.gmra.mrb[0].mxu0 %v3225
        %v3296 = vpop.f32.mrb[0].mxu0
        %v3297 = vadd.f32 0.0, %v3296
        %v3298 = vpop.f32.mrb[0].mxu0
        %v3299 = vpop.f32.mrb[0].mxu0
        %v3300 = vadd.f32 0.0, %v3299
        %v3301 = vpop.f32.mrb[0].mxu0
        %3302 = vmatprep.mubr.bf16.mxu0 0
        %3303 = vmatmul.mubr.bf16.gmra.mrb[0].mxu0 %v3228
        %v3304 = vpop.f32.mrb[0].mxu0
        %v3305 = vadd.f32 0.0, %v3304
        %v3306 = vpop.f32.mrb[0].mxu0
        %v3307 = vpop.f32.mrb[0].mxu0
        %v3308 = vadd.f32 0.0, %v3307
        %v3309 = vpop.f32.mrb[0].mxu0
        %3310 = vdwg.mxu0
        %v3311 = vpack.c.bf16 %v3268, %v3265
        %v3312 = vpack.c.bf16 %v3276, %v3273
        %v3313 = vpack.c.bf16 %v3284, %v3281
        %v3314 = vpack.c.bf16 %v3292, %v3289
        %v3315 = vpack.c.bf16 %v3300, %v3297
        %v3316 = vpack.c.bf16 %v3308, %v3305
        %s3317 = scalar_lea.vmem %s1074, 8
        %v3318 = vld [vmem:[%s3317] sm:$0xf]
        %v3319 = vld [vmem:[%s3317 + $0x4] sm:$0xf]
        %v3322 = vunpack.c.l.b16 %v3318
        %v3323 = vunpack.c.l.b16 %v3319
        %v3324 = vpack.c.b16 %v3323, %v3322
        %v3327 = vsel %vm2203, %v3311, 0
        %v3330 = vsel %vm2203, %v3312, 0
        %v3333 = vsel %vm2203, %v3313, 0
        %v3336 = vsel %vm2203, %v3314, 0
        %v3339 = vsel %vm2203, %v3315, 0
        %v3342 = vsel %vm2203, %v3316, 0
        %3344 = vmatprep.subr.bf16.mxu0 0
        %3345 = vmatpush1.bf16.msra.mxu0 %v3324
        %3346 = vmatprep.subr.bf16.mxu0 0
        %3347 = vmatpush1.bf16.msra.mxu0 0
        %3348 = vmatprep.subr.bf16.mxu0 0
        %3349 = vmatpush1.bf16.msra.mxu0 0
        %3350 = vmatprep.subr.bf16.mxu0 0
        %3351 = vmatpush1.bf16.msra.mxu0 0
        %3352 = vmatprep.subr.bf16.mxu0 0
        %3353 = vmatpush1.bf16.msra.mxu0 0
        %3354 = vmatprep.subr.bf16.mxu0 0
        %3355 = vmatpush1.bf16.msra.mxu0 0
        %3356 = vmatprep.subr.bf16.mxu0 0
        %3357 = vmatpush1.bf16.msra.mxu0 0
        %3358 = vmatprep.subr.bf16.mxu0 0
        %3359 = vmatpush1.bf16.msra.mxu0 0
        %3360 = vmatprep.subr.bf16.mxu0 0
        %3361 = vmatpush1.bf16.msra.mxu0 0
        %3362 = vmatprep.subr.bf16.mxu0 0
        %3363 = vmatpush1.bf16.msra.mxu0 0
        %3364 = vmatprep.subr.bf16.mxu0 0
        %3365 = vmatpush1.bf16.msra.mxu0 0
        %3366 = vmatprep.subr.bf16.mxu0 0
        %3367 = vmatpush1.bf16.msra.mxu0 0
        %3368 = vmatprep.subr.bf16.mxu0 0
        %3369 = vmatpush1.bf16.msra.mxu0 0
        %3370 = vmatprep.subr.bf16.mxu0 0
        %3371 = vmatpush1.bf16.msra.mxu0 0
        %3372 = vmatprep.subr.bf16.mxu0 0
        %3373 = vmatpush1.bf16.msra.mxu0 0
        %3374 = vmatprep.subr.bf16.mxu0 0
        %3375 = vmatpush1.bf16.msra.mxu0 0
        %3376 = vmatprep.mubr.bf16.mxu0 0
        %3377 = vmatmul.mubr.bf16.gmra.mrb[0].mxu0 %v3327
        %v3378 = vpop.f32.mrb[0].mxu0
        %v3379 = vadd.f32 0.0, %v3378
        %v3380 = vpop.f32.mrb[0].mxu0
        %v3381 = vpop.f32.mrb[0].mxu0
        %v3382 = vadd.f32 0.0, %v3381
        %v3383 = vpop.f32.mrb[0].mxu0
        %3384 = vmatprep.mubr.bf16.mxu0 0
        %3385 = vmatmul.mubr.bf16.gmra.mrb[0].mxu0 %v3330
        %v3386 = vpop.f32.mrb[0].mxu0
        %v3387 = vadd.f32 0.0, %v3386
        %v3388 = vpop.f32.mrb[0].mxu0
        %v3389 = vpop.f32.mrb[0].mxu0
        %v3390 = vadd.f32 0.0, %v3389
        %v3391 = vpop.f32.mrb[0].mxu0
        %3392 = vmatprep.mubr.bf16.mxu0 0
        %3393 = vmatmul.mubr.bf16.gmra.mrb[0].mxu0 %v3333
        %v3394 = vpop.f32.mrb[0].mxu0
        %v3395 = vadd.f32 0.0, %v3394
        %v3396 = vpop.f32.mrb[0].mxu0
        %v3397 = vpop.f32.mrb[0].mxu0
        %v3398 = vadd.f32 0.0, %v3397
        %v3399 = vpop.f32.mrb[0].mxu0
        %3400 = vmatprep.mubr.bf16.mxu0 0
        %3401 = vmatmul.mubr.bf16.gmra.mrb[0].mxu0 %v3336
        %v3402 = vpop.f32.mrb[0].mxu0
        %v3403 = vadd.f32 0.0, %v3402
        %v3404 = vpop.f32.mrb[0].mxu0
        %v3405 = vpop.f32.mrb[0].mxu0
        %v3406 = vadd.f32 0.0, %v3405
        %v3407 = vpop.f32.mrb[0].mxu0
        %3408 = vmatprep.mubr.bf16.mxu0 0
        %3409 = vmatmul.mubr.bf16.gmra.mrb[0].mxu0 %v3339
        %v3410 = vpop.f32.mrb[0].mxu0
        %v3411 = vadd.f32 0.0, %v3410
        %v3412 = vpop.f32.mrb[0].mxu0
        %v3413 = vpop.f32.mrb[0].mxu0
        %v3414 = vadd.f32 0.0, %v3413
        %v3415 = vpop.f32.mrb[0].mxu0
        %3416 = vmatprep.mubr.bf16.mxu0 0
        %3417 = vmatmul.mubr.bf16.gmra.mrb[0].mxu0 %v3342
        %v3418 = vpop.f32.mrb[0].mxu0
        %v3419 = vadd.f32 0.0, %v3418
        %v3420 = vpop.f32.mrb[0].mxu0
        %v3421 = vpop.f32.mrb[0].mxu0
        %v3422 = vadd.f32 0.0, %v3421
        %v3423 = vpop.f32.mrb[0].mxu0
        %3424 = vdwg.mxu0
        %v3427 = vunpack.c.l.b16 %v2571
        %v3428 = vunpack.c.l.b16 %v2572
        %v3429 = vpack.c.b16 %v3428, %v3427
        %v3432 = vsel %vm2203, %v2565, 0
        %v3435 = vsel %vm2203, %v2566, 0
        %v3438 = vsel %vm2203, %v2567, 0
        %v3441 = vsel %vm2203, %v2568, 0
        %v3444 = vsel %vm2203, %v2569, 0
        %v3447 = vsel %vm2203, %v2570, 0
        %3449 = vmatprep.subr.bf16.mxu0 0
        %3450 = vmatpush1.bf16.msra.mxu0 %v3429
        %3451 = vmatprep.subr.bf16.mxu0 0
        %3452 = vmatpush1.bf16.msra.mxu0 0
        %3453 = vmatprep.subr.bf16.mxu0 0
        %3454 = vmatpush1.bf16.msra.mxu0 0
        %3455 = vmatprep.subr.bf16.mxu0 0
        %3456 = vmatpush1.bf16.msra.mxu0 0
        %3457 = vmatprep.subr.bf16.mxu0 0
        %3458 = vmatpush1.bf16.msra.mxu0 0
        %3459 = vmatprep.subr.bf16.mxu0 0
        %3460 = vmatpush1.bf16.msra.mxu0 0
        %3461 = vmatprep.subr.bf16.mxu0 0
        %3462 = vmatpush1.bf16.msra.mxu0 0
        %3463 = vmatprep.subr.bf16.mxu0 0
        %3464 = vmatpush1.bf16.msra.mxu0 0
        %3465 = vmatprep.subr.bf16.mxu0 0
        %3466 = vmatpush1.bf16.msra.mxu0 0
        %3467 = vmatprep.subr.bf16.mxu0 0
        %3468 = vmatpush1.bf16.msra.mxu0 0
        %3469 = vmatprep.subr.bf16.mxu0 0
        %3470 = vmatpush1.bf16.msra.mxu0 0
        %3471 = vmatprep.subr.bf16.mxu0 0
        %3472 = vmatpush1.bf16.msra.mxu0 0
        %3473 = vmatprep.subr.bf16.mxu0 0
        %3474 = vmatpush1.bf16.msra.mxu0 0
        %3475 = vmatprep.subr.bf16.mxu0 0
        %3476 = vmatpush1.bf16.msra.mxu0 0
        %3477 = vmatprep.subr.bf16.mxu0 0
        %3478 = vmatpush1.bf16.msra.mxu0 0
        %3479 = vmatprep.subr.bf16.mxu0 0
        %3480 = vmatpush1.bf16.msra.mxu0 0
        %3481 = vmatprep.mubr.bf16.mxu0 0
        %3482 = vmatmul.mubr.bf16.gmra.mrb[0].mxu0 %v3432
        %v3483 = vpop.f32.mrb[0].mxu0
        %v3484 = vadd.f32 %v3379, %v3483
        %v3485 = vpop.f32.mrb[0].mxu0
        %v3486 = vpop.f32.mrb[0].mxu0
        %v3487 = vadd.f32 %v3382, %v3486
        %v3488 = vpop.f32.mrb[0].mxu0
        %3489 = vmatprep.mubr.bf16.mxu0 0
        %3490 = vmatmul.mubr.bf16.gmra.mrb[0].mxu0 %v3435
        %v3491 = vpop.f32.mrb[0].mxu0
        %v3492 = vadd.f32 %v3387, %v3491
        %v3493 = vpop.f32.mrb[0].mxu0
        %v3494 = vpop.f32.mrb[0].mxu0
        %v3495 = vadd.f32 %v3390, %v3494
        %v3496 = vpop.f32.mrb[0].mxu0
        %3497 = vmatprep.mubr.bf16.mxu0 0
        %3498 = vmatmul.mubr.bf16.gmra.mrb[0].mxu0 %v3438
        %v3499 = vpop.f32.mrb[0].mxu0
        %v3500 = vadd.f32 %v3395, %v3499
        %v3501 = vpop.f32.mrb[0].mxu0
        %v3502 = vpop.f32.mrb[0].mxu0
        %v3503 = vadd.f32 %v3398, %v3502
        %v3504 = vpop.f32.mrb[0].mxu0
        %3505 = vmatprep.mubr.bf16.mxu0 0
        %3506 = vmatmul.mubr.bf16.gmra.mrb[0].mxu0 %v3441
        %v3507 = vpop.f32.mrb[0].mxu0
        %v3508 = vadd.f32 %v3403, %v3507
        %v3509 = vpop.f32.mrb[0].mxu0
        %v3510 = vpop.f32.mrb[0].mxu0
        %v3511 = vadd.f32 %v3406, %v3510
        %v3512 = vpop.f32.mrb[0].mxu0
        %3513 = vmatprep.mubr.bf16.mxu0 0
        %3514 = vmatmul.mubr.bf16.gmra.mrb[0].mxu0 %v3444
        %v3515 = vpop.f32.mrb[0].mxu0
        %v3516 = vadd.f32 %v3411, %v3515
        %v3517 = vpop.f32.mrb[0].mxu0
        %v3518 = vpop.f32.mrb[0].mxu0
        %v3519 = vadd.f32 %v3414, %v3518
        %v3520 = vpop.f32.mrb[0].mxu0
        %3521 = vmatprep.mubr.bf16.mxu0 0
        %3522 = vmatmul.mubr.bf16.gmra.mrb[0].mxu0 %v3447
        %v3523 = vpop.f32.mrb[0].mxu0
        %v3524 = vadd.f32 %v3419, %v3523
        %v3525 = vpop.f32.mrb[0].mxu0
        %v3526 = vpop.f32.mrb[0].mxu0
        %v3527 = vadd.f32 %v3422, %v3526
        %v3528 = vpop.f32.mrb[0].mxu0
        %3529 = vdwg.mxu0
        %s3530 = scalar_lea.vmem %s1047, 64
        %v3531 = vld [vmem:[%s3530] sm:$0xf]
        %v3532 = vld [vmem:[%s3530 + $0x4] sm:$0xf]
        %v3533 = vld [vmem:[%s3530 + $0x8] sm:$0xf]
        %v3534 = vld [vmem:[%s3530 + $0xc] sm:$0xf]
        %v3535 = vld [vmem:[%s3530 + $0x10] sm:$0xf]
        %v3536 = vld [vmem:[%s3530 + $0x14] sm:$0xf]
        %v3537 = vld [vmem:[%s3530 + $0x18] sm:$0xf]
        %v3538 = vld [vmem:[%s3530 + $0x1c] sm:$0xf]
        %s3539 = scalar_lea.vmem %s1051, 2
        %v3540 = vld [vmem:[%s3539] sm:$0x1]
        %v3542 = vlaneseq
        %v3543 = vshrl.u32 %v3542, 7
        %v3544 = vsub.s32 0, %v3543
        %v3545 = vrot.slane %v3540, %v3544
        %v3555 = vunpack.c.l.b16 %v3531
        %v3556 = vunpack.c.l.b16 %v3532
        %v3557 = vunpack.c.l.b16 %v3533
        %v3558 = vunpack.c.l.b16 %v3534
        %v3559 = vunpack.c.l.b16 %v3535
        %v3560 = vunpack.c.l.b16 %v3536
        %v3561 = vunpack.c.l.b16 %v3537
        %v3562 = vunpack.c.l.b16 %v3538
        %v3563 = vpack.c.b16 %v3556, %v3555
        %v3564 = vpack.c.b16 %v3558, %v3557
        %v3565 = vpack.c.b16 %v3560, %v3559
        %v3566 = vpack.c.b16 %v3562, %v3561
        %3571 = vmatprep.subr.bf16.mxu0 0
        %3572 = vmatpush1.bf16.msra.mxu0 %v3563
        %3573 = vmatprep.subr.bf16.mxu0 0
        %3574 = vmatpush1.bf16.msra.mxu0 %v3564
        %3575 = vmatprep.subr.bf16.mxu0 0
        %3576 = vmatpush1.bf16.msra.mxu0 %v3565
        %3577 = vmatprep.subr.bf16.mxu0 0
        %3578 = vmatpush1.bf16.msra.mxu0 %v3566
        %3579 = vmatprep.subr.bf16.mxu0 0
        %3580 = vmatpush1.bf16.msra.mxu0 0
        %3581 = vmatprep.subr.bf16.mxu0 0
        %3582 = vmatpush1.bf16.msra.mxu0 0
        %3583 = vmatprep.subr.bf16.mxu0 0
        %3584 = vmatpush1.bf16.msra.mxu0 0
        %3585 = vmatprep.subr.bf16.mxu0 0
        %3586 = vmatpush1.bf16.msra.mxu0 0
        %3587 = vmatprep.subr.bf16.mxu0 0
        %3588 = vmatpush1.bf16.msra.mxu0 0
        %3589 = vmatprep.subr.bf16.mxu0 0
        %3590 = vmatpush1.bf16.msra.mxu0 0
        %3591 = vmatprep.subr.bf16.mxu0 0
        %3592 = vmatpush1.bf16.msra.mxu0 0
        %3593 = vmatprep.subr.bf16.mxu0 0
        %3594 = vmatpush1.bf16.msra.mxu0 0
        %3595 = vmatprep.subr.bf16.mxu0 0
        %3596 = vmatpush1.bf16.msra.mxu0 0
        %3597 = vmatprep.subr.bf16.mxu0 0
        %3598 = vmatpush1.bf16.msra.mxu0 0
        %3599 = vmatprep.subr.bf16.mxu0 0
        %3600 = vmatpush1.bf16.msra.mxu0 0
        %3601 = vmatprep.subr.bf16.mxu0 0
        %3602 = vmatpush1.bf16.msra.mxu0 0
        %3603 = vmatprep.mubr.bf16.mxu0 0
        %3604 = vmatmul.mubr.bf16.gmra.mrb[0].mxu0 %v1853
        %v3605 = vpop.f32.mrb[0].mxu0
        %v3606 = vadd.f32 %v3545, %v3605
        %v3607 = vpop.f32.mrb[0].mxu0
        %v3608 = vpop.f32.mrb[0].mxu0
        %v3609 = vadd.f32 %v3545, %v3608
        %v3610 = vpop.f32.mrb[0].mxu0
        %3611 = vmatprep.mubr.bf16.mxu0 0
        %3612 = vmatmul.mubr.bf16.gmra.mrb[0].mxu0 %v1856
        %v3613 = vpop.f32.mrb[0].mxu0
        %v3614 = vadd.f32 %v3545, %v3613
        %v3615 = vpop.f32.mrb[0].mxu0
        %v3616 = vpop.f32.mrb[0].mxu0
        %v3617 = vadd.f32 %v3545, %v3616
        %v3618 = vpop.f32.mrb[0].mxu0
        %3619 = vmatprep.mubr.bf16.mxu0 0
        %3620 = vmatmul.mubr.bf16.gmra.mrb[0].mxu0 %v1859
        %v3621 = vpop.f32.mrb[0].mxu0
        %v3622 = vadd.f32 %v3545, %v3621
        %v3623 = vpop.f32.mrb[0].mxu0
        %v3624 = vpop.f32.mrb[0].mxu0
        %v3625 = vadd.f32 %v3545, %v3624
        %v3626 = vpop.f32.mrb[0].mxu0
        %3627 = vmatprep.mubr.bf16.mxu0 0
        %3628 = vmatmul.mubr.bf16.gmra.mrb[0].mxu0 %v1862
        %v3629 = vpop.f32.mrb[0].mxu0
        %v3630 = vadd.f32 %v3545, %v3629
        %v3631 = vpop.f32.mrb[0].mxu0
        %v3632 = vpop.f32.mrb[0].mxu0
        %v3633 = vadd.f32 %v3545, %v3632
        %v3634 = vpop.f32.mrb[0].mxu0
        %3635 = vmatprep.mubr.bf16.mxu0 0
        %3636 = vmatmul.mubr.bf16.gmra.mrb[0].mxu0 %v1865
        %v3637 = vpop.f32.mrb[0].mxu0
        %v3638 = vadd.f32 %v3545, %v3637
        %v3639 = vpop.f32.mrb[0].mxu0
        %v3640 = vpop.f32.mrb[0].mxu0
        %v3641 = vadd.f32 %v3545, %v3640
        %v3642 = vpop.f32.mrb[0].mxu0
        %3643 = vmatprep.mubr.bf16.mxu0 0
        %3644 = vmatmul.mubr.bf16.gmra.mrb[0].mxu0 %v1868
        %v3645 = vpop.f32.mrb[0].mxu0
        %v3646 = vadd.f32 %v3545, %v3645
        %v3647 = vpop.f32.mrb[0].mxu0
        %v3648 = vpop.f32.mrb[0].mxu0
        %v3649 = vadd.f32 %v3545, %v3648
        %v3650 = vpop.f32.mrb[0].mxu0
        %3651 = vdwg.mxu0
        %s3652 = scalar_lea.vmem %s1056, 64
        %v3653 = vld [vmem:[%s3652] sm:$0xf]
        %v3654 = vld [vmem:[%s3652 + $0x4] sm:$0xf]
        %v3655 = vld [vmem:[%s3652 + $0x8] sm:$0xf]
        %v3656 = vld [vmem:[%s3652 + $0xc] sm:$0xf]
        %v3657 = vld [vmem:[%s3652 + $0x10] sm:$0xf]
        %v3658 = vld [vmem:[%s3652 + $0x14] sm:$0xf]
        %v3659 = vld [vmem:[%s3652 + $0x18] sm:$0xf]
        %v3660 = vld [vmem:[%s3652 + $0x1c] sm:$0xf]
        %s3661 = scalar_lea.vmem %s1060, 2
        %v3662 = vld [vmem:[%s3661] sm:$0x1]
        %v3664 = vlaneseq
        %v3665 = vshrl.u32 %v3664, 7
        %v3666 = vsub.s32 0, %v3665
        %v3667 = vrot.slane %v3662, %v3666
        %v3677 = vunpack.c.l.b16 %v3653
        %v3678 = vunpack.c.l.b16 %v3654
        %v3679 = vunpack.c.l.b16 %v3655
        %v3680 = vunpack.c.l.b16 %v3656
        %v3681 = vunpack.c.l.b16 %v3657
        %v3682 = vunpack.c.l.b16 %v3658
        %v3683 = vunpack.c.l.b16 %v3659
        %v3684 = vunpack.c.l.b16 %v3660
        %v3685 = vpack.c.b16 %v3678, %v3677
        %v3686 = vpack.c.b16 %v3680, %v3679
        %v3687 = vpack.c.b16 %v3682, %v3681
        %v3688 = vpack.c.b16 %v3684, %v3683
        %3693 = vmatprep.subr.bf16.mxu0 0
        %3694 = vmatpush1.bf16.msra.mxu0 %v3685
        %3695 = vmatprep.subr.bf16.mxu0 0
        %3696 = vmatpush1.bf16.msra.mxu0 %v3686
        %3697 = vmatprep.subr.bf16.mxu0 0
        %3698 = vmatpush1.bf16.msra.mxu0 %v3687
        %3699 = vmatprep.subr.bf16.mxu0 0
        %3700 = vmatpush1.bf16.msra.mxu0 %v3688
        %3701 = vmatprep.subr.bf16.mxu0 0
        %3702 = vmatpush1.bf16.msra.mxu0 0
        %3703 = vmatprep.subr.bf16.mxu0 0
        %3704 = vmatpush1.bf16.msra.mxu0 0
        %3705 = vmatprep.subr.bf16.mxu0 0
        %3706 = vmatpush1.bf16.msra.mxu0 0
        %3707 = vmatprep.subr.bf16.mxu0 0
        %3708 = vmatpush1.bf16.msra.mxu0 0
        %3709 = vmatprep.subr.bf16.mxu0 0
        %3710 = vmatpush1.bf16.msra.mxu0 0
        %3711 = vmatprep.subr.bf16.mxu0 0
        %3712 = vmatpush1.bf16.msra.mxu0 0
        %3713 = vmatprep.subr.bf16.mxu0 0
        %3714 = vmatpush1.bf16.msra.mxu0 0
        %3715 = vmatprep.subr.bf16.mxu0 0
        %3716 = vmatpush1.bf16.msra.mxu0 0
        %3717 = vmatprep.subr.bf16.mxu0 0
        %3718 = vmatpush1.bf16.msra.mxu0 0
        %3719 = vmatprep.subr.bf16.mxu0 0
        %3720 = vmatpush1.bf16.msra.mxu0 0
        %3721 = vmatprep.subr.bf16.mxu0 0
        %3722 = vmatpush1.bf16.msra.mxu0 0
        %3723 = vmatprep.subr.bf16.mxu0 0
        %3724 = vmatpush1.bf16.msra.mxu0 0
        %3725 = vmatprep.mubr.bf16.mxu0 0
        %3726 = vmatmul.mubr.bf16.gmra.mrb[0].mxu0 %v1853
        %v3727 = vpop.f32.mrb[0].mxu0
        %v3728 = vadd.f32 %v3667, %v3727
        %v3729 = vpop.f32.mrb[0].mxu0
        %v3730 = vpop.f32.mrb[0].mxu0
        %v3731 = vadd.f32 %v3667, %v3730
        %v3732 = vpop.f32.mrb[0].mxu0
        %3733 = vmatprep.mubr.bf16.mxu0 0
        %3734 = vmatmul.mubr.bf16.gmra.mrb[0].mxu0 %v1856
        %v3735 = vpop.f32.mrb[0].mxu0
        %v3736 = vadd.f32 %v3667, %v3735
        %v3737 = vpop.f32.mrb[0].mxu0
        %v3738 = vpop.f32.mrb[0].mxu0
        %v3739 = vadd.f32 %v3667, %v3738
        %v3740 = vpop.f32.mrb[0].mxu0
        %3741 = vmatprep.mubr.bf16.mxu0 0
        %3742 = vmatmul.mubr.bf16.gmra.mrb[0].mxu0 %v1859
        %v3743 = vpop.f32.mrb[0].mxu0
        %v3744 = vadd.f32 %v3667, %v3743
        %v3745 = vpop.f32.mrb[0].mxu0
        %v3746 = vpop.f32.mrb[0].mxu0
        %v3747 = vadd.f32 %v3667, %v3746
        %v3748 = vpop.f32.mrb[0].mxu0
        %3749 = vmatprep.mubr.bf16.mxu0 0
        %3750 = vmatmul.mubr.bf16.gmra.mrb[0].mxu0 %v1862
        %v3751 = vpop.f32.mrb[0].mxu0
        %v3752 = vadd.f32 %v3667, %v3751
        %v3753 = vpop.f32.mrb[0].mxu0
        %v3754 = vpop.f32.mrb[0].mxu0
        %v3755 = vadd.f32 %v3667, %v3754
        %v3756 = vpop.f32.mrb[0].mxu0
        %3757 = vmatprep.mubr.bf16.mxu0 0
        %3758 = vmatmul.mubr.bf16.gmra.mrb[0].mxu0 %v1865
        %v3759 = vpop.f32.mrb[0].mxu0
        %v3760 = vadd.f32 %v3667, %v3759
        %v3761 = vpop.f32.mrb[0].mxu0
        %v3762 = vpop.f32.mrb[0].mxu0
        %v3763 = vadd.f32 %v3667, %v3762
        %v3764 = vpop.f32.mrb[0].mxu0
        %3765 = vmatprep.mubr.bf16.mxu0 0
        %3766 = vmatmul.mubr.bf16.gmra.mrb[0].mxu0 %v1868
        %v3767 = vpop.f32.mrb[0].mxu0
        %v3768 = vadd.f32 %v3667, %v3767
        %v3769 = vpop.f32.mrb[0].mxu0
        %v3770 = vpop.f32.mrb[0].mxu0
        %v3771 = vadd.f32 %v3667, %v3770
        %v3772 = vpop.f32.mrb[0].mxu0
        %3773 = vdwg.mxu0
        %s3774 = scalar_lea.vmem %s1065, 64
        %v3775 = vld [vmem:[%s3774] sm:$0xf]
        %v3776 = vld [vmem:[%s3774 + $0x4] sm:$0xf]
        %v3777 = vld [vmem:[%s3774 + $0x8] sm:$0xf]
        %v3778 = vld [vmem:[%s3774 + $0xc] sm:$0xf]
        %v3779 = vld [vmem:[%s3774 + $0x10] sm:$0xf]
        %v3780 = vld [vmem:[%s3774 + $0x14] sm:$0xf]
        %v3781 = vld [vmem:[%s3774 + $0x18] sm:$0xf]
        %v3782 = vld [vmem:[%s3774 + $0x1c] sm:$0xf]
        %s3783 = scalar_lea.vmem %s1069, 2
        %v3784 = vld [vmem:[%s3783] sm:$0x1]
        %v3786 = vlaneseq
        %v3787 = vshrl.u32 %v3786, 7
        %v3788 = vsub.s32 0, %v3787
        %v3789 = vrot.slane %v3784, %v3788
        %v3799 = vunpack.c.l.b16 %v3775
        %v3800 = vunpack.c.l.b16 %v3776
        %v3801 = vunpack.c.l.b16 %v3777
        %v3802 = vunpack.c.l.b16 %v3778
        %v3803 = vunpack.c.l.b16 %v3779
        %v3804 = vunpack.c.l.b16 %v3780
        %v3805 = vunpack.c.l.b16 %v3781
        %v3806 = vunpack.c.l.b16 %v3782
        %v3807 = vpack.c.b16 %v3800, %v3799
        %v3808 = vpack.c.b16 %v3802, %v3801
        %v3809 = vpack.c.b16 %v3804, %v3803
        %v3810 = vpack.c.b16 %v3806, %v3805
        %3815 = vmatprep.subr.bf16.mxu0 0
        %3816 = vmatpush1.bf16.msra.mxu0 %v3807
        %3817 = vmatprep.subr.bf16.mxu0 0
        %3818 = vmatpush1.bf16.msra.mxu0 %v3808
        %3819 = vmatprep.subr.bf16.mxu0 0
        %3820 = vmatpush1.bf16.msra.mxu0 %v3809
        %3821 = vmatprep.subr.bf16.mxu0 0
        %3822 = vmatpush1.bf16.msra.mxu0 %v3810
        %3823 = vmatprep.subr.bf16.mxu0 0
        %3824 = vmatpush1.bf16.msra.mxu0 0
        %3825 = vmatprep.subr.bf16.mxu0 0
        %3826 = vmatpush1.bf16.msra.mxu0 0
        %3827 = vmatprep.subr.bf16.mxu0 0
        %3828 = vmatpush1.bf16.msra.mxu0 0
        %3829 = vmatprep.subr.bf16.mxu0 0
        %3830 = vmatpush1.bf16.msra.mxu0 0
        %3831 = vmatprep.subr.bf16.mxu0 0
        %3832 = vmatpush1.bf16.msra.mxu0 0
        %3833 = vmatprep.subr.bf16.mxu0 0
        %3834 = vmatpush1.bf16.msra.mxu0 0
        %3835 = vmatprep.subr.bf16.mxu0 0
        %3836 = vmatpush1.bf16.msra.mxu0 0
        %3837 = vmatprep.subr.bf16.mxu0 0
        %3838 = vmatpush1.bf16.msra.mxu0 0
        %3839 = vmatprep.subr.bf16.mxu0 0
        %3840 = vmatpush1.bf16.msra.mxu0 0
        %3841 = vmatprep.subr.bf16.mxu0 0
        %3842 = vmatpush1.bf16.msra.mxu0 0
        %3843 = vmatprep.subr.bf16.mxu0 0
        %3844 = vmatpush1.bf16.msra.mxu0 0
        %3845 = vmatprep.subr.bf16.mxu0 0
        %3846 = vmatpush1.bf16.msra.mxu0 0
        %3847 = vmatprep.mubr.bf16.mxu0 0
        %3848 = vmatmul.mubr.bf16.gmra.mrb[0].mxu0 %v1853
        %v3849 = vpop.f32.mrb[0].mxu0
        %v3850 = vadd.f32 %v3789, %v3849
        %v3851 = vpop.f32.mrb[0].mxu0
        %v3852 = vpop.f32.mrb[0].mxu0
        %v3853 = vadd.f32 %v3789, %v3852
        %v3854 = vpop.f32.mrb[0].mxu0
        %3855 = vmatprep.mubr.bf16.mxu0 0
        %3856 = vmatmul.mubr.bf16.gmra.mrb[0].mxu0 %v1856
        %v3857 = vpop.f32.mrb[0].mxu0
        %v3858 = vadd.f32 %v3789, %v3857
        %v3859 = vpop.f32.mrb[0].mxu0
        %v3860 = vpop.f32.mrb[0].mxu0
        %v3861 = vadd.f32 %v3789, %v3860
        %v3862 = vpop.f32.mrb[0].mxu0
        %3863 = vmatprep.mubr.bf16.mxu0 0
        %3864 = vmatmul.mubr.bf16.gmra.mrb[0].mxu0 %v1859
        %v3865 = vpop.f32.mrb[0].mxu0
        %v3866 = vadd.f32 %v3789, %v3865
        %v3867 = vpop.f32.mrb[0].mxu0
        %v3868 = vpop.f32.mrb[0].mxu0
        %v3869 = vadd.f32 %v3789, %v3868
        %v3870 = vpop.f32.mrb[0].mxu0
        %3871 = vmatprep.mubr.bf16.mxu0 0
        %3872 = vmatmul.mubr.bf16.gmra.mrb[0].mxu0 %v1862
        %v3873 = vpop.f32.mrb[0].mxu0
        %v3874 = vadd.f32 %v3789, %v3873
        %v3875 = vpop.f32.mrb[0].mxu0
        %v3876 = vpop.f32.mrb[0].mxu0
        %v3877 = vadd.f32 %v3789, %v3876
        %v3878 = vpop.f32.mrb[0].mxu0
        %3879 = vmatprep.mubr.bf16.mxu0 0
        %3880 = vmatmul.mubr.bf16.gmra.mrb[0].mxu0 %v1865
        %v3881 = vpop.f32.mrb[0].mxu0
        %v3882 = vadd.f32 %v3789, %v3881
        %v3883 = vpop.f32.mrb[0].mxu0
        %v3884 = vpop.f32.mrb[0].mxu0
        %v3885 = vadd.f32 %v3789, %v3884
        %v3886 = vpop.f32.mrb[0].mxu0
        %3887 = vmatprep.mubr.bf16.mxu0 0
        %3888 = vmatmul.mubr.bf16.gmra.mrb[0].mxu0 %v1868
        %v3889 = vpop.f32.mrb[0].mxu0
        %v3890 = vadd.f32 %v3789, %v3889
        %v3891 = vpop.f32.mrb[0].mxu0
        %v3892 = vpop.f32.mrb[0].mxu0
        %v3893 = vadd.f32 %v3789, %v3892
        %v3894 = vpop.f32.mrb[0].mxu0
        %3895 = vdwg.mxu0
        %v3896 = vpack.c.bf16 %v3609, %v3606
        %v3897 = vpack.c.bf16 %v3617, %v3614
        %v3898 = vpack.c.bf16 %v3625, %v3622
        %v3899 = vpack.c.bf16 %v3633, %v3630
        %v3900 = vpack.c.bf16 %v3641, %v3638
        %v3901 = vpack.c.bf16 %v3649, %v3646
        %v3902 = vpack.c.bf16 %v3731, %v3728
        %v3903 = vpack.c.bf16 %v3739, %v3736
        %v3904 = vpack.c.bf16 %v3747, %v3744
        %v3905 = vpack.c.bf16 %v3755, %v3752
        %v3906 = vpack.c.bf16 %v3763, %v3760
        %v3907 = vpack.c.bf16 %v3771, %v3768
        %v3909 = vsel %vm2203, %v3896, 0
        %v3912 = vsel %vm2203, %v3897, 0
        %v3915 = vsel %vm2203, %v3898, 0
        %v3918 = vsel %vm2203, %v3899, 0
        %v3921 = vsel %vm2203, %v3900, 0
        %v3924 = vsel %vm2203, %v3901, 0
        %v3927 = vsel %vm2203, %v3902, 0
        %v3930 = vsel %vm2203, %v3903, 0
        %v3933 = vsel %vm2203, %v3904, 0
        %v3936 = vsel %vm2203, %v3905, 0
        %v3939 = vsel %vm2203, %v3906, 0
        %v3942 = vsel %vm2203, %v3907, 0
        %3944 = vmatprep.subr.bf16.mxu0 0
        %3945 = vmatpush1.bf16.xpose.msra.mxu0 %v3927
        %3946 = vmatprep.subr.bf16.mxu0 0
        %3947 = vmatpush1.bf16.xpose.msra.mxu0 %v3930
        %3948 = vmatprep.subr.bf16.mxu0 0
        %3949 = vmatpush1.bf16.xpose.msra.mxu0 %v3933
        %3950 = vmatprep.subr.bf16.mxu0 0
        %3951 = vmatpush1.bf16.xpose.msra.mxu0 %v3936
        %3952 = vmatprep.subr.bf16.mxu0 0
        %3953 = vmatpush1.bf16.xpose.msra.mxu0 %v3939
        %3954 = vmatprep.subr.bf16.mxu0 0
        %3955 = vmatpush1.bf16.xpose.msra.mxu0 %v3942
        %3956 = vmatprep.subr.bf16.mxu0 0
        %3957 = vmatpush1.bf16.xpose.msra.mxu0 0
        %3958 = vmatprep.subr.bf16.mxu0 0
        %3959 = vmatpush1.bf16.xpose.msra.mxu0 0
        %3960 = vmatprep.subr.bf16.mxu0 0
        %3961 = vmatpush1.bf16.xpose.msra.mxu0 0
        %3962 = vmatprep.subr.bf16.mxu0 0
        %3963 = vmatpush1.bf16.xpose.msra.mxu0 0
        %3964 = vmatprep.subr.bf16.mxu0 0
        %3965 = vmatpush1.bf16.xpose.msra.mxu0 0
        %3966 = vmatprep.subr.bf16.mxu0 0
        %3967 = vmatpush1.bf16.xpose.msra.mxu0 0
        %3968 = vmatprep.subr.bf16.mxu0 0
        %3969 = vmatpush1.bf16.xpose.msra.mxu0 0
        %3970 = vmatprep.subr.bf16.mxu0 0
        %3971 = vmatpush1.bf16.xpose.msra.mxu0 0
        %3972 = vmatprep.subr.bf16.mxu0 0
        %3973 = vmatpush1.bf16.xpose.msra.mxu0 0
        %3974 = vmatprep.subr.bf16.mxu0 0
        %3975 = vmatpush1.bf16.xpose.msra.mxu0 0
        %3976 = vmatprep.mubr.bf16.mxu0 0
        %3977 = vmatmul.mubr.bf16.gmra.mrb[0].mxu0 %v3909
        %v3978 = vpop.f32.mrb[0].mxu0
        %v3979 = vadd.f32 %v1599, %v3978
        %v3980 = vpop.f32.mrb[0].mxu0
        %v3981 = vpop.f32.mrb[0].mxu0
        %v3982 = vadd.f32 %v1600, %v3981
        %v3983 = vpop.f32.mrb[0].mxu0
        %3984 = vmatprep.mubr.bf16.mxu0 0
        %3985 = vmatmul.mubr.bf16.gmra.mrb[0].mxu0 %v3912
        %v3986 = vpop.f32.mrb[0].mxu0
        %v3987 = vadd.f32 %v1601, %v3986
        %v3988 = vpop.f32.mrb[0].mxu0
        %v3989 = vpop.f32.mrb[0].mxu0
        %v3990 = vadd.f32 %v1602, %v3989
        %v3991 = vpop.f32.mrb[0].mxu0
        %3992 = vmatprep.mubr.bf16.mxu0 0
        %3993 = vmatmul.mubr.bf16.gmra.mrb[0].mxu0 %v3915
        %v3994 = vpop.f32.mrb[0].mxu0
        %v3995 = vadd.f32 %v1603, %v3994
        %v3996 = vpop.f32.mrb[0].mxu0
        %v3997 = vpop.f32.mrb[0].mxu0
        %v3998 = vadd.f32 %v1604, %v3997
        %v3999 = vpop.f32.mrb[0].mxu0
        %4000 = vmatprep.mubr.bf16.mxu0 0
        %4001 = vmatmul.mubr.bf16.gmra.mrb[0].mxu0 %v3918
        %v4002 = vpop.f32.mrb[0].mxu0
        %v4003 = vadd.f32 %v1605, %v4002
        %v4004 = vpop.f32.mrb[0].mxu0
        %v4005 = vpop.f32.mrb[0].mxu0
        %v4006 = vadd.f32 %v1606, %v4005
        %v4007 = vpop.f32.mrb[0].mxu0
        %4008 = vmatprep.mubr.bf16.mxu0 0
        %4009 = vmatmul.mubr.bf16.gmra.mrb[0].mxu0 %v3921
        %v4010 = vpop.f32.mrb[0].mxu0
        %v4011 = vadd.f32 %v1607, %v4010
        %v4012 = vpop.f32.mrb[0].mxu0
        %v4013 = vpop.f32.mrb[0].mxu0
        %v4014 = vadd.f32 %v1608, %v4013
        %v4015 = vpop.f32.mrb[0].mxu0
        %4016 = vmatprep.mubr.bf16.mxu0 0
        %4017 = vmatmul.mubr.bf16.gmra.mrb[0].mxu0 %v3924
        %v4018 = vpop.f32.mrb[0].mxu0
        %v4019 = vadd.f32 %v1609, %v4018
        %v4020 = vpop.f32.mrb[0].mxu0
        %v4021 = vpop.f32.mrb[0].mxu0
        %v4022 = vadd.f32 %v1610, %v4021
        %v4023 = vpop.f32.mrb[0].mxu0
        %4024 = vdwg.mxu0
        %v4025 = vsel %vm2321, %v3979, -inf
        %4026 = vmax.xlane.f32.xlu0 %v4025
        %v4027 = vpop.xlane.xlu0 %4026
        %v4028 = vsel %vm2321, %v3982, -inf
        %4029 = vmax.xlane.f32.xlu0 %v4028
        %v4030 = vpop.xlane.xlu0 %4029
        %v4031 = vsel %vm2321, %v3987, -inf
        %4032 = vmax.xlane.f32.xlu0 %v4031
        %v4033 = vpop.xlane.xlu0 %4032
        %v4034 = vsel %vm2321, %v3990, -inf
        %4035 = vmax.xlane.f32.xlu0 %v4034
        %v4036 = vpop.xlane.xlu0 %4035
        %v4037 = vsel %vm2321, %v3995, -inf
        %4038 = vmax.xlane.f32.xlu0 %v4037
        %v4039 = vpop.xlane.xlu0 %4038
        %v4040 = vsel %vm2321, %v3998, -inf
        %4041 = vmax.xlane.f32.xlu0 %v4040
        %v4042 = vpop.xlane.xlu0 %4041
        %v4043 = vsel %vm2321, %v4003, -inf
        %4044 = vmax.xlane.f32.xlu0 %v4043
        %v4045 = vpop.xlane.xlu0 %4044
        %v4046 = vsel %vm2321, %v4006, -inf
        %4047 = vmax.xlane.f32.xlu0 %v4046
        %v4048 = vpop.xlane.xlu0 %4047
        %v4049 = vsel %vm2321, %v4011, -inf
        %4050 = vmax.xlane.f32.xlu0 %v4049
        %v4051 = vpop.xlane.xlu0 %4050
        %v4052 = vsel %vm2321, %v4014, -inf
        %4053 = vmax.xlane.f32.xlu0 %v4052
        %v4054 = vpop.xlane.xlu0 %4053
        %v4055 = vsel %vm2321, %v4019, -inf
        %4056 = vmax.xlane.f32.xlu0 %v4055
        %v4057 = vpop.xlane.xlu0 %4056
        %v4058 = vsel %vm2321, %v4022, -inf
        %4059 = vmax.xlane.f32.xlu0 %v4058
        %v4060 = vpop.xlane.xlu0 %4059
        %v4061 = vsub.f32 %v3979, %v4027
        %v4062 = vsub.f32 %v3982, %v4030
        %v4063 = vsub.f32 %v3987, %v4033
        %v4064 = vsub.f32 %v3990, %v4036
        %v4065 = vsub.f32 %v3995, %v4039
        %v4066 = vsub.f32 %v3998, %v4042
        %v4067 = vsub.f32 %v4003, %v4045
        %v4068 = vsub.f32 %v4006, %v4048
        %v4069 = vsub.f32 %v4011, %v4051
        %v4070 = vsub.f32 %v4014, %v4054
        %v4071 = vsub.f32 %v4019, %v4057
        %v4072 = vsub.f32 %v4022, %v4060
        %v4073 = vmul.f32 %v4061, 1.442695
        %v4074 = vpow.pop %v4073
        %v4075 = vmul.f32 %v4062, 1.442695
        %v4076 = vpow.pop %v4075
        %v4077 = vmul.f32 %v4063, 1.442695
        %v4078 = vpow.pop %v4077
        %v4079 = vmul.f32 %v4064, 1.442695
        %v4080 = vpow.pop %v4079
        %v4081 = vmul.f32 %v4065, 1.442695
        %v4082 = vpow.pop %v4081
        %v4083 = vmul.f32 %v4066, 1.442695
        %v4084 = vpow.pop %v4083
        %v4085 = vmul.f32 %v4067, 1.442695
        %v4086 = vpow.pop %v4085
        %v4087 = vmul.f32 %v4068, 1.442695
        %v4088 = vpow.pop %v4087
        %v4089 = vmul.f32 %v4069, 1.442695
        %v4090 = vpow.pop %v4089
        %v4091 = vmul.f32 %v4070, 1.442695
        %v4092 = vpow.pop %v4091
        %v4093 = vmul.f32 %v4071, 1.442695
        %v4094 = vpow.pop %v4093
        %v4095 = vmul.f32 %v4072, 1.442695
        %v4096 = vpow.pop %v4095
        %v4097 = vsel %vm2321, %v4074, 0.0
        %4098 = vadd.xlane.f32.xlu0 %v4097
        %v4099 = vpop.xlane.xlu0 %4098
        %v4100 = vsel %vm2321, %v4076, 0.0
        %4101 = vadd.xlane.f32.xlu0 %v4100
        %v4102 = vpop.xlane.xlu0 %4101
        %v4103 = vsel %vm2321, %v4078, 0.0
        %4104 = vadd.xlane.f32.xlu0 %v4103
        %v4105 = vpop.xlane.xlu0 %4104
        %v4106 = vsel %vm2321, %v4080, 0.0
        %4107 = vadd.xlane.f32.xlu0 %v4106
        %v4108 = vpop.xlane.xlu0 %4107
        %v4109 = vsel %vm2321, %v4082, 0.0
        %4110 = vadd.xlane.f32.xlu0 %v4109
        %v4111 = vpop.xlane.xlu0 %4110
        %v4112 = vsel %vm2321, %v4084, 0.0
        %4113 = vadd.xlane.f32.xlu0 %v4112
        %v4114 = vpop.xlane.xlu0 %4113
        %v4115 = vsel %vm2321, %v4086, 0.0
        %4116 = vadd.xlane.f32.xlu0 %v4115
        %v4117 = vpop.xlane.xlu0 %4116
        %v4118 = vsel %vm2321, %v4088, 0.0
        %4119 = vadd.xlane.f32.xlu0 %v4118
        %v4120 = vpop.xlane.xlu0 %4119
        %v4121 = vsel %vm2321, %v4090, 0.0
        %4122 = vadd.xlane.f32.xlu0 %v4121
        %v4123 = vpop.xlane.xlu0 %4122
        %v4124 = vsel %vm2321, %v4092, 0.0
        %4125 = vadd.xlane.f32.xlu0 %v4124
        %v4126 = vpop.xlane.xlu0 %4125
        %v4127 = vsel %vm2321, %v4094, 0.0
        %4128 = vadd.xlane.f32.xlu0 %v4127
        %v4129 = vpop.xlane.xlu0 %4128
        %v4130 = vsel %vm2321, %v4096, 0.0
        %4131 = vadd.xlane.f32.xlu0 %v4130
        %v4132 = vpop.xlane.xlu0 %4131
        %v4133 = vrcp.pop %v4099
        %v4134 = vmul.f32 %v4074, %v4133
        %v4135 = vrcp.pop %v4102
        %v4136 = vmul.f32 %v4076, %v4135
        %v4137 = vrcp.pop %v4105
        %v4138 = vmul.f32 %v4078, %v4137
        %v4139 = vrcp.pop %v4108
        %v4140 = vmul.f32 %v4080, %v4139
        %v4141 = vrcp.pop %v4111
        %v4142 = vmul.f32 %v4082, %v4141
        %v4143 = vrcp.pop %v4114
        %v4144 = vmul.f32 %v4084, %v4143
        %v4145 = vrcp.pop %v4117
        %v4146 = vmul.f32 %v4086, %v4145
        %v4147 = vrcp.pop %v4120
        %v4148 = vmul.f32 %v4088, %v4147
        %v4149 = vrcp.pop %v4123
        %v4150 = vmul.f32 %v4090, %v4149
        %v4151 = vrcp.pop %v4126
        %v4152 = vmul.f32 %v4092, %v4151
        %v4153 = vrcp.pop %v4129
        %v4154 = vmul.f32 %v4094, %v4153
        %v4155 = vrcp.pop %v4132
        %v4156 = vmul.f32 %v4096, %v4155
        %v4157 = vpack.c.bf16 %v4136, %v4134
        %v4158 = vpack.c.bf16 %v4140, %v4138
        %v4159 = vpack.c.bf16 %v4144, %v4142
        %v4160 = vpack.c.bf16 %v4148, %v4146
        %v4161 = vpack.c.bf16 %v4152, %v4150
        %v4162 = vpack.c.bf16 %v4156, %v4154
        %v4163 = vpack.c.bf16 %v3853, %v3850
        %v4164 = vpack.c.bf16 %v3861, %v3858
        %v4165 = vpack.c.bf16 %v3869, %v3866
        %v4166 = vpack.c.bf16 %v3877, %v3874
        %v4167 = vpack.c.bf16 %v3885, %v3882
        %v4168 = vpack.c.bf16 %v3893, %v3890
        %v4170 = vsel %vm2321, %v4157, 0
        %v4173 = vsel %vm2321, %v4158, 0
        %v4176 = vsel %vm2321, %v4159, 0
        %v4179 = vsel %vm2321, %v4160, 0
        %v4182 = vsel %vm2321, %v4161, 0
        %v4185 = vsel %vm2321, %v4162, 0
        %4187 = vmatprep.subr.bf16.mxu0 0
        %4188 = vmatpush1.bf16.msra.mxu0 %v4163
        %4189 = vmatprep.subr.bf16.mxu0 0
        %4190 = vmatpush1.bf16.msra.mxu0 %v4164
        %4191 = vmatprep.subr.bf16.mxu0 0
        %4192 = vmatpush1.bf16.msra.mxu0 %v4165
        %4193 = vmatprep.subr.bf16.mxu0 0
        %4194 = vmatpush1.bf16.msra.mxu0 %v4166
        %4195 = vmatprep.subr.bf16.mxu0 0
        %4196 = vmatpush1.bf16.msra.mxu0 %v4167
        %4197 = vmatprep.subr.bf16.mxu0 0
        %4198 = vmatpush1.bf16.msra.mxu0 %v4168
        %4199 = vmatprep.subr.bf16.mxu0 0
        %4200 = vmatpush1.bf16.msra.mxu0 0
        %4201 = vmatprep.subr.bf16.mxu0 0
        %4202 = vmatpush1.bf16.msra.mxu0 0
        %4203 = vmatprep.subr.bf16.mxu0 0
        %4204 = vmatpush1.bf16.msra.mxu0 0
        %4205 = vmatprep.subr.bf16.mxu0 0
        %4206 = vmatpush1.bf16.msra.mxu0 0
        %4207 = vmatprep.subr.bf16.mxu0 0
        %4208 = vmatpush1.bf16.msra.mxu0 0
        %4209 = vmatprep.subr.bf16.mxu0 0
        %4210 = vmatpush1.bf16.msra.mxu0 0
        %4211 = vmatprep.subr.bf16.mxu0 0
        %4212 = vmatpush1.bf16.msra.mxu0 0
        %4213 = vmatprep.subr.bf16.mxu0 0
        %4214 = vmatpush1.bf16.msra.mxu0 0
        %4215 = vmatprep.subr.bf16.mxu0 0
        %4216 = vmatpush1.bf16.msra.mxu0 0
        %4217 = vmatprep.subr.bf16.mxu0 0
        %4218 = vmatpush1.bf16.msra.mxu0 0
        %4219 = vmatprep.mubr.bf16.mxu0 0
        %4220 = vmatmul.mubr.bf16.gmra.mrb[0].mxu0 %v4170
        %v4221 = vpop.f32.mrb[0].mxu0
        %v4222 = vadd.f32 0.0, %v4221
        %v4223 = vpop.f32.mrb[0].mxu0
        %v4224 = vpop.f32.mrb[0].mxu0
        %v4225 = vadd.f32 0.0, %v4224
        %v4226 = vpop.f32.mrb[0].mxu0
        %4227 = vmatprep.mubr.bf16.mxu0 0
        %4228 = vmatmul.mubr.bf16.gmra.mrb[0].mxu0 %v4173
        %v4229 = vpop.f32.mrb[0].mxu0
        %v4230 = vadd.f32 0.0, %v4229
        %v4231 = vpop.f32.mrb[0].mxu0
        %v4232 = vpop.f32.mrb[0].mxu0
        %v4233 = vadd.f32 0.0, %v4232
        %v4234 = vpop.f32.mrb[0].mxu0
        %4235 = vmatprep.mubr.bf16.mxu0 0
        %4236 = vmatmul.mubr.bf16.gmra.mrb[0].mxu0 %v4176
        %v4237 = vpop.f32.mrb[0].mxu0
        %v4238 = vadd.f32 0.0, %v4237
        %v4239 = vpop.f32.mrb[0].mxu0
        %v4240 = vpop.f32.mrb[0].mxu0
        %v4241 = vadd.f32 0.0, %v4240
        %v4242 = vpop.f32.mrb[0].mxu0
        %4243 = vmatprep.mubr.bf16.mxu0 0
        %4244 = vmatmul.mubr.bf16.gmra.mrb[0].mxu0 %v4179
        %v4245 = vpop.f32.mrb[0].mxu0
        %v4246 = vadd.f32 0.0, %v4245
        %v4247 = vpop.f32.mrb[0].mxu0
        %v4248 = vpop.f32.mrb[0].mxu0
        %v4249 = vadd.f32 0.0, %v4248
        %v4250 = vpop.f32.mrb[0].mxu0
        %4251 = vmatprep.mubr.bf16.mxu0 0
        %4252 = vmatmul.mubr.bf16.gmra.mrb[0].mxu0 %v4182
        %v4253 = vpop.f32.mrb[0].mxu0
        %v4254 = vadd.f32 0.0, %v4253
        %v4255 = vpop.f32.mrb[0].mxu0
        %v4256 = vpop.f32.mrb[0].mxu0
        %v4257 = vadd.f32 0.0, %v4256
        %v4258 = vpop.f32.mrb[0].mxu0
        %4259 = vmatprep.mubr.bf16.mxu0 0
        %4260 = vmatmul.mubr.bf16.gmra.mrb[0].mxu0 %v4185
        %v4261 = vpop.f32.mrb[0].mxu0
        %v4262 = vadd.f32 0.0, %v4261
        %v4263 = vpop.f32.mrb[0].mxu0
        %v4264 = vpop.f32.mrb[0].mxu0
        %v4265 = vadd.f32 0.0, %v4264
        %v4266 = vpop.f32.mrb[0].mxu0
        %4267 = vdwg.mxu0
        %v4268 = vpack.c.bf16 %v4225, %v4222
        %v4269 = vpack.c.bf16 %v4233, %v4230
        %v4270 = vpack.c.bf16 %v4241, %v4238
        %v4271 = vpack.c.bf16 %v4249, %v4246
        %v4272 = vpack.c.bf16 %v4257, %v4254
        %v4273 = vpack.c.bf16 %v4265, %v4262
        %s4274 = scalar_lea.vmem %s1074, 16
        %v4275 = vld [vmem:[%s4274] sm:$0xf]
        %v4276 = vld [vmem:[%s4274 + $0x4] sm:$0xf]
        %v4279 = vunpack.c.l.b16 %v4275
        %v4280 = vunpack.c.l.b16 %v4276
        %v4281 = vpack.c.b16 %v4280, %v4279
        %v4284 = vsel %vm2203, %v4268, 0
        %v4287 = vsel %vm2203, %v4269, 0
        %v4290 = vsel %vm2203, %v4270, 0
        %v4293 = vsel %vm2203, %v4271, 0
        %v4296 = vsel %vm2203, %v4272, 0
        %v4299 = vsel %vm2203, %v4273, 0
        %4301 = vmatprep.subr.bf16.mxu0 0
        %4302 = vmatpush1.bf16.msra.mxu0 %v4281
        %4303 = vmatprep.subr.bf16.mxu0 0
        %4304 = vmatpush1.bf16.msra.mxu0 0
        %4305 = vmatprep.subr.bf16.mxu0 0
        %4306 = vmatpush1.bf16.msra.mxu0 0
        %4307 = vmatprep.subr.bf16.mxu0 0
        %4308 = vmatpush1.bf16.msra.mxu0 0
        %4309 = vmatprep.subr.bf16.mxu0 0
        %4310 = vmatpush1.bf16.msra.mxu0 0
        %4311 = vmatprep.subr.bf16.mxu0 0
        %4312 = vmatpush1.bf16.msra.mxu0 0
        %4313 = vmatprep.subr.bf16.mxu0 0
        %4314 = vmatpush1.bf16.msra.mxu0 0
        %4315 = vmatprep.subr.bf16.mxu0 0
        %4316 = vmatpush1.bf16.msra.mxu0 0
        %4317 = vmatprep.subr.bf16.mxu0 0
        %4318 = vmatpush1.bf16.msra.mxu0 0
        %4319 = vmatprep.subr.bf16.mxu0 0
        %4320 = vmatpush1.bf16.msra.mxu0 0
        %4321 = vmatprep.subr.bf16.mxu0 0
        %4322 = vmatpush1.bf16.msra.mxu0 0
        %4323 = vmatprep.subr.bf16.mxu0 0
        %4324 = vmatpush1.bf16.msra.mxu0 0
        %4325 = vmatprep.subr.bf16.mxu0 0
        %4326 = vmatpush1.bf16.msra.mxu0 0
        %4327 = vmatprep.subr.bf16.mxu0 0
        %4328 = vmatpush1.bf16.msra.mxu0 0
        %4329 = vmatprep.subr.bf16.mxu0 0
        %4330 = vmatpush1.bf16.msra.mxu0 0
        %4331 = vmatprep.subr.bf16.mxu0 0
        %4332 = vmatpush1.bf16.msra.mxu0 0
        %4333 = vmatprep.mubr.bf16.mxu0 0
        %4334 = vmatmul.mubr.bf16.gmra.mrb[0].mxu0 %v4284
        %v4335 = vpop.f32.mrb[0].mxu0
        %v4336 = vadd.f32 0.0, %v4335
        %v4337 = vpop.f32.mrb[0].mxu0
        %v4338 = vpop.f32.mrb[0].mxu0
        %v4339 = vadd.f32 0.0, %v4338
        %v4340 = vpop.f32.mrb[0].mxu0
        %4341 = vmatprep.mubr.bf16.mxu0 0
        %4342 = vmatmul.mubr.bf16.gmra.mrb[0].mxu0 %v4287
        %v4343 = vpop.f32.mrb[0].mxu0
        %v4344 = vadd.f32 0.0, %v4343
        %v4345 = vpop.f32.mrb[0].mxu0
        %v4346 = vpop.f32.mrb[0].mxu0
        %v4347 = vadd.f32 0.0, %v4346
        %v4348 = vpop.f32.mrb[0].mxu0
        %4349 = vmatprep.mubr.bf16.mxu0 0
        %4350 = vmatmul.mubr.bf16.gmra.mrb[0].mxu0 %v4290
        %v4351 = vpop.f32.mrb[0].mxu0
        %v4352 = vadd.f32 0.0, %v4351
        %v4353 = vpop.f32.mrb[0].mxu0
        %v4354 = vpop.f32.mrb[0].mxu0
        %v4355 = vadd.f32 0.0, %v4354
        %v4356 = vpop.f32.mrb[0].mxu0
        %4357 = vmatprep.mubr.bf16.mxu0 0
        %4358 = vmatmul.mubr.bf16.gmra.mrb[0].mxu0 %v4293
        %v4359 = vpop.f32.mrb[0].mxu0
        %v4360 = vadd.f32 0.0, %v4359
        %v4361 = vpop.f32.mrb[0].mxu0
        %v4362 = vpop.f32.mrb[0].mxu0
        %v4363 = vadd.f32 0.0, %v4362
        %v4364 = vpop.f32.mrb[0].mxu0
        %4365 = vmatprep.mubr.bf16.mxu0 0
        %4366 = vmatmul.mubr.bf16.gmra.mrb[0].mxu0 %v4296
        %v4367 = vpop.f32.mrb[0].mxu0
        %v4368 = vadd.f32 0.0, %v4367
        %v4369 = vpop.f32.mrb[0].mxu0
        %v4370 = vpop.f32.mrb[0].mxu0
        %v4371 = vadd.f32 0.0, %v4370
        %v4372 = vpop.f32.mrb[0].mxu0
        %4373 = vmatprep.mubr.bf16.mxu0 0
        %4374 = vmatmul.mubr.bf16.gmra.mrb[0].mxu0 %v4299
        %v4375 = vpop.f32.mrb[0].mxu0
        %v4376 = vadd.f32 0.0, %v4375
        %v4377 = vpop.f32.mrb[0].mxu0
        %v4378 = vpop.f32.mrb[0].mxu0
        %v4379 = vadd.f32 0.0, %v4378
        %v4380 = vpop.f32.mrb[0].mxu0
        %4381 = vdwg.mxu0
        %v4382 = vadd.f32 %v3484, %v4336
        %v4383 = vadd.f32 %v3487, %v4339
        %v4384 = vadd.f32 %v3492, %v4344
        %v4385 = vadd.f32 %v3495, %v4347
        %v4386 = vadd.f32 %v3500, %v4352
        %v4387 = vadd.f32 %v3503, %v4355
        %v4388 = vadd.f32 %v3508, %v4360
        %v4389 = vadd.f32 %v3511, %v4363
        %v4390 = vadd.f32 %v3516, %v4368
        %v4391 = vadd.f32 %v3519, %v4371
        %v4392 = vadd.f32 %v3524, %v4376
        %v4393 = vadd.f32 %v3527, %v4379
        %s4394 = scalar_lea.vmem %s1047, 96
        %v4395 = vld [vmem:[%s4394] sm:$0xf]
        %v4396 = vld [vmem:[%s4394 + $0x4] sm:$0xf]
        %v4397 = vld [vmem:[%s4394 + $0x8] sm:$0xf]
        %v4398 = vld [vmem:[%s4394 + $0xc] sm:$0xf]
        %v4399 = vld [vmem:[%s4394 + $0x10] sm:$0xf]
        %v4400 = vld [vmem:[%s4394 + $0x14] sm:$0xf]
        %v4401 = vld [vmem:[%s4394 + $0x18] sm:$0xf]
        %v4402 = vld [vmem:[%s4394 + $0x1c] sm:$0xf]
        %s4403 = scalar_lea.vmem %s1051, 3
        %v4404 = vld [vmem:[%s4403] sm:$0x1]
        %v4406 = vlaneseq
        %v4407 = vshrl.u32 %v4406, 7
        %v4408 = vsub.s32 0, %v4407
        %v4409 = vrot.slane %v4404, %v4408
        %v4419 = vunpack.c.l.b16 %v4395
        %v4420 = vunpack.c.l.b16 %v4396
        %v4421 = vunpack.c.l.b16 %v4397
        %v4422 = vunpack.c.l.b16 %v4398
        %v4423 = vunpack.c.l.b16 %v4399
        %v4424 = vunpack.c.l.b16 %v4400
        %v4425 = vunpack.c.l.b16 %v4401
        %v4426 = vunpack.c.l.b16 %v4402
        %v4427 = vpack.c.b16 %v4420, %v4419
        %v4428 = vpack.c.b16 %v4422, %v4421
        %v4429 = vpack.c.b16 %v4424, %v4423
        %v4430 = vpack.c.b16 %v4426, %v4425
        %4435 = vmatprep.subr.bf16.mxu0 0
        %4436 = vmatpush1.bf16.msra.mxu0 %v4427
        %4437 = vmatprep.subr.bf16.mxu0 0
        %4438 = vmatpush1.bf16.msra.mxu0 %v4428
        %4439 = vmatprep.subr.bf16.mxu0 0
        %4440 = vmatpush1.bf16.msra.mxu0 %v4429
        %4441 = vmatprep.subr.bf16.mxu0 0
        %4442 = vmatpush1.bf16.msra.mxu0 %v4430
        %4443 = vmatprep.subr.bf16.mxu0 0
        %4444 = vmatpush1.bf16.msra.mxu0 0
        %4445 = vmatprep.subr.bf16.mxu0 0
        %4446 = vmatpush1.bf16.msra.mxu0 0
        %4447 = vmatprep.subr.bf16.mxu0 0
        %4448 = vmatpush1.bf16.msra.mxu0 0
        %4449 = vmatprep.subr.bf16.mxu0 0
        %4450 = vmatpush1.bf16.msra.mxu0 0
        %4451 = vmatprep.subr.bf16.mxu0 0
        %4452 = vmatpush1.bf16.msra.mxu0 0
        %4453 = vmatprep.subr.bf16.mxu0 0
        %4454 = vmatpush1.bf16.msra.mxu0 0
        %4455 = vmatprep.subr.bf16.mxu0 0
        %4456 = vmatpush1.bf16.msra.mxu0 0
        %4457 = vmatprep.subr.bf16.mxu0 0
        %4458 = vmatpush1.bf16.msra.mxu0 0
        %4459 = vmatprep.subr.bf16.mxu0 0
        %4460 = vmatpush1.bf16.msra.mxu0 0
        %4461 = vmatprep.subr.bf16.mxu0 0
        %4462 = vmatpush1.bf16.msra.mxu0 0
        %4463 = vmatprep.subr.bf16.mxu0 0
        %4464 = vmatpush1.bf16.msra.mxu0 0
        %4465 = vmatprep.subr.bf16.mxu0 0
        %4466 = vmatpush1.bf16.msra.mxu0 0
        %4467 = vmatprep.mubr.bf16.mxu0 0
        %4468 = vmatmul.mubr.bf16.gmra.mrb[0].mxu0 %v1853
        %v4469 = vpop.f32.mrb[0].mxu0
        %v4470 = vadd.f32 %v4409, %v4469
        %v4471 = vpop.f32.mrb[0].mxu0
        %v4472 = vpop.f32.mrb[0].mxu0
        %v4473 = vadd.f32 %v4409, %v4472
        %v4474 = vpop.f32.mrb[0].mxu0
        %4475 = vmatprep.mubr.bf16.mxu0 0
        %4476 = vmatmul.mubr.bf16.gmra.mrb[0].mxu0 %v1856
        %v4477 = vpop.f32.mrb[0].mxu0
        %v4478 = vadd.f32 %v4409, %v4477
        %v4479 = vpop.f32.mrb[0].mxu0
        %v4480 = vpop.f32.mrb[0].mxu0
        %v4481 = vadd.f32 %v4409, %v4480
        %v4482 = vpop.f32.mrb[0].mxu0
        %4483 = vmatprep.mubr.bf16.mxu0 0
        %4484 = vmatmul.mubr.bf16.gmra.mrb[0].mxu0 %v1859
        %v4485 = vpop.f32.mrb[0].mxu0
        %v4486 = vadd.f32 %v4409, %v4485
        %v4487 = vpop.f32.mrb[0].mxu0
        %v4488 = vpop.f32.mrb[0].mxu0
        %v4489 = vadd.f32 %v4409, %v4488
        %v4490 = vpop.f32.mrb[0].mxu0
        %4491 = vmatprep.mubr.bf16.mxu0 0
        %4492 = vmatmul.mubr.bf16.gmra.mrb[0].mxu0 %v1862
        %v4493 = vpop.f32.mrb[0].mxu0
        %v4494 = vadd.f32 %v4409, %v4493
        %v4495 = vpop.f32.mrb[0].mxu0
        %v4496 = vpop.f32.mrb[0].mxu0
        %v4497 = vadd.f32 %v4409, %v4496
        %v4498 = vpop.f32.mrb[0].mxu0
        %4499 = vmatprep.mubr.bf16.mxu0 0
        %4500 = vmatmul.mubr.bf16.gmra.mrb[0].mxu0 %v1865
        %v4501 = vpop.f32.mrb[0].mxu0
        %v4502 = vadd.f32 %v4409, %v4501
        %v4503 = vpop.f32.mrb[0].mxu0
        %v4504 = vpop.f32.mrb[0].mxu0
        %v4505 = vadd.f32 %v4409, %v4504
        %v4506 = vpop.f32.mrb[0].mxu0
        %4507 = vmatprep.mubr.bf16.mxu0 0
        %4508 = vmatmul.mubr.bf16.gmra.mrb[0].mxu0 %v1868
        %v4509 = vpop.f32.mrb[0].mxu0
        %v4510 = vadd.f32 %v4409, %v4509
        %v4511 = vpop.f32.mrb[0].mxu0
        %v4512 = vpop.f32.mrb[0].mxu0
        %v4513 = vadd.f32 %v4409, %v4512
        %v4514 = vpop.f32.mrb[0].mxu0
        %4515 = vdwg.mxu0
        %s4516 = scalar_lea.vmem %s1056, 96
        %v4517 = vld [vmem:[%s4516] sm:$0xf]
        %v4518 = vld [vmem:[%s4516 + $0x4] sm:$0xf]
        %v4519 = vld [vmem:[%s4516 + $0x8] sm:$0xf]
        %v4520 = vld [vmem:[%s4516 + $0xc] sm:$0xf]
        %v4521 = vld [vmem:[%s4516 + $0x10] sm:$0xf]
        %v4522 = vld [vmem:[%s4516 + $0x14] sm:$0xf]
        %v4523 = vld [vmem:[%s4516 + $0x18] sm:$0xf]
        %v4524 = vld [vmem:[%s4516 + $0x1c] sm:$0xf]
        %s4525 = scalar_lea.vmem %s1060, 3
        %v4526 = vld [vmem:[%s4525] sm:$0x1]
        %v4528 = vlaneseq
        %v4529 = vshrl.u32 %v4528, 7
        %v4530 = vsub.s32 0, %v4529
        %v4531 = vrot.slane %v4526, %v4530
        %v4541 = vunpack.c.l.b16 %v4517
        %v4542 = vunpack.c.l.b16 %v4518
        %v4543 = vunpack.c.l.b16 %v4519
        %v4544 = vunpack.c.l.b16 %v4520
        %v4545 = vunpack.c.l.b16 %v4521
        %v4546 = vunpack.c.l.b16 %v4522
        %v4547 = vunpack.c.l.b16 %v4523
        %v4548 = vunpack.c.l.b16 %v4524
        %v4549 = vpack.c.b16 %v4542, %v4541
        %v4550 = vpack.c.b16 %v4544, %v4543
        %v4551 = vpack.c.b16 %v4546, %v4545
        %v4552 = vpack.c.b16 %v4548, %v4547
        %4557 = vmatprep.subr.bf16.mxu0 0
        %4558 = vmatpush1.bf16.msra.mxu0 %v4549
        %4559 = vmatprep.subr.bf16.mxu0 0
        %4560 = vmatpush1.bf16.msra.mxu0 %v4550
        %4561 = vmatprep.subr.bf16.mxu0 0
        %4562 = vmatpush1.bf16.msra.mxu0 %v4551
        %4563 = vmatprep.subr.bf16.mxu0 0
        %4564 = vmatpush1.bf16.msra.mxu0 %v4552
        %4565 = vmatprep.subr.bf16.mxu0 0
        %4566 = vmatpush1.bf16.msra.mxu0 0
        %4567 = vmatprep.subr.bf16.mxu0 0
        %4568 = vmatpush1.bf16.msra.mxu0 0
        %4569 = vmatprep.subr.bf16.mxu0 0
        %4570 = vmatpush1.bf16.msra.mxu0 0
        %4571 = vmatprep.subr.bf16.mxu0 0
        %4572 = vmatpush1.bf16.msra.mxu0 0
        %4573 = vmatprep.subr.bf16.mxu0 0
        %4574 = vmatpush1.bf16.msra.mxu0 0
        %4575 = vmatprep.subr.bf16.mxu0 0
        %4576 = vmatpush1.bf16.msra.mxu0 0
        %4577 = vmatprep.subr.bf16.mxu0 0
        %4578 = vmatpush1.bf16.msra.mxu0 0
        %4579 = vmatprep.subr.bf16.mxu0 0
        %4580 = vmatpush1.bf16.msra.mxu0 0
        %4581 = vmatprep.subr.bf16.mxu0 0
        %4582 = vmatpush1.bf16.msra.mxu0 0
        %4583 = vmatprep.subr.bf16.mxu0 0
        %4584 = vmatpush1.bf16.msra.mxu0 0
        %4585 = vmatprep.subr.bf16.mxu0 0
        %4586 = vmatpush1.bf16.msra.mxu0 0
        %4587 = vmatprep.subr.bf16.mxu0 0
        %4588 = vmatpush1.bf16.msra.mxu0 0
        %4589 = vmatprep.mubr.bf16.mxu0 0
        %4590 = vmatmul.mubr.bf16.gmra.mrb[0].mxu0 %v1853
        %v4591 = vpop.f32.mrb[0].mxu0
        %v4592 = vadd.f32 %v4531, %v4591
        %v4593 = vpop.f32.mrb[0].mxu0
        %v4594 = vpop.f32.mrb[0].mxu0
        %v4595 = vadd.f32 %v4531, %v4594
        %v4596 = vpop.f32.mrb[0].mxu0
        %4597 = vmatprep.mubr.bf16.mxu0 0
        %4598 = vmatmul.mubr.bf16.gmra.mrb[0].mxu0 %v1856
        %v4599 = vpop.f32.mrb[0].mxu0
        %v4600 = vadd.f32 %v4531, %v4599
        %v4601 = vpop.f32.mrb[0].mxu0
        %v4602 = vpop.f32.mrb[0].mxu0
        %v4603 = vadd.f32 %v4531, %v4602
        %v4604 = vpop.f32.mrb[0].mxu0
        %4605 = vmatprep.mubr.bf16.mxu0 0
        %4606 = vmatmul.mubr.bf16.gmra.mrb[0].mxu0 %v1859
        %v4607 = vpop.f32.mrb[0].mxu0
        %v4608 = vadd.f32 %v4531, %v4607
        %v4609 = vpop.f32.mrb[0].mxu0
        %v4610 = vpop.f32.mrb[0].mxu0
        %v4611 = vadd.f32 %v4531, %v4610
        %v4612 = vpop.f32.mrb[0].mxu0
        %4613 = vmatprep.mubr.bf16.mxu0 0
        %4614 = vmatmul.mubr.bf16.gmra.mrb[0].mxu0 %v1862
        %v4615 = vpop.f32.mrb[0].mxu0
        %v4616 = vadd.f32 %v4531, %v4615
        %v4617 = vpop.f32.mrb[0].mxu0
        %v4618 = vpop.f32.mrb[0].mxu0
        %v4619 = vadd.f32 %v4531, %v4618
        %v4620 = vpop.f32.mrb[0].mxu0
        %4621 = vmatprep.mubr.bf16.mxu0 0
        %4622 = vmatmul.mubr.bf16.gmra.mrb[0].mxu0 %v1865
        %v4623 = vpop.f32.mrb[0].mxu0
        %v4624 = vadd.f32 %v4531, %v4623
        %v4625 = vpop.f32.mrb[0].mxu0
        %v4626 = vpop.f32.mrb[0].mxu0
        %v4627 = vadd.f32 %v4531, %v4626
        %v4628 = vpop.f32.mrb[0].mxu0
        %4629 = vmatprep.mubr.bf16.mxu0 0
        %4630 = vmatmul.mubr.bf16.gmra.mrb[0].mxu0 %v1868
        %v4631 = vpop.f32.mrb[0].mxu0
        %v4632 = vadd.f32 %v4531, %v4631
        %v4633 = vpop.f32.mrb[0].mxu0
        %v4634 = vpop.f32.mrb[0].mxu0
        %v4635 = vadd.f32 %v4531, %v4634
        %v4636 = vpop.f32.mrb[0].mxu0
        %4637 = vdwg.mxu0
        %s4638 = scalar_lea.vmem %s1065, 96
        %v4639 = vld [vmem:[%s4638] sm:$0xf]
        %v4640 = vld [vmem:[%s4638 + $0x4] sm:$0xf]
        %v4641 = vld [vmem:[%s4638 + $0x8] sm:$0xf]
        %v4642 = vld [vmem:[%s4638 + $0xc] sm:$0xf]
        %v4643 = vld [vmem:[%s4638 + $0x10] sm:$0xf]
        %v4644 = vld [vmem:[%s4638 + $0x14] sm:$0xf]
        %v4645 = vld [vmem:[%s4638 + $0x18] sm:$0xf]
        %v4646 = vld [vmem:[%s4638 + $0x1c] sm:$0xf]
        %s4647 = scalar_lea.vmem %s1069, 3
        %v4648 = vld [vmem:[%s4647] sm:$0x1]
        %v4650 = vlaneseq
        %v4651 = vshrl.u32 %v4650, 7
        %v4652 = vsub.s32 0, %v4651
        %v4653 = vrot.slane %v4648, %v4652
        %v4663 = vunpack.c.l.b16 %v4639
        %v4664 = vunpack.c.l.b16 %v4640
        %v4665 = vunpack.c.l.b16 %v4641
        %v4666 = vunpack.c.l.b16 %v4642
        %v4667 = vunpack.c.l.b16 %v4643
        %v4668 = vunpack.c.l.b16 %v4644
        %v4669 = vunpack.c.l.b16 %v4645
        %v4670 = vunpack.c.l.b16 %v4646
        %v4671 = vpack.c.b16 %v4664, %v4663
        %v4672 = vpack.c.b16 %v4666, %v4665
        %v4673 = vpack.c.b16 %v4668, %v4667
        %v4674 = vpack.c.b16 %v4670, %v4669
        %4679 = vmatprep.subr.bf16.mxu0 0
        %4680 = vmatpush1.bf16.msra.mxu0 %v4671
        %4681 = vmatprep.subr.bf16.mxu0 0
        %4682 = vmatpush1.bf16.msra.mxu0 %v4672
        %4683 = vmatprep.subr.bf16.mxu0 0
        %4684 = vmatpush1.bf16.msra.mxu0 %v4673
        %4685 = vmatprep.subr.bf16.mxu0 0
        %4686 = vmatpush1.bf16.msra.mxu0 %v4674
        %4687 = vmatprep.subr.bf16.mxu0 0
        %4688 = vmatpush1.bf16.msra.mxu0 0
        %4689 = vmatprep.subr.bf16.mxu0 0
        %4690 = vmatpush1.bf16.msra.mxu0 0
        %4691 = vmatprep.subr.bf16.mxu0 0
        %4692 = vmatpush1.bf16.msra.mxu0 0
        %4693 = vmatprep.subr.bf16.mxu0 0
        %4694 = vmatpush1.bf16.msra.mxu0 0
        %4695 = vmatprep.subr.bf16.mxu0 0
        %4696 = vmatpush1.bf16.msra.mxu0 0
        %4697 = vmatprep.subr.bf16.mxu0 0
        %4698 = vmatpush1.bf16.msra.mxu0 0
        %4699 = vmatprep.subr.bf16.mxu0 0
        %4700 = vmatpush1.bf16.msra.mxu0 0
        %4701 = vmatprep.subr.bf16.mxu0 0
        %4702 = vmatpush1.bf16.msra.mxu0 0
        %4703 = vmatprep.subr.bf16.mxu0 0
        %4704 = vmatpush1.bf16.msra.mxu0 0
        %4705 = vmatprep.subr.bf16.mxu0 0
        %4706 = vmatpush1.bf16.msra.mxu0 0
        %4707 = vmatprep.subr.bf16.mxu0 0
        %4708 = vmatpush1.bf16.msra.mxu0 0
        %4709 = vmatprep.subr.bf16.mxu0 0
        %4710 = vmatpush1.bf16.msra.mxu0 0
        %4711 = vmatprep.mubr.bf16.mxu0 0
        %4712 = vmatmul.mubr.bf16.gmra.mrb[0].mxu0 %v1853
        %v4713 = vpop.f32.mrb[0].mxu0
        %v4714 = vadd.f32 %v4653, %v4713
        %v4715 = vpop.f32.mrb[0].mxu0
        %v4716 = vpop.f32.mrb[0].mxu0
        %v4717 = vadd.f32 %v4653, %v4716
        %v4718 = vpop.f32.mrb[0].mxu0
        %4719 = vmatprep.mubr.bf16.mxu0 0
        %4720 = vmatmul.mubr.bf16.gmra.mrb[0].mxu0 %v1856
        %v4721 = vpop.f32.mrb[0].mxu0
        %v4722 = vadd.f32 %v4653, %v4721
        %v4723 = vpop.f32.mrb[0].mxu0
        %v4724 = vpop.f32.mrb[0].mxu0
        %v4725 = vadd.f32 %v4653, %v4724
        %v4726 = vpop.f32.mrb[0].mxu0
        %4727 = vmatprep.mubr.bf16.mxu0 0
        %4728 = vmatmul.mubr.bf16.gmra.mrb[0].mxu0 %v1859
        %v4729 = vpop.f32.mrb[0].mxu0
        %v4730 = vadd.f32 %v4653, %v4729
        %v4731 = vpop.f32.mrb[0].mxu0
        %v4732 = vpop.f32.mrb[0].mxu0
        %v4733 = vadd.f32 %v4653, %v4732
        %v4734 = vpop.f32.mrb[0].mxu0
        %4735 = vmatprep.mubr.bf16.mxu0 0
        %4736 = vmatmul.mubr.bf16.gmra.mrb[0].mxu0 %v1862
        %v4737 = vpop.f32.mrb[0].mxu0
        %v4738 = vadd.f32 %v4653, %v4737
        %v4739 = vpop.f32.mrb[0].mxu0
        %v4740 = vpop.f32.mrb[0].mxu0
        %v4741 = vadd.f32 %v4653, %v4740
        %v4742 = vpop.f32.mrb[0].mxu0
        %4743 = vmatprep.mubr.bf16.mxu0 0
        %4744 = vmatmul.mubr.bf16.gmra.mrb[0].mxu0 %v1865
        %v4745 = vpop.f32.mrb[0].mxu0
        %v4746 = vadd.f32 %v4653, %v4745
        %v4747 = vpop.f32.mrb[0].mxu0
        %v4748 = vpop.f32.mrb[0].mxu0
        %v4749 = vadd.f32 %v4653, %v4748
        %v4750 = vpop.f32.mrb[0].mxu0
        %4751 = vmatprep.mubr.bf16.mxu0 0
        %4752 = vmatmul.mubr.bf16.gmra.mrb[0].mxu0 %v1868
        %v4753 = vpop.f32.mrb[0].mxu0
        %v4754 = vadd.f32 %v4653, %v4753
        %v4755 = vpop.f32.mrb[0].mxu0
        %v4756 = vpop.f32.mrb[0].mxu0
        %v4757 = vadd.f32 %v4653, %v4756
        %v4758 = vpop.f32.mrb[0].mxu0
        %4759 = vdwg.mxu0
        %v4760 = vpack.c.bf16 %v4473, %v4470
        %v4761 = vpack.c.bf16 %v4481, %v4478
        %v4762 = vpack.c.bf16 %v4489, %v4486
        %v4763 = vpack.c.bf16 %v4497, %v4494
        %v4764 = vpack.c.bf16 %v4505, %v4502
        %v4765 = vpack.c.bf16 %v4513, %v4510
        %v4766 = vpack.c.bf16 %v4595, %v4592
        %v4767 = vpack.c.bf16 %v4603, %v4600
        %v4768 = vpack.c.bf16 %v4611, %v4608
        %v4769 = vpack.c.bf16 %v4619, %v4616
        %v4770 = vpack.c.bf16 %v4627, %v4624
        %v4771 = vpack.c.bf16 %v4635, %v4632
        %v4773 = vsel %vm2203, %v4760, 0
        %v4776 = vsel %vm2203, %v4761, 0
        %v4779 = vsel %vm2203, %v4762, 0
        %v4782 = vsel %vm2203, %v4763, 0
        %v4785 = vsel %vm2203, %v4764, 0
        %v4788 = vsel %vm2203, %v4765, 0
        %v4791 = vsel %vm2203, %v4766, 0
        %v4794 = vsel %vm2203, %v4767, 0
        %v4797 = vsel %vm2203, %v4768, 0
        %v4800 = vsel %vm2203, %v4769, 0
        %v4803 = vsel %vm2203, %v4770, 0
        %v4806 = vsel %vm2203, %v4771, 0
        %4808 = vmatprep.subr.bf16.mxu0 0
        %4809 = vmatpush1.bf16.xpose.msra.mxu0 %v4791
        %4810 = vmatprep.subr.bf16.mxu0 0
        %4811 = vmatpush1.bf16.xpose.msra.mxu0 %v4794
        %4812 = vmatprep.subr.bf16.mxu0 0
        %4813 = vmatpush1.bf16.xpose.msra.mxu0 %v4797
        %4814 = vmatprep.subr.bf16.mxu0 0
        %4815 = vmatpush1.bf16.xpose.msra.mxu0 %v4800
        %4816 = vmatprep.subr.bf16.mxu0 0
        %4817 = vmatpush1.bf16.xpose.msra.mxu0 %v4803
        %4818 = vmatprep.subr.bf16.mxu0 0
        %4819 = vmatpush1.bf16.xpose.msra.mxu0 %v4806
        %4820 = vmatprep.subr.bf16.mxu0 0
        %4821 = vmatpush1.bf16.xpose.msra.mxu0 0
        %4822 = vmatprep.subr.bf16.mxu0 0
        %4823 = vmatpush1.bf16.xpose.msra.mxu0 0
        %4824 = vmatprep.subr.bf16.mxu0 0
        %4825 = vmatpush1.bf16.xpose.msra.mxu0 0
        %4826 = vmatprep.subr.bf16.mxu0 0
        %4827 = vmatpush1.bf16.xpose.msra.mxu0 0
        %4828 = vmatprep.subr.bf16.mxu0 0
        %4829 = vmatpush1.bf16.xpose.msra.mxu0 0
        %4830 = vmatprep.subr.bf16.mxu0 0
        %4831 = vmatpush1.bf16.xpose.msra.mxu0 0
        %4832 = vmatprep.subr.bf16.mxu0 0
        %4833 = vmatpush1.bf16.xpose.msra.mxu0 0
        %4834 = vmatprep.subr.bf16.mxu0 0
        %4835 = vmatpush1.bf16.xpose.msra.mxu0 0
        %4836 = vmatprep.subr.bf16.mxu0 0
        %4837 = vmatpush1.bf16.xpose.msra.mxu0 0
        %4838 = vmatprep.subr.bf16.mxu0 0
        %4839 = vmatpush1.bf16.xpose.msra.mxu0 0
        %4840 = vmatprep.mubr.bf16.mxu0 0
        %4841 = vmatmul.mubr.bf16.gmra.mrb[0].mxu0 %v4773
        %v4842 = vpop.f32.mrb[0].mxu0
        %v4843 = vadd.f32 %v1599, %v4842
        %v4844 = vpop.f32.mrb[0].mxu0
        %v4845 = vpop.f32.mrb[0].mxu0
        %v4846 = vadd.f32 %v1600, %v4845
        %v4847 = vpop.f32.mrb[0].mxu0
        %4848 = vmatprep.mubr.bf16.mxu0 0
        %4849 = vmatmul.mubr.bf16.gmra.mrb[0].mxu0 %v4776
        %v4850 = vpop.f32.mrb[0].mxu0
        %v4851 = vadd.f32 %v1601, %v4850
        %v4852 = vpop.f32.mrb[0].mxu0
        %v4853 = vpop.f32.mrb[0].mxu0
        %v4854 = vadd.f32 %v1602, %v4853
        %v4855 = vpop.f32.mrb[0].mxu0
        %4856 = vmatprep.mubr.bf16.mxu0 0
        %4857 = vmatmul.mubr.bf16.gmra.mrb[0].mxu0 %v4779
        %v4858 = vpop.f32.mrb[0].mxu0
        %v4859 = vadd.f32 %v1603, %v4858
        %v4860 = vpop.f32.mrb[0].mxu0
        %v4861 = vpop.f32.mrb[0].mxu0
        %v4862 = vadd.f32 %v1604, %v4861
        %v4863 = vpop.f32.mrb[0].mxu0
        %4864 = vmatprep.mubr.bf16.mxu0 0
        %4865 = vmatmul.mubr.bf16.gmra.mrb[0].mxu0 %v4782
        %v4866 = vpop.f32.mrb[0].mxu0
        %v4867 = vadd.f32 %v1605, %v4866
        %v4868 = vpop.f32.mrb[0].mxu0
        %v4869 = vpop.f32.mrb[0].mxu0
        %v4870 = vadd.f32 %v1606, %v4869
        %v4871 = vpop.f32.mrb[0].mxu0
        %4872 = vmatprep.mubr.bf16.mxu0 0
        %4873 = vmatmul.mubr.bf16.gmra.mrb[0].mxu0 %v4785
        %v4874 = vpop.f32.mrb[0].mxu0
        %v4875 = vadd.f32 %v1607, %v4874
        %v4876 = vpop.f32.mrb[0].mxu0
        %v4877 = vpop.f32.mrb[0].mxu0
        %v4878 = vadd.f32 %v1608, %v4877
        %v4879 = vpop.f32.mrb[0].mxu0
        %4880 = vmatprep.mubr.bf16.mxu0 0
        %4881 = vmatmul.mubr.bf16.gmra.mrb[0].mxu0 %v4788
        %v4882 = vpop.f32.mrb[0].mxu0
        %v4883 = vadd.f32 %v1609, %v4882
        %v4884 = vpop.f32.mrb[0].mxu0
        %v4885 = vpop.f32.mrb[0].mxu0
        %v4886 = vadd.f32 %v1610, %v4885
        %v4887 = vpop.f32.mrb[0].mxu0
        %4888 = vdwg.mxu0
        %v4889 = vsel %vm2321, %v4843, -inf
        %4890 = vmax.xlane.f32.xlu0 %v4889
        %v4891 = vpop.xlane.xlu0 %4890
        %v4892 = vsel %vm2321, %v4846, -inf
        %4893 = vmax.xlane.f32.xlu0 %v4892
        %v4894 = vpop.xlane.xlu0 %4893
        %v4895 = vsel %vm2321, %v4851, -inf
        %4896 = vmax.xlane.f32.xlu0 %v4895
        %v4897 = vpop.xlane.xlu0 %4896
        %v4898 = vsel %vm2321, %v4854, -inf
        %4899 = vmax.xlane.f32.xlu0 %v4898
        %v4900 = vpop.xlane.xlu0 %4899
        %v4901 = vsel %vm2321, %v4859, -inf
        %4902 = vmax.xlane.f32.xlu0 %v4901
        %v4903 = vpop.xlane.xlu0 %4902
        %v4904 = vsel %vm2321, %v4862, -inf
        %4905 = vmax.xlane.f32.xlu0 %v4904
        %v4906 = vpop.xlane.xlu0 %4905
        %v4907 = vsel %vm2321, %v4867, -inf
        %4908 = vmax.xlane.f32.xlu0 %v4907
        %v4909 = vpop.xlane.xlu0 %4908
        %v4910 = vsel %vm2321, %v4870, -inf
        %4911 = vmax.xlane.f32.xlu0 %v4910
        %v4912 = vpop.xlane.xlu0 %4911
        %v4913 = vsel %vm2321, %v4875, -inf
        %4914 = vmax.xlane.f32.xlu0 %v4913
        %v4915 = vpop.xlane.xlu0 %4914
        %v4916 = vsel %vm2321, %v4878, -inf
        %4917 = vmax.xlane.f32.xlu0 %v4916
        %v4918 = vpop.xlane.xlu0 %4917
        %v4919 = vsel %vm2321, %v4883, -inf
        %4920 = vmax.xlane.f32.xlu0 %v4919
        %v4921 = vpop.xlane.xlu0 %4920
        %v4922 = vsel %vm2321, %v4886, -inf
        %4923 = vmax.xlane.f32.xlu0 %v4922
        %v4924 = vpop.xlane.xlu0 %4923
        %v4925 = vsub.f32 %v4843, %v4891
        %v4926 = vsub.f32 %v4846, %v4894
        %v4927 = vsub.f32 %v4851, %v4897
        %v4928 = vsub.f32 %v4854, %v4900
        %v4929 = vsub.f32 %v4859, %v4903
        %v4930 = vsub.f32 %v4862, %v4906
        %v4931 = vsub.f32 %v4867, %v4909
        %v4932 = vsub.f32 %v4870, %v4912
        %v4933 = vsub.f32 %v4875, %v4915
        %v4934 = vsub.f32 %v4878, %v4918
        %v4935 = vsub.f32 %v4883, %v4921
        %v4936 = vsub.f32 %v4886, %v4924
        %v4937 = vmul.f32 %v4925, 1.442695
        %v4938 = vpow.pop %v4937
        %v4939 = vmul.f32 %v4926, 1.442695
        %v4940 = vpow.pop %v4939
        %v4941 = vmul.f32 %v4927, 1.442695
        %v4942 = vpow.pop %v4941
        %v4943 = vmul.f32 %v4928, 1.442695
        %v4944 = vpow.pop %v4943
        %v4945 = vmul.f32 %v4929, 1.442695
        %v4946 = vpow.pop %v4945
        %v4947 = vmul.f32 %v4930, 1.442695
        %v4948 = vpow.pop %v4947
        %v4949 = vmul.f32 %v4931, 1.442695
        %v4950 = vpow.pop %v4949
        %v4951 = vmul.f32 %v4932, 1.442695
        %v4952 = vpow.pop %v4951
        %v4953 = vmul.f32 %v4933, 1.442695
        %v4954 = vpow.pop %v4953
        %v4955 = vmul.f32 %v4934, 1.442695
        %v4956 = vpow.pop %v4955
        %v4957 = vmul.f32 %v4935, 1.442695
        %v4958 = vpow.pop %v4957
        %v4959 = vmul.f32 %v4936, 1.442695
        %v4960 = vpow.pop %v4959
        %v4961 = vsel %vm2321, %v4938, 0.0
        %4962 = vadd.xlane.f32.xlu0 %v4961
        %v4963 = vpop.xlane.xlu0 %4962
        %v4964 = vsel %vm2321, %v4940, 0.0
        %4965 = vadd.xlane.f32.xlu0 %v4964
        %v4966 = vpop.xlane.xlu0 %4965
        %v4967 = vsel %vm2321, %v4942, 0.0
        %4968 = vadd.xlane.f32.xlu0 %v4967
        %v4969 = vpop.xlane.xlu0 %4968
        %v4970 = vsel %vm2321, %v4944, 0.0
        %4971 = vadd.xlane.f32.xlu0 %v4970
        %v4972 = vpop.xlane.xlu0 %4971
        %v4973 = vsel %vm2321, %v4946, 0.0
        %4974 = vadd.xlane.f32.xlu0 %v4973
        %v4975 = vpop.xlane.xlu0 %4974
        %v4976 = vsel %vm2321, %v4948, 0.0
        %4977 = vadd.xlane.f32.xlu0 %v4976
        %v4978 = vpop.xlane.xlu0 %4977
        %v4979 = vsel %vm2321, %v4950, 0.0
        %4980 = vadd.xlane.f32.xlu0 %v4979
        %v4981 = vpop.xlane.xlu0 %4980
        %v4982 = vsel %vm2321, %v4952, 0.0
        %4983 = vadd.xlane.f32.xlu0 %v4982
        %v4984 = vpop.xlane.xlu0 %4983
        %v4985 = vsel %vm2321, %v4954, 0.0
        %4986 = vadd.xlane.f32.xlu0 %v4985
        %v4987 = vpop.xlane.xlu0 %4986
        %v4988 = vsel %vm2321, %v4956, 0.0
        %4989 = vadd.xlane.f32.xlu0 %v4988
        %v4990 = vpop.xlane.xlu0 %4989
        %v4991 = vsel %vm2321, %v4958, 0.0
        %4992 = vadd.xlane.f32.xlu0 %v4991
        %v4993 = vpop.xlane.xlu0 %4992
        %v4994 = vsel %vm2321, %v4960, 0.0
        %4995 = vadd.xlane.f32.xlu0 %v4994
        %v4996 = vpop.xlane.xlu0 %4995
        %v4997 = vrcp.pop %v4963
        %v4998 = vmul.f32 %v4938, %v4997
        %v4999 = vrcp.pop %v4966
        %v5000 = vmul.f32 %v4940, %v4999
        %v5001 = vrcp.pop %v4969
        %v5002 = vmul.f32 %v4942, %v5001
        %v5003 = vrcp.pop %v4972
        %v5004 = vmul.f32 %v4944, %v5003
        %v5005 = vrcp.pop %v4975
        %v5006 = vmul.f32 %v4946, %v5005
        %v5007 = vrcp.pop %v4978
        %v5008 = vmul.f32 %v4948, %v5007
        %v5009 = vrcp.pop %v4981
        %v5010 = vmul.f32 %v4950, %v5009
        %v5011 = vrcp.pop %v4984
        %v5012 = vmul.f32 %v4952, %v5011
        %v5013 = vrcp.pop %v4987
        %v5014 = vmul.f32 %v4954, %v5013
        %v5015 = vrcp.pop %v4990
        %v5016 = vmul.f32 %v4956, %v5015
        %v5017 = vrcp.pop %v4993
        %v5018 = vmul.f32 %v4958, %v5017
        %v5019 = vrcp.pop %v4996
        %v5020 = vmul.f32 %v4960, %v5019
        %v5021 = vpack.c.bf16 %v5000, %v4998
        %v5022 = vpack.c.bf16 %v5004, %v5002
        %v5023 = vpack.c.bf16 %v5008, %v5006
        %v5024 = vpack.c.bf16 %v5012, %v5010
        %v5025 = vpack.c.bf16 %v5016, %v5014
        %v5026 = vpack.c.bf16 %v5020, %v5018
        %v5027 = vpack.c.bf16 %v4717, %v4714
        %v5028 = vpack.c.bf16 %v4725, %v4722
        %v5029 = vpack.c.bf16 %v4733, %v4730
        %v5030 = vpack.c.bf16 %v4741, %v4738
        %v5031 = vpack.c.bf16 %v4749, %v4746
        %v5032 = vpack.c.bf16 %v4757, %v4754
        %v5034 = vsel %vm2321, %v5021, 0
        %v5037 = vsel %vm2321, %v5022, 0
        %v5040 = vsel %vm2321, %v5023, 0
        %v5043 = vsel %vm2321, %v5024, 0
        %v5046 = vsel %vm2321, %v5025, 0
        %v5049 = vsel %vm2321, %v5026, 0
        %5051 = vmatprep.subr.bf16.mxu0 0
        %5052 = vmatpush1.bf16.msra.mxu0 %v5027
        %5053 = vmatprep.subr.bf16.mxu0 0
        %5054 = vmatpush1.bf16.msra.mxu0 %v5028
        %5055 = vmatprep.subr.bf16.mxu0 0
        %5056 = vmatpush1.bf16.msra.mxu0 %v5029
        %5057 = vmatprep.subr.bf16.mxu0 0
        %5058 = vmatpush1.bf16.msra.mxu0 %v5030
        %5059 = vmatprep.subr.bf16.mxu0 0
        %5060 = vmatpush1.bf16.msra.mxu0 %v5031
        %5061 = vmatprep.subr.bf16.mxu0 0
        %5062 = vmatpush1.bf16.msra.mxu0 %v5032
        %5063 = vmatprep.subr.bf16.mxu0 0
        %5064 = vmatpush1.bf16.msra.mxu0 0
        %5065 = vmatprep.subr.bf16.mxu0 0
        %5066 = vmatpush1.bf16.msra.mxu0 0
        %5067 = vmatprep.subr.bf16.mxu0 0
        %5068 = vmatpush1.bf16.msra.mxu0 0
        %5069 = vmatprep.subr.bf16.mxu0 0
        %5070 = vmatpush1.bf16.msra.mxu0 0
        %5071 = vmatprep.subr.bf16.mxu0 0
        %5072 = vmatpush1.bf16.msra.mxu0 0
        %5073 = vmatprep.subr.bf16.mxu0 0
        %5074 = vmatpush1.bf16.msra.mxu0 0
        %5075 = vmatprep.subr.bf16.mxu0 0
        %5076 = vmatpush1.bf16.msra.mxu0 0
        %5077 = vmatprep.subr.bf16.mxu0 0
        %5078 = vmatpush1.bf16.msra.mxu0 0
        %5079 = vmatprep.subr.bf16.mxu0 0
        %5080 = vmatpush1.bf16.msra.mxu0 0
        %5081 = vmatprep.subr.bf16.mxu0 0
        %5082 = vmatpush1.bf16.msra.mxu0 0
        %5083 = vmatprep.mubr.bf16.mxu0 0
        %5084 = vmatmul.mubr.bf16.gmra.mrb[0].mxu0 %v5034
        %v5085 = vpop.f32.mrb[0].mxu0
        %v5086 = vadd.f32 0.0, %v5085
        %v5087 = vpop.f32.mrb[0].mxu0
        %v5088 = vpop.f32.mrb[0].mxu0
        %v5089 = vadd.f32 0.0, %v5088
        %v5090 = vpop.f32.mrb[0].mxu0
        %5091 = vmatprep.mubr.bf16.mxu0 0
        %5092 = vmatmul.mubr.bf16.gmra.mrb[0].mxu0 %v5037
        %v5093 = vpop.f32.mrb[0].mxu0
        %v5094 = vadd.f32 0.0, %v5093
        %v5095 = vpop.f32.mrb[0].mxu0
        %v5096 = vpop.f32.mrb[0].mxu0
        %v5097 = vadd.f32 0.0, %v5096
        %v5098 = vpop.f32.mrb[0].mxu0
        %5099 = vmatprep.mubr.bf16.mxu0 0
        %5100 = vmatmul.mubr.bf16.gmra.mrb[0].mxu0 %v5040
        %v5101 = vpop.f32.mrb[0].mxu0
        %v5102 = vadd.f32 0.0, %v5101
        %v5103 = vpop.f32.mrb[0].mxu0
        %v5104 = vpop.f32.mrb[0].mxu0
        %v5105 = vadd.f32 0.0, %v5104
        %v5106 = vpop.f32.mrb[0].mxu0
        %5107 = vmatprep.mubr.bf16.mxu0 0
        %5108 = vmatmul.mubr.bf16.gmra.mrb[0].mxu0 %v5043
        %v5109 = vpop.f32.mrb[0].mxu0
        %v5110 = vadd.f32 0.0, %v5109
        %v5111 = vpop.f32.mrb[0].mxu0
        %v5112 = vpop.f32.mrb[0].mxu0
        %v5113 = vadd.f32 0.0, %v5112
        %v5114 = vpop.f32.mrb[0].mxu0
        %5115 = vmatprep.mubr.bf16.mxu0 0
        %5116 = vmatmul.mubr.bf16.gmra.mrb[0].mxu0 %v5046
        %v5117 = vpop.f32.mrb[0].mxu0
        %v5118 = vadd.f32 0.0, %v5117
        %v5119 = vpop.f32.mrb[0].mxu0
        %v5120 = vpop.f32.mrb[0].mxu0
        %v5121 = vadd.f32 0.0, %v5120
        %v5122 = vpop.f32.mrb[0].mxu0
        %5123 = vmatprep.mubr.bf16.mxu0 0
        %5124 = vmatmul.mubr.bf16.gmra.mrb[0].mxu0 %v5049
        %v5125 = vpop.f32.mrb[0].mxu0
        %v5126 = vadd.f32 0.0, %v5125
        %v5127 = vpop.f32.mrb[0].mxu0
        %v5128 = vpop.f32.mrb[0].mxu0
        %v5129 = vadd.f32 0.0, %v5128
        %v5130 = vpop.f32.mrb[0].mxu0
        %5131 = vdwg.mxu0
        %v5132 = vpack.c.bf16 %v5089, %v5086
        %v5133 = vpack.c.bf16 %v5097, %v5094
        %v5134 = vpack.c.bf16 %v5105, %v5102
        %v5135 = vpack.c.bf16 %v5113, %v5110
        %v5136 = vpack.c.bf16 %v5121, %v5118
        %v5137 = vpack.c.bf16 %v5129, %v5126
        %s5138 = scalar_lea.vmem %s1074, 24
        %v5139 = vld [vmem:[%s5138] sm:$0xf]
        %v5140 = vld [vmem:[%s5138 + $0x4] sm:$0xf]
        %v5143 = vunpack.c.l.b16 %v5139
        %v5144 = vunpack.c.l.b16 %v5140
        %v5145 = vpack.c.b16 %v5144, %v5143
        %v5148 = vsel %vm2203, %v5132, 0
        %v5151 = vsel %vm2203, %v5133, 0
        %v5154 = vsel %vm2203, %v5134, 0
        %v5157 = vsel %vm2203, %v5135, 0
        %v5160 = vsel %vm2203, %v5136, 0
        %v5163 = vsel %vm2203, %v5137, 0
        %5165 = vmatprep.subr.bf16.mxu0 0
        %5166 = vmatpush1.bf16.msra.mxu0 %v5145
        %5167 = vmatprep.subr.bf16.mxu0 0
        %5168 = vmatpush1.bf16.msra.mxu0 0
        %5169 = vmatprep.subr.bf16.mxu0 0
        %5170 = vmatpush1.bf16.msra.mxu0 0
        %5171 = vmatprep.subr.bf16.mxu0 0
        %5172 = vmatpush1.bf16.msra.mxu0 0
        %5173 = vmatprep.subr.bf16.mxu0 0
        %5174 = vmatpush1.bf16.msra.mxu0 0
        %5175 = vmatprep.subr.bf16.mxu0 0
        %5176 = vmatpush1.bf16.msra.mxu0 0
        %5177 = vmatprep.subr.bf16.mxu0 0
        %5178 = vmatpush1.bf16.msra.mxu0 0
        %5179 = vmatprep.subr.bf16.mxu0 0
        %5180 = vmatpush1.bf16.msra.mxu0 0
        %5181 = vmatprep.subr.bf16.mxu0 0
        %5182 = vmatpush1.bf16.msra.mxu0 0
        %5183 = vmatprep.subr.bf16.mxu0 0
        %5184 = vmatpush1.bf16.msra.mxu0 0
        %5185 = vmatprep.subr.bf16.mxu0 0
        %5186 = vmatpush1.bf16.msra.mxu0 0
        %5187 = vmatprep.subr.bf16.mxu0 0
        %5188 = vmatpush1.bf16.msra.mxu0 0
        %5189 = vmatprep.subr.bf16.mxu0 0
        %5190 = vmatpush1.bf16.msra.mxu0 0
        %5191 = vmatprep.subr.bf16.mxu0 0
        %5192 = vmatpush1.bf16.msra.mxu0 0
        %5193 = vmatprep.subr.bf16.mxu0 0
        %5194 = vmatpush1.bf16.msra.mxu0 0
        %5195 = vmatprep.subr.bf16.mxu0 0
        %5196 = vmatpush1.bf16.msra.mxu0 0
        %5197 = vmatprep.mubr.bf16.mxu0 0
        %5198 = vmatmul.mubr.bf16.gmra.mrb[0].mxu0 %v5148
        %v5199 = vpop.f32.mrb[0].mxu0
        %v5200 = vadd.f32 0.0, %v5199
        %v5201 = vpop.f32.mrb[0].mxu0
        %v5202 = vpop.f32.mrb[0].mxu0
        %v5203 = vadd.f32 0.0, %v5202
        %v5204 = vpop.f32.mrb[0].mxu0
        %5205 = vmatprep.mubr.bf16.mxu0 0
        %5206 = vmatmul.mubr.bf16.gmra.mrb[0].mxu0 %v5151
        %v5207 = vpop.f32.mrb[0].mxu0
        %v5208 = vadd.f32 0.0, %v5207
        %v5209 = vpop.f32.mrb[0].mxu0
        %v5210 = vpop.f32.mrb[0].mxu0
        %v5211 = vadd.f32 0.0, %v5210
        %v5212 = vpop.f32.mrb[0].mxu0
        %5213 = vmatprep.mubr.bf16.mxu0 0
        %5214 = vmatmul.mubr.bf16.gmra.mrb[0].mxu0 %v5154
        %v5215 = vpop.f32.mrb[0].mxu0
        %v5216 = vadd.f32 0.0, %v5215
        %v5217 = vpop.f32.mrb[0].mxu0
        %v5218 = vpop.f32.mrb[0].mxu0
        %v5219 = vadd.f32 0.0, %v5218
        %v5220 = vpop.f32.mrb[0].mxu0
        %5221 = vmatprep.mubr.bf16.mxu0 0
        %5222 = vmatmul.mubr.bf16.gmra.mrb[0].mxu0 %v5157
        %v5223 = vpop.f32.mrb[0].mxu0
        %v5224 = vadd.f32 0.0, %v5223
        %v5225 = vpop.f32.mrb[0].mxu0
        %v5226 = vpop.f32.mrb[0].mxu0
        %v5227 = vadd.f32 0.0, %v5226
        %v5228 = vpop.f32.mrb[0].mxu0
        %5229 = vmatprep.mubr.bf16.mxu0 0
        %5230 = vmatmul.mubr.bf16.gmra.mrb[0].mxu0 %v5160
        %v5231 = vpop.f32.mrb[0].mxu0
        %v5232 = vadd.f32 0.0, %v5231
        %v5233 = vpop.f32.mrb[0].mxu0
        %v5234 = vpop.f32.mrb[0].mxu0
        %v5235 = vadd.f32 0.0, %v5234
        %v5236 = vpop.f32.mrb[0].mxu0
        %5237 = vmatprep.mubr.bf16.mxu0 0
        %5238 = vmatmul.mubr.bf16.gmra.mrb[0].mxu0 %v5163
        %v5239 = vpop.f32.mrb[0].mxu0
        %v5240 = vadd.f32 0.0, %v5239
        %v5241 = vpop.f32.mrb[0].mxu0
        %v5242 = vpop.f32.mrb[0].mxu0
        %v5243 = vadd.f32 0.0, %v5242
        %v5244 = vpop.f32.mrb[0].mxu0
        %5245 = vdwg.mxu0
        %v5246 = vadd.f32 %v4382, %v5200
        %v5247 = vadd.f32 %v4383, %v5203
        %v5248 = vadd.f32 %v4384, %v5208
        %v5249 = vadd.f32 %v4385, %v5211
        %v5250 = vadd.f32 %v4386, %v5216
        %v5251 = vadd.f32 %v4387, %v5219
        %v5252 = vadd.f32 %v4388, %v5224
        %v5253 = vadd.f32 %v4389, %v5227
        %v5254 = vadd.f32 %v4390, %v5232
        %v5255 = vadd.f32 %v4391, %v5235
        %v5256 = vadd.f32 %v4392, %v5240
        %v5257 = vadd.f32 %v4393, %v5243
        %v5258 = vadd.f32 %v1587, %v5246
        %v5259 = vadd.f32 %v1588, %v5247
        %v5260 = vadd.f32 %v1589, %v5248
        %v5261 = vadd.f32 %v1590, %v5249
        %v5262 = vadd.f32 %v1591, %v5250
        %v5263 = vadd.f32 %v1592, %v5251
        %v5264 = vadd.f32 %v1593, %v5252
        %v5265 = vadd.f32 %v1594, %v5253
        %v5266 = vadd.f32 %v1595, %v5254
        %v5267 = vadd.f32 %v1596, %v5255
        %v5268 = vadd.f32 %v1597, %v5256
        %v5269 = vadd.f32 %v1598, %v5257
        %v5270 = vld [vmem:[%s1077] sm:$0x1]
        %v5272 = vlaneseq
        %v5273 = vshrl.u32 %v5272, 7
        %v5274 = vsub.s32 0, %v5273
        %v5275 = vrot.slane %v5270, %v5274
        %v5277 = vadd.f32 %v5258, %v5275
        %v5278 = vadd.f32 %v5259, %v5275
        %v5279 = vadd.f32 %v5260, %v5275
        %v5280 = vadd.f32 %v5261, %v5275
        %v5281 = vadd.f32 %v5262, %v5275
        %v5282 = vadd.f32 %v5263, %v5275
        %v5283 = vadd.f32 %v5264, %v5275
        %v5284 = vadd.f32 %v5265, %v5275
        %v5285 = vadd.f32 %v5266, %v5275
        %v5286 = vadd.f32 %v5267, %v5275
        %v5287 = vadd.f32 %v5268, %v5275
        %v5288 = vadd.f32 %v5269, %v5275
        %v5289 = vld [vmem:[%s1080] sm:$0x1]
        %v5290 = vld [vmem:[%s1083] sm:$0x1]
        %v5291 = vsel %vm1613, %v5277, 0.0
        %5292 = vadd.xlane.f32.xlu0 %v5291
        %v5293 = vpop.xlane.xlu0 %5292
        %v5294 = vsel %vm1613, %v5278, 0.0
        %5295 = vadd.xlane.f32.xlu0 %v5294
        %v5296 = vpop.xlane.xlu0 %5295
        %v5297 = vsel %vm1613, %v5279, 0.0
        %5298 = vadd.xlane.f32.xlu0 %v5297
        %v5299 = vpop.xlane.xlu0 %5298
        %v5300 = vsel %vm1613, %v5280, 0.0
        %5301 = vadd.xlane.f32.xlu0 %v5300
        %v5302 = vpop.xlane.xlu0 %5301
        %v5303 = vsel %vm1613, %v5281, 0.0
        %5304 = vadd.xlane.f32.xlu0 %v5303
        %v5305 = vpop.xlane.xlu0 %5304
        %v5306 = vsel %vm1613, %v5282, 0.0
        %5307 = vadd.xlane.f32.xlu0 %v5306
        %v5308 = vpop.xlane.xlu0 %5307
        %v5309 = vsel %vm1613, %v5283, 0.0
        %5310 = vadd.xlane.f32.xlu0 %v5309
        %v5311 = vpop.xlane.xlu0 %5310
        %v5312 = vsel %vm1613, %v5284, 0.0
        %5313 = vadd.xlane.f32.xlu0 %v5312
        %v5314 = vpop.xlane.xlu0 %5313
        %v5315 = vsel %vm1613, %v5285, 0.0
        %5316 = vadd.xlane.f32.xlu0 %v5315
        %v5317 = vpop.xlane.xlu0 %5316
        %v5318 = vsel %vm1613, %v5286, 0.0
        %5319 = vadd.xlane.f32.xlu0 %v5318
        %v5320 = vpop.xlane.xlu0 %5319
        %v5321 = vsel %vm1613, %v5287, 0.0
        %5322 = vadd.xlane.f32.xlu0 %v5321
        %v5323 = vpop.xlane.xlu0 %5322
        %v5324 = vsel %vm1613, %v5288, 0.0
        %5325 = vadd.xlane.f32.xlu0 %v5324
        %v5326 = vpop.xlane.xlu0 %5325
        %v5327 = vmul.f32 %v5293, %v1650
        %v5328 = vmul.f32 %v5296, %v1650
        %v5329 = vmul.f32 %v5299, %v1650
        %v5330 = vmul.f32 %v5302, %v1650
        %v5331 = vmul.f32 %v5305, %v1650
        %v5332 = vmul.f32 %v5308, %v1650
        %v5333 = vmul.f32 %v5311, %v1650
        %v5334 = vmul.f32 %v5314, %v1650
        %v5335 = vmul.f32 %v5317, %v1650
        %v5336 = vmul.f32 %v5320, %v1650
        %v5337 = vmul.f32 %v5323, %v1650
        %v5338 = vmul.f32 %v5326, %v1650
        %v5339 = vsub.f32 %v5277, %v5327
        %v5340 = vsub.f32 %v5278, %v5328
        %v5341 = vsub.f32 %v5279, %v5329
        %v5342 = vsub.f32 %v5280, %v5330
        %v5343 = vsub.f32 %v5281, %v5331
        %v5344 = vsub.f32 %v5282, %v5332
        %v5345 = vsub.f32 %v5283, %v5333
        %v5346 = vsub.f32 %v5284, %v5334
        %v5347 = vsub.f32 %v5285, %v5335
        %v5348 = vsub.f32 %v5286, %v5336
        %v5349 = vsub.f32 %v5287, %v5337
        %v5350 = vsub.f32 %v5288, %v5338
        %v5351 = vmul.f32 %v5339, %v5339
        %v5352 = vmul.f32 %v5340, %v5340
        %v5353 = vmul.f32 %v5341, %v5341
        %v5354 = vmul.f32 %v5342, %v5342
        %v5355 = vmul.f32 %v5343, %v5343
        %v5356 = vmul.f32 %v5344, %v5344
        %v5357 = vmul.f32 %v5345, %v5345
        %v5358 = vmul.f32 %v5346, %v5346
        %v5359 = vmul.f32 %v5347, %v5347
        %v5360 = vmul.f32 %v5348, %v5348
        %v5361 = vmul.f32 %v5349, %v5349
        %v5362 = vmul.f32 %v5350, %v5350
        %v5363 = vsel %vm1613, %v5351, 0.0
        %5364 = vadd.xlane.f32.xlu0 %v5363
        %v5365 = vpop.xlane.xlu0 %5364
        %v5366 = vsel %vm1613, %v5352, 0.0
        %5367 = vadd.xlane.f32.xlu0 %v5366
        %v5368 = vpop.xlane.xlu0 %5367
        %v5369 = vsel %vm1613, %v5353, 0.0
        %5370 = vadd.xlane.f32.xlu0 %v5369
        %v5371 = vpop.xlane.xlu0 %5370
        %v5372 = vsel %vm1613, %v5354, 0.0
        %5373 = vadd.xlane.f32.xlu0 %v5372
        %v5374 = vpop.xlane.xlu0 %5373
        %v5375 = vsel %vm1613, %v5355, 0.0
        %5376 = vadd.xlane.f32.xlu0 %v5375
        %v5377 = vpop.xlane.xlu0 %5376
        %v5378 = vsel %vm1613, %v5356, 0.0
        %5379 = vadd.xlane.f32.xlu0 %v5378
        %v5380 = vpop.xlane.xlu0 %5379
        %v5381 = vsel %vm1613, %v5357, 0.0
        %5382 = vadd.xlane.f32.xlu0 %v5381
        %v5383 = vpop.xlane.xlu0 %5382
        %v5384 = vsel %vm1613, %v5358, 0.0
        %5385 = vadd.xlane.f32.xlu0 %v5384
        %v5386 = vpop.xlane.xlu0 %5385
        %v5387 = vsel %vm1613, %v5359, 0.0
        %5388 = vadd.xlane.f32.xlu0 %v5387
        %v5389 = vpop.xlane.xlu0 %5388
        %v5390 = vsel %vm1613, %v5360, 0.0
        %5391 = vadd.xlane.f32.xlu0 %v5390
        %v5392 = vpop.xlane.xlu0 %5391
        %v5393 = vsel %vm1613, %v5361, 0.0
        %5394 = vadd.xlane.f32.xlu0 %v5393
        %v5395 = vpop.xlane.xlu0 %5394
        %v5396 = vsel %vm1613, %v5362, 0.0
        %5397 = vadd.xlane.f32.xlu0 %v5396
        %v5398 = vpop.xlane.xlu0 %5397
        %v5399 = vmul.f32 %v5365, %v1650
        %v5400 = vmul.f32 %v5368, %v1650
        %v5401 = vmul.f32 %v5371, %v1650
        %v5402 = vmul.f32 %v5374, %v1650
        %v5403 = vmul.f32 %v5377, %v1650
        %v5404 = vmul.f32 %v5380, %v1650
        %v5405 = vmul.f32 %v5383, %v1650
        %v5406 = vmul.f32 %v5386, %v1650
        %v5407 = vmul.f32 %v5389, %v1650
        %v5408 = vmul.f32 %v5392, %v1650
        %v5409 = vmul.f32 %v5395, %v1650
        %v5410 = vmul.f32 %v5398, %v1650
        %v5411 = vadd.f32 %v5399, 1e-05
        %v5412 = vadd.f32 %v5400, 1e-05
        %v5413 = vadd.f32 %v5401, 1e-05
        %v5414 = vadd.f32 %v5402, 1e-05
        %v5415 = vadd.f32 %v5403, 1e-05
        %v5416 = vadd.f32 %v5404, 1e-05
        %v5417 = vadd.f32 %v5405, 1e-05
        %v5418 = vadd.f32 %v5406, 1e-05
        %v5419 = vadd.f32 %v5407, 1e-05
        %v5420 = vadd.f32 %v5408, 1e-05
        %v5421 = vadd.f32 %v5409, 1e-05
        %v5422 = vadd.f32 %v5410, 1e-05
        %v5423 = vrsqrt.pop %v5411
        %v5424 = vrsqrt.pop %v5412
        %v5425 = vrsqrt.pop %v5413
        %v5426 = vrsqrt.pop %v5414
        %v5427 = vrsqrt.pop %v5415
        %v5428 = vrsqrt.pop %v5416
        %v5429 = vrsqrt.pop %v5417
        %v5430 = vrsqrt.pop %v5418
        %v5431 = vrsqrt.pop %v5419
        %v5432 = vrsqrt.pop %v5420
        %v5433 = vrsqrt.pop %v5421
        %v5434 = vrsqrt.pop %v5422
        %v5435 = vmul.f32 %v5339, %v5423
        %v5436 = vmul.f32 %v5340, %v5424
        %v5437 = vmul.f32 %v5341, %v5425
        %v5438 = vmul.f32 %v5342, %v5426
        %v5439 = vmul.f32 %v5343, %v5427
        %v5440 = vmul.f32 %v5344, %v5428
        %v5441 = vmul.f32 %v5345, %v5429
        %v5442 = vmul.f32 %v5346, %v5430
        %v5443 = vmul.f32 %v5347, %v5431
        %v5444 = vmul.f32 %v5348, %v5432
        %v5445 = vmul.f32 %v5349, %v5433
        %v5446 = vmul.f32 %v5350, %v5434
        %v5448 = vlaneseq
        %v5449 = vshrl.u32 %v5448, 7
        %v5450 = vsub.s32 0, %v5449
        %v5451 = vrot.slane %v5289, %v5450
        %v5453 = vmul.f32 %v5435, %v5451
        %v5454 = vmul.f32 %v5436, %v5451
        %v5455 = vmul.f32 %v5437, %v5451
        %v5456 = vmul.f32 %v5438, %v5451
        %v5457 = vmul.f32 %v5439, %v5451
        %v5458 = vmul.f32 %v5440, %v5451
        %v5459 = vmul.f32 %v5441, %v5451
        %v5460 = vmul.f32 %v5442, %v5451
        %v5461 = vmul.f32 %v5443, %v5451
        %v5462 = vmul.f32 %v5444, %v5451
        %v5463 = vmul.f32 %v5445, %v5451
        %v5464 = vmul.f32 %v5446, %v5451
        %v5466 = vlaneseq
        %v5467 = vshrl.u32 %v5466, 7
        %v5468 = vsub.s32 0, %v5467
        %v5469 = vrot.slane %v5290, %v5468
        %v5471 = vadd.f32 %v5453, %v5469
        %v5472 = vadd.f32 %v5454, %v5469
        %v5473 = vadd.f32 %v5455, %v5469
        %v5474 = vadd.f32 %v5456, %v5469
        %v5475 = vadd.f32 %v5457, %v5469
        %v5476 = vadd.f32 %v5458, %v5469
        %v5477 = vadd.f32 %v5459, %v5469
        %v5478 = vadd.f32 %v5460, %v5469
        %v5479 = vadd.f32 %v5461, %v5469
        %v5480 = vadd.f32 %v5462, %v5469
        %v5481 = vadd.f32 %v5463, %v5469
        %v5482 = vadd.f32 %v5464, %v5469
        %v5483 = vpack.c.bf16 %v5472, %v5471
        %v5484 = vpack.c.bf16 %v5474, %v5473
        %v5485 = vpack.c.bf16 %v5476, %v5475
        %v5486 = vpack.c.bf16 %v5478, %v5477
        %v5487 = vpack.c.bf16 %v5480, %v5479
        %v5488 = vpack.c.bf16 %v5482, %v5481
        %v5489 = vld [vmem:[%s1088] sm:$0xff]
        %v5490 = vld [vmem:[%s1088 + $0x8] sm:$0xff]
        %v5491 = vld [vmem:[%s1088 + $0x10] sm:$0xff]
        %v5492 = vld [vmem:[%s1088 + $0x18] sm:$0xff]
        %v5493 = vld [vmem:[%s1088 + $0x20] sm:$0xff]
        %v5494 = vld [vmem:[%s1088 + $0x28] sm:$0xff]
        %v5495 = vld [vmem:[%s1088 + $0x30] sm:$0xff]
        %v5496 = vld [vmem:[%s1088 + $0x38] sm:$0xff]
        %v5497 = vld [vmem:[%s1092] sm:$0x3]
        %v5499 = vlaneseq
        %v5500 = vshrl.u32 %v5499, 7
        %v5501 = vsub.s32 0, %v5500
        %v5502 = vrot.slane %v5497, %v5501
        %v5503 = vlaneseq
        %v5504 = vshrl.u32 %v5503, 7
        %v5505 = vsub.s32 1, %v5504
        %v5506 = vrot.slane %v5497, %v5505
        %v5517 = vunpack.c.l.b16 %v5489
        %v5518 = vunpack.c.h.b16 %v5489
        %v5519 = vunpack.c.l.b16 %v5490
        %v5520 = vunpack.c.h.b16 %v5490
        %v5521 = vunpack.c.l.b16 %v5491
        %v5522 = vunpack.c.h.b16 %v5491
        %v5523 = vunpack.c.l.b16 %v5492
        %v5524 = vunpack.c.h.b16 %v5492
        %v5525 = vunpack.c.l.b16 %v5493
        %v5526 = vunpack.c.h.b16 %v5493
        %v5527 = vunpack.c.l.b16 %v5494
        %v5528 = vunpack.c.h.b16 %v5494
        %v5529 = vunpack.c.l.b16 %v5495
        %v5530 = vunpack.c.h.b16 %v5495
        %v5531 = vunpack.c.l.b16 %v5496
        %v5532 = vunpack.c.h.b16 %v5496
        %v5533 = vpack.c.b16 %v5519, %v5517
        %v5534 = vpack.c.b16 %v5520, %v5518
        %v5535 = vpack.c.b16 %v5523, %v5521
        %v5536 = vpack.c.b16 %v5524, %v5522
        %v5537 = vpack.c.b16 %v5527, %v5525
        %v5538 = vpack.c.b16 %v5528, %v5526
        %v5539 = vpack.c.b16 %v5531, %v5529
        %v5540 = vpack.c.b16 %v5532, %v5530
        %v5550 = vsel %vm1613, %v5483, 0
        %v5553 = vsel %vm1613, %v5484, 0
        %v5556 = vsel %vm1613, %v5485, 0
        %v5559 = vsel %vm1613, %v5486, 0
        %v5562 = vsel %vm1613, %v5487, 0
        %v5565 = vsel %vm1613, %v5488, 0
        %5567 = vmatprep.subr.bf16.mxu0 %v5534
        %5568 = vmatpush1.bf16.msra.mxu0 %v5533
        %5569 = vmatprep.subr.bf16.mxu0 %v5536
        %5570 = vmatpush1.bf16.msra.mxu0 %v5535
        %5571 = vmatprep.subr.bf16.mxu0 %v5538
        %5572 = vmatpush1.bf16.msra.mxu0 %v5537
        %5573 = vmatprep.subr.bf16.mxu0 %v5540
        %5574 = vmatpush1.bf16.msra.mxu0 %v5539
        %5575 = vmatprep.subr.bf16.mxu0 0
        %5576 = vmatpush1.bf16.msra.mxu0 0
        %5577 = vmatprep.subr.bf16.mxu0 0
        %5578 = vmatpush1.bf16.msra.mxu0 0
        %5579 = vmatprep.subr.bf16.mxu0 0
        %5580 = vmatpush1.bf16.msra.mxu0 0
        %5581 = vmatprep.subr.bf16.mxu0 0
        %5582 = vmatpush1.bf16.msra.mxu0 0
        %5583 = vmatprep.subr.bf16.mxu0 0
        %5584 = vmatpush1.bf16.msra.mxu0 0
        %5585 = vmatprep.subr.bf16.mxu0 0
        %5586 = vmatpush1.bf16.msra.mxu0 0
        %5587 = vmatprep.subr.bf16.mxu0 0
        %5588 = vmatpush1.bf16.msra.mxu0 0
        %5589 = vmatprep.subr.bf16.mxu0 0
        %5590 = vmatpush1.bf16.msra.mxu0 0
        %5591 = vmatprep.subr.bf16.mxu0 0
        %5592 = vmatpush1.bf16.msra.mxu0 0
        %5593 = vmatprep.subr.bf16.mxu0 0
        %5594 = vmatpush1.bf16.msra.mxu0 0
        %5595 = vmatprep.subr.bf16.mxu0 0
        %5596 = vmatpush1.bf16.msra.mxu0 0
        %5597 = vmatprep.subr.bf16.mxu0 0
        %5598 = vmatpush1.bf16.msra.mxu0 0
        %5599 = vmatprep.mubr.bf16.mxu0 0
        %5600 = vmatmul.mubr.bf16.gmra.mrb[0].mxu0 %v5550
        %v5601 = vpop.f32.mrb[0].mxu0
        %v5602 = vadd.f32 %v5502, %v5601
        %v5603 = vpop.f32.mrb[0].mxu0
        %v5604 = vadd.f32 %v5506, %v5603
        %v5605 = vpop.f32.mrb[0].mxu0
        %v5606 = vadd.f32 %v5502, %v5605
        %v5607 = vpop.f32.mrb[0].mxu0
        %v5608 = vadd.f32 %v5506, %v5607
        %5609 = vmatprep.mubr.bf16.mxu0 0
        %5610 = vmatmul.mubr.bf16.gmra.mrb[0].mxu0 %v5553
        %v5611 = vpop.f32.mrb[0].mxu0
        %v5612 = vadd.f32 %v5502, %v5611
        %v5613 = vpop.f32.mrb[0].mxu0
        %v5614 = vadd.f32 %v5506, %v5613
        %v5615 = vpop.f32.mrb[0].mxu0
        %v5616 = vadd.f32 %v5502, %v5615
        %v5617 = vpop.f32.mrb[0].mxu0
        %v5618 = vadd.f32 %v5506, %v5617
        %5619 = vmatprep.mubr.bf16.mxu0 0
        %5620 = vmatmul.mubr.bf16.gmra.mrb[0].mxu0 %v5556
        %v5621 = vpop.f32.mrb[0].mxu0
        %v5622 = vadd.f32 %v5502, %v5621
        %v5623 = vpop.f32.mrb[0].mxu0
        %v5624 = vadd.f32 %v5506, %v5623
        %v5625 = vpop.f32.mrb[0].mxu0
        %v5626 = vadd.f32 %v5502, %v5625
        %v5627 = vpop.f32.mrb[0].mxu0
        %v5628 = vadd.f32 %v5506, %v5627
        %5629 = vmatprep.mubr.bf16.mxu0 0
        %5630 = vmatmul.mubr.bf16.gmra.mrb[0].mxu0 %v5559
        %v5631 = vpop.f32.mrb[0].mxu0
        %v5632 = vadd.f32 %v5502, %v5631
        %v5633 = vpop.f32.mrb[0].mxu0
        %v5634 = vadd.f32 %v5506, %v5633
        %v5635 = vpop.f32.mrb[0].mxu0
        %v5636 = vadd.f32 %v5502, %v5635
        %v5637 = vpop.f32.mrb[0].mxu0
        %v5638 = vadd.f32 %v5506, %v5637
        %5639 = vmatprep.mubr.bf16.mxu0 0
        %5640 = vmatmul.mubr.bf16.gmra.mrb[0].mxu0 %v5562
        %v5641 = vpop.f32.mrb[0].mxu0
        %v5642 = vadd.f32 %v5502, %v5641
        %v5643 = vpop.f32.mrb[0].mxu0
        %v5644 = vadd.f32 %v5506, %v5643
        %v5645 = vpop.f32.mrb[0].mxu0
        %v5646 = vadd.f32 %v5502, %v5645
        %v5647 = vpop.f32.mrb[0].mxu0
        %v5648 = vadd.f32 %v5506, %v5647
        %5649 = vmatprep.mubr.bf16.mxu0 0
        %5650 = vmatmul.mubr.bf16.gmra.mrb[0].mxu0 %v5565
        %v5651 = vpop.f32.mrb[0].mxu0
        %v5652 = vadd.f32 %v5502, %v5651
        %v5653 = vpop.f32.mrb[0].mxu0
        %v5654 = vadd.f32 %v5506, %v5653
        %v5655 = vpop.f32.mrb[0].mxu0
        %v5656 = vadd.f32 %v5502, %v5655
        %v5657 = vpop.f32.mrb[0].mxu0
        %v5658 = vadd.f32 %v5506, %v5657
        %5659 = vdwg.mxu0
        %v5660 = vmul.f32 %v5602, 1.702
        %v5661 = vmul.f32 %v5604, 1.702
        %v5662 = vmul.f32 %v5606, 1.702
        %v5663 = vmul.f32 %v5608, 1.702
        %v5664 = vmul.f32 %v5612, 1.702
        %v5665 = vmul.f32 %v5614, 1.702
        %v5666 = vmul.f32 %v5616, 1.702
        %v5667 = vmul.f32 %v5618, 1.702
        %v5668 = vmul.f32 %v5622, 1.702
        %v5669 = vmul.f32 %v5624, 1.702
        %v5670 = vmul.f32 %v5626, 1.702
        %v5671 = vmul.f32 %v5628, 1.702
        %v5672 = vmul.f32 %v5632, 1.702
        %v5673 = vmul.f32 %v5634, 1.702
        %v5674 = vmul.f32 %v5636, 1.702
        %v5675 = vmul.f32 %v5638, 1.702
        %v5676 = vmul.f32 %v5642, 1.702
        %v5677 = vmul.f32 %v5644, 1.702
        %v5678 = vmul.f32 %v5646, 1.702
        %v5679 = vmul.f32 %v5648, 1.702
        %v5680 = vmul.f32 %v5652, 1.702
        %v5681 = vmul.f32 %v5654, 1.702
        %v5682 = vmul.f32 %v5656, 1.702
        %v5683 = vmul.f32 %v5658, 1.702
        %v5684 = vxor.u32 %v5660, 2147483648
        %v5685 = vxor.u32 %v5661, 2147483648
        %v5686 = vxor.u32 %v5662, 2147483648
        %v5687 = vxor.u32 %v5663, 2147483648
        %v5688 = vxor.u32 %v5664, 2147483648
        %v5689 = vxor.u32 %v5665, 2147483648
        %v5690 = vxor.u32 %v5666, 2147483648
        %v5691 = vxor.u32 %v5667, 2147483648
        %v5692 = vxor.u32 %v5668, 2147483648
        %v5693 = vxor.u32 %v5669, 2147483648
        %v5694 = vxor.u32 %v5670, 2147483648
        %v5695 = vxor.u32 %v5671, 2147483648
        %v5696 = vxor.u32 %v5672, 2147483648
        %v5697 = vxor.u32 %v5673, 2147483648
        %v5698 = vxor.u32 %v5674, 2147483648
        %v5699 = vxor.u32 %v5675, 2147483648
        %v5700 = vxor.u32 %v5676, 2147483648
        %v5701 = vxor.u32 %v5677, 2147483648
        %v5702 = vxor.u32 %v5678, 2147483648
        %v5703 = vxor.u32 %v5679, 2147483648
        %v5704 = vxor.u32 %v5680, 2147483648
        %v5705 = vxor.u32 %v5681, 2147483648
        %v5706 = vxor.u32 %v5682, 2147483648
        %v5707 = vxor.u32 %v5683, 2147483648
        %v5708 = vmul.f32 %v5684, 1.442695
        %v5709 = vpow.pop %v5708
        %v5710 = vmul.f32 %v5685, 1.442695
        %v5711 = vpow.pop %v5710
        %v5712 = vmul.f32 %v5686, 1.442695
        %v5713 = vpow.pop %v5712
        %v5714 = vmul.f32 %v5687, 1.442695
        %v5715 = vpow.pop %v5714
        %v5716 = vmul.f32 %v5688, 1.442695
        %v5717 = vpow.pop %v5716
        %v5718 = vmul.f32 %v5689, 1.442695
        %v5719 = vpow.pop %v5718
        %v5720 = vmul.f32 %v5690, 1.442695
        %v5721 = vpow.pop %v5720
        %v5722 = vmul.f32 %v5691, 1.442695
        %v5723 = vpow.pop %v5722
        %v5724 = vmul.f32 %v5692, 1.442695
        %v5725 = vpow.pop %v5724
        %v5726 = vmul.f32 %v5693, 1.442695
        %v5727 = vpow.pop %v5726
        %v5728 = vmul.f32 %v5694, 1.442695
        %v5729 = vpow.pop %v5728
        %v5730 = vmul.f32 %v5695, 1.442695
        %v5731 = vpow.pop %v5730
        %v5732 = vmul.f32 %v5696, 1.442695
        %v5733 = vpow.pop %v5732
        %v5734 = vmul.f32 %v5697, 1.442695
        %v5735 = vpow.pop %v5734
        %v5736 = vmul.f32 %v5698, 1.442695
        %v5737 = vpow.pop %v5736
        %v5738 = vmul.f32 %v5699, 1.442695
        %v5739 = vpow.pop %v5738
        %v5740 = vmul.f32 %v5700, 1.442695
        %v5741 = vpow.pop %v5740
        %v5742 = vmul.f32 %v5701, 1.442695
        %v5743 = vpow.pop %v5742
        %v5744 = vmul.f32 %v5702, 1.442695
        %v5745 = vpow.pop %v5744
        %v5746 = vmul.f32 %v5703, 1.442695
        %v5747 = vpow.pop %v5746
        %v5748 = vmul.f32 %v5704, 1.442695
        %v5749 = vpow.pop %v5748
        %v5750 = vmul.f32 %v5705, 1.442695
        %v5751 = vpow.pop %v5750
        %v5752 = vmul.f32 %v5706, 1.442695
        %v5753 = vpow.pop %v5752
        %v5754 = vmul.f32 %v5707, 1.442695
        %v5755 = vpow.pop %v5754
        %v5756 = vadd.f32 %v5709, 1.0
        %v5757 = vadd.f32 %v5711, 1.0
        %v5758 = vadd.f32 %v5713, 1.0
        %v5759 = vadd.f32 %v5715, 1.0
        %v5760 = vadd.f32 %v5717, 1.0
        %v5761 = vadd.f32 %v5719, 1.0
        %v5762 = vadd.f32 %v5721, 1.0
        %v5763 = vadd.f32 %v5723, 1.0
        %v5764 = vadd.f32 %v5725, 1.0
        %v5765 = vadd.f32 %v5727, 1.0
        %v5766 = vadd.f32 %v5729, 1.0
        %v5767 = vadd.f32 %v5731, 1.0
        %v5768 = vadd.f32 %v5733, 1.0
        %v5769 = vadd.f32 %v5735, 1.0
        %v5770 = vadd.f32 %v5737, 1.0
        %v5771 = vadd.f32 %v5739, 1.0
        %v5772 = vadd.f32 %v5741, 1.0
        %v5773 = vadd.f32 %v5743, 1.0
        %v5774 = vadd.f32 %v5745, 1.0
        %v5775 = vadd.f32 %v5747, 1.0
        %v5776 = vadd.f32 %v5749, 1.0
        %v5777 = vadd.f32 %v5751, 1.0
        %v5778 = vadd.f32 %v5753, 1.0
        %v5779 = vadd.f32 %v5755, 1.0
        %v5780 = vrcp.pop %v5756
        %v5781 = vmul.f32 1.0, %v5780
        %v5782 = vrcp.pop %v5757
        %v5783 = vmul.f32 1.0, %v5782
        %v5784 = vrcp.pop %v5758
        %v5785 = vmul.f32 1.0, %v5784
        %v5786 = vrcp.pop %v5759
        %v5787 = vmul.f32 1.0, %v5786
        %v5788 = vrcp.pop %v5760
        %v5789 = vmul.f32 1.0, %v5788
        %v5790 = vrcp.pop %v5761
        %v5791 = vmul.f32 1.0, %v5790
        %v5792 = vrcp.pop %v5762
        %v5793 = vmul.f32 1.0, %v5792
        %v5794 = vrcp.pop %v5763
        %v5795 = vmul.f32 1.0, %v5794
        %v5796 = vrcp.pop %v5764
        %v5797 = vmul.f32 1.0, %v5796
        %v5798 = vrcp.pop %v5765
        %v5799 = vmul.f32 1.0, %v5798
        %v5800 = vrcp.pop %v5766
        %v5801 = vmul.f32 1.0, %v5800
        %v5802 = vrcp.pop %v5767
        %v5803 = vmul.f32 1.0, %v5802
        %v5804 = vrcp.pop %v5768
        %v5805 = vmul.f32 1.0, %v5804
        %v5806 = vrcp.pop %v5769
        %v5807 = vmul.f32 1.0, %v5806
        %v5808 = vrcp.pop %v5770
        %v5809 = vmul.f32 1.0, %v5808
        %v5810 = vrcp.pop %v5771
        %v5811 = vmul.f32 1.0, %v5810
        %v5812 = vrcp.pop %v5772
        %v5813 = vmul.f32 1.0, %v5812
        %v5814 = vrcp.pop %v5773
        %v5815 = vmul.f32 1.0, %v5814
        %v5816 = vrcp.pop %v5774
        %v5817 = vmul.f32 1.0, %v5816
        %v5818 = vrcp.pop %v5775
        %v5819 = vmul.f32 1.0, %v5818
        %v5820 = vrcp.pop %v5776
        %v5821 = vmul.f32 1.0, %v5820
        %v5822 = vrcp.pop %v5777
        %v5823 = vmul.f32 1.0, %v5822
        %v5824 = vrcp.pop %v5778
        %v5825 = vmul.f32 1.0, %v5824
        %v5826 = vrcp.pop %v5779
        %v5827 = vmul.f32 1.0, %v5826
        %v5828 = vmul.f32 %v5602, %v5781
        %v5829 = vmul.f32 %v5604, %v5783
        %v5830 = vmul.f32 %v5606, %v5785
        %v5831 = vmul.f32 %v5608, %v5787
        %v5832 = vmul.f32 %v5612, %v5789
        %v5833 = vmul.f32 %v5614, %v5791
        %v5834 = vmul.f32 %v5616, %v5793
        %v5835 = vmul.f32 %v5618, %v5795
        %v5836 = vmul.f32 %v5622, %v5797
        %v5837 = vmul.f32 %v5624, %v5799
        %v5838 = vmul.f32 %v5626, %v5801
        %v5839 = vmul.f32 %v5628, %v5803
        %v5840 = vmul.f32 %v5632, %v5805
        %v5841 = vmul.f32 %v5634, %v5807
        %v5842 = vmul.f32 %v5636, %v5809
        %v5843 = vmul.f32 %v5638, %v5811
        %v5844 = vmul.f32 %v5642, %v5813
        %v5845 = vmul.f32 %v5644, %v5815
        %v5846 = vmul.f32 %v5646, %v5817
        %v5847 = vmul.f32 %v5648, %v5819
        %v5848 = vmul.f32 %v5652, %v5821
        %v5849 = vmul.f32 %v5654, %v5823
        %v5850 = vmul.f32 %v5656, %v5825
        %v5851 = vmul.f32 %v5658, %v5827
        %v5852 = vpack.c.bf16 %v5830, %v5828
        %v5853 = vpack.c.bf16 %v5831, %v5829
        %v5854 = vpack.c.bf16 %v5834, %v5832
        %v5855 = vpack.c.bf16 %v5835, %v5833
        %v5856 = vpack.c.bf16 %v5838, %v5836
        %v5857 = vpack.c.bf16 %v5839, %v5837
        %v5858 = vpack.c.bf16 %v5842, %v5840
        %v5859 = vpack.c.bf16 %v5843, %v5841
        %v5860 = vpack.c.bf16 %v5846, %v5844
        %v5861 = vpack.c.bf16 %v5847, %v5845
        %v5862 = vpack.c.bf16 %v5850, %v5848
        %v5863 = vpack.c.bf16 %v5851, %v5849
        %v5864 = vld [vmem:[%s1097] sm:$0xf]
        %v5865 = vld [vmem:[%s1097 + $0x4] sm:$0xf]
        %v5866 = vld [vmem:[%s1097 + $0x8] sm:$0xf]
        %v5867 = vld [vmem:[%s1097 + $0xc] sm:$0xf]
        %v5868 = vld [vmem:[%s1097 + $0x10] sm:$0xf]
        %v5869 = vld [vmem:[%s1097 + $0x14] sm:$0xf]
        %v5870 = vld [vmem:[%s1097 + $0x18] sm:$0xf]
        %v5871 = vld [vmem:[%s1097 + $0x1c] sm:$0xf]
        %v5872 = vld [vmem:[%s1097 + $0x20] sm:$0xf]
        %v5873 = vld [vmem:[%s1097 + $0x24] sm:$0xf]
        %v5874 = vld [vmem:[%s1097 + $0x28] sm:$0xf]
        %v5875 = vld [vmem:[%s1097 + $0x2c] sm:$0xf]
        %v5876 = vld [vmem:[%s1097 + $0x30] sm:$0xf]
        %v5877 = vld [vmem:[%s1097 + $0x34] sm:$0xf]
        %v5878 = vld [vmem:[%s1097 + $0x38] sm:$0xf]
        %v5879 = vld [vmem:[%s1097 + $0x3c] sm:$0xf]
        %v5880 = vld [vmem:[%s1097 + $0x40] sm:$0xf]
        %v5881 = vld [vmem:[%s1097 + $0x44] sm:$0xf]
        %v5882 = vld [vmem:[%s1097 + $0x48] sm:$0xf]
        %v5883 = vld [vmem:[%s1097 + $0x4c] sm:$0xf]
        %v5884 = vld [vmem:[%s1097 + $0x50] sm:$0xf]
        %v5885 = vld [vmem:[%s1097 + $0x54] sm:$0xf]
        %v5886 = vld [vmem:[%s1097 + $0x58] sm:$0xf]
        %v5887 = vld [vmem:[%s1097 + $0x5c] sm:$0xf]
        %v5888 = vld [vmem:[%s1097 + $0x60] sm:$0xf]
        %v5889 = vld [vmem:[%s1097 + $0x64] sm:$0xf]
        %v5890 = vld [vmem:[%s1097 + $0x68] sm:$0xf]
        %v5891 = vld [vmem:[%s1097 + $0x6c] sm:$0xf]
        %v5892 = vld [vmem:[%s1097 + $0x70] sm:$0xf]
        %v5893 = vld [vmem:[%s1097 + $0x74] sm:$0xf]
        %v5894 = vld [vmem:[%s1097 + $0x78] sm:$0xf]
        %v5895 = vld [vmem:[%s1097 + $0x7c] sm:$0xf]
        %v5896 = vld [vmem:[%s1100] sm:$0x1]
        %v5898 = vlaneseq
        %v5899 = vshrl.u32 %v5898, 7
        %v5900 = vsub.s32 0, %v5899
        %v5901 = vrot.slane %v5896, %v5900
        %v5935 = vunpack.c.l.b16 %v5864
        %v5936 = vunpack.c.l.b16 %v5865
        %v5937 = vunpack.c.l.b16 %v5866
        %v5938 = vunpack.c.l.b16 %v5867
        %v5939 = vunpack.c.l.b16 %v5868
        %v5940 = vunpack.c.l.b16 %v5869
        %v5941 = vunpack.c.l.b16 %v5870
        %v5942 = vunpack.c.l.b16 %v5871
        %v5943 = vunpack.c.l.b16 %v5872
        %v5944 = vunpack.c.l.b16 %v5873
        %v5945 = vunpack.c.l.b16 %v5874
        %v5946 = vunpack.c.l.b16 %v5875
        %v5947 = vunpack.c.l.b16 %v5876
        %v5948 = vunpack.c.l.b16 %v5877
        %v5949 = vunpack.c.l.b16 %v5878
        %v5950 = vunpack.c.l.b16 %v5879
        %v5951 = vunpack.c.l.b16 %v5880
        %v5952 = vunpack.c.l.b16 %v5881
        %v5953 = vunpack.c.l.b16 %v5882
        %v5954 = vunpack.c.l.b16 %v5883
        %v5955 = vunpack.c.l.b16 %v5884
        %v5956 = vunpack.c.l.b16 %v5885
        %v5957 = vunpack.c.l.b16 %v5886
        %v5958 = vunpack.c.l.b16 %v5887
        %v5959 = vunpack.c.l.b16 %v5888
        %v5960 = vunpack.c.l.b16 %v5889
        %v5961 = vunpack.c.l.b16 %v5890
        %v5962 = vunpack.c.l.b16 %v5891
        %v5963 = vunpack.c.l.b16 %v5892
        %v5964 = vunpack.c.l.b16 %v5893
        %v5965 = vunpack.c.l.b16 %v5894
        %v5966 = vunpack.c.l.b16 %v5895
        %v5967 = vpack.c.b16 %v5936, %v5935
        %v5968 = vpack.c.b16 %v5938, %v5937
        %v5969 = vpack.c.b16 %v5940, %v5939
        %v5970 = vpack.c.b16 %v5942, %v5941
        %v5971 = vpack.c.b16 %v5944, %v5943
        %v5972 = vpack.c.b16 %v5946, %v5945
        %v5973 = vpack.c.b16 %v5948, %v5947
        %v5974 = vpack.c.b16 %v5950, %v5949
        %v5975 = vpack.c.b16 %v5952, %v5951
        %v5976 = vpack.c.b16 %v5954, %v5953
        %v5977 = vpack.c.b16 %v5956, %v5955
        %v5978 = vpack.c.b16 %v5958, %v5957
        %v5979 = vpack.c.b16 %v5960, %v5959
        %v5980 = vpack.c.b16 %v5962, %v5961
        %v5981 = vpack.c.b16 %v5964, %v5963
        %v5982 = vpack.c.b16 %v5966, %v5965
        %5999 = vmatprep.subr.bf16.mxu0 0
        %6000 = vmatpush1.bf16.msra.mxu0 %v5967
        %6001 = vmatprep.subr.bf16.mxu0 0
        %6002 = vmatpush1.bf16.msra.mxu0 %v5968
        %6003 = vmatprep.subr.bf16.mxu0 0
        %6004 = vmatpush1.bf16.msra.mxu0 %v5969
        %6005 = vmatprep.subr.bf16.mxu0 0
        %6006 = vmatpush1.bf16.msra.mxu0 %v5970
        %6007 = vmatprep.subr.bf16.mxu0 0
        %6008 = vmatpush1.bf16.msra.mxu0 %v5971
        %6009 = vmatprep.subr.bf16.mxu0 0
        %6010 = vmatpush1.bf16.msra.mxu0 %v5972
        %6011 = vmatprep.subr.bf16.mxu0 0
        %6012 = vmatpush1.bf16.msra.mxu0 %v5973
        %6013 = vmatprep.subr.bf16.mxu0 0
        %6014 = vmatpush1.bf16.msra.mxu0 %v5974
        %6015 = vmatprep.subr.bf16.mxu0 0
        %6016 = vmatpush1.bf16.msra.mxu0 %v5975
        %6017 = vmatprep.subr.bf16.mxu0 0
        %6018 = vmatpush1.bf16.msra.mxu0 %v5976
        %6019 = vmatprep.subr.bf16.mxu0 0
        %6020 = vmatpush1.bf16.msra.mxu0 %v5977
        %6021 = vmatprep.subr.bf16.mxu0 0
        %6022 = vmatpush1.bf16.msra.mxu0 %v5978
        %6023 = vmatprep.subr.bf16.mxu0 0
        %6024 = vmatpush1.bf16.msra.mxu0 %v5979
        %6025 = vmatprep.subr.bf16.mxu0 0
        %6026 = vmatpush1.bf16.msra.mxu0 %v5980
        %6027 = vmatprep.subr.bf16.mxu0 0
        %6028 = vmatpush1.bf16.msra.mxu0 %v5981
        %6029 = vmatprep.subr.bf16.mxu0 0
        %6030 = vmatpush1.bf16.msra.mxu0 %v5982
        %6031 = vmatprep.mubr.bf16.mxu0 %v5853
        %6032 = vmatmul.mubr.bf16.gmra.mrb[0].mxu0 %v5852
        %v6033 = vpop.f32.mrb[0].mxu0
        %v6034 = vadd.f32 %v5901, %v6033
        %v6035 = vpop.f32.mrb[0].mxu0
        %v6036 = vpop.f32.mrb[0].mxu0
        %v6037 = vadd.f32 %v5901, %v6036
        %v6038 = vpop.f32.mrb[0].mxu0
        %6039 = vmatprep.mubr.bf16.mxu0 %v5855
        %6040 = vmatmul.mubr.bf16.gmra.mrb[0].mxu0 %v5854
        %v6041 = vpop.f32.mrb[0].mxu0
        %v6042 = vadd.f32 %v5901, %v6041
        %v6043 = vpop.f32.mrb[0].mxu0
        %v6044 = vpop.f32.mrb[0].mxu0
        %v6045 = vadd.f32 %v5901, %v6044
        %v6046 = vpop.f32.mrb[0].mxu0
        %6047 = vmatprep.mubr.bf16.mxu0 %v5857
        %6048 = vmatmul.mubr.bf16.gmra.mrb[0].mxu0 %v5856
        %v6049 = vpop.f32.mrb[0].mxu0
        %v6050 = vadd.f32 %v5901, %v6049
        %v6051 = vpop.f32.mrb[0].mxu0
        %v6052 = vpop.f32.mrb[0].mxu0
        %v6053 = vadd.f32 %v5901, %v6052
        %v6054 = vpop.f32.mrb[0].mxu0
        %6055 = vmatprep.mubr.bf16.mxu0 %v5859
        %6056 = vmatmul.mubr.bf16.gmra.mrb[0].mxu0 %v5858
        %v6057 = vpop.f32.mrb[0].mxu0
        %v6058 = vadd.f32 %v5901, %v6057
        %v6059 = vpop.f32.mrb[0].mxu0
        %v6060 = vpop.f32.mrb[0].mxu0
        %v6061 = vadd.f32 %v5901, %v6060
        %v6062 = vpop.f32.mrb[0].mxu0
        %6063 = vmatprep.mubr.bf16.mxu0 %v5861
        %6064 = vmatmul.mubr.bf16.gmra.mrb[0].mxu0 %v5860
        %v6065 = vpop.f32.mrb[0].mxu0
        %v6066 = vadd.f32 %v5901, %v6065
        %v6067 = vpop.f32.mrb[0].mxu0
        %v6068 = vpop.f32.mrb[0].mxu0
        %v6069 = vadd.f32 %v5901, %v6068
        %v6070 = vpop.f32.mrb[0].mxu0
        %6071 = vmatprep.mubr.bf16.mxu0 %v5863
        %6072 = vmatmul.mubr.bf16.gmra.mrb[0].mxu0 %v5862
        %v6073 = vpop.f32.mrb[0].mxu0
        %v6074 = vadd.f32 %v5901, %v6073
        %v6075 = vpop.f32.mrb[0].mxu0
        %v6076 = vpop.f32.mrb[0].mxu0
        %v6077 = vadd.f32 %v5901, %v6076
        %v6078 = vpop.f32.mrb[0].mxu0
        %6079 = vdwg.mxu0
        %v6080 = vadd.f32 %v5277, %v6034
        %v6081 = vadd.f32 %v5278, %v6037
        %v6082 = vadd.f32 %v5279, %v6042
        %v6083 = vadd.f32 %v5280, %v6045
        %v6084 = vadd.f32 %v5281, %v6050
        %v6085 = vadd.f32 %v5282, %v6053
        %v6086 = vadd.f32 %v5283, %v6058
        %v6087 = vadd.f32 %v5284, %v6061
        %v6088 = vadd.f32 %v5285, %v6066
        %v6089 = vadd.f32 %v5286, %v6069
        %v6090 = vadd.f32 %v5287, %v6074
        %v6091 = vadd.f32 %v5288, %v6077
        %6092 = vst.msk [vmem:[#allocation2] sm:$0xff] %vm1613, %v6080
        %6093 = vst.msk [vmem:[#allocation2 + $0x8] sm:$0xff] %vm1613, %v6081
        %6094 = vst.msk [vmem:[#allocation2 + $0x10] sm:$0xff] %vm1613, %v6082
        %6095 = vst.msk [vmem:[#allocation2 + $0x18] sm:$0xff] %vm1613, %v6083
        %6096 = vst.msk [vmem:[#allocation2 + $0x20] sm:$0xff] %vm1613, %v6084
        %6097 = vst.msk [vmem:[#allocation2 + $0x28] sm:$0xff] %vm1613, %v6085
        %6098 = vst.msk [vmem:[#allocation2 + $0x30] sm:$0xff] %vm1613, %v6086
        %6099 = vst.msk [vmem:[#allocation2 + $0x38] sm:$0xff] %vm1613, %v6087
        %6100 = vst.msk [vmem:[#allocation2 + $0x40] sm:$0xff] %vm1613, %v6088
        %6101 = vst.msk [vmem:[#allocation2 + $0x48] sm:$0xff] %vm1613, %v6089
        %6102 = vst.msk [vmem:[#allocation2 + $0x50] sm:$0xff] %vm1613, %v6090
        %6103 = vst.msk [vmem:[#allocation2 + $0x58] sm:$0xff] %vm1613, %v6091
        %p6104 = scmp.eq.s32.totalorder %s46, 1
        // Predicated region
        $region133: #{_lambda_.1} parent=127 // pred_check
          %p6105 = pneg %p6104
        $region134: #{_lambda_.1} parent=127 // pred_check_branch
          %6107 = sbr.rel (%p6105) target = $region136
        $region135: #{_lambda_.1} parent=127 // pred_region
          %v6108 = vld [vmem:[%s3] sm:$0x3]
          %v6109 = vpack.c.bf16 %v6081, %v6080
          %v6110 = vpack.c.bf16 %v6083, %v6082
          %v6111 = vpack.c.bf16 %v6085, %v6084
          %v6112 = vpack.c.bf16 %v6087, %v6086
          %v6113 = vpack.c.bf16 %v6089, %v6088
          %v6114 = vpack.c.bf16 %v6091, %v6090
          %v6116 = vsel %vm2321, %v6108, 0
          %6118 = vmatprep.subr.bf16.mxu0 0
          %6119 = vmatpush1.bf16.msra.mxu0 %v6109
          %6120 = vmatprep.subr.bf16.mxu0 0
          %6121 = vmatpush1.bf16.msra.mxu0 %v6110
          %6122 = vmatprep.subr.bf16.mxu0 0
          %6123 = vmatpush1.bf16.msra.mxu0 %v6111
          %6124 = vmatprep.subr.bf16.mxu0 0
          %6125 = vmatpush1.bf16.msra.mxu0 %v6112
          %6126 = vmatprep.subr.bf16.mxu0 0
          %6127 = vmatpush1.bf16.msra.mxu0 %v6113
          %6128 = vmatprep.subr.bf16.mxu0 0
          %6129 = vmatpush1.bf16.msra.mxu0 %v6114
          %6130 = vmatprep.subr.bf16.mxu0 0
          %6131 = vmatpush1.bf16.msra.mxu0 0
          %6132 = vmatprep.subr.bf16.mxu0 0
          %6133 = vmatpush1.bf16.msra.mxu0 0
          %6134 = vmatprep.subr.bf16.mxu0 0
          %6135 = vmatpush1.bf16.msra.mxu0 0
          %6136 = vmatprep.subr.bf16.mxu0 0
          %6137 = vmatpush1.bf16.msra.mxu0 0
          %6138 = vmatprep.subr.bf16.mxu0 0
          %6139 = vmatpush1.bf16.msra.mxu0 0
          %6140 = vmatprep.subr.bf16.mxu0 0
          %6141 = vmatpush1.bf16.msra.mxu0 0
          %6142 = vmatprep.subr.bf16.mxu0 0
          %6143 = vmatpush1.bf16.msra.mxu0 0
          %6144 = vmatprep.subr.bf16.mxu0 0
          %6145 = vmatpush1.bf16.msra.mxu0 0
          %6146 = vmatprep.subr.bf16.mxu0 0
          %6147 = vmatpush1.bf16.msra.mxu0 0
          %6148 = vmatprep.subr.bf16.mxu0 0
          %6149 = vmatpush1.bf16.msra.mxu0 0
          %6150 = vmatprep.mubr.bf16.mxu0 0
          %6151 = vmatmul.mubr.bf16.gmra.mrb[0].mxu0 %v6116
          %v6152 = vpop.f32.mrb[0].mxu0
          %v6153 = vadd.f32 0.0, %v6152
          %v6154 = vpop.f32.mrb[0].mxu0
          %v6155 = vpop.f32.mrb[0].mxu0
          %v6156 = vpop.f32.mrb[0].mxu0
          %6157 = vdwg.mxu0
          %v6158 = vld [vmem:[%s23] sm:$0x1]
          %v6159 = vld [vmem:[%s24] sm:$0x1]
          %vm6160 = vcmask 519168
          %v6161 = vsel %vm6160, %v6153, 0.0
          %6162 = vadd.xlane.f32.xlu0 %v6161
          %v6163 = vpop.xlane.xlu0 %6162
          %v6164 = vmul.f32 %v6163, %v1650
          %v6165 = vsub.f32 %v6153, %v6164
          %v6166 = vmul.f32 %v6165, %v6165
          %v6167 = vsel %vm6160, %v6166, 0.0
          %6168 = vadd.xlane.f32.xlu0 %v6167
          %v6169 = vpop.xlane.xlu0 %6168
          %v6170 = vmul.f32 %v6169, %v1650
          %v6171 = vadd.f32 %v6170, 1e-05
          %v6172 = vrsqrt.pop %v6171
          %v6173 = vmul.f32 %v6165, %v6172
          %v6175 = vlaneseq
          %v6176 = vshrl.u32 %v6175, 7
          %v6177 = vsub.s32 0, %v6176
          %v6178 = vrot.slane %v6158, %v6177
          %v6180 = vmul.f32 %v6173, %v6178
          %v6182 = vlaneseq
          %v6183 = vshrl.u32 %v6182, 7
          %v6184 = vsub.s32 0, %v6183
          %v6185 = vrot.slane %v6159, %v6184
          %v6187 = vadd.f32 %v6180, %v6185
          %v6188 = vpack.c.bf16 %v6187, %v6187
          %v6189 = vld [vmem:[%s25] sm:$0xf]
          %v6190 = vld [vmem:[%s25 + $0x4] sm:$0xf]
          %v6191 = vld [vmem:[%s25 + $0x8] sm:$0xf]
          %v6192 = vld [vmem:[%s25 + $0xc] sm:$0xf]
          %v6193 = vld [vmem:[%s25 + $0x10] sm:$0xf]
          %v6194 = vld [vmem:[%s25 + $0x14] sm:$0xf]
          %v6195 = vld [vmem:[%s25 + $0x18] sm:$0xf]
          %v6196 = vld [vmem:[%s25 + $0x1c] sm:$0xf]
          %v6197 = vld [vmem:[%s26] sm:$0x1]
          %v6199 = vlaneseq
          %v6200 = vshrl.u32 %v6199, 7
          %v6201 = vsub.s32 0, %v6200
          %v6202 = vrot.slane %v6197, %v6201
          %v6212 = vunpack.c.l.b16 %v6189
          %v6213 = vunpack.c.l.b16 %v6190
          %v6214 = vunpack.c.l.b16 %v6191
          %v6215 = vunpack.c.l.b16 %v6192
          %v6216 = vunpack.c.l.b16 %v6193
          %v6217 = vunpack.c.l.b16 %v6194
          %v6218 = vunpack.c.l.b16 %v6195
          %v6219 = vunpack.c.l.b16 %v6196
          %v6220 = vpack.c.b16 %v6213, %v6212
          %v6221 = vpack.c.b16 %v6215, %v6214
          %v6222 = vpack.c.b16 %v6217, %v6216
          %v6223 = vpack.c.b16 %v6219, %v6218
          %v6229 = vsel %vm1613, %v6188, 0
          %6231 = vmatprep.subr.bf16.mxu0 0
          %6232 = vmatpush1.bf16.msra.mxu0 %v6220
          %6233 = vmatprep.subr.bf16.mxu0 0
          %6234 = vmatpush1.bf16.msra.mxu0 %v6221
          %6235 = vmatprep.subr.bf16.mxu0 0
          %6236 = vmatpush1.bf16.msra.mxu0 %v6222
          %6237 = vmatprep.subr.bf16.mxu0 0
          %6238 = vmatpush1.bf16.msra.mxu0 %v6223
          %6239 = vmatprep.subr.bf16.mxu0 0
          %6240 = vmatpush1.bf16.msra.mxu0 0
          %6241 = vmatprep.subr.bf16.mxu0 0
          %6242 = vmatpush1.bf16.msra.mxu0 0
          %6243 = vmatprep.subr.bf16.mxu0 0
          %6244 = vmatpush1.bf16.msra.mxu0 0
          %6245 = vmatprep.subr.bf16.mxu0 0
          %6246 = vmatpush1.bf16.msra.mxu0 0
          %6247 = vmatprep.subr.bf16.mxu0 0
          %6248 = vmatpush1.bf16.msra.mxu0 0
          %6249 = vmatprep.subr.bf16.mxu0 0
          %6250 = vmatpush1.bf16.msra.mxu0 0
          %6251 = vmatprep.subr.bf16.mxu0 0
          %6252 = vmatpush1.bf16.msra.mxu0 0
          %6253 = vmatprep.subr.bf16.mxu0 0
          %6254 = vmatpush1.bf16.msra.mxu0 0
          %6255 = vmatprep.subr.bf16.mxu0 0
          %6256 = vmatpush1.bf16.msra.mxu0 0
          %6257 = vmatprep.subr.bf16.mxu0 0
          %6258 = vmatpush1.bf16.msra.mxu0 0
          %6259 = vmatprep.subr.bf16.mxu0 0
          %6260 = vmatpush1.bf16.msra.mxu0 0
          %6261 = vmatprep.subr.bf16.mxu0 0
          %6262 = vmatpush1.bf16.msra.mxu0 0
          %6263 = vmatprep.mubr.bf16.mxu0 0
          %6264 = vmatmul.mubr.bf16.gmra.mrb[0].mxu0 %v6229
          %v6265 = vpop.f32.mrb[0].mxu0
          %v6266 = vadd.f32 %v6202, %v6265
          %v6267 = vpop.f32.mrb[0].mxu0
          %v6268 = vpop.f32.mrb[0].mxu0
          %v6269 = vpop.f32.mrb[0].mxu0
          %6270 = vdwg.mxu0
          %vm6271 = vcmask 125952
          %6272 = vst.msk [vmem:[%s1031] sm:$0xf] %vm6271, %v6266
        $region136: #{_lambda_.1} parent=127 // pred_fallthru
          _
        %s6273 = sand.u32 %s713, 1
        %s6274 = scalar_lea.sflag [#allocation4], %s6273
        %s6275 = sand.u32 %s713, 1
        %s6276 = smul.addr %s6275, 4
        %s6277 = scalar_lea.vmem [#allocation3], %s6276
        // Predicated region
        $region137: #{_lambda_.1} parent=127 // pred_check
          %p6278 = pneg %p723
        $region138: #{_lambda_.1} parent=127 // pred_check_branch
          %6280 = sbr.rel (%p6278) target = $region140
        $region139: #{_lambda_.1} parent=127 // pred_region
          %s6282 = ssub.s32 64, 64
          %6283 = vsyncadd %s6274, %s6282
          %s6284 = smul.addr %s45, 64
          %s6285 = scalar_lea.hbm %s27, %s6284
          %s6287 = sshll.u32 %s6277, 4
          %s6288 = int_to_ptr.vmem [resolvable:$true] %s6287
          %6290 = dma.vmem_to_hbm [thread:$0]  %s6288, 64, %s6285, %s6274
        $region140: #{_lambda_.1} parent=127 // pred_fallthru
          _
      $region128: #{_lambda_.1} parent=5 // pred_fallthru
        _
      %p6291 = scmp.le.s32.totalorder 2, %s36
      // Predicated region
      $region141: #{_lambda_.1} parent=5 // pred_check
        %p6292 = pneg %p6291
      $region142: #{_lambda_.1} parent=5 // pred_check_branch
        %6294 = sbr.rel (%p6292) target = $region144
      $region143: #{_lambda_.1} parent=5 // pred_region
        %s6295 = ssub.s32 %s36, 2
        // Predicated region
        $region145: #{_lambda_.1} parent=143 // pred_check
          %p6296 = pneg %p729
        $region146: #{_lambda_.1} parent=143 // pred_check_branch
          %6298 = sbr.rel (%p6296) target = $region148
        $region147: #{_lambda_.1} parent=143 // pred_region
          %s6299 = sand.u32 %s714, 1
          %s6300 = scalar_lea.sflag [#allocation4], %s6299
          %s6301 = sand.u32 %s714, 1
          %s6302 = smul.addr %s6301, 4
          %s6303 = scalar_lea.vmem [#allocation3], %s6302
          %6304 = dma.done %s6300, 64
        $region148: #{_lambda_.1} parent=143 // pred_fallthru
          _
      $region144: #{_lambda_.1} parent=5 // pred_fallthru
        _
    $region6: #{_lambda_.1} parent=1 // loop_footer
      %s40 = sadd.s32 1, %s36
    $region7: #{_lambda_.1} parent=1 // loop_footer_branch
      %35 = sbr.rel target = $region3
    $region8: #{_lambda_.1} parent=1 // loop_exit
      _
    %6305 = vsyncpa [#allocation4], 1
    %s6306 = scalar_lea.sflag [#allocation4], 1
    %6307 = vsyncpa %s6306, 1

</llo_original>
